<compile_context>
chip_gen: v7x
topology: tpu7x:2x2x1
jax: 0.10.0
libtpu: 0.0.40
codegen_flags: <defaults>
</compile_context>

<pallas_src>
import functools

import jax
import jax.numpy as jnp
import numpy as np
from jax.experimental import pallas as pl
from jax.experimental.pallas import tpu as pltpu

BN_EPS = 1e-5
VMEM_LIMIT = 32 * 1024 * 1024


# ---------------------------------------------------------------------------
# Pallas kernels
# ---------------------------------------------------------------------------
def _matmul_bias_relu_kernel(a_ref, w_ref, b_ref, o_ref):
    """Single-K-block matmul with fused (BN-folded) bias + ReLU."""
    y = jnp.dot(a_ref[...], w_ref[...], preferred_element_type=jnp.float32)
    y = y + b_ref[...]                       # (tm, N) + (1, N)
    o_ref[...] = jnp.maximum(y, 0.0).astype(o_ref.dtype)


def _fc_fused_kernel(x_ref, w1_ref, b1_ref, w2_ref, b2_ref, o_ref, acc_ref):
    """Fused fc1 + ReLU + (dropout identity) + fc2.  grid = (K // tk,)."""
    k = pl.program_id(0)

    @pl.when(k == 0)
    def _():
        acc_ref[...] = jnp.zeros_like(acc_ref)

    acc_ref[...] += jnp.dot(x_ref[...], w1_ref[...],
                            preferred_element_type=jnp.float32)

    @pl.when(k == pl.num_programs(0) - 1)
    def _():
        h = jnp.maximum(acc_ref[...] + b1_ref[...], 0.0)      # fc1 + ReLU
        # dropout(0.5) -> identity (eval mode)
        o = jnp.dot(h, w2_ref[...], preferred_element_type=jnp.float32)
        o_ref[...] = (o + b2_ref[...]).astype(o_ref.dtype)    # fc2 + bias


def _max4_kernel(a_ref, b_ref, c_ref, d_ref, o_ref):
    """Element-wise max of the four 2x2-window corners (lane-dense blocks)."""
    o_ref[...] = jnp.maximum(jnp.maximum(a_ref[...], b_ref[...]),
                             jnp.maximum(c_ref[...], d_ref[...]))


# ---------------------------------------------------------------------------
# Pallas wrappers
# ---------------------------------------------------------------------------
def _pick_tile(dim, candidates=(1024, 768, 512, 384, 256, 128, 64, 32, 16, 8)):
    for c in candidates:
        if c <= dim and dim % c == 0:
            return c
    return dim  # full dimension (always legal as a block size)


def matmul_bias_relu(a, w, bias):
    """relu(a @ w + bias).  a: (M, K), w: (K, N), bias: (N,).

    K and N are single full-dimension blocks (no zero padding, no accumulator
    loop); only M is tiled, and the M axis is 'parallel' for megacore.
    """
    M, K = a.shape
    K2, N = w.shape
    assert K == K2
    tm = _pick_tile(M)
    return pl.pallas_call(
        _matmul_bias_relu_kernel,
        out_shape=jax.ShapeDtypeStruct((M, N), jnp.float32),
        grid_spec=pltpu.PrefetchScalarGridSpec(
            num_scalar_prefetch=0,
            grid=(M // tm,),
            in_specs=[
                pl.BlockSpec((tm, K), lambda i: (i, 0)),
                pl.BlockSpec((K, N), lambda i: (0, 0)),
                pl.BlockSpec((1, N), lambda i: (0, 0)),
            ],
            out_specs=pl.BlockSpec((tm, N), lambda i: (i, 0)),
        ),
        compiler_params=pltpu.CompilerParams(
            dimension_semantics=("parallel",),
            vmem_limit_bytes=VMEM_LIMIT),
    )(a, w, bias.reshape(1, N))


def conv3x3_bn_relu(x_nhwc, wmat, bias):
    """3x3 conv (pad=1, stride=1) with folded-BN bias + ReLU via im2col+matmul.

    x_nhwc: (B, H, W, Cin); wmat: (9*Cin, Cout) in (kh, kw, cin) row order.
    """
    B, H, W, Cin = x_nhwc.shape
    Cout = wmat.shape[1]
    xp = jnp.pad(x_nhwc, ((0, 0), (1, 1), (1, 1), (0, 0)))
    patches = [xp[:, kh:kh + H, kw:kw + W, :]
               for kh in range(3) for kw in range(3)]
    pat = jnp.concatenate(patches, axis=-1).reshape(B * H * W, 9 * Cin)
    out = matmul_bias_relu(pat, wmat, bias)
    return out.reshape(B, H, W, Cout)


def maxpool2x2(y_nhwc):
    """2x2 stride-2 max pool.  Corner views are reshaped to (B, Hh, Wh*C) so
    the kernel works on lane-dense (>=1536-lane) blocks (unmasked vst)."""
    B, H, W, C = y_nhwc.shape
    Hh, Wh = H // 2, W // 2
    corners = [y_nhwc[:, i::2, j::2, :].reshape(B, Hh, Wh * C)
               for i in (0, 1) for j in (0, 1)]
    spec = pl.BlockSpec((1, Hh, Wh * C), lambda b: (b, 0, 0))
    out = pl.pallas_call(
        _max4_kernel,
        out_shape=jax.ShapeDtypeStruct((B, Hh, Wh * C), jnp.float32),
        grid_spec=pltpu.PrefetchScalarGridSpec(
            num_scalar_prefetch=0,
            grid=(B,),
            in_specs=[spec, spec, spec, spec],
            out_specs=spec,
        ),
        compiler_params=pltpu.CompilerParams(
            dimension_semantics=("parallel",),
            vmem_limit_bytes=VMEM_LIMIT),
    )(*corners)
    return out.reshape(B, Hh, Wh, C)


def fc_fused(x, w1, b1, w2, b2, *, tk=2304):
    """out = (relu(x @ w1 + b1)) @ w2 + b2 in a single Pallas kernel.

    x: (B, K) with K = 128*12*12; w1: (K, 256); w2: (256, 8).
    M = B (no padding to 128), N = 256 full block, K tiled at `tk`.
    """
    B, K = x.shape
    K2, Hd = w1.shape
    Hd2, N = w2.shape
    assert K == K2 and Hd == Hd2
    if K % tk != 0:
        tk = _pick_tile(K, (2304, 2048, 1536, 1024, 512, 256, 128))
    return pl.pallas_call(
        _fc_fused_kernel,
        out_shape=jax.ShapeDtypeStruct((B, N), jnp.float32),
        grid_spec=pltpu.PrefetchScalarGridSpec(
            num_scalar_prefetch=0,
            grid=(K // tk,),
            in_specs=[
                pl.BlockSpec((B, tk), lambda k: (0, k)),
                pl.BlockSpec((tk, Hd), lambda k: (k, 0)),
                pl.BlockSpec((1, Hd), lambda k: (0, 0)),
                pl.BlockSpec((Hd, N), lambda k: (0, 0)),
                pl.BlockSpec((1, N), lambda k: (0, 0)),
            ],
            out_specs=pl.BlockSpec((B, N), lambda k: (0, 0)),
            scratch_shapes=[pltpu.VMEM((B, Hd), jnp.float32)],
        ),
        compiler_params=pltpu.CompilerParams(
            dimension_semantics=("arbitrary",),
            vmem_limit_bytes=VMEM_LIMIT),
    )(x, w1, b1.reshape(1, Hd), w2, b2.reshape(1, N))


# ---------------------------------------------------------------------------
# Forward pass (Pallas path)
# ---------------------------------------------------------------------------
def feature_extractor_forward(prep, x_nchw):
    # NCHW (PyTorch) -> NHWC for the conv path
    x = jnp.transpose(x_nchw, (0, 2, 3, 1)).astype(jnp.float32)

    x = maxpool2x2(conv3x3_bn_relu(x, prep["w1"], prep["b1"]))   # (B,48,48,32)
    x = maxpool2x2(conv3x3_bn_relu(x, prep["w2"], prep["b2"]))   # (B,24,24,64)
    x = maxpool2x2(conv3x3_bn_relu(x, prep["w3"], prep["b3"]))   # (B,12,12,128)

    B = x.shape[0]
    # NHWC flatten; fc1 weight rows were permuted at setup to match this order
    xf = x.reshape(B, -1)                                        # (B, 18432)
    return fc_fused(xf, prep["fc1_w"], prep["fc1_b"],
                    prep["fc2_w"], prep["fc2_b"])                # (B, 8)


# ---------------------------------------------------------------------------
# One-time parameter preparation (outside jit): BN folding + weight re-layout
# ---------------------------------------------------------------------------
def _fold_bn(w_oihw, b_o, bn):
    scale = bn["gamma"] / jnp.sqrt(bn["var"] + BN_EPS)
    w_f = w_oihw * scale[:, None, None, None]
    b_f = (b_o - bn["mean"]) * scale + bn["beta"]
    return w_f, b_f


def prepare_params(p):
    prep = {}
    for i in (1, 2, 3):
        w_f, b_f = _fold_bn(p[f"conv{i}_w"], p[f"conv{i}_b"], p[f"bn{i}"])
        cout, cin = w_f.shape[0], w_f.shape[1]
        # (Cout,Cin,3,3) -> rows ordered (kh, kw, cin), columns = cout
        prep[f"w{i}"] = jnp.transpose(w_f, (2, 3, 1, 0)).reshape(9 * cin, cout)
        prep[f"b{i}"] = b_f
    # fc1: PyTorch flattens NCHW => columns in (c,h,w) order on a 128x12x12
    # map; our activations flatten NHWC => permute rows once to (h,w,c) order.
    w1 = p["fc1_w"].reshape(256, 128, 12, 12)
    prep["fc1_w"] = jnp.transpose(w1, (2, 3, 1, 0)).reshape(128 * 12 * 12, 256)
    prep["fc1_b"] = p["fc1_b"]
    prep["fc2_w"] = p["fc2_w"].T                                  # (256, 8)
    prep["fc2_b"] = p["fc2_b"]
    return prep


# ---------------------------------------------------------------------------
# Pure-JAX reference with PyTorch-layout params (explicit, un-folded BN)
# ---------------------------------------------------------------------------
def reference_forward(params, x_nchw):
    dn = ("NCHW", "OIHW", "NCHW")
    hp = jax.lax.Precision.HIGHEST

    def conv_bn_relu(x, w, b, bn):
        y = jax.lax.conv_general_dilated(
            x, w, (1, 1), ((1, 1), (1, 1)), dimension_numbers=dn, precision=hp)
        y = y + b[None, :, None, None]
        inv = (bn["gamma"] / jnp.sqrt(bn["var"] + BN_EPS))[None, :, None, None]
        y = (y - bn["mean"][None, :, None, None]) * inv \
            + bn["beta"][None, :, None, None]
        return jax.nn.relu(y)

    def pool(x):
        return jax.lax.reduce_window(x, -jnp.inf, jax.lax.max,
                                     (1, 1, 2, 2), (1, 1, 2, 2), "VALID")

    x = pool(conv_bn_relu(x_nchw, params["conv1_w"], params["conv1_b"], params["bn1"]))
    x = pool(conv_bn_relu(x, params["conv2_w"], params["conv2_b"], params["bn2"]))
    x = pool(conv_bn_relu(x, params["conv3_w"], params["conv3_b"], params["bn3"]))
    x = x.reshape(x.shape[0], -1)
    x = jax.nn.relu(jnp.dot(x, params["fc1_w"].T, precision=hp) + params["fc1_b"])
    return jnp.dot(x, params["fc2_w"].T, precision=hp) + params["fc2_b"]


# ---------------------------------------------------------------------------
# Deterministic parameter init (PyTorch layout / shapes from __init__)
# ---------------------------------------------------------------------------
def init_params(key):
    ks = jax.random.split(key, 16)

    def w(k, shape, fan_in):
        return jax.random.normal(k, shape, jnp.float32) * np.sqrt(2.0 / fan_in)

    def b(k, n):
        return jax.random.normal(k, (n,), jnp.float32) * 0.01

    def bn(k, n):
        k1, k2, k3, k4 = jax.random.split(k, 4)
        return {
            "gamma": 1.0 + 0.1 * jax.random.normal(k1, (n,), jnp.float32),
            "beta": 0.1 * jax.random.normal(k2, (n,), jnp.float32),
            "mean": 0.1 * jax.random.normal(k3, (n,), jnp.float32),
            "var": jnp.abs(1.0 + 0.1 * jax.random.normal(k4, (n,), jnp.float32)),
        }

    return {
        "conv1_w": w(ks[0], (32, 3, 3, 3), 27),     "conv1_b": b(ks[1], 32),
        "bn1": bn(ks[2], 32),
        "conv2_w": w(ks[3], (64, 32, 3, 3), 288),   "conv2_b": b(ks[4], 64),
        "bn2": bn(ks[5], 64),
        "conv3_w": w(ks[6], (128, 64, 3, 3), 576),  "conv3_b": b(ks[7], 128),
        "bn3": bn(ks[8], 128),
        "fc1_w": w(ks[9], (256, 128 * 12 * 12), 128 * 12 * 12),
        "fc1_b": b(ks[10], 256),
        "fc2_w": w(ks[11], (8, 256), 256),          "fc2_b": b(ks[12], 8),
    }


# ---------------------------------------------------------------------------
if __name__ == "__main__":
    B = 2  # fc1 size 128*12*12 implies 96x96 inputs

    params = init_params(jax.random.PRNGKey(42))
    x = jax.random.normal(jax.random.PRNGKey(0), (B, 3, 96, 96), jnp.float32)

    prep = prepare_params(params)          # one-time BN fold + weight re-layout
    fwd = jax.jit(feature_extractor_forward)

    out = fwd(prep, x)
    jax.block_until_ready(out)
    assert out.shape == (B, 8)

    # Numerical check against a HIGHEST-precision pure-JAX reference.
    # Tolerance 0.08 (vs 0.25 before): covers worst-case single-pass-bf16 MXU
    # rounding of the f32 dots on the K=18432 fc1 reduction (~2e-2 expected).
    ref = reference_forward(params, x)
    err = float(jnp.max(jnp.abs(out - ref)))
    assert err < 8e-2, f"max abs err {err}"

    print("KERNEL_OK")
</pallas_src>

<mosaic_0001>
module attributes {stable_mosaic.version = 11 : i64} {
  func.func @_matmul_bias_relu_kernel(%arg0: i32, %arg1: memref<1024x27xf32, #tpu.memory_space<vmem>>, %arg2: memref<27x32xf32, #tpu.memory_space<vmem>>, %arg3: memref<1x32xf32, #tpu.memory_space<vmem>>, %arg4: memref<1024x32xf32, #tpu.memory_space<vmem>>) attributes {dimension_semantics = [#tpu.dimension_semantics<parallel>], iteration_bounds = array<i64: 18>, scalar_prefetch = 0 : i64, scratch_operands = 0 : i64, tpu.core_type = #tpu.core_type<tc>, window_params = [{transform_indices = @transform_0, window_bounds = array<i64: 1024, 27>}, {pipeline_mode = #tpu.pipeline_mode<synchronous>, transform_indices = @transform_1, window_bounds = array<i64: 27, 32>}, {pipeline_mode = #tpu.pipeline_mode<synchronous>, transform_indices = @transform_2, window_bounds = array<i64: 1, 32>}, {transform_indices = @transform_3, window_bounds = array<i64: 1024, 32>}]} {
    %c0 = arith.constant 0 : index
    %c0_0 = arith.constant 0 : index
    %0 = vector.load %arg1[%c0, %c0_0] : memref<1024x27xf32, #tpu.memory_space<vmem>>, vector<1024x27xf32>
    %c0_1 = arith.constant 0 : index
    %c0_2 = arith.constant 0 : index
    %1 = vector.load %arg2[%c0_1, %c0_2] : memref<27x32xf32, #tpu.memory_space<vmem>>, vector<27x32xf32>
    %cst = arith.constant dense<0.000000e+00> : vector<1024x32xf32>
    %2 = tpu.matmul %0, %1, %cst {dimension_numbers = #tpu.dot_dimension_numbers<[1], [0], [0], [1], [0, 0, 1, 1], [], []>} : vector<1024x27xf32>, vector<27x32xf32>, vector<1024x32xf32> -> vector<1024x32xf32>
    %c0_3 = arith.constant 0 : index
    %c0_4 = arith.constant 0 : index
    %3 = vector.load %arg3[%c0_3, %c0_4] : memref<1x32xf32, #tpu.memory_space<vmem>>, vector<1x32xf32>
    %4 = vector.broadcast %3 : vector<1x32xf32> to vector<1024x32xf32>
    %5 = arith.addf %2, %4 : vector<1024x32xf32>
    %cst_5 = arith.constant 0.000000e+00 : f32
    %6 = vector.broadcast %cst_5 : f32 to vector<1024x32xf32>
    %7 = arith.maximumf %5, %6 : vector<1024x32xf32>
    %c0_6 = arith.constant 0 : index
    %c0_7 = arith.constant 0 : index
    %8 = vector.load %arg4[%c0_6, %c0_7] : memref<1024x32xf32, #tpu.memory_space<vmem>>, vector<1024x32xf32>
    tpu.vector_store %arg4[%c0_6, %c0_7], %7 {strides = array<i32>} : memref<1024x32xf32, #tpu.memory_space<vmem>>, vector<1024x32xf32>,
    return
  }
  func.func @transform_0(%arg0: i32) -> (i32, i32) {
    %c0_i32 = arith.constant 0 : i32
    %c0_i32_0 = arith.constant 0 : i32
    return %arg0, %c0_i32 : i32, i32
  }
  func.func @transform_1(%arg0: i32) -> (i32, i32) {
    %c0_i32 = arith.constant 0 : i32
    %c0_i32_0 = arith.constant 0 : i32
    %c0_i32_1 = arith.constant 0 : i32
    return %c0_i32, %c0_i32_0 : i32, i32
  }
  func.func @transform_2(%arg0: i32) -> (i32, i32) {
    %c0_i32 = arith.constant 0 : i32
    %c0_i32_0 = arith.constant 0 : i32
    %c0_i32_1 = arith.constant 0 : i32
    return %c0_i32, %c0_i32_0 : i32, i32
  }
  func.func @transform_3(%arg0: i32) -> (i32, i32) {
    %c0_i32 = arith.constant 0 : i32
    %c0_i32_0 = arith.constant 0 : i32
    return %arg0, %c0_i32 : i32, i32
  }
}

module attributes {stable_mosaic.version = 11 : i64} {
  func.func @_max4_kernel(%arg0: i32, %arg1: memref<1x48x1536xf32, #tpu.memory_space<vmem>>, %arg2: memref<1x48x1536xf32, #tpu.memory_space<vmem>>, %arg3: memref<1x48x1536xf32, #tpu.memory_space<vmem>>, %arg4: memref<1x48x1536xf32, #tpu.memory_space<vmem>>, %arg5: memref<1x48x1536xf32, #tpu.memory_space<vmem>>) attributes {dimension_semantics = [#tpu.dimension_semantics<parallel>], iteration_bounds = array<i64: 2>, scalar_prefetch = 0 : i64, scratch_operands = 0 : i64, tpu.core_type = #tpu.core_type<tc>, window_params = [{transform_indices = @transform_0, window_bounds = array<i64: 1, 48, 1536>}, {transform_indices = @transform_1, window_bounds = array<i64: 1, 48, 1536>}, {transform_indices = @transform_2, window_bounds = array<i64: 1, 48, 1536>}, {transform_indices = @transform_3, window_bounds = array<i64: 1, 48, 1536>}, {transform_indices = @transform_4, window_bounds = array<i64: 1, 48, 1536>}]} {
    %c0 = arith.constant 0 : index
    %c0_0 = arith.constant 0 : index
    %c0_1 = arith.constant 0 : index
    %0 = vector.load %arg1[%c0, %c0_0, %c0_1] : memref<1x48x1536xf32, #tpu.memory_space<vmem>>, vector<1x48x1536xf32>
    %c0_2 = arith.constant 0 : index
    %c0_3 = arith.constant 0 : index
    %c0_4 = arith.constant 0 : index
    %1 = vector.load %arg2[%c0_2, %c0_3, %c0_4] : memref<1x48x1536xf32, #tpu.memory_space<vmem>>, vector<1x48x1536xf32>
    %2 = arith.maximumf %0, %1 : vector<1x48x1536xf32>
    %c0_5 = arith.constant 0 : index
    %c0_6 = arith.constant 0 : index
    %c0_7 = arith.constant 0 : index
    %3 = vector.load %arg3[%c0_5, %c0_6, %c0_7] : memref<1x48x1536xf32, #tpu.memory_space<vmem>>, vector<1x48x1536xf32>
    %c0_8 = arith.constant 0 : index
    %c0_9 = arith.constant 0 : index
    %c0_10 = arith.constant 0 : index
    %4 = vector.load %arg4[%c0_8, %c0_9, %c0_10] : memref<1x48x1536xf32, #tpu.memory_space<vmem>>, vector<1x48x1536xf32>
    %5 = arith.maximumf %3, %4 : vector<1x48x1536xf32>
    %6 = arith.maximumf %2, %5 : vector<1x48x1536xf32>
    %c0_11 = arith.constant 0 : index
    %c0_12 = arith.constant 0 : index
    %c0_13 = arith.constant 0 : index
    %7 = vector.load %arg5[%c0_11, %c0_12, %c0_13] : memref<1x48x1536xf32, #tpu.memory_space<vmem>>, vector<1x48x1536xf32>
    tpu.vector_store %arg5[%c0_11, %c0_12, %c0_13], %6 {strides = array<i32>} : memref<1x48x1536xf32, #tpu.memory_space<vmem>>, vector<1x48x1536xf32>,
    return
  }
  func.func @transform_0(%arg0: i32) -> (i32, i32, i32) {
    %c0_i32 = arith.constant 0 : i32
    %c0_i32_0 = arith.constant 0 : i32
    %c0_i32_1 = arith.constant 0 : i32
    return %arg0, %c0_i32, %c0_i32_0 : i32, i32, i32
  }
  func.func @transform_1(%arg0: i32) -> (i32, i32, i32) {
    %c0_i32 = arith.constant 0 : i32
    %c0_i32_0 = arith.constant 0 : i32
    %c0_i32_1 = arith.constant 0 : i32
    return %arg0, %c0_i32, %c0_i32_0 : i32, i32, i32
  }
  func.func @transform_2(%arg0: i32) -> (i32, i32, i32) {
    %c0_i32 = arith.constant 0 : i32
    %c0_i32_0 = arith.constant 0 : i32
    %c0_i32_1 = arith.constant 0 : i32
    return %arg0, %c0_i32, %c0_i32_0 : i32, i32, i32
  }
  func.func @transform_3(%arg0: i32) -> (i32, i32, i32) {
    %c0_i32 = arith.constant 0 : i32
    %c0_i32_0 = arith.constant 0 : i32
    %c0_i32_1 = arith.constant 0 : i32
    return %arg0, %c0_i32, %c0_i32_0 : i32, i32, i32
  }
  func.func @transform_4(%arg0: i32) -> (i32, i32, i32) {
    %c0_i32 = arith.constant 0 : i32
    %c0_i32_0 = arith.constant 0 : i32
    %c0_i32_1 = arith.constant 0 : i32
    return %arg0, %c0_i32, %c0_i32_0 : i32, i32, i32
  }
}

module attributes {stable_mosaic.version = 11 : i64} {
  func.func @_matmul_bias_relu_kernel(%arg0: i32, %arg1: memref<768x288xf32, #tpu.memory_space<vmem>>, %arg2: memref<288x64xf32, #tpu.memory_space<vmem>>, %arg3: memref<1x64xf32, #tpu.memory_space<vmem>>, %arg4: memref<768x64xf32, #tpu.memory_space<vmem>>) attributes {dimension_semantics = [#tpu.dimension_semantics<parallel>], iteration_bounds = array<i64: 6>, scalar_prefetch = 0 : i64, scratch_operands = 0 : i64, tpu.core_type = #tpu.core_type<tc>, window_params = [{transform_indices = @transform_0, window_bounds = array<i64: 768, 288>}, {pipeline_mode = #tpu.pipeline_mode<synchronous>, transform_indices = @transform_1, window_bounds = array<i64: 288, 64>}, {pipeline_mode = #tpu.pipeline_mode<synchronous>, transform_indices = @transform_2, window_bounds = array<i64: 1, 64>}, {transform_indices = @transform_3, window_bounds = array<i64: 768, 64>}]} {
    %c0 = arith.constant 0 : index
    %c0_0 = arith.constant 0 : index
    %0 = vector.load %arg1[%c0, %c0_0] : memref<768x288xf32, #tpu.memory_space<vmem>>, vector<768x288xf32>
    %c0_1 = arith.constant 0 : index
    %c0_2 = arith.constant 0 : index
    %1 = vector.load %arg2[%c0_1, %c0_2] : memref<288x64xf32, #tpu.memory_space<vmem>>, vector<288x64xf32>
    %cst = arith.constant dense<0.000000e+00> : vector<768x64xf32>
    %2 = tpu.matmul %0, %1, %cst {dimension_numbers = #tpu.dot_dimension_numbers<[1], [0], [0], [1], [0, 0, 1, 1], [], []>} : vector<768x288xf32>, vector<288x64xf32>, vector<768x64xf32> -> vector<768x64xf32>
    %c0_3 = arith.constant 0 : index
    %c0_4 = arith.constant 0 : index
    %3 = vector.load %arg3[%c0_3, %c0_4] : memref<1x64xf32, #tpu.memory_space<vmem>>, vector<1x64xf32>
    %4 = vector.broadcast %3 : vector<1x64xf32> to vector<768x64xf32>
    %5 = arith.addf %2, %4 : vector<768x64xf32>
    %cst_5 = arith.constant 0.000000e+00 : f32
    %6 = vector.broadcast %cst_5 : f32 to vector<768x64xf32>
    %7 = arith.maximumf %5, %6 : vector<768x64xf32>
    %c0_6 = arith.constant 0 : index
    %c0_7 = arith.constant 0 : index
    %8 = vector.load %arg4[%c0_6, %c0_7] : memref<768x64xf32, #tpu.memory_space<vmem>>, vector<768x64xf32>
    tpu.vector_store %arg4[%c0_6, %c0_7], %7 {strides = array<i32>} : memref<768x64xf32, #tpu.memory_space<vmem>>, vector<768x64xf32>,
    return
  }
  func.func @transform_0(%arg0: i32) -> (i32, i32) {
    %c0_i32 = arith.constant 0 : i32
    %c0_i32_0 = arith.constant 0 : i32
    return %arg0, %c0_i32 : i32, i32
  }
  func.func @transform_1(%arg0: i32) -> (i32, i32) {
    %c0_i32 = arith.constant 0 : i32
    %c0_i32_0 = arith.constant 0 : i32
    %c0_i32_1 = arith.constant 0 : i32
    return %c0_i32, %c0_i32_0 : i32, i32
  }
  func.func @transform_2(%arg0: i32) -> (i32, i32) {
    %c0_i32 = arith.constant 0 : i32
    %c0_i32_0 = arith.constant 0 : i32
    %c0_i32_1 = arith.constant 0 : i32
    return %c0_i32, %c0_i32_0 : i32, i32
  }
  func.func @transform_3(%arg0: i32) -> (i32, i32) {
    %c0_i32 = arith.constant 0 : i32
    %c0_i32_0 = arith.constant 0 : i32
    return %arg0, %c0_i32 : i32, i32
  }
}

module attributes {stable_mosaic.version = 11 : i64} {
  func.func @_max4_kernel(%arg0: i32, %arg1: memref<1x24x1536xf32, #tpu.memory_space<vmem>>, %arg2: memref<1x24x1536xf32, #tpu.memory_space<vmem>>, %arg3: memref<1x24x1536xf32, #tpu.memory_space<vmem>>, %arg4: memref<1x24x1536xf32, #tpu.memory_space<vmem>>, %arg5: memref<1x24x1536xf32, #tpu.memory_space<vmem>>) attributes {dimension_semantics = [#tpu.dimension_semantics<parallel>], iteration_bounds = array<i64: 2>, scalar_prefetch = 0 : i64, scratch_operands = 0 : i64, tpu.core_type = #tpu.core_type<tc>, window_params = [{transform_indices = @transform_0, window_bounds = array<i64: 1, 24, 1536>}, {transform_indices = @transform_1, window_bounds = array<i64: 1, 24, 1536>}, {transform_indices = @transform_2, window_bounds = array<i64: 1, 24, 1536>}, {transform_indices = @transform_3, window_bounds = array<i64: 1, 24, 1536>}, {transform_indices = @transform_4, window_bounds = array<i64: 1, 24, 1536>}]} {
    %c0 = arith.constant 0 : index
    %c0_0 = arith.constant 0 : index
    %c0_1 = arith.constant 0 : index
    %0 = vector.load %arg1[%c0, %c0_0, %c0_1] : memref<1x24x1536xf32, #tpu.memory_space<vmem>>, vector<1x24x1536xf32>
    %c0_2 = arith.constant 0 : index
    %c0_3 = arith.constant 0 : index
    %c0_4 = arith.constant 0 : index
    %1 = vector.load %arg2[%c0_2, %c0_3, %c0_4] : memref<1x24x1536xf32, #tpu.memory_space<vmem>>, vector<1x24x1536xf32>
    %2 = arith.maximumf %0, %1 : vector<1x24x1536xf32>
    %c0_5 = arith.constant 0 : index
    %c0_6 = arith.constant 0 : index
    %c0_7 = arith.constant 0 : index
    %3 = vector.load %arg3[%c0_5, %c0_6, %c0_7] : memref<1x24x1536xf32, #tpu.memory_space<vmem>>, vector<1x24x1536xf32>
    %c0_8 = arith.constant 0 : index
    %c0_9 = arith.constant 0 : index
    %c0_10 = arith.constant 0 : index
    %4 = vector.load %arg4[%c0_8, %c0_9, %c0_10] : memref<1x24x1536xf32, #tpu.memory_space<vmem>>, vector<1x24x1536xf32>
    %5 = arith.maximumf %3, %4 : vector<1x24x1536xf32>
    %6 = arith.maximumf %2, %5 : vector<1x24x1536xf32>
    %c0_11 = arith.constant 0 : index
    %c0_12 = arith.constant 0 : index
    %c0_13 = arith.constant 0 : index
    %7 = vector.load %arg5[%c0_11, %c0_12, %c0_13] : memref<1x24x1536xf32, #tpu.memory_space<vmem>>, vector<1x24x1536xf32>
    tpu.vector_store %arg5[%c0_11, %c0_12, %c0_13], %6 {strides = array<i32>} : memref<1x24x1536xf32, #tpu.memory_space<vmem>>, vector<1x24x1536xf32>,
    return
  }
  func.func @transform_0(%arg0: i32) -> (i32, i32, i32) {
    %c0_i32 = arith.constant 0 : i32
    %c0_i32_0 = arith.constant 0 : i32
    %c0_i32_1 = arith.constant 0 : i32
    return %arg0, %c0_i32, %c0_i32_0 : i32, i32, i32
  }
  func.func @transform_1(%arg0: i32) -> (i32, i32, i32) {
    %c0_i32 = arith.constant 0 : i32
    %c0_i32_0 = arith.constant 0 : i32
    %c0_i32_1 = arith.constant 0 : i32
    return %arg0, %c0_i32, %c0_i32_0 : i32, i32, i32
  }
  func.func @transform_2(%arg0: i32) -> (i32, i32, i32) {
    %c0_i32 = arith.constant 0 : i32
    %c0_i32_0 = arith.constant 0 : i32
    %c0_i32_1 = arith.constant 0 : i32
    return %arg0, %c0_i32, %c0_i32_0 : i32, i32, i32
  }
  func.func @transform_3(%arg0: i32) -> (i32, i32, i32) {
    %c0_i32 = arith.constant 0 : i32
    %c0_i32_0 = arith.constant 0 : i32
    %c0_i32_1 = arith.constant 0 : i32
    return %arg0, %c0_i32, %c0_i32_0 : i32, i32, i32
  }
  func.func @transform_4(%arg0: i32) -> (i32, i32, i32) {
    %c0_i32 = arith.constant 0 : i32
    %c0_i32_0 = arith.constant 0 : i32
    %c0_i32_1 = arith.constant 0 : i32
    return %arg0, %c0_i32, %c0_i32_0 : i32, i32, i32
  }
}

module attributes {stable_mosaic.version = 11 : i64} {
  func.func @_matmul_bias_relu_kernel(%arg0: i32, %arg1: memref<384x576xf32, #tpu.memory_space<vmem>>, %arg2: memref<576x128xf32, #tpu.memory_space<vmem>>, %arg3: memref<1x128xf32, #tpu.memory_space<vmem>>, %arg4: memref<384x128xf32, #tpu.memory_space<vmem>>) attributes {dimension_semantics = [#tpu.dimension_semantics<parallel>], iteration_bounds = array<i64: 3>, scalar_prefetch = 0 : i64, scratch_operands = 0 : i64, tpu.core_type = #tpu.core_type<tc>, window_params = [{transform_indices = @transform_0, window_bounds = array<i64: 384, 576>}, {pipeline_mode = #tpu.pipeline_mode<synchronous>, transform_indices = @transform_1, window_bounds = array<i64: 576, 128>}, {pipeline_mode = #tpu.pipeline_mode<synchronous>, transform_indices = @transform_2, window_bounds = array<i64: 1, 128>}, {transform_indices = @transform_3, window_bounds = array<i64: 384, 128>}]} {
    %c0 = arith.constant 0 : index
    %c0_0 = arith.constant 0 : index
    %0 = vector.load %arg1[%c0, %c0_0] : memref<384x576xf32, #tpu.memory_space<vmem>>, vector<384x576xf32>
    %c0_1 = arith.constant 0 : index
    %c0_2 = arith.constant 0 : index
    %1 = vector.load %arg2[%c0_1, %c0_2] : memref<576x128xf32, #tpu.memory_space<vmem>>, vector<576x128xf32>
    %cst = arith.constant dense<0.000000e+00> : vector<384x128xf32>
    %2 = tpu.matmul %0, %1, %cst {dimension_numbers = #tpu.dot_dimension_numbers<[1], [0], [0], [1], [0, 0, 1, 1], [], []>} : vector<384x576xf32>, vector<576x128xf32>, vector<384x128xf32> -> vector<384x128xf32>
    %c0_3 = arith.constant 0 : index
    %c0_4 = arith.constant 0 : index
    %3 = vector.load %arg3[%c0_3, %c0_4] : memref<1x128xf32, #tpu.memory_space<vmem>>, vector<1x128xf32>
    %4 = vector.broadcast %3 : vector<1x128xf32> to vector<384x128xf32>
    %5 = arith.addf %2, %4 : vector<384x128xf32>
    %cst_5 = arith.constant 0.000000e+00 : f32
    %6 = vector.broadcast %cst_5 : f32 to vector<384x128xf32>
    %7 = arith.maximumf %5, %6 : vector<384x128xf32>
    %c0_6 = arith.constant 0 : index
    %c0_7 = arith.constant 0 : index
    %8 = vector.load %arg4[%c0_6, %c0_7] : memref<384x128xf32, #tpu.memory_space<vmem>>, vector<384x128xf32>
    tpu.vector_store %arg4[%c0_6, %c0_7], %7 {strides = array<i32>} : memref<384x128xf32, #tpu.memory_space<vmem>>, vector<384x128xf32>,
    return
  }
  func.func @transform_0(%arg0: i32) -> (i32, i32) {
    %c0_i32 = arith.constant 0 : i32
    %c0_i32_0 = arith.constant 0 : i32
    return %arg0, %c0_i32 : i32, i32
  }
  func.func @transform_1(%arg0: i32) -> (i32, i32) {
    %c0_i32 = arith.constant 0 : i32
    %c0_i32_0 = arith.constant 0 : i32
    %c0_i32_1 = arith.constant 0 : i32
    return %c0_i32, %c0_i32_0 : i32, i32
  }
  func.func @transform_2(%arg0: i32) -> (i32, i32) {
    %c0_i32 = arith.constant 0 : i32
    %c0_i32_0 = arith.constant 0 : i32
    %c0_i32_1 = arith.constant 0 : i32
    return %c0_i32, %c0_i32_0 : i32, i32
  }
  func.func @transform_3(%arg0: i32) -> (i32, i32) {
    %c0_i32 = arith.constant 0 : i32
    %c0_i32_0 = arith.constant 0 : i32
    return %arg0, %c0_i32 : i32, i32
  }
}

module attributes {stable_mosaic.version = 11 : i64} {
  func.func @_max4_kernel(%arg0: i32, %arg1: memref<1x12x1536xf32, #tpu.memory_space<vmem>>, %arg2: memref<1x12x1536xf32, #tpu.memory_space<vmem>>, %arg3: memref<1x12x1536xf32, #tpu.memory_space<vmem>>, %arg4: memref<1x12x1536xf32, #tpu.memory_space<vmem>>, %arg5: memref<1x12x1536xf32, #tpu.memory_space<vmem>>) attributes {dimension_semantics = [#tpu.dimension_semantics<parallel>], iteration_bounds = array<i64: 2>, scalar_prefetch = 0 : i64, scratch_operands = 0 : i64, tpu.core_type = #tpu.core_type<tc>, window_params = [{transform_indices = @transform_0, window_bounds = array<i64: 1, 12, 1536>}, {transform_indices = @transform_1, window_bounds = array<i64: 1, 12, 1536>}, {transform_indices = @transform_2, window_bounds = array<i64: 1, 12, 1536>}, {transform_indices = @transform_3, window_bounds = array<i64: 1, 12, 1536>}, {transform_indices = @transform_4, window_bounds = array<i64: 1, 12, 1536>}]} {
    %c0 = arith.constant 0 : index
    %c0_0 = arith.constant 0 : index
    %c0_1 = arith.constant 0 : index
    %0 = vector.load %arg1[%c0, %c0_0, %c0_1] : memref<1x12x1536xf32, #tpu.memory_space<vmem>>, vector<1x12x1536xf32>
    %c0_2 = arith.constant 0 : index
    %c0_3 = arith.constant 0 : index
    %c0_4 = arith.constant 0 : index
    %1 = vector.load %arg2[%c0_2, %c0_3, %c0_4] : memref<1x12x1536xf32, #tpu.memory_space<vmem>>, vector<1x12x1536xf32>
    %2 = arith.maximumf %0, %1 : vector<1x12x1536xf32>
    %c0_5 = arith.constant 0 : index
    %c0_6 = arith.constant 0 : index
    %c0_7 = arith.constant 0 : index
    %3 = vector.load %arg3[%c0_5, %c0_6, %c0_7] : memref<1x12x1536xf32, #tpu.memory_space<vmem>>, vector<1x12x1536xf32>
    %c0_8 = arith.constant 0 : index
    %c0_9 = arith.constant 0 : index
    %c0_10 = arith.constant 0 : index
    %4 = vector.load %arg4[%c0_8, %c0_9, %c0_10] : memref<1x12x1536xf32, #tpu.memory_space<vmem>>, vector<1x12x1536xf32>
    %5 = arith.maximumf %3, %4 : vector<1x12x1536xf32>
    %6 = arith.maximumf %2, %5 : vector<1x12x1536xf32>
    %c0_11 = arith.constant 0 : index
    %c0_12 = arith.constant 0 : index
    %c0_13 = arith.constant 0 : index
    %7 = vector.load %arg5[%c0_11, %c0_12, %c0_13] : memref<1x12x1536xf32, #tpu.memory_space<vmem>>, vector<1x12x1536xf32>
    tpu.vector_store %arg5[%c0_11, %c0_12, %c0_13], %6 {strides = array<i32>} : memref<1x12x1536xf32, #tpu.memory_space<vmem>>, vector<1x12x1536xf32>,
    return
  }
  func.func @transform_0(%arg0: i32) -> (i32, i32, i32) {
    %c0_i32 = arith.constant 0 : i32
    %c0_i32_0 = arith.constant 0 : i32
    %c0_i32_1 = arith.constant 0 : i32
    return %arg0, %c0_i32, %c0_i32_0 : i32, i32, i32
  }
  func.func @transform_1(%arg0: i32) -> (i32, i32, i32) {
    %c0_i32 = arith.constant 0 : i32
    %c0_i32_0 = arith.constant 0 : i32
    %c0_i32_1 = arith.constant 0 : i32
    return %arg0, %c0_i32, %c0_i32_0 : i32, i32, i32
  }
  func.func @transform_2(%arg0: i32) -> (i32, i32, i32) {
    %c0_i32 = arith.constant 0 : i32
    %c0_i32_0 = arith.constant 0 : i32
    %c0_i32_1 = arith.constant 0 : i32
    return %arg0, %c0_i32, %c0_i32_0 : i32, i32, i32
  }
  func.func @transform_3(%arg0: i32) -> (i32, i32, i32) {
    %c0_i32 = arith.constant 0 : i32
    %c0_i32_0 = arith.constant 0 : i32
    %c0_i32_1 = arith.constant 0 : i32
    return %arg0, %c0_i32, %c0_i32_0 : i32, i32, i32
  }
  func.func @transform_4(%arg0: i32) -> (i32, i32, i32) {
    %c0_i32 = arith.constant 0 : i32
    %c0_i32_0 = arith.constant 0 : i32
    %c0_i32_1 = arith.constant 0 : i32
    return %arg0, %c0_i32, %c0_i32_0 : i32, i32, i32
  }
}

module attributes {stable_mosaic.version = 11 : i64} {
  func.func @_fc_fused_kernel(%arg0: i32, %arg1: memref<2x2304xf32, #tpu.memory_space<vmem>>, %arg2: memref<2304x256xf32, #tpu.memory_space<vmem>>, %arg3: memref<1x256xf32, #tpu.memory_space<vmem>>, %arg4: memref<256x8xf32, #tpu.memory_space<vmem>>, %arg5: memref<1x8xf32, #tpu.memory_space<vmem>>, %arg6: memref<2x8xf32, #tpu.memory_space<vmem>>, %arg7: memref<2x256xf32, #tpu.memory_space<vmem>>) attributes {dimension_semantics = [#tpu.dimension_semantics<arbitrary>], iteration_bounds = array<i64: 8>, scalar_prefetch = 0 : i64, scratch_operands = 1 : i64, tpu.core_type = #tpu.core_type<tc>, window_params = [{transform_indices = @transform_0, window_bounds = array<i64: 2, 2304>}, {transform_indices = @transform_1, window_bounds = array<i64: 2304, 256>}, {pipeline_mode = #tpu.pipeline_mode<synchronous>, transform_indices = @transform_2, window_bounds = array<i64: 1, 256>}, {pipeline_mode = #tpu.pipeline_mode<synchronous>, transform_indices = @transform_3, window_bounds = array<i64: 256, 8>}, {pipeline_mode = #tpu.pipeline_mode<synchronous>, transform_indices = @transform_4, window_bounds = array<i64: 1, 8>}, {pipeline_mode = #tpu.pipeline_mode<synchronous>, transform_indices = @transform_5, window_bounds = array<i64: 2, 8>}]} {
    %c0_i32 = arith.constant 0 : i32
    %0 = arith.cmpi eq, %arg0, %c0_i32 : i32
    %1 = arith.extui %0 : i1 to i32
    %c0_i32_0 = arith.constant 0 : i32
    %2 = arith.cmpi ne, %1, %c0_i32_0 : i32
    scf.if %2 {
      %cst_9 = arith.constant 0.000000e+00 : f32
      %12 = vector.broadcast %cst_9 : f32 to vector<2x256xf32>
      %c0_10 = arith.constant 0 : index
      %c0_11 = arith.constant 0 : index
      %13 = vector.load %arg7[%c0_10, %c0_11] : memref<2x256xf32, #tpu.memory_space<vmem>>, vector<2x256xf32>
      tpu.vector_store %arg7[%c0_10, %c0_11], %12 {strides = array<i32>} : memref<2x256xf32, #tpu.memory_space<vmem>>, vector<2x256xf32>,
    } else {
    }
    %c0 = arith.constant 0 : index
    %c0_1 = arith.constant 0 : index
    %3 = vector.load %arg7[%c0, %c0_1] : memref<2x256xf32, #tpu.memory_space<vmem>>, vector<2x256xf32>
    %c0_2 = arith.constant 0 : index
    %c0_3 = arith.constant 0 : index
    %4 = vector.load %arg1[%c0_2, %c0_3] : memref<2x2304xf32, #tpu.memory_space<vmem>>, vector<2x2304xf32>
    %c0_4 = arith.constant 0 : index
    %c0_5 = arith.constant 0 : index
    %5 = vector.load %arg2[%c0_4, %c0_5] : memref<2304x256xf32, #tpu.memory_space<vmem>>, vector<2304x256xf32>
    %cst = arith.constant dense<0.000000e+00> : vector<2x256xf32>
    %6 = tpu.matmul %4, %5, %cst {dimension_numbers = #tpu.dot_dimension_numbers<[1], [0], [0], [1], [0, 0, 1, 1], [], []>} : vector<2x2304xf32>, vector<2304x256xf32>, vector<2x256xf32> -> vector<2x256xf32>
    %7 = arith.addf %3, %6 : vector<2x256xf32>
    %c0_6 = arith.constant 0 : index
    %c0_7 = arith.constant 0 : index
    %8 = vector.load %arg7[%c0_6, %c0_7] : memref<2x256xf32, #tpu.memory_space<vmem>>, vector<2x256xf32>
    tpu.vector_store %arg7[%c0_6, %c0_7], %7 {strides = array<i32>} : memref<2x256xf32, #tpu.memory_space<vmem>>, vector<2x256xf32>,
    %c7_i32 = arith.constant 7 : i32
    %9 = arith.cmpi eq, %arg0, %c7_i32 : i32
    %10 = arith.extui %9 : i1 to i32
    %c0_i32_8 = arith.constant 0 : i32
    %11 = arith.cmpi ne, %10, %c0_i32_8 : i32
    scf.if %11 {
      %c0_9 = arith.constant 0 : index
      %c0_10 = arith.constant 0 : index
      %12 = vector.load %arg7[%c0_9, %c0_10] : memref<2x256xf32, #tpu.memory_space<vmem>>, vector<2x256xf32>
      %c0_11 = arith.constant 0 : index
      %c0_12 = arith.constant 0 : index
      %13 = vector.load %arg3[%c0_11, %c0_12] : memref<1x256xf32, #tpu.memory_space<vmem>>, vector<1x256xf32>
      %14 = vector.broadcast %13 : vector<1x256xf32> to vector<2x256xf32>
      %15 = arith.addf %12, %14 : vector<2x256xf32>
      %cst_13 = arith.constant 0.000000e+00 : f32
      %16 = vector.broadcast %cst_13 : f32 to vector<2x256xf32>
      %17 = arith.maximumf %15, %16 : vector<2x256xf32>
      %c0_14 = arith.constant 0 : index
      %c0_15 = arith.constant 0 : index
      %18 = vector.load %arg4[%c0_14, %c0_15] : memref<256x8xf32, #tpu.memory_space<vmem>>, vector<256x8xf32>
      %cst_16 = arith.constant dense<0.000000e+00> : vector<2x8xf32>
      %19 = tpu.matmul %17, %18, %cst_16 {dimension_numbers = #tpu.dot_dimension_numbers<[1], [0], [0], [1], [0, 0, 1, 1], [], []>} : vector<2x256xf32>, vector<256x8xf32>, vector<2x8xf32> -> vector<2x8xf32>
      %c0_17 = arith.constant 0 : index
      %c0_18 = arith.constant 0 : index
      %20 = vector.load %arg5[%c0_17, %c0_18] : memref<1x8xf32, #tpu.memory_space<vmem>>, vector<1x8xf32>
      %21 = vector.broadcast %20 : vector<1x8xf32> to vector<2x8xf32>
      %22 = arith.addf %19, %21 : vector<2x8xf32>
      %c0_19 = arith.constant 0 : index
      %c0_20 = arith.constant 0 : index
      %23 = vector.load %arg6[%c0_19, %c0_20] : memref<2x8xf32, #tpu.memory_space<vmem>>, vector<2x8xf32>
      tpu.vector_store %arg6[%c0_19, %c0_20], %22 {strides = array<i32>} : memref<2x8xf32, #tpu.memory_space<vmem>>, vector<2x8xf32>,
    } else {
    }
    return
  }
  func.func @transform_0(%arg0: i32) -> (i32, i32) {
    %c0_i32 = arith.constant 0 : i32
    %c0_i32_0 = arith.constant 0 : i32
    return %c0_i32, %arg0 : i32, i32
  }
  func.func @transform_1(%arg0: i32) -> (i32, i32) {
    %c0_i32 = arith.constant 0 : i32
    %c0_i32_0 = arith.constant 0 : i32
    return %arg0, %c0_i32 : i32, i32
  }
  func.func @transform_2(%arg0: i32) -> (i32, i32) {
    %c0_i32 = arith.constant 0 : i32
    %c0_i32_0 = arith.constant 0 : i32
    %c0_i32_1 = arith.constant 0 : i32
    return %c0_i32, %c0_i32_0 : i32, i32
  }
  func.func @transform_3(%arg0: i32) -> (i32, i32) {
    %c0_i32 = arith.constant 0 : i32
    %c0_i32_0 = arith.constant 0 : i32
    %c0_i32_1 = arith.constant 0 : i32
    return %c0_i32, %c0_i32_0 : i32, i32
  }
  func.func @transform_4(%arg0: i32) -> (i32, i32) {
    %c0_i32 = arith.constant 0 : i32
    %c0_i32_0 = arith.constant 0 : i32
    %c0_i32_1 = arith.constant 0 : i32
    return %c0_i32, %c0_i32_0 : i32, i32
  }
  func.func @transform_5(%arg0: i32) -> (i32, i32) {
    %c0_i32 = arith.constant 0 : i32
    %c0_i32_0 = arith.constant 0 : i32
    %c0_i32_1 = arith.constant 0 : i32
    return %c0_i32, %c0_i32_0 : i32, i32
  }
}

</mosaic_0001>

<llo_original>
// kernel: feature_extractor_forward.7
$region0: #{feature_extractor_forward.7}
  #allocation0 [shape = 'u32[]', space=smem, size = 0x4, offset = 0x4, fixed_abs, tag = 'smem constant byte address 0x4 - core index']
  #allocation1 [shape = 'u32[144,128]{1,0:T(1,128)}', space=vmem, size = 0x12000, scoped, tag = 'internal scratch']
  %s0 = inlined_call_operand.vmem [shape: f32[18432,27], index: 0, kind: input, shape index: {}]
  %s1 = inlined_call_operand.vmem [shape: f32[27,32], index: 1, kind: input, shape index: {}]
  %s2 = inlined_call_operand.vmem [shape: f32[1,32], index: 2, kind: input, shape index: {}]
  %s3 = inlined_call_operand.vmem [shape: f32[18432,32], index: 3, kind: output, shape index: {}]
  %s4 = sld [smem:[#allocation0]]
  $region45: #{feature_extractor_forward.7} parent=0
    _
  %s6 = ssub.s32 1, %s4
  %s7 = scalar_select 0, %s6, %s4
  loop: start=0, step=1, limit=20
  $region2: #{feature_extractor_forward.7} parent=0 // loop_pre_header
    _
  $region3: #{feature_extractor_forward.7} parent=0 // loop_header
    %s9 = sphi 0, %s13
    %p10 = scmp.ge.s32.totalorder %s9, 20
    %s19 = sphi 0, %s21
    %s22 = sphi 0, %s19
    %s23 = sphi 0, %s22
    %s39 = sphi 0, %s23
    %s43 = sphi 0, %s43
    %s45 = sphi 0, %s43
    %s46 = sphi 0, %s45
    %s60 = sphi 0, %s46
    %s64 = sphi 0, %s64
    %s66 = sphi 0, %s64
    %s67 = sphi 0, %s66
    %s81 = sphi 0, %s67
    %s87 = sphi 0, %s89
    %s90 = sphi 0, %s87
    %s91 = sphi 0, %s90
    %s107 = sphi 0, %s91
  $region4: #{feature_extractor_forward.7} parent=0 // loop_header_branch
    %12 = sbr.rel (%p10) target = $region8
  $region5: #{feature_extractor_forward.7} parent=0 // loop_body
    %s14 = ssub.s32 %s9, 1
    %s15 = ssub.s32 %s9, 2
    %s16 = sadd.s32 %s9, 1
    %s17 = ssub.s32 %s9, %s16
    %p18 = scmp.eq.s32.totalorder %s17, 0
    %s20 = sadd.s32 %s19, 1
    %s21 = scalar_select %p18, %s19, %s20
    %p24 = pneg %p18
    %p25 = scmp.eq.s32.totalorder %s9, 17
    %p26 = por %p24, %p25
    %p27 = scmp.ne.s32.totalorder %s19, %s22
    %p28 = scmp.eq.s32.totalorder %s9, 0
    %p29 = por %p27, %p28
    %p30 = scmp.ne.s32.totalorder %s19, %s22
    %p31 = scmp.eq.s32.totalorder %s14, 17
    %p32 = por %p30, %p31
    %p33 = scmp.ne.s32.totalorder %s22, %s23
    %p34 = scmp.eq.s32.totalorder %s14, 0
    %p35 = por %p33, %p34
    %p36 = scmp.ne.s32.totalorder %s22, %s23
    %p37 = scmp.eq.s32.totalorder %s15, 17
    %p38 = por %p36, %p37
    %p40 = scmp.ne.s32.totalorder %s23, %s39
    %p41 = scmp.eq.s32.totalorder %s15, 0
    %p42 = por %p40, %p41
    %s44 = sadd.s32 %s43, 1
    %p47 = scmp.eq.s32.totalorder %s9, 17
    %p48 = scmp.ne.s32.totalorder %s43, %s45
    %p49 = scmp.eq.s32.totalorder %s9, 0
    %p50 = por %p48, %p49
    %p51 = scmp.ne.s32.totalorder %s43, %s45
    %p52 = scmp.eq.s32.totalorder %s14, 17
    %p53 = por %p51, %p52
    %p54 = scmp.ne.s32.totalorder %s45, %s46
    %p55 = scmp.eq.s32.totalorder %s14, 0
    %p56 = por %p54, %p55
    %p57 = scmp.ne.s32.totalorder %s45, %s46
    %p58 = scmp.eq.s32.totalorder %s15, 17
    %p59 = por %p57, %p58
    %p61 = scmp.ne.s32.totalorder %s46, %s60
    %p62 = scmp.eq.s32.totalorder %s15, 0
    %p63 = por %p61, %p62
    %s65 = sadd.s32 %s64, 1
    %p68 = scmp.eq.s32.totalorder %s9, 17
    %p69 = scmp.ne.s32.totalorder %s64, %s66
    %p70 = scmp.eq.s32.totalorder %s9, 0
    %p71 = por %p69, %p70
    %p72 = scmp.ne.s32.totalorder %s64, %s66
    %p73 = scmp.eq.s32.totalorder %s14, 17
    %p74 = por %p72, %p73
    %p75 = scmp.ne.s32.totalorder %s66, %s67
    %p76 = scmp.eq.s32.totalorder %s14, 0
    %p77 = por %p75, %p76
    %p78 = scmp.ne.s32.totalorder %s66, %s67
    %p79 = scmp.eq.s32.totalorder %s15, 17
    %p80 = por %p78, %p79
    %p82 = scmp.ne.s32.totalorder %s67, %s81
    %p83 = scmp.eq.s32.totalorder %s15, 0
    %p84 = por %p82, %p83
    %s85 = ssub.s32 %s9, %s16
    %p86 = scmp.eq.s32.totalorder %s85, 0
    %s88 = sadd.s32 %s87, 1
    %s89 = scalar_select %p86, %s87, %s88
    %p92 = pneg %p86
    %p93 = scmp.eq.s32.totalorder %s9, 17
    %p94 = por %p92, %p93
    %p95 = scmp.ne.s32.totalorder %s87, %s90
    %p96 = scmp.eq.s32.totalorder %s9, 0
    %p97 = por %p95, %p96
    %p98 = scmp.ne.s32.totalorder %s87, %s90
    %p99 = scmp.eq.s32.totalorder %s14, 17
    %p100 = por %p98, %p99
    %p101 = scmp.ne.s32.totalorder %s90, %s91
    %p102 = scmp.eq.s32.totalorder %s14, 0
    %p103 = por %p101, %p102
    %p104 = scmp.ne.s32.totalorder %s90, %s91
    %p105 = scmp.eq.s32.totalorder %s15, 17
    %p106 = por %p104, %p105
    %p108 = scmp.ne.s32.totalorder %s91, %s107
    %p109 = scmp.eq.s32.totalorder %s15, 0
    %p110 = por %p108, %p109
    %p111 = scmp.le.s32.totalorder 1, %s9
    %p112 = scmp.lt.s32.totalorder %s9, 19
    %p113 = pnand %p111, %p112
    %p114 = pneg %p113
    // Predicated region
    $region9: #{feature_extractor_forward.7} parent=5 // pred_check
      _
    $region10: #{feature_extractor_forward.7} parent=5 // pred_check_branch
      %116 = sbr.rel (%p113) target = $region12
    $region11: #{feature_extractor_forward.7} parent=5 // pred_region
      %s117 = ssub.s32 %s9, 1
      // Predicated region
      $region13: #{feature_extractor_forward.7} parent=11 // pred_check
        %p118 = pneg %p56
      $region14: #{feature_extractor_forward.7} parent=11 // pred_check_branch
        %120 = sbr.rel (%p118) target = $region16
      $region15: #{feature_extractor_forward.7} parent=11 // pred_region
        _
      $region16: #{feature_extractor_forward.7} parent=11 // pred_fallthru
        _
      // Predicated region
      $region17: #{feature_extractor_forward.7} parent=11 // pred_check
        %p121 = pneg %p77
      $region18: #{feature_extractor_forward.7} parent=11 // pred_check_branch
        %123 = sbr.rel (%p121) target = $region20
      $region19: #{feature_extractor_forward.7} parent=11 // pred_region
        _
      $region20: #{feature_extractor_forward.7} parent=11 // pred_fallthru
        _
    $region12: #{feature_extractor_forward.7} parent=5 // pred_fallthru
      _
    %p124 = scmp.lt.s32.totalorder %s9, 18
    // Predicated region
    $region21: #{feature_extractor_forward.7} parent=5 // pred_check
      %p125 = pneg %p124
    $region22: #{feature_extractor_forward.7} parent=5 // pred_check_branch
      %127 = sbr.rel (%p125) target = $region24
    $region23: #{feature_extractor_forward.7} parent=5 // pred_region
      // Predicated region
      $region25: #{feature_extractor_forward.7} parent=23 // pred_check
        %p128 = pneg %p29
      $region26: #{feature_extractor_forward.7} parent=23 // pred_check_branch
        %130 = sbr.rel (%p128) target = $region28
      $region27: #{feature_extractor_forward.7} parent=23 // pred_region
        %s131 = smul.u32 128, %s9
        %p132 = scmp.lt.s32.totalorder %s131, 2303
        %s133 = scalar_select %p132, %s131, 2303
        %s134 = smul.addr %s133, 8
        %s135 = scalar_lea.vmem %s0, %s134
        %s136 = smul.u32 128, %s9
      $region28: #{feature_extractor_forward.7} parent=23 // pred_fallthru
        _
    $region24: #{feature_extractor_forward.7} parent=5 // pred_fallthru
      _
    %p137 = scmp.le.s32.totalorder 1, %s9
    %p138 = scmp.lt.s32.totalorder %s9, 19
    %p139 = pnand %p137, %p138
    %p140 = pneg %p139
    // Predicated region
    $region29: #{feature_extractor_forward.7} parent=5 // pred_check
      _
    $region30: #{feature_extractor_forward.7} parent=5 // pred_check_branch
      %142 = sbr.rel (%p139) target = $region32
    $region31: #{feature_extractor_forward.7} parent=5 // pred_region
      %s143 = ssub.s32 %s9, 1
      %s144 = smul.u32 128, %s14
      %p145 = scmp.lt.s32.totalorder %s144, 2303
      %s146 = scalar_select %p145, %s144, 2303
      %s147 = smul.addr %s146, 8
      %s148 = scalar_lea.vmem %s0, %s147
      %p149 = pneg %p35
      %p150 = pneg %p32
      %p151 = pneg %p56
      %p152 = pneg %p53
      %p153 = pneg %p77
      %p154 = pneg %p74
      %p155 = pneg %p103
      %p156 = pneg %p100
      %s157 = smul.u32 128, %s14
      %p158 = scmp.lt.s32.totalorder %s157, 2303
      %s159 = scalar_select %p158, %s157, 2303
      %s160 = smul.addr %s159, 8
      %s161 = scalar_lea.vmem %s3, %s160
      %s162 = smul.u32 128, %s14
      %p163 = scmp.lt.s32.totalorder %s162, 2303
      %s164 = scalar_select %p163, %s162, 2303
      %s165 = smul.addr %s164, 8
      %s166 = scalar_lea.vmem %s0, %s165
      %s167 = smul.u32 128, %s14
      %s168 = smul.u32 128, %s14
      %p169 = scmp.lt.s32.totalorder %s168, 2303
      %s170 = scalar_select %p169, %s168, 2303
      %s171 = smul.addr %s170, 8
      %s172 = scalar_lea.vmem %s3, %s171
      %s173 = smul.u32 128, %s14
      %v174 = vld [vmem:[%s166] sm:$0xff]
      %v175 = vld [vmem:[%s166 + $0x8] sm:$0xff]
      %v176 = vld [vmem:[%s166 + $0x10] sm:$0xff]
      %v177 = vld [vmem:[%s166 + $0x18] sm:$0xff]
      %v178 = vld [vmem:[%s166 + $0x20] sm:$0xff]
      %v179 = vld [vmem:[%s166 + $0x28] sm:$0xff]
      %v180 = vld [vmem:[%s166 + $0x30] sm:$0xff]
      %v181 = vld [vmem:[%s166 + $0x38] sm:$0xff]
      %v182 = vld [vmem:[%s166 + $0x40] sm:$0xff]
      %v183 = vld [vmem:[%s166 + $0x48] sm:$0xff]
      %v184 = vld [vmem:[%s166 + $0x50] sm:$0xff]
      %v185 = vld [vmem:[%s166 + $0x58] sm:$0xff]
      %v186 = vld [vmem:[%s166 + $0x60] sm:$0xff]
      %v187 = vld [vmem:[%s166 + $0x68] sm:$0xff]
      %v188 = vld [vmem:[%s166 + $0x70] sm:$0xff]
      %v189 = vld [vmem:[%s166 + $0x78] sm:$0xff]
      %v190 = vld [vmem:[%s166 + $0x80] sm:$0xff]
      %v191 = vld [vmem:[%s166 + $0x88] sm:$0xff]
      %v192 = vld [vmem:[%s166 + $0x90] sm:$0xff]
      %v193 = vld [vmem:[%s166 + $0x98] sm:$0xff]
      %v194 = vld [vmem:[%s166 + $0xa0] sm:$0xff]
      %v195 = vld [vmem:[%s166 + $0xa8] sm:$0xff]
      %v196 = vld [vmem:[%s166 + $0xb0] sm:$0xff]
      %v197 = vld [vmem:[%s166 + $0xb8] sm:$0xff]
      %v198 = vld [vmem:[%s166 + $0xc0] sm:$0xff]
      %v199 = vld [vmem:[%s166 + $0xc8] sm:$0xff]
      %v200 = vld [vmem:[%s166 + $0xd0] sm:$0xff]
      %v201 = vld [vmem:[%s166 + $0xd8] sm:$0xff]
      %v202 = vld [vmem:[%s166 + $0xe0] sm:$0xff]
      %v203 = vld [vmem:[%s166 + $0xe8] sm:$0xff]
      %v204 = vld [vmem:[%s166 + $0xf0] sm:$0xff]
      %v205 = vld [vmem:[%s166 + $0xf8] sm:$0xff]
      %v206 = vld [vmem:[%s166 + $0x100] sm:$0xff]
      %v207 = vld [vmem:[%s166 + $0x108] sm:$0xff]
      %v208 = vld [vmem:[%s166 + $0x110] sm:$0xff]
      %v209 = vld [vmem:[%s166 + $0x118] sm:$0xff]
      %v210 = vld [vmem:[%s166 + $0x120] sm:$0xff]
      %v211 = vld [vmem:[%s166 + $0x128] sm:$0xff]
      %v212 = vld [vmem:[%s166 + $0x130] sm:$0xff]
      %v213 = vld [vmem:[%s166 + $0x138] sm:$0xff]
      %v214 = vld [vmem:[%s166 + $0x140] sm:$0xff]
      %v215 = vld [vmem:[%s166 + $0x148] sm:$0xff]
      %v216 = vld [vmem:[%s166 + $0x150] sm:$0xff]
      %v217 = vld [vmem:[%s166 + $0x158] sm:$0xff]
      %v218 = vld [vmem:[%s166 + $0x160] sm:$0xff]
      %v219 = vld [vmem:[%s166 + $0x168] sm:$0xff]
      %v220 = vld [vmem:[%s166 + $0x170] sm:$0xff]
      %v221 = vld [vmem:[%s166 + $0x178] sm:$0xff]
      %v222 = vld [vmem:[%s166 + $0x180] sm:$0xff]
      %v223 = vld [vmem:[%s166 + $0x188] sm:$0xff]
      %v224 = vld [vmem:[%s166 + $0x190] sm:$0xff]
      %v225 = vld [vmem:[%s166 + $0x198] sm:$0xff]
      %v226 = vld [vmem:[%s166 + $0x1a0] sm:$0xff]
      %v227 = vld [vmem:[%s166 + $0x1a8] sm:$0xff]
      %v228 = vld [vmem:[%s166 + $0x1b0] sm:$0xff]
      %v229 = vld [vmem:[%s166 + $0x1b8] sm:$0xff]
      %v230 = vld [vmem:[%s166 + $0x1c0] sm:$0xff]
      %v231 = vld [vmem:[%s166 + $0x1c8] sm:$0xff]
      %v232 = vld [vmem:[%s166 + $0x1d0] sm:$0xff]
      %v233 = vld [vmem:[%s166 + $0x1d8] sm:$0xff]
      %v234 = vld [vmem:[%s166 + $0x1e0] sm:$0xff]
      %v235 = vld [vmem:[%s166 + $0x1e8] sm:$0xff]
      %v236 = vld [vmem:[%s166 + $0x1f0] sm:$0xff]
      %v237 = vld [vmem:[%s166 + $0x1f8] sm:$0xff]
      %v238 = vld [vmem:[%s166 + $0x200] sm:$0xff]
      %v239 = vld [vmem:[%s166 + $0x208] sm:$0xff]
      %v240 = vld [vmem:[%s166 + $0x210] sm:$0xff]
      %v241 = vld [vmem:[%s166 + $0x218] sm:$0xff]
      %v242 = vld [vmem:[%s166 + $0x220] sm:$0xff]
      %v243 = vld [vmem:[%s166 + $0x228] sm:$0xff]
      %v244 = vld [vmem:[%s166 + $0x230] sm:$0xff]
      %v245 = vld [vmem:[%s166 + $0x238] sm:$0xff]
      %v246 = vld [vmem:[%s166 + $0x240] sm:$0xff]
      %v247 = vld [vmem:[%s166 + $0x248] sm:$0xff]
      %v248 = vld [vmem:[%s166 + $0x250] sm:$0xff]
      %v249 = vld [vmem:[%s166 + $0x258] sm:$0xff]
      %v250 = vld [vmem:[%s166 + $0x260] sm:$0xff]
      %v251 = vld [vmem:[%s166 + $0x268] sm:$0xff]
      %v252 = vld [vmem:[%s166 + $0x270] sm:$0xff]
      %v253 = vld [vmem:[%s166 + $0x278] sm:$0xff]
      %v254 = vld [vmem:[%s166 + $0x280] sm:$0xff]
      %v255 = vld [vmem:[%s166 + $0x288] sm:$0xff]
      %v256 = vld [vmem:[%s166 + $0x290] sm:$0xff]
      %v257 = vld [vmem:[%s166 + $0x298] sm:$0xff]
      %v258 = vld [vmem:[%s166 + $0x2a0] sm:$0xff]
      %v259 = vld [vmem:[%s166 + $0x2a8] sm:$0xff]
      %v260 = vld [vmem:[%s166 + $0x2b0] sm:$0xff]
      %v261 = vld [vmem:[%s166 + $0x2b8] sm:$0xff]
      %v262 = vld [vmem:[%s166 + $0x2c0] sm:$0xff]
      %v263 = vld [vmem:[%s166 + $0x2c8] sm:$0xff]
      %v264 = vld [vmem:[%s166 + $0x2d0] sm:$0xff]
      %v265 = vld [vmem:[%s166 + $0x2d8] sm:$0xff]
      %v266 = vld [vmem:[%s166 + $0x2e0] sm:$0xff]
      %v267 = vld [vmem:[%s166 + $0x2e8] sm:$0xff]
      %v268 = vld [vmem:[%s166 + $0x2f0] sm:$0xff]
      %v269 = vld [vmem:[%s166 + $0x2f8] sm:$0xff]
      %v270 = vld [vmem:[%s166 + $0x300] sm:$0xff]
      %v271 = vld [vmem:[%s166 + $0x308] sm:$0xff]
      %v272 = vld [vmem:[%s166 + $0x310] sm:$0xff]
      %v273 = vld [vmem:[%s166 + $0x318] sm:$0xff]
      %v274 = vld [vmem:[%s166 + $0x320] sm:$0xff]
      %v275 = vld [vmem:[%s166 + $0x328] sm:$0xff]
      %v276 = vld [vmem:[%s166 + $0x330] sm:$0xff]
      %v277 = vld [vmem:[%s166 + $0x338] sm:$0xff]
      %v278 = vld [vmem:[%s166 + $0x340] sm:$0xff]
      %v279 = vld [vmem:[%s166 + $0x348] sm:$0xff]
      %v280 = vld [vmem:[%s166 + $0x350] sm:$0xff]
      %v281 = vld [vmem:[%s166 + $0x358] sm:$0xff]
      %v282 = vld [vmem:[%s166 + $0x360] sm:$0xff]
      %v283 = vld [vmem:[%s166 + $0x368] sm:$0xff]
      %v284 = vld [vmem:[%s166 + $0x370] sm:$0xff]
      %v285 = vld [vmem:[%s166 + $0x378] sm:$0xff]
      %v286 = vld [vmem:[%s166 + $0x380] sm:$0xff]
      %v287 = vld [vmem:[%s166 + $0x388] sm:$0xff]
      %v288 = vld [vmem:[%s166 + $0x390] sm:$0xff]
      %v289 = vld [vmem:[%s166 + $0x398] sm:$0xff]
      %v290 = vld [vmem:[%s166 + $0x3a0] sm:$0xff]
      %v291 = vld [vmem:[%s166 + $0x3a8] sm:$0xff]
      %v292 = vld [vmem:[%s166 + $0x3b0] sm:$0xff]
      %v293 = vld [vmem:[%s166 + $0x3b8] sm:$0xff]
      %v294 = vld [vmem:[%s166 + $0x3c0] sm:$0xff]
      %v295 = vld [vmem:[%s166 + $0x3c8] sm:$0xff]
      %v296 = vld [vmem:[%s166 + $0x3d0] sm:$0xff]
      %v297 = vld [vmem:[%s166 + $0x3d8] sm:$0xff]
      %v298 = vld [vmem:[%s166 + $0x3e0] sm:$0xff]
      %v299 = vld [vmem:[%s166 + $0x3e8] sm:$0xff]
      %v300 = vld [vmem:[%s166 + $0x3f0] sm:$0xff]
      %v301 = vld [vmem:[%s166 + $0x3f8] sm:$0xff]
      %v302 = vld [vmem:[%s1] sm:$0xff]
      %v303 = vld [vmem:[%s1 + $0x8] sm:$0xff]
      %v304 = vld [vmem:[%s1 + $0x10] sm:$0xff]
      %v305 = vld [vmem:[%s1 + $0x18] sm:$0x7]
      %v306 = vld [vmem:[%s2] sm:$0x1]
      %v308 = vlaneseq
      %v309 = vshrl.u32 %v308, 7
      %v310 = vsub.s32 0, %v309
      %v311 = vrot.slane %v306, %v310
      %vm313 = vcmask 220160
      %v315 = vsel %vm313, %v174, 0
      %v318 = vsel %vm313, %v175, 0
      %v321 = vsel %vm313, %v176, 0
      %v324 = vsel %vm313, %v177, 0
      %v327 = vsel %vm313, %v178, 0
      %v330 = vsel %vm313, %v179, 0
      %v333 = vsel %vm313, %v180, 0
      %v336 = vsel %vm313, %v181, 0
      %v339 = vsel %vm313, %v182, 0
      %v342 = vsel %vm313, %v183, 0
      %v345 = vsel %vm313, %v184, 0
      %v348 = vsel %vm313, %v185, 0
      %v351 = vsel %vm313, %v186, 0
      %v354 = vsel %vm313, %v187, 0
      %v357 = vsel %vm313, %v188, 0
      %v360 = vsel %vm313, %v189, 0
      %v363 = vsel %vm313, %v190, 0
      %v366 = vsel %vm313, %v191, 0
      %v369 = vsel %vm313, %v192, 0
      %v372 = vsel %vm313, %v193, 0
      %v375 = vsel %vm313, %v194, 0
      %v378 = vsel %vm313, %v195, 0
      %v381 = vsel %vm313, %v196, 0
      %v384 = vsel %vm313, %v197, 0
      %v387 = vsel %vm313, %v198, 0
      %v390 = vsel %vm313, %v199, 0
      %v393 = vsel %vm313, %v200, 0
      %v396 = vsel %vm313, %v201, 0
      %v399 = vsel %vm313, %v202, 0
      %v402 = vsel %vm313, %v203, 0
      %v405 = vsel %vm313, %v204, 0
      %v408 = vsel %vm313, %v205, 0
      %v411 = vsel %vm313, %v206, 0
      %v414 = vsel %vm313, %v207, 0
      %v417 = vsel %vm313, %v208, 0
      %v420 = vsel %vm313, %v209, 0
      %v423 = vsel %vm313, %v210, 0
      %v426 = vsel %vm313, %v211, 0
      %v429 = vsel %vm313, %v212, 0
      %v432 = vsel %vm313, %v213, 0
      %v435 = vsel %vm313, %v214, 0
      %v438 = vsel %vm313, %v215, 0
      %v441 = vsel %vm313, %v216, 0
      %v444 = vsel %vm313, %v217, 0
      %v447 = vsel %vm313, %v218, 0
      %v450 = vsel %vm313, %v219, 0
      %v453 = vsel %vm313, %v220, 0
      %v456 = vsel %vm313, %v221, 0
      %v459 = vsel %vm313, %v222, 0
      %v462 = vsel %vm313, %v223, 0
      %v465 = vsel %vm313, %v224, 0
      %v468 = vsel %vm313, %v225, 0
      %v471 = vsel %vm313, %v226, 0
      %v474 = vsel %vm313, %v227, 0
      %v477 = vsel %vm313, %v228, 0
      %v480 = vsel %vm313, %v229, 0
      %v483 = vsel %vm313, %v230, 0
      %v486 = vsel %vm313, %v231, 0
      %v489 = vsel %vm313, %v232, 0
      %v492 = vsel %vm313, %v233, 0
      %v495 = vsel %vm313, %v234, 0
      %v498 = vsel %vm313, %v235, 0
      %v501 = vsel %vm313, %v236, 0
      %v504 = vsel %vm313, %v237, 0
      %v507 = vsel %vm313, %v238, 0
      %v510 = vsel %vm313, %v239, 0
      %v513 = vsel %vm313, %v240, 0
      %v516 = vsel %vm313, %v241, 0
      %v519 = vsel %vm313, %v242, 0
      %v522 = vsel %vm313, %v243, 0
      %v525 = vsel %vm313, %v244, 0
      %v528 = vsel %vm313, %v245, 0
      %v531 = vsel %vm313, %v246, 0
      %v534 = vsel %vm313, %v247, 0
      %v537 = vsel %vm313, %v248, 0
      %v540 = vsel %vm313, %v249, 0
      %v543 = vsel %vm313, %v250, 0
      %v546 = vsel %vm313, %v251, 0
      %v549 = vsel %vm313, %v252, 0
      %v552 = vsel %vm313, %v253, 0
      %v555 = vsel %vm313, %v254, 0
      %v558 = vsel %vm313, %v255, 0
      %v561 = vsel %vm313, %v256, 0
      %v564 = vsel %vm313, %v257, 0
      %v567 = vsel %vm313, %v258, 0
      %v570 = vsel %vm313, %v259, 0
      %v573 = vsel %vm313, %v260, 0
      %v576 = vsel %vm313, %v261, 0
      %v579 = vsel %vm313, %v262, 0
      %v582 = vsel %vm313, %v263, 0
      %v585 = vsel %vm313, %v264, 0
      %v588 = vsel %vm313, %v265, 0
      %v591 = vsel %vm313, %v266, 0
      %v594 = vsel %vm313, %v267, 0
      %v597 = vsel %vm313, %v268, 0
      %v600 = vsel %vm313, %v269, 0
      %v603 = vsel %vm313, %v270, 0
      %v606 = vsel %vm313, %v271, 0
      %v609 = vsel %vm313, %v272, 0
      %v612 = vsel %vm313, %v273, 0
      %v615 = vsel %vm313, %v274, 0
      %v618 = vsel %vm313, %v275, 0
      %v621 = vsel %vm313, %v276, 0
      %v624 = vsel %vm313, %v277, 0
      %v627 = vsel %vm313, %v278, 0
      %v630 = vsel %vm313, %v279, 0
      %v633 = vsel %vm313, %v280, 0
      %v636 = vsel %vm313, %v281, 0
      %v639 = vsel %vm313, %v282, 0
      %v642 = vsel %vm313, %v283, 0
      %v645 = vsel %vm313, %v284, 0
      %v648 = vsel %vm313, %v285, 0
      %v651 = vsel %vm313, %v286, 0
      %v654 = vsel %vm313, %v287, 0
      %v657 = vsel %vm313, %v288, 0
      %v660 = vsel %vm313, %v289, 0
      %v663 = vsel %vm313, %v290, 0
      %v666 = vsel %vm313, %v291, 0
      %v669 = vsel %vm313, %v292, 0
      %v672 = vsel %vm313, %v293, 0
      %v675 = vsel %vm313, %v294, 0
      %v678 = vsel %vm313, %v295, 0
      %v681 = vsel %vm313, %v296, 0
      %v684 = vsel %vm313, %v297, 0
      %v687 = vsel %vm313, %v298, 0
      %v690 = vsel %vm313, %v299, 0
      %v693 = vsel %vm313, %v300, 0
      %v696 = vsel %vm313, %v301, 0
      %vm698 = vcmask 1042432
      %v700 = vsel %vm698, %v305, 0
      %702 = vmatprep.subr.mxu0 0.0
      %703 = vmatpush1.msra.mxu0 %v302
      %704 = vmatprep.subr.mxu0 0.0
      %705 = vmatpush1.msra.mxu0 %v303
      %706 = vmatprep.subr.mxu0 0.0
      %707 = vmatpush1.msra.mxu0 %v304
      %708 = vmatprep.subr.mxu0 0.0
      %709 = vmatpush1.msra.mxu0 %v700
      %710 = vmatprep.subr.mxu0 0.0
      %711 = vmatpush1.msra.mxu0 0.0
      %712 = vmatprep.subr.mxu0 0.0
      %713 = vmatpush1.msra.mxu0 0.0
      %714 = vmatprep.subr.mxu0 0.0
      %715 = vmatpush1.msra.mxu0 0.0
      %716 = vmatprep.subr.mxu0 0.0
      %717 = vmatpush1.msra.mxu0 0.0
      %718 = vmatprep.subr.mxu0 0.0
      %719 = vmatpush1.msra.mxu0 0.0
      %720 = vmatprep.subr.mxu0 0.0
      %721 = vmatpush1.msra.mxu0 0.0
      %722 = vmatprep.subr.mxu0 0.0
      %723 = vmatpush1.msra.mxu0 0.0
      %724 = vmatprep.subr.mxu0 0.0
      %725 = vmatpush1.msra.mxu0 0.0
      %726 = vmatprep.subr.mxu0 0.0
      %727 = vmatpush1.msra.mxu0 0.0
      %728 = vmatprep.subr.mxu0 0.0
      %729 = vmatpush1.msra.mxu0 0.0
      %730 = vmatprep.subr.mxu0 0.0
      %731 = vmatpush1.msra.mxu0 0.0
      %732 = vmatprep.subr.mxu0 0.0
      %733 = vmatpush1.msra.mxu0 0.0
      %734 = vmatprep.subr.mxu0 0.0
      %735 = vmatpush1.msra.mxu0 0.0
      %736 = vmatprep.subr.mxu0 0.0
      %737 = vmatpush1.msra.mxu0 0.0
      %738 = vmatprep.subr.mxu0 0.0
      %739 = vmatpush1.msra.mxu0 0.0
      %740 = vmatprep.subr.mxu0 0.0
      %741 = vmatpush1.msra.mxu0 0.0
      %742 = vmatprep.subr.mxu0 0.0
      %743 = vmatpush1.msra.mxu0 0.0
      %744 = vmatprep.subr.mxu0 0.0
      %745 = vmatpush1.msra.mxu0 0.0
      %746 = vmatprep.subr.mxu0 0.0
      %747 = vmatpush1.msra.mxu0 0.0
      %748 = vmatprep.subr.mxu0 0.0
      %749 = vmatpush1.msra.mxu0 0.0
      %750 = vmatprep.subr.mxu0 0.0
      %751 = vmatpush1.msra.mxu0 0.0
      %752 = vmatprep.subr.mxu0 0.0
      %753 = vmatpush1.msra.mxu0 0.0
      %754 = vmatprep.subr.mxu0 0.0
      %755 = vmatpush1.msra.mxu0 0.0
      %756 = vmatprep.subr.mxu0 0.0
      %757 = vmatpush1.msra.mxu0 0.0
      %758 = vmatprep.subr.mxu0 0.0
      %759 = vmatpush1.msra.mxu0 0.0
      %760 = vmatprep.subr.mxu0 0.0
      %761 = vmatpush1.msra.mxu0 0.0
      %762 = vmatprep.subr.mxu0 0.0
      %763 = vmatpush1.msra.mxu0 0.0
      %764 = vmatprep.subr.mxu0 0.0
      %765 = vmatpush1.msra.mxu0 0.0
      %766 = vmatprep.mubr.f32.mxu0 0.0
      %767 = vmatmul.mubr.f32.gmra.mrb[0].mxu0 %v315
      %v768 = vpop.f32.mrb[0].mxu0
      %v769 = vadd.f32 %v311, %v768
      %v770 = vpop.f32.mrb[0].mxu0
      %771 = vmatprep.mubr.f32.mxu0 0.0
      %772 = vmatmul.mubr.f32.gmra.mrb[0].mxu0 %v318
      %v773 = vpop.f32.mrb[0].mxu0
      %v774 = vadd.f32 %v311, %v773
      %v775 = vpop.f32.mrb[0].mxu0
      %776 = vmatprep.mubr.f32.mxu0 0.0
      %777 = vmatmul.mubr.f32.gmra.mrb[0].mxu0 %v321
      %v778 = vpop.f32.mrb[0].mxu0
      %v779 = vadd.f32 %v311, %v778
      %v780 = vpop.f32.mrb[0].mxu0
      %781 = vmatprep.mubr.f32.mxu0 0.0
      %782 = vmatmul.mubr.f32.gmra.mrb[0].mxu0 %v324
      %v783 = vpop.f32.mrb[0].mxu0
      %v784 = vadd.f32 %v311, %v783
      %v785 = vpop.f32.mrb[0].mxu0
      %786 = vmatprep.mubr.f32.mxu0 0.0
      %787 = vmatmul.mubr.f32.gmra.mrb[0].mxu0 %v327
      %v788 = vpop.f32.mrb[0].mxu0
      %v789 = vadd.f32 %v311, %v788
      %v790 = vpop.f32.mrb[0].mxu0
      %791 = vmatprep.mubr.f32.mxu0 0.0
      %792 = vmatmul.mubr.f32.gmra.mrb[0].mxu0 %v330
      %v793 = vpop.f32.mrb[0].mxu0
      %v794 = vadd.f32 %v311, %v793
      %v795 = vpop.f32.mrb[0].mxu0
      %796 = vmatprep.mubr.f32.mxu0 0.0
      %797 = vmatmul.mubr.f32.gmra.mrb[0].mxu0 %v333
      %v798 = vpop.f32.mrb[0].mxu0
      %v799 = vadd.f32 %v311, %v798
      %v800 = vpop.f32.mrb[0].mxu0
      %801 = vmatprep.mubr.f32.mxu0 0.0
      %802 = vmatmul.mubr.f32.gmra.mrb[0].mxu0 %v336
      %v803 = vpop.f32.mrb[0].mxu0
      %v804 = vadd.f32 %v311, %v803
      %v805 = vpop.f32.mrb[0].mxu0
      %806 = vmatprep.mubr.f32.mxu0 0.0
      %807 = vmatmul.mubr.f32.gmra.mrb[0].mxu0 %v339
      %v808 = vpop.f32.mrb[0].mxu0
      %v809 = vadd.f32 %v311, %v808
      %v810 = vpop.f32.mrb[0].mxu0
      %811 = vmatprep.mubr.f32.mxu0 0.0
      %812 = vmatmul.mubr.f32.gmra.mrb[0].mxu0 %v342
      %v813 = vpop.f32.mrb[0].mxu0
      %v814 = vadd.f32 %v311, %v813
      %v815 = vpop.f32.mrb[0].mxu0
      %816 = vmatprep.mubr.f32.mxu0 0.0
      %817 = vmatmul.mubr.f32.gmra.mrb[0].mxu0 %v345
      %v818 = vpop.f32.mrb[0].mxu0
      %v819 = vadd.f32 %v311, %v818
      %v820 = vpop.f32.mrb[0].mxu0
      %821 = vmatprep.mubr.f32.mxu0 0.0
      %822 = vmatmul.mubr.f32.gmra.mrb[0].mxu0 %v348
      %v823 = vpop.f32.mrb[0].mxu0
      %v824 = vadd.f32 %v311, %v823
      %v825 = vpop.f32.mrb[0].mxu0
      %826 = vmatprep.mubr.f32.mxu0 0.0
      %827 = vmatmul.mubr.f32.gmra.mrb[0].mxu0 %v351
      %v828 = vpop.f32.mrb[0].mxu0
      %v829 = vadd.f32 %v311, %v828
      %v830 = vpop.f32.mrb[0].mxu0
      %831 = vmatprep.mubr.f32.mxu0 0.0
      %832 = vmatmul.mubr.f32.gmra.mrb[0].mxu0 %v354
      %v833 = vpop.f32.mrb[0].mxu0
      %v834 = vadd.f32 %v311, %v833
      %v835 = vpop.f32.mrb[0].mxu0
      %836 = vmatprep.mubr.f32.mxu0 0.0
      %837 = vmatmul.mubr.f32.gmra.mrb[0].mxu0 %v357
      %v838 = vpop.f32.mrb[0].mxu0
      %v839 = vadd.f32 %v311, %v838
      %v840 = vpop.f32.mrb[0].mxu0
      %841 = vmatprep.mubr.f32.mxu0 0.0
      %842 = vmatmul.mubr.f32.gmra.mrb[0].mxu0 %v360
      %v843 = vpop.f32.mrb[0].mxu0
      %v844 = vadd.f32 %v311, %v843
      %v845 = vpop.f32.mrb[0].mxu0
      %846 = vmatprep.mubr.f32.mxu0 0.0
      %847 = vmatmul.mubr.f32.gmra.mrb[0].mxu0 %v363
      %v848 = vpop.f32.mrb[0].mxu0
      %v849 = vadd.f32 %v311, %v848
      %v850 = vpop.f32.mrb[0].mxu0
      %851 = vmatprep.mubr.f32.mxu0 0.0
      %852 = vmatmul.mubr.f32.gmra.mrb[0].mxu0 %v366
      %v853 = vpop.f32.mrb[0].mxu0
      %v854 = vadd.f32 %v311, %v853
      %v855 = vpop.f32.mrb[0].mxu0
      %856 = vmatprep.mubr.f32.mxu0 0.0
      %857 = vmatmul.mubr.f32.gmra.mrb[0].mxu0 %v369
      %v858 = vpop.f32.mrb[0].mxu0
      %v859 = vadd.f32 %v311, %v858
      %v860 = vpop.f32.mrb[0].mxu0
      %861 = vmatprep.mubr.f32.mxu0 0.0
      %862 = vmatmul.mubr.f32.gmra.mrb[0].mxu0 %v372
      %v863 = vpop.f32.mrb[0].mxu0
      %v864 = vadd.f32 %v311, %v863
      %v865 = vpop.f32.mrb[0].mxu0
      %866 = vmatprep.mubr.f32.mxu0 0.0
      %867 = vmatmul.mubr.f32.gmra.mrb[0].mxu0 %v375
      %v868 = vpop.f32.mrb[0].mxu0
      %v869 = vadd.f32 %v311, %v868
      %v870 = vpop.f32.mrb[0].mxu0
      %871 = vmatprep.mubr.f32.mxu0 0.0
      %872 = vmatmul.mubr.f32.gmra.mrb[0].mxu0 %v378
      %v873 = vpop.f32.mrb[0].mxu0
      %v874 = vadd.f32 %v311, %v873
      %v875 = vpop.f32.mrb[0].mxu0
      %876 = vmatprep.mubr.f32.mxu0 0.0
      %877 = vmatmul.mubr.f32.gmra.mrb[0].mxu0 %v381
      %v878 = vpop.f32.mrb[0].mxu0
      %v879 = vadd.f32 %v311, %v878
      %v880 = vpop.f32.mrb[0].mxu0
      %881 = vmatprep.mubr.f32.mxu0 0.0
      %882 = vmatmul.mubr.f32.gmra.mrb[0].mxu0 %v384
      %v883 = vpop.f32.mrb[0].mxu0
      %v884 = vadd.f32 %v311, %v883
      %v885 = vpop.f32.mrb[0].mxu0
      %886 = vmatprep.mubr.f32.mxu0 0.0
      %887 = vmatmul.mubr.f32.gmra.mrb[0].mxu0 %v387
      %v888 = vpop.f32.mrb[0].mxu0
      %v889 = vadd.f32 %v311, %v888
      %v890 = vpop.f32.mrb[0].mxu0
      %891 = vmatprep.mubr.f32.mxu0 0.0
      %892 = vmatmul.mubr.f32.gmra.mrb[0].mxu0 %v390
      %v893 = vpop.f32.mrb[0].mxu0
      %v894 = vadd.f32 %v311, %v893
      %v895 = vpop.f32.mrb[0].mxu0
      %896 = vmatprep.mubr.f32.mxu0 0.0
      %897 = vmatmul.mubr.f32.gmra.mrb[0].mxu0 %v393
      %v898 = vpop.f32.mrb[0].mxu0
      %v899 = vadd.f32 %v311, %v898
      %v900 = vpop.f32.mrb[0].mxu0
      %901 = vmatprep.mubr.f32.mxu0 0.0
      %902 = vmatmul.mubr.f32.gmra.mrb[0].mxu0 %v396
      %v903 = vpop.f32.mrb[0].mxu0
      %v904 = vadd.f32 %v311, %v903
      %v905 = vpop.f32.mrb[0].mxu0
      %906 = vmatprep.mubr.f32.mxu0 0.0
      %907 = vmatmul.mubr.f32.gmra.mrb[0].mxu0 %v399
      %v908 = vpop.f32.mrb[0].mxu0
      %v909 = vadd.f32 %v311, %v908
      %v910 = vpop.f32.mrb[0].mxu0
      %911 = vmatprep.mubr.f32.mxu0 0.0
      %912 = vmatmul.mubr.f32.gmra.mrb[0].mxu0 %v402
      %v913 = vpop.f32.mrb[0].mxu0
      %v914 = vadd.f32 %v311, %v913
      %v915 = vpop.f32.mrb[0].mxu0
      %916 = vmatprep.mubr.f32.mxu0 0.0
      %917 = vmatmul.mubr.f32.gmra.mrb[0].mxu0 %v405
      %v918 = vpop.f32.mrb[0].mxu0
      %v919 = vadd.f32 %v311, %v918
      %v920 = vpop.f32.mrb[0].mxu0
      %921 = vmatprep.mubr.f32.mxu0 0.0
      %922 = vmatmul.mubr.f32.gmra.mrb[0].mxu0 %v408
      %v923 = vpop.f32.mrb[0].mxu0
      %v924 = vadd.f32 %v311, %v923
      %v925 = vpop.f32.mrb[0].mxu0
      %926 = vmatprep.mubr.f32.mxu0 0.0
      %927 = vmatmul.mubr.f32.gmra.mrb[0].mxu0 %v411
      %v928 = vpop.f32.mrb[0].mxu0
      %v929 = vadd.f32 %v311, %v928
      %v930 = vpop.f32.mrb[0].mxu0
      %931 = vmatprep.mubr.f32.mxu0 0.0
      %932 = vmatmul.mubr.f32.gmra.mrb[0].mxu0 %v414
      %v933 = vpop.f32.mrb[0].mxu0
      %v934 = vadd.f32 %v311, %v933
      %v935 = vpop.f32.mrb[0].mxu0
      %936 = vmatprep.mubr.f32.mxu0 0.0
      %937 = vmatmul.mubr.f32.gmra.mrb[0].mxu0 %v417
      %v938 = vpop.f32.mrb[0].mxu0
      %v939 = vadd.f32 %v311, %v938
      %v940 = vpop.f32.mrb[0].mxu0
      %941 = vmatprep.mubr.f32.mxu0 0.0
      %942 = vmatmul.mubr.f32.gmra.mrb[0].mxu0 %v420
      %v943 = vpop.f32.mrb[0].mxu0
      %v944 = vadd.f32 %v311, %v943
      %v945 = vpop.f32.mrb[0].mxu0
      %946 = vmatprep.mubr.f32.mxu0 0.0
      %947 = vmatmul.mubr.f32.gmra.mrb[0].mxu0 %v423
      %v948 = vpop.f32.mrb[0].mxu0
      %v949 = vadd.f32 %v311, %v948
      %v950 = vpop.f32.mrb[0].mxu0
      %951 = vmatprep.mubr.f32.mxu0 0.0
      %952 = vmatmul.mubr.f32.gmra.mrb[0].mxu0 %v426
      %v953 = vpop.f32.mrb[0].mxu0
      %v954 = vadd.f32 %v311, %v953
      %v955 = vpop.f32.mrb[0].mxu0
      %956 = vmatprep.mubr.f32.mxu0 0.0
      %957 = vmatmul.mubr.f32.gmra.mrb[0].mxu0 %v429
      %v958 = vpop.f32.mrb[0].mxu0
      %v959 = vadd.f32 %v311, %v958
      %v960 = vpop.f32.mrb[0].mxu0
      %961 = vmatprep.mubr.f32.mxu0 0.0
      %962 = vmatmul.mubr.f32.gmra.mrb[0].mxu0 %v432
      %v963 = vpop.f32.mrb[0].mxu0
      %v964 = vadd.f32 %v311, %v963
      %v965 = vpop.f32.mrb[0].mxu0
      %966 = vmatprep.mubr.f32.mxu0 0.0
      %967 = vmatmul.mubr.f32.gmra.mrb[0].mxu0 %v435
      %v968 = vpop.f32.mrb[0].mxu0
      %v969 = vadd.f32 %v311, %v968
      %v970 = vpop.f32.mrb[0].mxu0
      %971 = vmatprep.mubr.f32.mxu0 0.0
      %972 = vmatmul.mubr.f32.gmra.mrb[0].mxu0 %v438
      %v973 = vpop.f32.mrb[0].mxu0
      %v974 = vadd.f32 %v311, %v973
      %v975 = vpop.f32.mrb[0].mxu0
      %976 = vmatprep.mubr.f32.mxu0 0.0
      %977 = vmatmul.mubr.f32.gmra.mrb[0].mxu0 %v441
      %v978 = vpop.f32.mrb[0].mxu0
      %v979 = vadd.f32 %v311, %v978
      %v980 = vpop.f32.mrb[0].mxu0
      %981 = vmatprep.mubr.f32.mxu0 0.0
      %982 = vmatmul.mubr.f32.gmra.mrb[0].mxu0 %v444
      %v983 = vpop.f32.mrb[0].mxu0
      %v984 = vadd.f32 %v311, %v983
      %v985 = vpop.f32.mrb[0].mxu0
      %986 = vmatprep.mubr.f32.mxu0 0.0
      %987 = vmatmul.mubr.f32.gmra.mrb[0].mxu0 %v447
      %v988 = vpop.f32.mrb[0].mxu0
      %v989 = vadd.f32 %v311, %v988
      %v990 = vpop.f32.mrb[0].mxu0
      %991 = vmatprep.mubr.f32.mxu0 0.0
      %992 = vmatmul.mubr.f32.gmra.mrb[0].mxu0 %v450
      %v993 = vpop.f32.mrb[0].mxu0
      %v994 = vadd.f32 %v311, %v993
      %v995 = vpop.f32.mrb[0].mxu0
      %996 = vmatprep.mubr.f32.mxu0 0.0
      %997 = vmatmul.mubr.f32.gmra.mrb[0].mxu0 %v453
      %v998 = vpop.f32.mrb[0].mxu0
      %v999 = vadd.f32 %v311, %v998
      %v1000 = vpop.f32.mrb[0].mxu0
      %1001 = vmatprep.mubr.f32.mxu0 0.0
      %1002 = vmatmul.mubr.f32.gmra.mrb[0].mxu0 %v456
      %v1003 = vpop.f32.mrb[0].mxu0
      %v1004 = vadd.f32 %v311, %v1003
      %v1005 = vpop.f32.mrb[0].mxu0
      %1006 = vmatprep.mubr.f32.mxu0 0.0
      %1007 = vmatmul.mubr.f32.gmra.mrb[0].mxu0 %v459
      %v1008 = vpop.f32.mrb[0].mxu0
      %v1009 = vadd.f32 %v311, %v1008
      %v1010 = vpop.f32.mrb[0].mxu0
      %1011 = vmatprep.mubr.f32.mxu0 0.0
      %1012 = vmatmul.mubr.f32.gmra.mrb[0].mxu0 %v462
      %v1013 = vpop.f32.mrb[0].mxu0
      %v1014 = vadd.f32 %v311, %v1013
      %v1015 = vpop.f32.mrb[0].mxu0
      %1016 = vmatprep.mubr.f32.mxu0 0.0
      %1017 = vmatmul.mubr.f32.gmra.mrb[0].mxu0 %v465
      %v1018 = vpop.f32.mrb[0].mxu0
      %v1019 = vadd.f32 %v311, %v1018
      %v1020 = vpop.f32.mrb[0].mxu0
      %1021 = vmatprep.mubr.f32.mxu0 0.0
      %1022 = vmatmul.mubr.f32.gmra.mrb[0].mxu0 %v468
      %v1023 = vpop.f32.mrb[0].mxu0
      %v1024 = vadd.f32 %v311, %v1023
      %v1025 = vpop.f32.mrb[0].mxu0
      %1026 = vmatprep.mubr.f32.mxu0 0.0
      %1027 = vmatmul.mubr.f32.gmra.mrb[0].mxu0 %v471
      %v1028 = vpop.f32.mrb[0].mxu0
      %v1029 = vadd.f32 %v311, %v1028
      %v1030 = vpop.f32.mrb[0].mxu0
      %1031 = vmatprep.mubr.f32.mxu0 0.0
      %1032 = vmatmul.mubr.f32.gmra.mrb[0].mxu0 %v474
      %v1033 = vpop.f32.mrb[0].mxu0
      %v1034 = vadd.f32 %v311, %v1033
      %v1035 = vpop.f32.mrb[0].mxu0
      %1036 = vmatprep.mubr.f32.mxu0 0.0
      %1037 = vmatmul.mubr.f32.gmra.mrb[0].mxu0 %v477
      %v1038 = vpop.f32.mrb[0].mxu0
      %v1039 = vadd.f32 %v311, %v1038
      %v1040 = vpop.f32.mrb[0].mxu0
      %1041 = vmatprep.mubr.f32.mxu0 0.0
      %1042 = vmatmul.mubr.f32.gmra.mrb[0].mxu0 %v480
      %v1043 = vpop.f32.mrb[0].mxu0
      %v1044 = vadd.f32 %v311, %v1043
      %v1045 = vpop.f32.mrb[0].mxu0
      %1046 = vmatprep.mubr.f32.mxu0 0.0
      %1047 = vmatmul.mubr.f32.gmra.mrb[0].mxu0 %v483
      %v1048 = vpop.f32.mrb[0].mxu0
      %v1049 = vadd.f32 %v311, %v1048
      %v1050 = vpop.f32.mrb[0].mxu0
      %1051 = vmatprep.mubr.f32.mxu0 0.0
      %1052 = vmatmul.mubr.f32.gmra.mrb[0].mxu0 %v486
      %v1053 = vpop.f32.mrb[0].mxu0
      %v1054 = vadd.f32 %v311, %v1053
      %v1055 = vpop.f32.mrb[0].mxu0
      %1056 = vmatprep.mubr.f32.mxu0 0.0
      %1057 = vmatmul.mubr.f32.gmra.mrb[0].mxu0 %v489
      %v1058 = vpop.f32.mrb[0].mxu0
      %v1059 = vadd.f32 %v311, %v1058
      %v1060 = vpop.f32.mrb[0].mxu0
      %1061 = vmatprep.mubr.f32.mxu0 0.0
      %1062 = vmatmul.mubr.f32.gmra.mrb[0].mxu0 %v492
      %v1063 = vpop.f32.mrb[0].mxu0
      %v1064 = vadd.f32 %v311, %v1063
      %v1065 = vpop.f32.mrb[0].mxu0
      %1066 = vmatprep.mubr.f32.mxu0 0.0
      %1067 = vmatmul.mubr.f32.gmra.mrb[0].mxu0 %v495
      %v1068 = vpop.f32.mrb[0].mxu0
      %v1069 = vadd.f32 %v311, %v1068
      %v1070 = vpop.f32.mrb[0].mxu0
      %1071 = vmatprep.mubr.f32.mxu0 0.0
      %1072 = vmatmul.mubr.f32.gmra.mrb[0].mxu0 %v498
      %v1073 = vpop.f32.mrb[0].mxu0
      %v1074 = vadd.f32 %v311, %v1073
      %v1075 = vpop.f32.mrb[0].mxu0
      %1076 = vmatprep.mubr.f32.mxu0 0.0
      %1077 = vmatmul.mubr.f32.gmra.mrb[0].mxu0 %v501
      %v1078 = vpop.f32.mrb[0].mxu0
      %v1079 = vadd.f32 %v311, %v1078
      %v1080 = vpop.f32.mrb[0].mxu0
      %1081 = vmatprep.mubr.f32.mxu0 0.0
      %1082 = vmatmul.mubr.f32.gmra.mrb[0].mxu0 %v504
      %v1083 = vpop.f32.mrb[0].mxu0
      %v1084 = vadd.f32 %v311, %v1083
      %v1085 = vpop.f32.mrb[0].mxu0
      %1086 = vmatprep.mubr.f32.mxu0 0.0
      %1087 = vmatmul.mubr.f32.gmra.mrb[0].mxu0 %v507
      %v1088 = vpop.f32.mrb[0].mxu0
      %v1089 = vadd.f32 %v311, %v1088
      %v1090 = vpop.f32.mrb[0].mxu0
      %1091 = vmatprep.mubr.f32.mxu0 0.0
      %1092 = vmatmul.mubr.f32.gmra.mrb[0].mxu0 %v510
      %v1093 = vpop.f32.mrb[0].mxu0
      %v1094 = vadd.f32 %v311, %v1093
      %v1095 = vpop.f32.mrb[0].mxu0
      %1096 = vmatprep.mubr.f32.mxu0 0.0
      %1097 = vmatmul.mubr.f32.gmra.mrb[0].mxu0 %v513
      %v1098 = vpop.f32.mrb[0].mxu0
      %v1099 = vadd.f32 %v311, %v1098
      %v1100 = vpop.f32.mrb[0].mxu0
      %1101 = vmatprep.mubr.f32.mxu0 0.0
      %1102 = vmatmul.mubr.f32.gmra.mrb[0].mxu0 %v516
      %v1103 = vpop.f32.mrb[0].mxu0
      %v1104 = vadd.f32 %v311, %v1103
      %v1105 = vpop.f32.mrb[0].mxu0
      %1106 = vmatprep.mubr.f32.mxu0 0.0
      %1107 = vmatmul.mubr.f32.gmra.mrb[0].mxu0 %v519
      %v1108 = vpop.f32.mrb[0].mxu0
      %v1109 = vadd.f32 %v311, %v1108
      %v1110 = vpop.f32.mrb[0].mxu0
      %1111 = vmatprep.mubr.f32.mxu0 0.0
      %1112 = vmatmul.mubr.f32.gmra.mrb[0].mxu0 %v522
      %v1113 = vpop.f32.mrb[0].mxu0
      %v1114 = vadd.f32 %v311, %v1113
      %v1115 = vpop.f32.mrb[0].mxu0
      %1116 = vmatprep.mubr.f32.mxu0 0.0
      %1117 = vmatmul.mubr.f32.gmra.mrb[0].mxu0 %v525
      %v1118 = vpop.f32.mrb[0].mxu0
      %v1119 = vadd.f32 %v311, %v1118
      %v1120 = vpop.f32.mrb[0].mxu0
      %1121 = vmatprep.mubr.f32.mxu0 0.0
      %1122 = vmatmul.mubr.f32.gmra.mrb[0].mxu0 %v528
      %v1123 = vpop.f32.mrb[0].mxu0
      %v1124 = vadd.f32 %v311, %v1123
      %v1125 = vpop.f32.mrb[0].mxu0
      %1126 = vmatprep.mubr.f32.mxu0 0.0
      %1127 = vmatmul.mubr.f32.gmra.mrb[0].mxu0 %v531
      %v1128 = vpop.f32.mrb[0].mxu0
      %v1129 = vadd.f32 %v311, %v1128
      %v1130 = vpop.f32.mrb[0].mxu0
      %1131 = vmatprep.mubr.f32.mxu0 0.0
      %1132 = vmatmul.mubr.f32.gmra.mrb[0].mxu0 %v534
      %v1133 = vpop.f32.mrb[0].mxu0
      %v1134 = vadd.f32 %v311, %v1133
      %v1135 = vpop.f32.mrb[0].mxu0
      %1136 = vmatprep.mubr.f32.mxu0 0.0
      %1137 = vmatmul.mubr.f32.gmra.mrb[0].mxu0 %v537
      %v1138 = vpop.f32.mrb[0].mxu0
      %v1139 = vadd.f32 %v311, %v1138
      %v1140 = vpop.f32.mrb[0].mxu0
      %1141 = vmatprep.mubr.f32.mxu0 0.0
      %1142 = vmatmul.mubr.f32.gmra.mrb[0].mxu0 %v540
      %v1143 = vpop.f32.mrb[0].mxu0
      %v1144 = vadd.f32 %v311, %v1143
      %v1145 = vpop.f32.mrb[0].mxu0
      %1146 = vmatprep.mubr.f32.mxu0 0.0
      %1147 = vmatmul.mubr.f32.gmra.mrb[0].mxu0 %v543
      %v1148 = vpop.f32.mrb[0].mxu0
      %v1149 = vadd.f32 %v311, %v1148
      %v1150 = vpop.f32.mrb[0].mxu0
      %1151 = vmatprep.mubr.f32.mxu0 0.0
      %1152 = vmatmul.mubr.f32.gmra.mrb[0].mxu0 %v546
      %v1153 = vpop.f32.mrb[0].mxu0
      %v1154 = vadd.f32 %v311, %v1153
      %v1155 = vpop.f32.mrb[0].mxu0
      %1156 = vmatprep.mubr.f32.mxu0 0.0
      %1157 = vmatmul.mubr.f32.gmra.mrb[0].mxu0 %v549
      %v1158 = vpop.f32.mrb[0].mxu0
      %v1159 = vadd.f32 %v311, %v1158
      %v1160 = vpop.f32.mrb[0].mxu0
      %1161 = vmatprep.mubr.f32.mxu0 0.0
      %1162 = vmatmul.mubr.f32.gmra.mrb[0].mxu0 %v552
      %v1163 = vpop.f32.mrb[0].mxu0
      %v1164 = vadd.f32 %v311, %v1163
      %v1165 = vpop.f32.mrb[0].mxu0
      %1166 = vmatprep.mubr.f32.mxu0 0.0
      %1167 = vmatmul.mubr.f32.gmra.mrb[0].mxu0 %v555
      %v1168 = vpop.f32.mrb[0].mxu0
      %v1169 = vadd.f32 %v311, %v1168
      %v1170 = vpop.f32.mrb[0].mxu0
      %1171 = vmatprep.mubr.f32.mxu0 0.0
      %1172 = vmatmul.mubr.f32.gmra.mrb[0].mxu0 %v558
      %v1173 = vpop.f32.mrb[0].mxu0
      %v1174 = vadd.f32 %v311, %v1173
      %v1175 = vpop.f32.mrb[0].mxu0
      %1176 = vmatprep.mubr.f32.mxu0 0.0
      %1177 = vmatmul.mubr.f32.gmra.mrb[0].mxu0 %v561
      %v1178 = vpop.f32.mrb[0].mxu0
      %v1179 = vadd.f32 %v311, %v1178
      %v1180 = vpop.f32.mrb[0].mxu0
      %1181 = vmatprep.mubr.f32.mxu0 0.0
      %1182 = vmatmul.mubr.f32.gmra.mrb[0].mxu0 %v564
      %v1183 = vpop.f32.mrb[0].mxu0
      %v1184 = vadd.f32 %v311, %v1183
      %v1185 = vpop.f32.mrb[0].mxu0
      %1186 = vmatprep.mubr.f32.mxu0 0.0
      %1187 = vmatmul.mubr.f32.gmra.mrb[0].mxu0 %v567
      %v1188 = vpop.f32.mrb[0].mxu0
      %v1189 = vadd.f32 %v311, %v1188
      %v1190 = vpop.f32.mrb[0].mxu0
      %1191 = vmatprep.mubr.f32.mxu0 0.0
      %1192 = vmatmul.mubr.f32.gmra.mrb[0].mxu0 %v570
      %v1193 = vpop.f32.mrb[0].mxu0
      %v1194 = vadd.f32 %v311, %v1193
      %v1195 = vpop.f32.mrb[0].mxu0
      %1196 = vmatprep.mubr.f32.mxu0 0.0
      %1197 = vmatmul.mubr.f32.gmra.mrb[0].mxu0 %v573
      %v1198 = vpop.f32.mrb[0].mxu0
      %v1199 = vadd.f32 %v311, %v1198
      %v1200 = vpop.f32.mrb[0].mxu0
      %1201 = vmatprep.mubr.f32.mxu0 0.0
      %1202 = vmatmul.mubr.f32.gmra.mrb[0].mxu0 %v576
      %v1203 = vpop.f32.mrb[0].mxu0
      %v1204 = vadd.f32 %v311, %v1203
      %v1205 = vpop.f32.mrb[0].mxu0
      %1206 = vmatprep.mubr.f32.mxu0 0.0
      %1207 = vmatmul.mubr.f32.gmra.mrb[0].mxu0 %v579
      %v1208 = vpop.f32.mrb[0].mxu0
      %v1209 = vadd.f32 %v311, %v1208
      %v1210 = vpop.f32.mrb[0].mxu0
      %1211 = vmatprep.mubr.f32.mxu0 0.0
      %1212 = vmatmul.mubr.f32.gmra.mrb[0].mxu0 %v582
      %v1213 = vpop.f32.mrb[0].mxu0
      %v1214 = vadd.f32 %v311, %v1213
      %v1215 = vpop.f32.mrb[0].mxu0
      %1216 = vmatprep.mubr.f32.mxu0 0.0
      %1217 = vmatmul.mubr.f32.gmra.mrb[0].mxu0 %v585
      %v1218 = vpop.f32.mrb[0].mxu0
      %v1219 = vadd.f32 %v311, %v1218
      %v1220 = vpop.f32.mrb[0].mxu0
      %1221 = vmatprep.mubr.f32.mxu0 0.0
      %1222 = vmatmul.mubr.f32.gmra.mrb[0].mxu0 %v588
      %v1223 = vpop.f32.mrb[0].mxu0
      %v1224 = vadd.f32 %v311, %v1223
      %v1225 = vpop.f32.mrb[0].mxu0
      %1226 = vmatprep.mubr.f32.mxu0 0.0
      %1227 = vmatmul.mubr.f32.gmra.mrb[0].mxu0 %v591
      %v1228 = vpop.f32.mrb[0].mxu0
      %v1229 = vadd.f32 %v311, %v1228
      %v1230 = vpop.f32.mrb[0].mxu0
      %1231 = vmatprep.mubr.f32.mxu0 0.0
      %1232 = vmatmul.mubr.f32.gmra.mrb[0].mxu0 %v594
      %v1233 = vpop.f32.mrb[0].mxu0
      %v1234 = vadd.f32 %v311, %v1233
      %v1235 = vpop.f32.mrb[0].mxu0
      %1236 = vmatprep.mubr.f32.mxu0 0.0
      %1237 = vmatmul.mubr.f32.gmra.mrb[0].mxu0 %v597
      %v1238 = vpop.f32.mrb[0].mxu0
      %v1239 = vadd.f32 %v311, %v1238
      %v1240 = vpop.f32.mrb[0].mxu0
      %1241 = vmatprep.mubr.f32.mxu0 0.0
      %1242 = vmatmul.mubr.f32.gmra.mrb[0].mxu0 %v600
      %v1243 = vpop.f32.mrb[0].mxu0
      %v1244 = vadd.f32 %v311, %v1243
      %v1245 = vpop.f32.mrb[0].mxu0
      %1246 = vmatprep.mubr.f32.mxu0 0.0
      %1247 = vmatmul.mubr.f32.gmra.mrb[0].mxu0 %v603
      %v1248 = vpop.f32.mrb[0].mxu0
      %v1249 = vadd.f32 %v311, %v1248
      %v1250 = vpop.f32.mrb[0].mxu0
      %1251 = vmatprep.mubr.f32.mxu0 0.0
      %1252 = vmatmul.mubr.f32.gmra.mrb[0].mxu0 %v606
      %v1253 = vpop.f32.mrb[0].mxu0
      %v1254 = vadd.f32 %v311, %v1253
      %v1255 = vpop.f32.mrb[0].mxu0
      %1256 = vmatprep.mubr.f32.mxu0 0.0
      %1257 = vmatmul.mubr.f32.gmra.mrb[0].mxu0 %v609
      %v1258 = vpop.f32.mrb[0].mxu0
      %v1259 = vadd.f32 %v311, %v1258
      %v1260 = vpop.f32.mrb[0].mxu0
      %1261 = vmatprep.mubr.f32.mxu0 0.0
      %1262 = vmatmul.mubr.f32.gmra.mrb[0].mxu0 %v612
      %v1263 = vpop.f32.mrb[0].mxu0
      %v1264 = vadd.f32 %v311, %v1263
      %v1265 = vpop.f32.mrb[0].mxu0
      %1266 = vmatprep.mubr.f32.mxu0 0.0
      %1267 = vmatmul.mubr.f32.gmra.mrb[0].mxu0 %v615
      %v1268 = vpop.f32.mrb[0].mxu0
      %v1269 = vadd.f32 %v311, %v1268
      %v1270 = vpop.f32.mrb[0].mxu0
      %1271 = vmatprep.mubr.f32.mxu0 0.0
      %1272 = vmatmul.mubr.f32.gmra.mrb[0].mxu0 %v618
      %v1273 = vpop.f32.mrb[0].mxu0
      %v1274 = vadd.f32 %v311, %v1273
      %v1275 = vpop.f32.mrb[0].mxu0
      %1276 = vmatprep.mubr.f32.mxu0 0.0
      %1277 = vmatmul.mubr.f32.gmra.mrb[0].mxu0 %v621
      %v1278 = vpop.f32.mrb[0].mxu0
      %v1279 = vadd.f32 %v311, %v1278
      %v1280 = vpop.f32.mrb[0].mxu0
      %1281 = vmatprep.mubr.f32.mxu0 0.0
      %1282 = vmatmul.mubr.f32.gmra.mrb[0].mxu0 %v624
      %v1283 = vpop.f32.mrb[0].mxu0
      %v1284 = vadd.f32 %v311, %v1283
      %v1285 = vpop.f32.mrb[0].mxu0
      %1286 = vmatprep.mubr.f32.mxu0 0.0
      %1287 = vmatmul.mubr.f32.gmra.mrb[0].mxu0 %v627
      %v1288 = vpop.f32.mrb[0].mxu0
      %v1289 = vadd.f32 %v311, %v1288
      %v1290 = vpop.f32.mrb[0].mxu0
      %1291 = vmatprep.mubr.f32.mxu0 0.0
      %1292 = vmatmul.mubr.f32.gmra.mrb[0].mxu0 %v630
      %v1293 = vpop.f32.mrb[0].mxu0
      %v1294 = vadd.f32 %v311, %v1293
      %v1295 = vpop.f32.mrb[0].mxu0
      %1296 = vmatprep.mubr.f32.mxu0 0.0
      %1297 = vmatmul.mubr.f32.gmra.mrb[0].mxu0 %v633
      %v1298 = vpop.f32.mrb[0].mxu0
      %v1299 = vadd.f32 %v311, %v1298
      %v1300 = vpop.f32.mrb[0].mxu0
      %1301 = vmatprep.mubr.f32.mxu0 0.0
      %1302 = vmatmul.mubr.f32.gmra.mrb[0].mxu0 %v636
      %v1303 = vpop.f32.mrb[0].mxu0
      %v1304 = vadd.f32 %v311, %v1303
      %v1305 = vpop.f32.mrb[0].mxu0
      %1306 = vmatprep.mubr.f32.mxu0 0.0
      %1307 = vmatmul.mubr.f32.gmra.mrb[0].mxu0 %v639
      %v1308 = vpop.f32.mrb[0].mxu0
      %v1309 = vadd.f32 %v311, %v1308
      %v1310 = vpop.f32.mrb[0].mxu0
      %1311 = vmatprep.mubr.f32.mxu0 0.0
      %1312 = vmatmul.mubr.f32.gmra.mrb[0].mxu0 %v642
      %v1313 = vpop.f32.mrb[0].mxu0
      %v1314 = vadd.f32 %v311, %v1313
      %v1315 = vpop.f32.mrb[0].mxu0
      %1316 = vmatprep.mubr.f32.mxu0 0.0
      %1317 = vmatmul.mubr.f32.gmra.mrb[0].mxu0 %v645
      %v1318 = vpop.f32.mrb[0].mxu0
      %v1319 = vadd.f32 %v311, %v1318
      %v1320 = vpop.f32.mrb[0].mxu0
      %1321 = vmatprep.mubr.f32.mxu0 0.0
      %1322 = vmatmul.mubr.f32.gmra.mrb[0].mxu0 %v648
      %v1323 = vpop.f32.mrb[0].mxu0
      %v1324 = vadd.f32 %v311, %v1323
      %v1325 = vpop.f32.mrb[0].mxu0
      %1326 = vmatprep.mubr.f32.mxu0 0.0
      %1327 = vmatmul.mubr.f32.gmra.mrb[0].mxu0 %v651
      %v1328 = vpop.f32.mrb[0].mxu0
      %v1329 = vadd.f32 %v311, %v1328
      %v1330 = vpop.f32.mrb[0].mxu0
      %1331 = vmatprep.mubr.f32.mxu0 0.0
      %1332 = vmatmul.mubr.f32.gmra.mrb[0].mxu0 %v654
      %v1333 = vpop.f32.mrb[0].mxu0
      %v1334 = vadd.f32 %v311, %v1333
      %v1335 = vpop.f32.mrb[0].mxu0
      %1336 = vmatprep.mubr.f32.mxu0 0.0
      %1337 = vmatmul.mubr.f32.gmra.mrb[0].mxu0 %v657
      %v1338 = vpop.f32.mrb[0].mxu0
      %v1339 = vadd.f32 %v311, %v1338
      %v1340 = vpop.f32.mrb[0].mxu0
      %1341 = vmatprep.mubr.f32.mxu0 0.0
      %1342 = vmatmul.mubr.f32.gmra.mrb[0].mxu0 %v660
      %v1343 = vpop.f32.mrb[0].mxu0
      %v1344 = vadd.f32 %v311, %v1343
      %v1345 = vpop.f32.mrb[0].mxu0
      %1346 = vmatprep.mubr.f32.mxu0 0.0
      %1347 = vmatmul.mubr.f32.gmra.mrb[0].mxu0 %v663
      %v1348 = vpop.f32.mrb[0].mxu0
      %v1349 = vadd.f32 %v311, %v1348
      %v1350 = vpop.f32.mrb[0].mxu0
      %1351 = vmatprep.mubr.f32.mxu0 0.0
      %1352 = vmatmul.mubr.f32.gmra.mrb[0].mxu0 %v666
      %v1353 = vpop.f32.mrb[0].mxu0
      %v1354 = vadd.f32 %v311, %v1353
      %v1355 = vpop.f32.mrb[0].mxu0
      %1356 = vmatprep.mubr.f32.mxu0 0.0
      %1357 = vmatmul.mubr.f32.gmra.mrb[0].mxu0 %v669
      %v1358 = vpop.f32.mrb[0].mxu0
      %v1359 = vadd.f32 %v311, %v1358
      %v1360 = vpop.f32.mrb[0].mxu0
      %1361 = vmatprep.mubr.f32.mxu0 0.0
      %1362 = vmatmul.mubr.f32.gmra.mrb[0].mxu0 %v672
      %v1363 = vpop.f32.mrb[0].mxu0
      %v1364 = vadd.f32 %v311, %v1363
      %v1365 = vpop.f32.mrb[0].mxu0
      %1366 = vmatprep.mubr.f32.mxu0 0.0
      %1367 = vmatmul.mubr.f32.gmra.mrb[0].mxu0 %v675
      %v1368 = vpop.f32.mrb[0].mxu0
      %v1369 = vadd.f32 %v311, %v1368
      %v1370 = vpop.f32.mrb[0].mxu0
      %1371 = vmatprep.mubr.f32.mxu0 0.0
      %1372 = vmatmul.mubr.f32.gmra.mrb[0].mxu0 %v678
      %v1373 = vpop.f32.mrb[0].mxu0
      %v1374 = vadd.f32 %v311, %v1373
      %v1375 = vpop.f32.mrb[0].mxu0
      %1376 = vmatprep.mubr.f32.mxu0 0.0
      %1377 = vmatmul.mubr.f32.gmra.mrb[0].mxu0 %v681
      %v1378 = vpop.f32.mrb[0].mxu0
      %v1379 = vadd.f32 %v311, %v1378
      %v1380 = vpop.f32.mrb[0].mxu0
      %1381 = vmatprep.mubr.f32.mxu0 0.0
      %1382 = vmatmul.mubr.f32.gmra.mrb[0].mxu0 %v684
      %v1383 = vpop.f32.mrb[0].mxu0
      %v1384 = vadd.f32 %v311, %v1383
      %v1385 = vpop.f32.mrb[0].mxu0
      %1386 = vmatprep.mubr.f32.mxu0 0.0
      %1387 = vmatmul.mubr.f32.gmra.mrb[0].mxu0 %v687
      %v1388 = vpop.f32.mrb[0].mxu0
      %v1389 = vadd.f32 %v311, %v1388
      %v1390 = vpop.f32.mrb[0].mxu0
      %1391 = vmatprep.mubr.f32.mxu0 0.0
      %1392 = vmatmul.mubr.f32.gmra.mrb[0].mxu0 %v690
      %v1393 = vpop.f32.mrb[0].mxu0
      %v1394 = vadd.f32 %v311, %v1393
      %v1395 = vpop.f32.mrb[0].mxu0
      %1396 = vmatprep.mubr.f32.mxu0 0.0
      %1397 = vmatmul.mubr.f32.gmra.mrb[0].mxu0 %v693
      %v1398 = vpop.f32.mrb[0].mxu0
      %v1399 = vadd.f32 %v311, %v1398
      %v1400 = vpop.f32.mrb[0].mxu0
      %1401 = vmatprep.mubr.f32.mxu0 0.0
      %1402 = vmatmul.mubr.f32.gmra.mrb[0].mxu0 %v696
      %v1403 = vpop.f32.mrb[0].mxu0
      %v1404 = vadd.f32 %v311, %v1403
      %v1405 = vpop.f32.mrb[0].mxu0
      %1406 = vdwg.mxu0
      %v1407 = vmax.f32 %v769, 0.0
      %v1408 = vmax.f32 %v774, 0.0
      %v1409 = vmax.f32 %v779, 0.0
      %v1410 = vmax.f32 %v784, 0.0
      %v1411 = vmax.f32 %v789, 0.0
      %v1412 = vmax.f32 %v794, 0.0
      %v1413 = vmax.f32 %v799, 0.0
      %v1414 = vmax.f32 %v804, 0.0
      %v1415 = vmax.f32 %v809, 0.0
      %v1416 = vmax.f32 %v814, 0.0
      %v1417 = vmax.f32 %v819, 0.0
      %v1418 = vmax.f32 %v824, 0.0
      %v1419 = vmax.f32 %v829, 0.0
      %v1420 = vmax.f32 %v834, 0.0
      %v1421 = vmax.f32 %v839, 0.0
      %v1422 = vmax.f32 %v844, 0.0
      %v1423 = vmax.f32 %v849, 0.0
      %v1424 = vmax.f32 %v854, 0.0
      %v1425 = vmax.f32 %v859, 0.0
      %v1426 = vmax.f32 %v864, 0.0
      %v1427 = vmax.f32 %v869, 0.0
      %v1428 = vmax.f32 %v874, 0.0
      %v1429 = vmax.f32 %v879, 0.0
      %v1430 = vmax.f32 %v884, 0.0
      %v1431 = vmax.f32 %v889, 0.0
      %v1432 = vmax.f32 %v894, 0.0
      %v1433 = vmax.f32 %v899, 0.0
      %v1434 = vmax.f32 %v904, 0.0
      %v1435 = vmax.f32 %v909, 0.0
      %v1436 = vmax.f32 %v914, 0.0
      %v1437 = vmax.f32 %v919, 0.0
      %v1438 = vmax.f32 %v924, 0.0
      %v1439 = vmax.f32 %v929, 0.0
      %v1440 = vmax.f32 %v934, 0.0
      %v1441 = vmax.f32 %v939, 0.0
      %v1442 = vmax.f32 %v944, 0.0
      %v1443 = vmax.f32 %v949, 0.0
      %v1444 = vmax.f32 %v954, 0.0
      %v1445 = vmax.f32 %v959, 0.0
      %v1446 = vmax.f32 %v964, 0.0
      %v1447 = vmax.f32 %v969, 0.0
      %v1448 = vmax.f32 %v974, 0.0
      %v1449 = vmax.f32 %v979, 0.0
      %v1450 = vmax.f32 %v984, 0.0
      %v1451 = vmax.f32 %v989, 0.0
      %v1452 = vmax.f32 %v994, 0.0
      %v1453 = vmax.f32 %v999, 0.0
      %v1454 = vmax.f32 %v1004, 0.0
      %v1455 = vmax.f32 %v1009, 0.0
      %v1456 = vmax.f32 %v1014, 0.0
      %v1457 = vmax.f32 %v1019, 0.0
      %v1458 = vmax.f32 %v1024, 0.0
      %v1459 = vmax.f32 %v1029, 0.0
      %v1460 = vmax.f32 %v1034, 0.0
      %v1461 = vmax.f32 %v1039, 0.0
      %v1462 = vmax.f32 %v1044, 0.0
      %v1463 = vmax.f32 %v1049, 0.0
      %v1464 = vmax.f32 %v1054, 0.0
      %v1465 = vmax.f32 %v1059, 0.0
      %v1466 = vmax.f32 %v1064, 0.0
      %v1467 = vmax.f32 %v1069, 0.0
      %v1468 = vmax.f32 %v1074, 0.0
      %v1469 = vmax.f32 %v1079, 0.0
      %v1470 = vmax.f32 %v1084, 0.0
      %v1471 = vmax.f32 %v1089, 0.0
      %v1472 = vmax.f32 %v1094, 0.0
      %v1473 = vmax.f32 %v1099, 0.0
      %v1474 = vmax.f32 %v1104, 0.0
      %v1475 = vmax.f32 %v1109, 0.0
      %v1476 = vmax.f32 %v1114, 0.0
      %v1477 = vmax.f32 %v1119, 0.0
      %v1478 = vmax.f32 %v1124, 0.0
      %v1479 = vmax.f32 %v1129, 0.0
      %v1480 = vmax.f32 %v1134, 0.0
      %v1481 = vmax.f32 %v1139, 0.0
      %v1482 = vmax.f32 %v1144, 0.0
      %v1483 = vmax.f32 %v1149, 0.0
      %v1484 = vmax.f32 %v1154, 0.0
      %v1485 = vmax.f32 %v1159, 0.0
      %v1486 = vmax.f32 %v1164, 0.0
      %v1487 = vmax.f32 %v1169, 0.0
      %v1488 = vmax.f32 %v1174, 0.0
      %v1489 = vmax.f32 %v1179, 0.0
      %v1490 = vmax.f32 %v1184, 0.0
      %v1491 = vmax.f32 %v1189, 0.0
      %v1492 = vmax.f32 %v1194, 0.0
      %v1493 = vmax.f32 %v1199, 0.0
      %v1494 = vmax.f32 %v1204, 0.0
      %v1495 = vmax.f32 %v1209, 0.0
      %v1496 = vmax.f32 %v1214, 0.0
      %v1497 = vmax.f32 %v1219, 0.0
      %v1498 = vmax.f32 %v1224, 0.0
      %v1499 = vmax.f32 %v1229, 0.0
      %v1500 = vmax.f32 %v1234, 0.0
      %v1501 = vmax.f32 %v1239, 0.0
      %v1502 = vmax.f32 %v1244, 0.0
      %v1503 = vmax.f32 %v1249, 0.0
      %v1504 = vmax.f32 %v1254, 0.0
      %v1505 = vmax.f32 %v1259, 0.0
      %v1506 = vmax.f32 %v1264, 0.0
      %v1507 = vmax.f32 %v1269, 0.0
      %v1508 = vmax.f32 %v1274, 0.0
      %v1509 = vmax.f32 %v1279, 0.0
      %v1510 = vmax.f32 %v1284, 0.0
      %v1511 = vmax.f32 %v1289, 0.0
      %v1512 = vmax.f32 %v1294, 0.0
      %v1513 = vmax.f32 %v1299, 0.0
      %v1514 = vmax.f32 %v1304, 0.0
      %v1515 = vmax.f32 %v1309, 0.0
      %v1516 = vmax.f32 %v1314, 0.0
      %v1517 = vmax.f32 %v1319, 0.0
      %v1518 = vmax.f32 %v1324, 0.0
      %v1519 = vmax.f32 %v1329, 0.0
      %v1520 = vmax.f32 %v1334, 0.0
      %v1521 = vmax.f32 %v1339, 0.0
      %v1522 = vmax.f32 %v1344, 0.0
      %v1523 = vmax.f32 %v1349, 0.0
      %v1524 = vmax.f32 %v1354, 0.0
      %v1525 = vmax.f32 %v1359, 0.0
      %v1526 = vmax.f32 %v1364, 0.0
      %v1527 = vmax.f32 %v1369, 0.0
      %v1528 = vmax.f32 %v1374, 0.0
      %v1529 = vmax.f32 %v1379, 0.0
      %v1530 = vmax.f32 %v1384, 0.0
      %v1531 = vmax.f32 %v1389, 0.0
      %v1532 = vmax.f32 %v1394, 0.0
      %v1533 = vmax.f32 %v1399, 0.0
      %v1534 = vmax.f32 %v1404, 0.0
      %vm1535 = vcmask 261120
      %1536 = vst.msk [vmem:[%s172] sm:$0xff] %vm1535, %v1407
      %1537 = vst.msk [vmem:[%s172 + $0x8] sm:$0xff] %vm1535, %v1408
      %1538 = vst.msk [vmem:[%s172 + $0x10] sm:$0xff] %vm1535, %v1409
      %1539 = vst.msk [vmem:[%s172 + $0x18] sm:$0xff] %vm1535, %v1410
      %1540 = vst.msk [vmem:[%s172 + $0x20] sm:$0xff] %vm1535, %v1411
      %1541 = vst.msk [vmem:[%s172 + $0x28] sm:$0xff] %vm1535, %v1412
      %1542 = vst.msk [vmem:[%s172 + $0x30] sm:$0xff] %vm1535, %v1413
      %1543 = vst.msk [vmem:[%s172 + $0x38] sm:$0xff] %vm1535, %v1414
      %1544 = vst.msk [vmem:[%s172 + $0x40] sm:$0xff] %vm1535, %v1415
      %1545 = vst.msk [vmem:[%s172 + $0x48] sm:$0xff] %vm1535, %v1416
      %1546 = vst.msk [vmem:[%s172 + $0x50] sm:$0xff] %vm1535, %v1417
      %1547 = vst.msk [vmem:[%s172 + $0x58] sm:$0xff] %vm1535, %v1418
      %1548 = vst.msk [vmem:[%s172 + $0x60] sm:$0xff] %vm1535, %v1419
      %1549 = vst.msk [vmem:[%s172 + $0x68] sm:$0xff] %vm1535, %v1420
      %1550 = vst.msk [vmem:[%s172 + $0x70] sm:$0xff] %vm1535, %v1421
      %1551 = vst.msk [vmem:[%s172 + $0x78] sm:$0xff] %vm1535, %v1422
      %1552 = vst.msk [vmem:[%s172 + $0x80] sm:$0xff] %vm1535, %v1423
      %1553 = vst.msk [vmem:[%s172 + $0x88] sm:$0xff] %vm1535, %v1424
      %1554 = vst.msk [vmem:[%s172 + $0x90] sm:$0xff] %vm1535, %v1425
      %1555 = vst.msk [vmem:[%s172 + $0x98] sm:$0xff] %vm1535, %v1426
      %1556 = vst.msk [vmem:[%s172 + $0xa0] sm:$0xff] %vm1535, %v1427
      %1557 = vst.msk [vmem:[%s172 + $0xa8] sm:$0xff] %vm1535, %v1428
      %1558 = vst.msk [vmem:[%s172 + $0xb0] sm:$0xff] %vm1535, %v1429
      %1559 = vst.msk [vmem:[%s172 + $0xb8] sm:$0xff] %vm1535, %v1430
      %1560 = vst.msk [vmem:[%s172 + $0xc0] sm:$0xff] %vm1535, %v1431
      %1561 = vst.msk [vmem:[%s172 + $0xc8] sm:$0xff] %vm1535, %v1432
      %1562 = vst.msk [vmem:[%s172 + $0xd0] sm:$0xff] %vm1535, %v1433
      %1563 = vst.msk [vmem:[%s172 + $0xd8] sm:$0xff] %vm1535, %v1434
      %1564 = vst.msk [vmem:[%s172 + $0xe0] sm:$0xff] %vm1535, %v1435
      %1565 = vst.msk [vmem:[%s172 + $0xe8] sm:$0xff] %vm1535, %v1436
      %1566 = vst.msk [vmem:[%s172 + $0xf0] sm:$0xff] %vm1535, %v1437
      %1567 = vst.msk [vmem:[%s172 + $0xf8] sm:$0xff] %vm1535, %v1438
      %1568 = vst.msk [vmem:[%s172 + $0x100] sm:$0xff] %vm1535, %v1439
      %1569 = vst.msk [vmem:[%s172 + $0x108] sm:$0xff] %vm1535, %v1440
      %1570 = vst.msk [vmem:[%s172 + $0x110] sm:$0xff] %vm1535, %v1441
      %1571 = vst.msk [vmem:[%s172 + $0x118] sm:$0xff] %vm1535, %v1442
      %1572 = vst.msk [vmem:[%s172 + $0x120] sm:$0xff] %vm1535, %v1443
      %1573 = vst.msk [vmem:[%s172 + $0x128] sm:$0xff] %vm1535, %v1444
      %1574 = vst.msk [vmem:[%s172 + $0x130] sm:$0xff] %vm1535, %v1445
      %1575 = vst.msk [vmem:[%s172 + $0x138] sm:$0xff] %vm1535, %v1446
      %1576 = vst.msk [vmem:[%s172 + $0x140] sm:$0xff] %vm1535, %v1447
      %1577 = vst.msk [vmem:[%s172 + $0x148] sm:$0xff] %vm1535, %v1448
      %1578 = vst.msk [vmem:[%s172 + $0x150] sm:$0xff] %vm1535, %v1449
      %1579 = vst.msk [vmem:[%s172 + $0x158] sm:$0xff] %vm1535, %v1450
      %1580 = vst.msk [vmem:[%s172 + $0x160] sm:$0xff] %vm1535, %v1451
      %1581 = vst.msk [vmem:[%s172 + $0x168] sm:$0xff] %vm1535, %v1452
      %1582 = vst.msk [vmem:[%s172 + $0x170] sm:$0xff] %vm1535, %v1453
      %1583 = vst.msk [vmem:[%s172 + $0x178] sm:$0xff] %vm1535, %v1454
      %1584 = vst.msk [vmem:[%s172 + $0x180] sm:$0xff] %vm1535, %v1455
      %1585 = vst.msk [vmem:[%s172 + $0x188] sm:$0xff] %vm1535, %v1456
      %1586 = vst.msk [vmem:[%s172 + $0x190] sm:$0xff] %vm1535, %v1457
      %1587 = vst.msk [vmem:[%s172 + $0x198] sm:$0xff] %vm1535, %v1458
      %1588 = vst.msk [vmem:[%s172 + $0x1a0] sm:$0xff] %vm1535, %v1459
      %1589 = vst.msk [vmem:[%s172 + $0x1a8] sm:$0xff] %vm1535, %v1460
      %1590 = vst.msk [vmem:[%s172 + $0x1b0] sm:$0xff] %vm1535, %v1461
      %1591 = vst.msk [vmem:[%s172 + $0x1b8] sm:$0xff] %vm1535, %v1462
      %1592 = vst.msk [vmem:[%s172 + $0x1c0] sm:$0xff] %vm1535, %v1463
      %1593 = vst.msk [vmem:[%s172 + $0x1c8] sm:$0xff] %vm1535, %v1464
      %1594 = vst.msk [vmem:[%s172 + $0x1d0] sm:$0xff] %vm1535, %v1465
      %1595 = vst.msk [vmem:[%s172 + $0x1d8] sm:$0xff] %vm1535, %v1466
      %1596 = vst.msk [vmem:[%s172 + $0x1e0] sm:$0xff] %vm1535, %v1467
      %1597 = vst.msk [vmem:[%s172 + $0x1e8] sm:$0xff] %vm1535, %v1468
      %1598 = vst.msk [vmem:[%s172 + $0x1f0] sm:$0xff] %vm1535, %v1469
      %1599 = vst.msk [vmem:[%s172 + $0x1f8] sm:$0xff] %vm1535, %v1470
      %1600 = vst.msk [vmem:[%s172 + $0x200] sm:$0xff] %vm1535, %v1471
      %1601 = vst.msk [vmem:[%s172 + $0x208] sm:$0xff] %vm1535, %v1472
      %1602 = vst.msk [vmem:[%s172 + $0x210] sm:$0xff] %vm1535, %v1473
      %1603 = vst.msk [vmem:[%s172 + $0x218] sm:$0xff] %vm1535, %v1474
      %1604 = vst.msk [vmem:[%s172 + $0x220] sm:$0xff] %vm1535, %v1475
      %1605 = vst.msk [vmem:[%s172 + $0x228] sm:$0xff] %vm1535, %v1476
      %1606 = vst.msk [vmem:[%s172 + $0x230] sm:$0xff] %vm1535, %v1477
      %1607 = vst.msk [vmem:[%s172 + $0x238] sm:$0xff] %vm1535, %v1478
      %1608 = vst.msk [vmem:[%s172 + $0x240] sm:$0xff] %vm1535, %v1479
      %1609 = vst.msk [vmem:[%s172 + $0x248] sm:$0xff] %vm1535, %v1480
      %1610 = vst.msk [vmem:[%s172 + $0x250] sm:$0xff] %vm1535, %v1481
      %1611 = vst.msk [vmem:[%s172 + $0x258] sm:$0xff] %vm1535, %v1482
      %1612 = vst.msk [vmem:[%s172 + $0x260] sm:$0xff] %vm1535, %v1483
      %1613 = vst.msk [vmem:[%s172 + $0x268] sm:$0xff] %vm1535, %v1484
      %1614 = vst.msk [vmem:[%s172 + $0x270] sm:$0xff] %vm1535, %v1485
      %1615 = vst.msk [vmem:[%s172 + $0x278] sm:$0xff] %vm1535, %v1486
      %1616 = vst.msk [vmem:[%s172 + $0x280] sm:$0xff] %vm1535, %v1487
      %1617 = vst.msk [vmem:[%s172 + $0x288] sm:$0xff] %vm1535, %v1488
      %1618 = vst.msk [vmem:[%s172 + $0x290] sm:$0xff] %vm1535, %v1489
      %1619 = vst.msk [vmem:[%s172 + $0x298] sm:$0xff] %vm1535, %v1490
      %1620 = vst.msk [vmem:[%s172 + $0x2a0] sm:$0xff] %vm1535, %v1491
      %1621 = vst.msk [vmem:[%s172 + $0x2a8] sm:$0xff] %vm1535, %v1492
      %1622 = vst.msk [vmem:[%s172 + $0x2b0] sm:$0xff] %vm1535, %v1493
      %1623 = vst.msk [vmem:[%s172 + $0x2b8] sm:$0xff] %vm1535, %v1494
      %1624 = vst.msk [vmem:[%s172 + $0x2c0] sm:$0xff] %vm1535, %v1495
      %1625 = vst.msk [vmem:[%s172 + $0x2c8] sm:$0xff] %vm1535, %v1496
      %1626 = vst.msk [vmem:[%s172 + $0x2d0] sm:$0xff] %vm1535, %v1497
      %1627 = vst.msk [vmem:[%s172 + $0x2d8] sm:$0xff] %vm1535, %v1498
      %1628 = vst.msk [vmem:[%s172 + $0x2e0] sm:$0xff] %vm1535, %v1499
      %1629 = vst.msk [vmem:[%s172 + $0x2e8] sm:$0xff] %vm1535, %v1500
      %1630 = vst.msk [vmem:[%s172 + $0x2f0] sm:$0xff] %vm1535, %v1501
      %1631 = vst.msk [vmem:[%s172 + $0x2f8] sm:$0xff] %vm1535, %v1502
      %1632 = vst.msk [vmem:[%s172 + $0x300] sm:$0xff] %vm1535, %v1503
      %1633 = vst.msk [vmem:[%s172 + $0x308] sm:$0xff] %vm1535, %v1504
      %1634 = vst.msk [vmem:[%s172 + $0x310] sm:$0xff] %vm1535, %v1505
      %1635 = vst.msk [vmem:[%s172 + $0x318] sm:$0xff] %vm1535, %v1506
      %1636 = vst.msk [vmem:[%s172 + $0x320] sm:$0xff] %vm1535, %v1507
      %1637 = vst.msk [vmem:[%s172 + $0x328] sm:$0xff] %vm1535, %v1508
      %1638 = vst.msk [vmem:[%s172 + $0x330] sm:$0xff] %vm1535, %v1509
      %1639 = vst.msk [vmem:[%s172 + $0x338] sm:$0xff] %vm1535, %v1510
      %1640 = vst.msk [vmem:[%s172 + $0x340] sm:$0xff] %vm1535, %v1511
      %1641 = vst.msk [vmem:[%s172 + $0x348] sm:$0xff] %vm1535, %v1512
      %1642 = vst.msk [vmem:[%s172 + $0x350] sm:$0xff] %vm1535, %v1513
      %1643 = vst.msk [vmem:[%s172 + $0x358] sm:$0xff] %vm1535, %v1514
      %1644 = vst.msk [vmem:[%s172 + $0x360] sm:$0xff] %vm1535, %v1515
      %1645 = vst.msk [vmem:[%s172 + $0x368] sm:$0xff] %vm1535, %v1516
      %1646 = vst.msk [vmem:[%s172 + $0x370] sm:$0xff] %vm1535, %v1517
      %1647 = vst.msk [vmem:[%s172 + $0x378] sm:$0xff] %vm1535, %v1518
      %1648 = vst.msk [vmem:[%s172 + $0x380] sm:$0xff] %vm1535, %v1519
      %1649 = vst.msk [vmem:[%s172 + $0x388] sm:$0xff] %vm1535, %v1520
      %1650 = vst.msk [vmem:[%s172 + $0x390] sm:$0xff] %vm1535, %v1521
      %1651 = vst.msk [vmem:[%s172 + $0x398] sm:$0xff] %vm1535, %v1522
      %1652 = vst.msk [vmem:[%s172 + $0x3a0] sm:$0xff] %vm1535, %v1523
      %1653 = vst.msk [vmem:[%s172 + $0x3a8] sm:$0xff] %vm1535, %v1524
      %1654 = vst.msk [vmem:[%s172 + $0x3b0] sm:$0xff] %vm1535, %v1525
      %1655 = vst.msk [vmem:[%s172 + $0x3b8] sm:$0xff] %vm1535, %v1526
      %1656 = vst.msk [vmem:[%s172 + $0x3c0] sm:$0xff] %vm1535, %v1527
      %1657 = vst.msk [vmem:[%s172 + $0x3c8] sm:$0xff] %vm1535, %v1528
      %1658 = vst.msk [vmem:[%s172 + $0x3d0] sm:$0xff] %vm1535, %v1529
      %1659 = vst.msk [vmem:[%s172 + $0x3d8] sm:$0xff] %vm1535, %v1530
      %1660 = vst.msk [vmem:[%s172 + $0x3e0] sm:$0xff] %vm1535, %v1531
      %1661 = vst.msk [vmem:[%s172 + $0x3e8] sm:$0xff] %vm1535, %v1532
      %1662 = vst.msk [vmem:[%s172 + $0x3f0] sm:$0xff] %vm1535, %v1533
      %1663 = vst.msk [vmem:[%s172 + $0x3f8] sm:$0xff] %vm1535, %v1534
      %s1664 = smul.u32 128, %s14
      %p1665 = scmp.lt.s32.totalorder %s1664, 2303
      %s1666 = scalar_select %p1665, %s1664, 2303
      %s1667 = smul.addr %s1666, 8
      %s1668 = scalar_lea.vmem %s3, %s1667
      // Predicated region
      $region33: #{feature_extractor_forward.7} parent=31 // pred_check
        %p1669 = pneg %p100
      $region34: #{feature_extractor_forward.7} parent=31 // pred_check_branch
        %1671 = sbr.rel (%p1669) target = $region36
      $region35: #{feature_extractor_forward.7} parent=31 // pred_region
        %s1672 = smul.u32 128, %s14
      $region36: #{feature_extractor_forward.7} parent=31 // pred_fallthru
        _
    $region32: #{feature_extractor_forward.7} parent=5 // pred_fallthru
      _
    %p1673 = scmp.le.s32.totalorder 2, %s9
    // Predicated region
    $region37: #{feature_extractor_forward.7} parent=5 // pred_check
      %p1674 = pneg %p1673
    $region38: #{feature_extractor_forward.7} parent=5 // pred_check_branch
      %1676 = sbr.rel (%p1674) target = $region40
    $region39: #{feature_extractor_forward.7} parent=5 // pred_region
      %s1677 = ssub.s32 %s9, 2
      // Predicated region
      $region41: #{feature_extractor_forward.7} parent=39 // pred_check
        %p1678 = pneg %p106
      $region42: #{feature_extractor_forward.7} parent=39 // pred_check_branch
        %1680 = sbr.rel (%p1678) target = $region44
      $region43: #{feature_extractor_forward.7} parent=39 // pred_region
        %s1681 = smul.u32 128, %s15
        %p1682 = scmp.lt.s32.totalorder %s1681, 2303
        %s1683 = scalar_select %p1682, %s1681, 2303
        %s1684 = smul.addr %s1683, 8
        %s1685 = scalar_lea.vmem %s3, %s1684
      $region44: #{feature_extractor_forward.7} parent=39 // pred_fallthru
        _
    $region40: #{feature_extractor_forward.7} parent=5 // pred_fallthru
      _
  $region6: #{feature_extractor_forward.7} parent=0 // loop_footer
    %s13 = sadd.s32 1, %s9
  $region7: #{feature_extractor_forward.7} parent=0 // loop_footer_branch
    %8 = sbr.rel target = $region3
  $region8: #{feature_extractor_forward.7} parent=0 // loop_exit
    _

// kernel: feature_extractor_forward.8
$region0: #{feature_extractor_forward.8}
  #allocation0 [shape = 'u32[]', space=smem, size = 0x4, offset = 0x4, fixed_abs, tag = 'smem constant byte address 0x4 - core index']
  #allocation1 [shape = 'u32[144,128]{1,0:T(1,128)}', space=vmem, size = 0x12000, scoped, tag = 'internal scratch']
  %s0 = inlined_call_operand.vmem [shape: f32[2,48,1536], index: 0, kind: input, shape index: {}]
  %s1 = inlined_call_operand.vmem [shape: f32[2,48,1536], index: 1, kind: input, shape index: {}]
  %s2 = inlined_call_operand.vmem [shape: f32[2,48,1536], index: 2, kind: input, shape index: {}]
  %s3 = inlined_call_operand.vmem [shape: f32[2,48,1536], index: 3, kind: input, shape index: {}]
  %s4 = inlined_call_operand.vmem [shape: f32[2,48,1536], index: 4, kind: output, shape index: {}]
  %s5 = sld [smem:[#allocation0]]
  $region49: #{feature_extractor_forward.8} parent=0
    _
  %s7 = ssub.s32 1, %s5
  %s8 = scalar_select 0, %s7, %s5
  loop: start=0, step=1, limit=4
  $region2: #{feature_extractor_forward.8} parent=0 // loop_pre_header
    _
  $region3: #{feature_extractor_forward.8} parent=0 // loop_header
    %s10 = sphi 0, %s14
    %p11 = scmp.ge.s32.totalorder %s10, 4
    %s20 = sphi 0, %s22
    %s23 = sphi 0, %s20
    %s24 = sphi 0, %s23
    %s40 = sphi 0, %s24
    %s46 = sphi 0, %s48
    %s49 = sphi 0, %s46
    %s50 = sphi 0, %s49
    %s66 = sphi 0, %s50
    %s72 = sphi 0, %s74
    %s75 = sphi 0, %s72
    %s76 = sphi 0, %s75
    %s92 = sphi 0, %s76
    %s98 = sphi 0, %s100
    %s101 = sphi 0, %s98
    %s102 = sphi 0, %s101
    %s118 = sphi 0, %s102
    %s124 = sphi 0, %s126
    %s127 = sphi 0, %s124
    %s128 = sphi 0, %s127
    %s144 = sphi 0, %s128
  $region4: #{feature_extractor_forward.8} parent=0 // loop_header_branch
    %13 = sbr.rel (%p11) target = $region8
  $region5: #{feature_extractor_forward.8} parent=0 // loop_body
    %s15 = ssub.s32 %s10, 1
    %s16 = ssub.s32 %s10, 2
    %s17 = sadd.s32 %s10, 1
    %s18 = ssub.s32 %s10, %s17
    %p19 = scmp.eq.s32.totalorder %s18, 0
    %s21 = sadd.s32 %s20, 1
    %s22 = scalar_select %p19, %s20, %s21
    %p25 = pneg %p19
    %p26 = scmp.eq.s32.totalorder %s10, 1
    %p27 = por %p25, %p26
    %p28 = scmp.ne.s32.totalorder %s20, %s23
    %p29 = scmp.eq.s32.totalorder %s10, 0
    %p30 = por %p28, %p29
    %p31 = scmp.ne.s32.totalorder %s20, %s23
    %p32 = scmp.eq.s32.totalorder %s15, 1
    %p33 = por %p31, %p32
    %p34 = scmp.ne.s32.totalorder %s23, %s24
    %p35 = scmp.eq.s32.totalorder %s15, 0
    %p36 = por %p34, %p35
    %p37 = scmp.ne.s32.totalorder %s23, %s24
    %p38 = scmp.eq.s32.totalorder %s16, 1
    %p39 = por %p37, %p38
    %p41 = scmp.ne.s32.totalorder %s24, %s40
    %p42 = scmp.eq.s32.totalorder %s16, 0
    %p43 = por %p41, %p42
    %s44 = ssub.s32 %s10, %s17
    %p45 = scmp.eq.s32.totalorder %s44, 0
    %s47 = sadd.s32 %s46, 1
    %s48 = scalar_select %p45, %s46, %s47
    %p51 = pneg %p45
    %p52 = scmp.eq.s32.totalorder %s10, 1
    %p53 = por %p51, %p52
    %p54 = scmp.ne.s32.totalorder %s46, %s49
    %p55 = scmp.eq.s32.totalorder %s10, 0
    %p56 = por %p54, %p55
    %p57 = scmp.ne.s32.totalorder %s46, %s49
    %p58 = scmp.eq.s32.totalorder %s15, 1
    %p59 = por %p57, %p58
    %p60 = scmp.ne.s32.totalorder %s49, %s50
    %p61 = scmp.eq.s32.totalorder %s15, 0
    %p62 = por %p60, %p61
    %p63 = scmp.ne.s32.totalorder %s49, %s50
    %p64 = scmp.eq.s32.totalorder %s16, 1
    %p65 = por %p63, %p64
    %p67 = scmp.ne.s32.totalorder %s50, %s66
    %p68 = scmp.eq.s32.totalorder %s16, 0
    %p69 = por %p67, %p68
    %s70 = ssub.s32 %s10, %s17
    %p71 = scmp.eq.s32.totalorder %s70, 0
    %s73 = sadd.s32 %s72, 1
    %s74 = scalar_select %p71, %s72, %s73
    %p77 = pneg %p71
    %p78 = scmp.eq.s32.totalorder %s10, 1
    %p79 = por %p77, %p78
    %p80 = scmp.ne.s32.totalorder %s72, %s75
    %p81 = scmp.eq.s32.totalorder %s10, 0
    %p82 = por %p80, %p81
    %p83 = scmp.ne.s32.totalorder %s72, %s75
    %p84 = scmp.eq.s32.totalorder %s15, 1
    %p85 = por %p83, %p84
    %p86 = scmp.ne.s32.totalorder %s75, %s76
    %p87 = scmp.eq.s32.totalorder %s15, 0
    %p88 = por %p86, %p87
    %p89 = scmp.ne.s32.totalorder %s75, %s76
    %p90 = scmp.eq.s32.totalorder %s16, 1
    %p91 = por %p89, %p90
    %p93 = scmp.ne.s32.totalorder %s76, %s92
    %p94 = scmp.eq.s32.totalorder %s16, 0
    %p95 = por %p93, %p94
    %s96 = ssub.s32 %s10, %s17
    %p97 = scmp.eq.s32.totalorder %s96, 0
    %s99 = sadd.s32 %s98, 1
    %s100 = scalar_select %p97, %s98, %s99
    %p103 = pneg %p97
    %p104 = scmp.eq.s32.totalorder %s10, 1
    %p105 = por %p103, %p104
    %p106 = scmp.ne.s32.totalorder %s98, %s101
    %p107 = scmp.eq.s32.totalorder %s10, 0
    %p108 = por %p106, %p107
    %p109 = scmp.ne.s32.totalorder %s98, %s101
    %p110 = scmp.eq.s32.totalorder %s15, 1
    %p111 = por %p109, %p110
    %p112 = scmp.ne.s32.totalorder %s101, %s102
    %p113 = scmp.eq.s32.totalorder %s15, 0
    %p114 = por %p112, %p113
    %p115 = scmp.ne.s32.totalorder %s101, %s102
    %p116 = scmp.eq.s32.totalorder %s16, 1
    %p117 = por %p115, %p116
    %p119 = scmp.ne.s32.totalorder %s102, %s118
    %p120 = scmp.eq.s32.totalorder %s16, 0
    %p121 = por %p119, %p120
    %s122 = ssub.s32 %s10, %s17
    %p123 = scmp.eq.s32.totalorder %s122, 0
    %s125 = sadd.s32 %s124, 1
    %s126 = scalar_select %p123, %s124, %s125
    %p129 = pneg %p123
    %p130 = scmp.eq.s32.totalorder %s10, 1
    %p131 = por %p129, %p130
    %p132 = scmp.ne.s32.totalorder %s124, %s127
    %p133 = scmp.eq.s32.totalorder %s10, 0
    %p134 = por %p132, %p133
    %p135 = scmp.ne.s32.totalorder %s124, %s127
    %p136 = scmp.eq.s32.totalorder %s15, 1
    %p137 = por %p135, %p136
    %p138 = scmp.ne.s32.totalorder %s127, %s128
    %p139 = scmp.eq.s32.totalorder %s15, 0
    %p140 = por %p138, %p139
    %p141 = scmp.ne.s32.totalorder %s127, %s128
    %p142 = scmp.eq.s32.totalorder %s16, 1
    %p143 = por %p141, %p142
    %p145 = scmp.ne.s32.totalorder %s128, %s144
    %p146 = scmp.eq.s32.totalorder %s16, 0
    %p147 = por %p145, %p146
    %p148 = scmp.le.s32.totalorder 1, %s10
    %p149 = scmp.lt.s32.totalorder %s10, 3
    %p150 = pnand %p148, %p149
    %p151 = pneg %p150
    // Predicated region
    $region9: #{feature_extractor_forward.8} parent=5 // pred_check
      _
    $region10: #{feature_extractor_forward.8} parent=5 // pred_check_branch
      %153 = sbr.rel (%p150) target = $region12
    $region11: #{feature_extractor_forward.8} parent=5 // pred_region
      %s154 = ssub.s32 %s10, 1
    $region12: #{feature_extractor_forward.8} parent=5 // pred_fallthru
      _
    %p155 = scmp.lt.s32.totalorder %s10, 2
    // Predicated region
    $region13: #{feature_extractor_forward.8} parent=5 // pred_check
      %p156 = pneg %p155
    $region14: #{feature_extractor_forward.8} parent=5 // pred_check_branch
      %158 = sbr.rel (%p156) target = $region16
    $region15: #{feature_extractor_forward.8} parent=5 // pred_region
      // Predicated region
      $region17: #{feature_extractor_forward.8} parent=15 // pred_check
        %p159 = pneg %p30
      $region18: #{feature_extractor_forward.8} parent=15 // pred_check_branch
        %161 = sbr.rel (%p159) target = $region20
      $region19: #{feature_extractor_forward.8} parent=15 // pred_region
        %p162 = scmp.lt.s32.totalorder %s10, 1
        %s163 = scalar_select %p162, %s10, 1
        %s164 = smul.addr %s163, 72
        %s165 = smul.addr %s164, 8
        %s166 = scalar_lea.vmem %s0, %s165
      $region20: #{feature_extractor_forward.8} parent=15 // pred_fallthru
        _
      // Predicated region
      $region21: #{feature_extractor_forward.8} parent=15 // pred_check
        %p167 = pneg %p56
      $region22: #{feature_extractor_forward.8} parent=15 // pred_check_branch
        %169 = sbr.rel (%p167) target = $region24
      $region23: #{feature_extractor_forward.8} parent=15 // pred_region
        %p170 = scmp.lt.s32.totalorder %s10, 1
        %s171 = scalar_select %p170, %s10, 1
        %s172 = smul.addr %s171, 72
        %s173 = smul.addr %s172, 8
        %s174 = scalar_lea.vmem %s1, %s173
      $region24: #{feature_extractor_forward.8} parent=15 // pred_fallthru
        _
      // Predicated region
      $region25: #{feature_extractor_forward.8} parent=15 // pred_check
        %p175 = pneg %p82
      $region26: #{feature_extractor_forward.8} parent=15 // pred_check_branch
        %177 = sbr.rel (%p175) target = $region28
      $region27: #{feature_extractor_forward.8} parent=15 // pred_region
        %p178 = scmp.lt.s32.totalorder %s10, 1
        %s179 = scalar_select %p178, %s10, 1
        %s180 = smul.addr %s179, 72
        %s181 = smul.addr %s180, 8
        %s182 = scalar_lea.vmem %s2, %s181
      $region28: #{feature_extractor_forward.8} parent=15 // pred_fallthru
        _
      // Predicated region
      $region29: #{feature_extractor_forward.8} parent=15 // pred_check
        %p183 = pneg %p108
      $region30: #{feature_extractor_forward.8} parent=15 // pred_check_branch
        %185 = sbr.rel (%p183) target = $region32
      $region31: #{feature_extractor_forward.8} parent=15 // pred_region
        %p186 = scmp.lt.s32.totalorder %s10, 1
        %s187 = scalar_select %p186, %s10, 1
        %s188 = smul.addr %s187, 72
        %s189 = smul.addr %s188, 8
        %s190 = scalar_lea.vmem %s3, %s189
      $region32: #{feature_extractor_forward.8} parent=15 // pred_fallthru
        _
    $region16: #{feature_extractor_forward.8} parent=5 // pred_fallthru
      _
    %p191 = scmp.le.s32.totalorder 1, %s10
    %p192 = scmp.lt.s32.totalorder %s10, 3
    %p193 = pnand %p191, %p192
    %p194 = pneg %p193
    // Predicated region
    $region33: #{feature_extractor_forward.8} parent=5 // pred_check
      _
    $region34: #{feature_extractor_forward.8} parent=5 // pred_check_branch
      %196 = sbr.rel (%p193) target = $region36
    $region35: #{feature_extractor_forward.8} parent=5 // pred_region
      %s197 = ssub.s32 %s10, 1
      %p198 = scmp.lt.s32.totalorder %s15, 1
      %s199 = scalar_select %p198, %s15, 1
      %s200 = smul.addr %s199, 72
      %s201 = smul.addr %s200, 8
      %s202 = scalar_lea.vmem %s0, %s201
      %p203 = pneg %p36
      %p204 = pneg %p33
      %p205 = scmp.lt.s32.totalorder %s15, 1
      %s206 = scalar_select %p205, %s15, 1
      %s207 = smul.addr %s206, 72
      %s208 = smul.addr %s207, 8
      %s209 = scalar_lea.vmem %s1, %s208
      %p210 = pneg %p62
      %p211 = pneg %p59
      %p212 = scmp.lt.s32.totalorder %s15, 1
      %s213 = scalar_select %p212, %s15, 1
      %s214 = smul.addr %s213, 72
      %s215 = smul.addr %s214, 8
      %s216 = scalar_lea.vmem %s2, %s215
      %p217 = pneg %p88
      %p218 = pneg %p85
      %p219 = scmp.lt.s32.totalorder %s15, 1
      %s220 = scalar_select %p219, %s15, 1
      %s221 = smul.addr %s220, 72
      %s222 = smul.addr %s221, 8
      %s223 = scalar_lea.vmem %s3, %s222
      %p224 = pneg %p114
      %p225 = pneg %p111
      %p226 = pneg %p140
      %p227 = pneg %p137
      %p228 = scmp.lt.s32.totalorder %s15, 1
      %s229 = scalar_select %p228, %s15, 1
      %s230 = smul.addr %s229, 72
      %s231 = smul.addr %s230, 8
      %s232 = scalar_lea.vmem %s4, %s231
      %p233 = scmp.lt.s32.totalorder %s15, 1
      %s234 = scalar_select %p233, %s15, 1
      %s235 = smul.addr %s234, 72
      %s236 = smul.addr %s235, 8
      %s237 = scalar_lea.vmem %s0, %s236
      %p238 = scmp.lt.s32.totalorder %s15, 1
      %s239 = scalar_select %p238, %s15, 1
      %s240 = smul.addr %s239, 72
      %s241 = smul.addr %s240, 8
      %s242 = scalar_lea.vmem %s1, %s241
      %p243 = scmp.lt.s32.totalorder %s15, 1
      %s244 = scalar_select %p243, %s15, 1
      %s245 = smul.addr %s244, 72
      %s246 = smul.addr %s245, 8
      %s247 = scalar_lea.vmem %s2, %s246
      %p248 = scmp.lt.s32.totalorder %s15, 1
      %s249 = scalar_select %p248, %s15, 1
      %s250 = smul.addr %s249, 72
      %s251 = smul.addr %s250, 8
      %s252 = scalar_lea.vmem %s3, %s251
      %p253 = scmp.lt.s32.totalorder %s15, 1
      %s254 = scalar_select %p253, %s15, 1
      %s255 = smul.addr %s254, 72
      %s256 = smul.addr %s255, 8
      %s257 = scalar_lea.vmem %s4, %s256
      %v258 = vld [vmem:[%s237] sm:$0xff]
      %v259 = vld [vmem:[%s237 + $0x8] sm:$0xff]
      %v260 = vld [vmem:[%s237 + $0x10] sm:$0xff]
      %v261 = vld [vmem:[%s237 + $0x18] sm:$0xff]
      %v262 = vld [vmem:[%s237 + $0x20] sm:$0xff]
      %v263 = vld [vmem:[%s237 + $0x28] sm:$0xff]
      %v264 = vld [vmem:[%s237 + $0x30] sm:$0xff]
      %v265 = vld [vmem:[%s237 + $0x38] sm:$0xff]
      %v266 = vld [vmem:[%s237 + $0x40] sm:$0xff]
      %v267 = vld [vmem:[%s237 + $0x48] sm:$0xff]
      %v268 = vld [vmem:[%s237 + $0x50] sm:$0xff]
      %v269 = vld [vmem:[%s237 + $0x58] sm:$0xff]
      %v270 = vld [vmem:[%s237 + $0x60] sm:$0xff]
      %v271 = vld [vmem:[%s237 + $0x68] sm:$0xff]
      %v272 = vld [vmem:[%s237 + $0x70] sm:$0xff]
      %v273 = vld [vmem:[%s237 + $0x78] sm:$0xff]
      %v274 = vld [vmem:[%s237 + $0x80] sm:$0xff]
      %v275 = vld [vmem:[%s237 + $0x88] sm:$0xff]
      %v276 = vld [vmem:[%s237 + $0x90] sm:$0xff]
      %v277 = vld [vmem:[%s237 + $0x98] sm:$0xff]
      %v278 = vld [vmem:[%s237 + $0xa0] sm:$0xff]
      %v279 = vld [vmem:[%s237 + $0xa8] sm:$0xff]
      %v280 = vld [vmem:[%s237 + $0xb0] sm:$0xff]
      %v281 = vld [vmem:[%s237 + $0xb8] sm:$0xff]
      %v282 = vld [vmem:[%s237 + $0xc0] sm:$0xff]
      %v283 = vld [vmem:[%s237 + $0xc8] sm:$0xff]
      %v284 = vld [vmem:[%s237 + $0xd0] sm:$0xff]
      %v285 = vld [vmem:[%s237 + $0xd8] sm:$0xff]
      %v286 = vld [vmem:[%s237 + $0xe0] sm:$0xff]
      %v287 = vld [vmem:[%s237 + $0xe8] sm:$0xff]
      %v288 = vld [vmem:[%s237 + $0xf0] sm:$0xff]
      %v289 = vld [vmem:[%s237 + $0xf8] sm:$0xff]
      %v290 = vld [vmem:[%s237 + $0x100] sm:$0xff]
      %v291 = vld [vmem:[%s237 + $0x108] sm:$0xff]
      %v292 = vld [vmem:[%s237 + $0x110] sm:$0xff]
      %v293 = vld [vmem:[%s237 + $0x118] sm:$0xff]
      %v294 = vld [vmem:[%s237 + $0x120] sm:$0xff]
      %v295 = vld [vmem:[%s237 + $0x128] sm:$0xff]
      %v296 = vld [vmem:[%s237 + $0x130] sm:$0xff]
      %v297 = vld [vmem:[%s237 + $0x138] sm:$0xff]
      %v298 = vld [vmem:[%s237 + $0x140] sm:$0xff]
      %v299 = vld [vmem:[%s237 + $0x148] sm:$0xff]
      %v300 = vld [vmem:[%s237 + $0x150] sm:$0xff]
      %v301 = vld [vmem:[%s237 + $0x158] sm:$0xff]
      %v302 = vld [vmem:[%s237 + $0x160] sm:$0xff]
      %v303 = vld [vmem:[%s237 + $0x168] sm:$0xff]
      %v304 = vld [vmem:[%s237 + $0x170] sm:$0xff]
      %v305 = vld [vmem:[%s237 + $0x178] sm:$0xff]
      %v306 = vld [vmem:[%s237 + $0x180] sm:$0xff]
      %v307 = vld [vmem:[%s237 + $0x188] sm:$0xff]
      %v308 = vld [vmem:[%s237 + $0x190] sm:$0xff]
      %v309 = vld [vmem:[%s237 + $0x198] sm:$0xff]
      %v310 = vld [vmem:[%s237 + $0x1a0] sm:$0xff]
      %v311 = vld [vmem:[%s237 + $0x1a8] sm:$0xff]
      %v312 = vld [vmem:[%s237 + $0x1b0] sm:$0xff]
      %v313 = vld [vmem:[%s237 + $0x1b8] sm:$0xff]
      %v314 = vld [vmem:[%s237 + $0x1c0] sm:$0xff]
      %v315 = vld [vmem:[%s237 + $0x1c8] sm:$0xff]
      %v316 = vld [vmem:[%s237 + $0x1d0] sm:$0xff]
      %v317 = vld [vmem:[%s237 + $0x1d8] sm:$0xff]
      %v318 = vld [vmem:[%s237 + $0x1e0] sm:$0xff]
      %v319 = vld [vmem:[%s237 + $0x1e8] sm:$0xff]
      %v320 = vld [vmem:[%s237 + $0x1f0] sm:$0xff]
      %v321 = vld [vmem:[%s237 + $0x1f8] sm:$0xff]
      %v322 = vld [vmem:[%s237 + $0x200] sm:$0xff]
      %v323 = vld [vmem:[%s237 + $0x208] sm:$0xff]
      %v324 = vld [vmem:[%s237 + $0x210] sm:$0xff]
      %v325 = vld [vmem:[%s237 + $0x218] sm:$0xff]
      %v326 = vld [vmem:[%s237 + $0x220] sm:$0xff]
      %v327 = vld [vmem:[%s237 + $0x228] sm:$0xff]
      %v328 = vld [vmem:[%s237 + $0x230] sm:$0xff]
      %v329 = vld [vmem:[%s237 + $0x238] sm:$0xff]
      %v330 = vld [vmem:[%s242] sm:$0xff]
      %v331 = vld [vmem:[%s242 + $0x8] sm:$0xff]
      %v332 = vld [vmem:[%s242 + $0x10] sm:$0xff]
      %v333 = vld [vmem:[%s242 + $0x18] sm:$0xff]
      %v334 = vld [vmem:[%s242 + $0x20] sm:$0xff]
      %v335 = vld [vmem:[%s242 + $0x28] sm:$0xff]
      %v336 = vld [vmem:[%s242 + $0x30] sm:$0xff]
      %v337 = vld [vmem:[%s242 + $0x38] sm:$0xff]
      %v338 = vld [vmem:[%s242 + $0x40] sm:$0xff]
      %v339 = vld [vmem:[%s242 + $0x48] sm:$0xff]
      %v340 = vld [vmem:[%s242 + $0x50] sm:$0xff]
      %v341 = vld [vmem:[%s242 + $0x58] sm:$0xff]
      %v342 = vld [vmem:[%s242 + $0x60] sm:$0xff]
      %v343 = vld [vmem:[%s242 + $0x68] sm:$0xff]
      %v344 = vld [vmem:[%s242 + $0x70] sm:$0xff]
      %v345 = vld [vmem:[%s242 + $0x78] sm:$0xff]
      %v346 = vld [vmem:[%s242 + $0x80] sm:$0xff]
      %v347 = vld [vmem:[%s242 + $0x88] sm:$0xff]
      %v348 = vld [vmem:[%s242 + $0x90] sm:$0xff]
      %v349 = vld [vmem:[%s242 + $0x98] sm:$0xff]
      %v350 = vld [vmem:[%s242 + $0xa0] sm:$0xff]
      %v351 = vld [vmem:[%s242 + $0xa8] sm:$0xff]
      %v352 = vld [vmem:[%s242 + $0xb0] sm:$0xff]
      %v353 = vld [vmem:[%s242 + $0xb8] sm:$0xff]
      %v354 = vld [vmem:[%s242 + $0xc0] sm:$0xff]
      %v355 = vld [vmem:[%s242 + $0xc8] sm:$0xff]
      %v356 = vld [vmem:[%s242 + $0xd0] sm:$0xff]
      %v357 = vld [vmem:[%s242 + $0xd8] sm:$0xff]
      %v358 = vld [vmem:[%s242 + $0xe0] sm:$0xff]
      %v359 = vld [vmem:[%s242 + $0xe8] sm:$0xff]
      %v360 = vld [vmem:[%s242 + $0xf0] sm:$0xff]
      %v361 = vld [vmem:[%s242 + $0xf8] sm:$0xff]
      %v362 = vld [vmem:[%s242 + $0x100] sm:$0xff]
      %v363 = vld [vmem:[%s242 + $0x108] sm:$0xff]
      %v364 = vld [vmem:[%s242 + $0x110] sm:$0xff]
      %v365 = vld [vmem:[%s242 + $0x118] sm:$0xff]
      %v366 = vld [vmem:[%s242 + $0x120] sm:$0xff]
      %v367 = vld [vmem:[%s242 + $0x128] sm:$0xff]
      %v368 = vld [vmem:[%s242 + $0x130] sm:$0xff]
      %v369 = vld [vmem:[%s242 + $0x138] sm:$0xff]
      %v370 = vld [vmem:[%s242 + $0x140] sm:$0xff]
      %v371 = vld [vmem:[%s242 + $0x148] sm:$0xff]
      %v372 = vld [vmem:[%s242 + $0x150] sm:$0xff]
      %v373 = vld [vmem:[%s242 + $0x158] sm:$0xff]
      %v374 = vld [vmem:[%s242 + $0x160] sm:$0xff]
      %v375 = vld [vmem:[%s242 + $0x168] sm:$0xff]
      %v376 = vld [vmem:[%s242 + $0x170] sm:$0xff]
      %v377 = vld [vmem:[%s242 + $0x178] sm:$0xff]
      %v378 = vld [vmem:[%s242 + $0x180] sm:$0xff]
      %v379 = vld [vmem:[%s242 + $0x188] sm:$0xff]
      %v380 = vld [vmem:[%s242 + $0x190] sm:$0xff]
      %v381 = vld [vmem:[%s242 + $0x198] sm:$0xff]
      %v382 = vld [vmem:[%s242 + $0x1a0] sm:$0xff]
      %v383 = vld [vmem:[%s242 + $0x1a8] sm:$0xff]
      %v384 = vld [vmem:[%s242 + $0x1b0] sm:$0xff]
      %v385 = vld [vmem:[%s242 + $0x1b8] sm:$0xff]
      %v386 = vld [vmem:[%s242 + $0x1c0] sm:$0xff]
      %v387 = vld [vmem:[%s242 + $0x1c8] sm:$0xff]
      %v388 = vld [vmem:[%s242 + $0x1d0] sm:$0xff]
      %v389 = vld [vmem:[%s242 + $0x1d8] sm:$0xff]
      %v390 = vld [vmem:[%s242 + $0x1e0] sm:$0xff]
      %v391 = vld [vmem:[%s242 + $0x1e8] sm:$0xff]
      %v392 = vld [vmem:[%s242 + $0x1f0] sm:$0xff]
      %v393 = vld [vmem:[%s242 + $0x1f8] sm:$0xff]
      %v394 = vld [vmem:[%s242 + $0x200] sm:$0xff]
      %v395 = vld [vmem:[%s242 + $0x208] sm:$0xff]
      %v396 = vld [vmem:[%s242 + $0x210] sm:$0xff]
      %v397 = vld [vmem:[%s242 + $0x218] sm:$0xff]
      %v398 = vld [vmem:[%s242 + $0x220] sm:$0xff]
      %v399 = vld [vmem:[%s242 + $0x228] sm:$0xff]
      %v400 = vld [vmem:[%s242 + $0x230] sm:$0xff]
      %v401 = vld [vmem:[%s242 + $0x238] sm:$0xff]
      %v402 = vmax.f32 %v258, %v330
      %v403 = vmax.f32 %v259, %v331
      %v404 = vmax.f32 %v260, %v332
      %v405 = vmax.f32 %v261, %v333
      %v406 = vmax.f32 %v262, %v334
      %v407 = vmax.f32 %v263, %v335
      %v408 = vmax.f32 %v264, %v336
      %v409 = vmax.f32 %v265, %v337
      %v410 = vmax.f32 %v266, %v338
      %v411 = vmax.f32 %v267, %v339
      %v412 = vmax.f32 %v268, %v340
      %v413 = vmax.f32 %v269, %v341
      %v414 = vmax.f32 %v270, %v342
      %v415 = vmax.f32 %v271, %v343
      %v416 = vmax.f32 %v272, %v344
      %v417 = vmax.f32 %v273, %v345
      %v418 = vmax.f32 %v274, %v346
      %v419 = vmax.f32 %v275, %v347
      %v420 = vmax.f32 %v276, %v348
      %v421 = vmax.f32 %v277, %v349
      %v422 = vmax.f32 %v278, %v350
      %v423 = vmax.f32 %v279, %v351
      %v424 = vmax.f32 %v280, %v352
      %v425 = vmax.f32 %v281, %v353
      %v426 = vmax.f32 %v282, %v354
      %v427 = vmax.f32 %v283, %v355
      %v428 = vmax.f32 %v284, %v356
      %v429 = vmax.f32 %v285, %v357
      %v430 = vmax.f32 %v286, %v358
      %v431 = vmax.f32 %v287, %v359
      %v432 = vmax.f32 %v288, %v360
      %v433 = vmax.f32 %v289, %v361
      %v434 = vmax.f32 %v290, %v362
      %v435 = vmax.f32 %v291, %v363
      %v436 = vmax.f32 %v292, %v364
      %v437 = vmax.f32 %v293, %v365
      %v438 = vmax.f32 %v294, %v366
      %v439 = vmax.f32 %v295, %v367
      %v440 = vmax.f32 %v296, %v368
      %v441 = vmax.f32 %v297, %v369
      %v442 = vmax.f32 %v298, %v370
      %v443 = vmax.f32 %v299, %v371
      %v444 = vmax.f32 %v300, %v372
      %v445 = vmax.f32 %v301, %v373
      %v446 = vmax.f32 %v302, %v374
      %v447 = vmax.f32 %v303, %v375
      %v448 = vmax.f32 %v304, %v376
      %v449 = vmax.f32 %v305, %v377
      %v450 = vmax.f32 %v306, %v378
      %v451 = vmax.f32 %v307, %v379
      %v452 = vmax.f32 %v308, %v380
      %v453 = vmax.f32 %v309, %v381
      %v454 = vmax.f32 %v310, %v382
      %v455 = vmax.f32 %v311, %v383
      %v456 = vmax.f32 %v312, %v384
      %v457 = vmax.f32 %v313, %v385
      %v458 = vmax.f32 %v314, %v386
      %v459 = vmax.f32 %v315, %v387
      %v460 = vmax.f32 %v316, %v388
      %v461 = vmax.f32 %v317, %v389
      %v462 = vmax.f32 %v318, %v390
      %v463 = vmax.f32 %v319, %v391
      %v464 = vmax.f32 %v320, %v392
      %v465 = vmax.f32 %v321, %v393
      %v466 = vmax.f32 %v322, %v394
      %v467 = vmax.f32 %v323, %v395
      %v468 = vmax.f32 %v324, %v396
      %v469 = vmax.f32 %v325, %v397
      %v470 = vmax.f32 %v326, %v398
      %v471 = vmax.f32 %v327, %v399
      %v472 = vmax.f32 %v328, %v400
      %v473 = vmax.f32 %v329, %v401
      %v474 = vld [vmem:[%s247] sm:$0xff]
      %v475 = vld [vmem:[%s247 + $0x8] sm:$0xff]
      %v476 = vld [vmem:[%s247 + $0x10] sm:$0xff]
      %v477 = vld [vmem:[%s247 + $0x18] sm:$0xff]
      %v478 = vld [vmem:[%s247 + $0x20] sm:$0xff]
      %v479 = vld [vmem:[%s247 + $0x28] sm:$0xff]
      %v480 = vld [vmem:[%s247 + $0x30] sm:$0xff]
      %v481 = vld [vmem:[%s247 + $0x38] sm:$0xff]
      %v482 = vld [vmem:[%s247 + $0x40] sm:$0xff]
      %v483 = vld [vmem:[%s247 + $0x48] sm:$0xff]
      %v484 = vld [vmem:[%s247 + $0x50] sm:$0xff]
      %v485 = vld [vmem:[%s247 + $0x58] sm:$0xff]
      %v486 = vld [vmem:[%s247 + $0x60] sm:$0xff]
      %v487 = vld [vmem:[%s247 + $0x68] sm:$0xff]
      %v488 = vld [vmem:[%s247 + $0x70] sm:$0xff]
      %v489 = vld [vmem:[%s247 + $0x78] sm:$0xff]
      %v490 = vld [vmem:[%s247 + $0x80] sm:$0xff]
      %v491 = vld [vmem:[%s247 + $0x88] sm:$0xff]
      %v492 = vld [vmem:[%s247 + $0x90] sm:$0xff]
      %v493 = vld [vmem:[%s247 + $0x98] sm:$0xff]
      %v494 = vld [vmem:[%s247 + $0xa0] sm:$0xff]
      %v495 = vld [vmem:[%s247 + $0xa8] sm:$0xff]
      %v496 = vld [vmem:[%s247 + $0xb0] sm:$0xff]
      %v497 = vld [vmem:[%s247 + $0xb8] sm:$0xff]
      %v498 = vld [vmem:[%s247 + $0xc0] sm:$0xff]
      %v499 = vld [vmem:[%s247 + $0xc8] sm:$0xff]
      %v500 = vld [vmem:[%s247 + $0xd0] sm:$0xff]
      %v501 = vld [vmem:[%s247 + $0xd8] sm:$0xff]
      %v502 = vld [vmem:[%s247 + $0xe0] sm:$0xff]
      %v503 = vld [vmem:[%s247 + $0xe8] sm:$0xff]
      %v504 = vld [vmem:[%s247 + $0xf0] sm:$0xff]
      %v505 = vld [vmem:[%s247 + $0xf8] sm:$0xff]
      %v506 = vld [vmem:[%s247 + $0x100] sm:$0xff]
      %v507 = vld [vmem:[%s247 + $0x108] sm:$0xff]
      %v508 = vld [vmem:[%s247 + $0x110] sm:$0xff]
      %v509 = vld [vmem:[%s247 + $0x118] sm:$0xff]
      %v510 = vld [vmem:[%s247 + $0x120] sm:$0xff]
      %v511 = vld [vmem:[%s247 + $0x128] sm:$0xff]
      %v512 = vld [vmem:[%s247 + $0x130] sm:$0xff]
      %v513 = vld [vmem:[%s247 + $0x138] sm:$0xff]
      %v514 = vld [vmem:[%s247 + $0x140] sm:$0xff]
      %v515 = vld [vmem:[%s247 + $0x148] sm:$0xff]
      %v516 = vld [vmem:[%s247 + $0x150] sm:$0xff]
      %v517 = vld [vmem:[%s247 + $0x158] sm:$0xff]
      %v518 = vld [vmem:[%s247 + $0x160] sm:$0xff]
      %v519 = vld [vmem:[%s247 + $0x168] sm:$0xff]
      %v520 = vld [vmem:[%s247 + $0x170] sm:$0xff]
      %v521 = vld [vmem:[%s247 + $0x178] sm:$0xff]
      %v522 = vld [vmem:[%s247 + $0x180] sm:$0xff]
      %v523 = vld [vmem:[%s247 + $0x188] sm:$0xff]
      %v524 = vld [vmem:[%s247 + $0x190] sm:$0xff]
      %v525 = vld [vmem:[%s247 + $0x198] sm:$0xff]
      %v526 = vld [vmem:[%s247 + $0x1a0] sm:$0xff]
      %v527 = vld [vmem:[%s247 + $0x1a8] sm:$0xff]
      %v528 = vld [vmem:[%s247 + $0x1b0] sm:$0xff]
      %v529 = vld [vmem:[%s247 + $0x1b8] sm:$0xff]
      %v530 = vld [vmem:[%s247 + $0x1c0] sm:$0xff]
      %v531 = vld [vmem:[%s247 + $0x1c8] sm:$0xff]
      %v532 = vld [vmem:[%s247 + $0x1d0] sm:$0xff]
      %v533 = vld [vmem:[%s247 + $0x1d8] sm:$0xff]
      %v534 = vld [vmem:[%s247 + $0x1e0] sm:$0xff]
      %v535 = vld [vmem:[%s247 + $0x1e8] sm:$0xff]
      %v536 = vld [vmem:[%s247 + $0x1f0] sm:$0xff]
      %v537 = vld [vmem:[%s247 + $0x1f8] sm:$0xff]
      %v538 = vld [vmem:[%s247 + $0x200] sm:$0xff]
      %v539 = vld [vmem:[%s247 + $0x208] sm:$0xff]
      %v540 = vld [vmem:[%s247 + $0x210] sm:$0xff]
      %v541 = vld [vmem:[%s247 + $0x218] sm:$0xff]
      %v542 = vld [vmem:[%s247 + $0x220] sm:$0xff]
      %v543 = vld [vmem:[%s247 + $0x228] sm:$0xff]
      %v544 = vld [vmem:[%s247 + $0x230] sm:$0xff]
      %v545 = vld [vmem:[%s247 + $0x238] sm:$0xff]
      %v546 = vld [vmem:[%s252] sm:$0xff]
      %v547 = vld [vmem:[%s252 + $0x8] sm:$0xff]
      %v548 = vld [vmem:[%s252 + $0x10] sm:$0xff]
      %v549 = vld [vmem:[%s252 + $0x18] sm:$0xff]
      %v550 = vld [vmem:[%s252 + $0x20] sm:$0xff]
      %v551 = vld [vmem:[%s252 + $0x28] sm:$0xff]
      %v552 = vld [vmem:[%s252 + $0x30] sm:$0xff]
      %v553 = vld [vmem:[%s252 + $0x38] sm:$0xff]
      %v554 = vld [vmem:[%s252 + $0x40] sm:$0xff]
      %v555 = vld [vmem:[%s252 + $0x48] sm:$0xff]
      %v556 = vld [vmem:[%s252 + $0x50] sm:$0xff]
      %v557 = vld [vmem:[%s252 + $0x58] sm:$0xff]
      %v558 = vld [vmem:[%s252 + $0x60] sm:$0xff]
      %v559 = vld [vmem:[%s252 + $0x68] sm:$0xff]
      %v560 = vld [vmem:[%s252 + $0x70] sm:$0xff]
      %v561 = vld [vmem:[%s252 + $0x78] sm:$0xff]
      %v562 = vld [vmem:[%s252 + $0x80] sm:$0xff]
      %v563 = vld [vmem:[%s252 + $0x88] sm:$0xff]
      %v564 = vld [vmem:[%s252 + $0x90] sm:$0xff]
      %v565 = vld [vmem:[%s252 + $0x98] sm:$0xff]
      %v566 = vld [vmem:[%s252 + $0xa0] sm:$0xff]
      %v567 = vld [vmem:[%s252 + $0xa8] sm:$0xff]
      %v568 = vld [vmem:[%s252 + $0xb0] sm:$0xff]
      %v569 = vld [vmem:[%s252 + $0xb8] sm:$0xff]
      %v570 = vld [vmem:[%s252 + $0xc0] sm:$0xff]
      %v571 = vld [vmem:[%s252 + $0xc8] sm:$0xff]
      %v572 = vld [vmem:[%s252 + $0xd0] sm:$0xff]
      %v573 = vld [vmem:[%s252 + $0xd8] sm:$0xff]
      %v574 = vld [vmem:[%s252 + $0xe0] sm:$0xff]
      %v575 = vld [vmem:[%s252 + $0xe8] sm:$0xff]
      %v576 = vld [vmem:[%s252 + $0xf0] sm:$0xff]
      %v577 = vld [vmem:[%s252 + $0xf8] sm:$0xff]
      %v578 = vld [vmem:[%s252 + $0x100] sm:$0xff]
      %v579 = vld [vmem:[%s252 + $0x108] sm:$0xff]
      %v580 = vld [vmem:[%s252 + $0x110] sm:$0xff]
      %v581 = vld [vmem:[%s252 + $0x118] sm:$0xff]
      %v582 = vld [vmem:[%s252 + $0x120] sm:$0xff]
      %v583 = vld [vmem:[%s252 + $0x128] sm:$0xff]
      %v584 = vld [vmem:[%s252 + $0x130] sm:$0xff]
      %v585 = vld [vmem:[%s252 + $0x138] sm:$0xff]
      %v586 = vld [vmem:[%s252 + $0x140] sm:$0xff]
      %v587 = vld [vmem:[%s252 + $0x148] sm:$0xff]
      %v588 = vld [vmem:[%s252 + $0x150] sm:$0xff]
      %v589 = vld [vmem:[%s252 + $0x158] sm:$0xff]
      %v590 = vld [vmem:[%s252 + $0x160] sm:$0xff]
      %v591 = vld [vmem:[%s252 + $0x168] sm:$0xff]
      %v592 = vld [vmem:[%s252 + $0x170] sm:$0xff]
      %v593 = vld [vmem:[%s252 + $0x178] sm:$0xff]
      %v594 = vld [vmem:[%s252 + $0x180] sm:$0xff]
      %v595 = vld [vmem:[%s252 + $0x188] sm:$0xff]
      %v596 = vld [vmem:[%s252 + $0x190] sm:$0xff]
      %v597 = vld [vmem:[%s252 + $0x198] sm:$0xff]
      %v598 = vld [vmem:[%s252 + $0x1a0] sm:$0xff]
      %v599 = vld [vmem:[%s252 + $0x1a8] sm:$0xff]
      %v600 = vld [vmem:[%s252 + $0x1b0] sm:$0xff]
      %v601 = vld [vmem:[%s252 + $0x1b8] sm:$0xff]
      %v602 = vld [vmem:[%s252 + $0x1c0] sm:$0xff]
      %v603 = vld [vmem:[%s252 + $0x1c8] sm:$0xff]
      %v604 = vld [vmem:[%s252 + $0x1d0] sm:$0xff]
      %v605 = vld [vmem:[%s252 + $0x1d8] sm:$0xff]
      %v606 = vld [vmem:[%s252 + $0x1e0] sm:$0xff]
      %v607 = vld [vmem:[%s252 + $0x1e8] sm:$0xff]
      %v608 = vld [vmem:[%s252 + $0x1f0] sm:$0xff]
      %v609 = vld [vmem:[%s252 + $0x1f8] sm:$0xff]
      %v610 = vld [vmem:[%s252 + $0x200] sm:$0xff]
      %v611 = vld [vmem:[%s252 + $0x208] sm:$0xff]
      %v612 = vld [vmem:[%s252 + $0x210] sm:$0xff]
      %v613 = vld [vmem:[%s252 + $0x218] sm:$0xff]
      %v614 = vld [vmem:[%s252 + $0x220] sm:$0xff]
      %v615 = vld [vmem:[%s252 + $0x228] sm:$0xff]
      %v616 = vld [vmem:[%s252 + $0x230] sm:$0xff]
      %v617 = vld [vmem:[%s252 + $0x238] sm:$0xff]
      %v618 = vmax.f32 %v474, %v546
      %v619 = vmax.f32 %v475, %v547
      %v620 = vmax.f32 %v476, %v548
      %v621 = vmax.f32 %v477, %v549
      %v622 = vmax.f32 %v478, %v550
      %v623 = vmax.f32 %v479, %v551
      %v624 = vmax.f32 %v480, %v552
      %v625 = vmax.f32 %v481, %v553
      %v626 = vmax.f32 %v482, %v554
      %v627 = vmax.f32 %v483, %v555
      %v628 = vmax.f32 %v484, %v556
      %v629 = vmax.f32 %v485, %v557
      %v630 = vmax.f32 %v486, %v558
      %v631 = vmax.f32 %v487, %v559
      %v632 = vmax.f32 %v488, %v560
      %v633 = vmax.f32 %v489, %v561
      %v634 = vmax.f32 %v490, %v562
      %v635 = vmax.f32 %v491, %v563
      %v636 = vmax.f32 %v492, %v564
      %v637 = vmax.f32 %v493, %v565
      %v638 = vmax.f32 %v494, %v566
      %v639 = vmax.f32 %v495, %v567
      %v640 = vmax.f32 %v496, %v568
      %v641 = vmax.f32 %v497, %v569
      %v642 = vmax.f32 %v498, %v570
      %v643 = vmax.f32 %v499, %v571
      %v644 = vmax.f32 %v500, %v572
      %v645 = vmax.f32 %v501, %v573
      %v646 = vmax.f32 %v502, %v574
      %v647 = vmax.f32 %v503, %v575
      %v648 = vmax.f32 %v504, %v576
      %v649 = vmax.f32 %v505, %v577
      %v650 = vmax.f32 %v506, %v578
      %v651 = vmax.f32 %v507, %v579
      %v652 = vmax.f32 %v508, %v580
      %v653 = vmax.f32 %v509, %v581
      %v654 = vmax.f32 %v510, %v582
      %v655 = vmax.f32 %v511, %v583
      %v656 = vmax.f32 %v512, %v584
      %v657 = vmax.f32 %v513, %v585
      %v658 = vmax.f32 %v514, %v586
      %v659 = vmax.f32 %v515, %v587
      %v660 = vmax.f32 %v516, %v588
      %v661 = vmax.f32 %v517, %v589
      %v662 = vmax.f32 %v518, %v590
      %v663 = vmax.f32 %v519, %v591
      %v664 = vmax.f32 %v520, %v592
      %v665 = vmax.f32 %v521, %v593
      %v666 = vmax.f32 %v522, %v594
      %v667 = vmax.f32 %v523, %v595
      %v668 = vmax.f32 %v524, %v596
      %v669 = vmax.f32 %v525, %v597
      %v670 = vmax.f32 %v526, %v598
      %v671 = vmax.f32 %v527, %v599
      %v672 = vmax.f32 %v528, %v600
      %v673 = vmax.f32 %v529, %v601
      %v674 = vmax.f32 %v530, %v602
      %v675 = vmax.f32 %v531, %v603
      %v676 = vmax.f32 %v532, %v604
      %v677 = vmax.f32 %v533, %v605
      %v678 = vmax.f32 %v534, %v606
      %v679 = vmax.f32 %v535, %v607
      %v680 = vmax.f32 %v536, %v608
      %v681 = vmax.f32 %v537, %v609
      %v682 = vmax.f32 %v538, %v610
      %v683 = vmax.f32 %v539, %v611
      %v684 = vmax.f32 %v540, %v612
      %v685 = vmax.f32 %v541, %v613
      %v686 = vmax.f32 %v542, %v614
      %v687 = vmax.f32 %v543, %v615
      %v688 = vmax.f32 %v544, %v616
      %v689 = vmax.f32 %v545, %v617
      %v690 = vmax.f32 %v402, %v618
      %v691 = vmax.f32 %v403, %v619
      %v692 = vmax.f32 %v404, %v620
      %v693 = vmax.f32 %v405, %v621
      %v694 = vmax.f32 %v406, %v622
      %v695 = vmax.f32 %v407, %v623
      %v696 = vmax.f32 %v408, %v624
      %v697 = vmax.f32 %v409, %v625
      %v698 = vmax.f32 %v410, %v626
      %v699 = vmax.f32 %v411, %v627
      %v700 = vmax.f32 %v412, %v628
      %v701 = vmax.f32 %v413, %v629
      %v702 = vmax.f32 %v414, %v630
      %v703 = vmax.f32 %v415, %v631
      %v704 = vmax.f32 %v416, %v632
      %v705 = vmax.f32 %v417, %v633
      %v706 = vmax.f32 %v418, %v634
      %v707 = vmax.f32 %v419, %v635
      %v708 = vmax.f32 %v420, %v636
      %v709 = vmax.f32 %v421, %v637
      %v710 = vmax.f32 %v422, %v638
      %v711 = vmax.f32 %v423, %v639
      %v712 = vmax.f32 %v424, %v640
      %v713 = vmax.f32 %v425, %v641
      %v714 = vmax.f32 %v426, %v642
      %v715 = vmax.f32 %v427, %v643
      %v716 = vmax.f32 %v428, %v644
      %v717 = vmax.f32 %v429, %v645
      %v718 = vmax.f32 %v430, %v646
      %v719 = vmax.f32 %v431, %v647
      %v720 = vmax.f32 %v432, %v648
      %v721 = vmax.f32 %v433, %v649
      %v722 = vmax.f32 %v434, %v650
      %v723 = vmax.f32 %v435, %v651
      %v724 = vmax.f32 %v436, %v652
      %v725 = vmax.f32 %v437, %v653
      %v726 = vmax.f32 %v438, %v654
      %v727 = vmax.f32 %v439, %v655
      %v728 = vmax.f32 %v440, %v656
      %v729 = vmax.f32 %v441, %v657
      %v730 = vmax.f32 %v442, %v658
      %v731 = vmax.f32 %v443, %v659
      %v732 = vmax.f32 %v444, %v660
      %v733 = vmax.f32 %v445, %v661
      %v734 = vmax.f32 %v446, %v662
      %v735 = vmax.f32 %v447, %v663
      %v736 = vmax.f32 %v448, %v664
      %v737 = vmax.f32 %v449, %v665
      %v738 = vmax.f32 %v450, %v666
      %v739 = vmax.f32 %v451, %v667
      %v740 = vmax.f32 %v452, %v668
      %v741 = vmax.f32 %v453, %v669
      %v742 = vmax.f32 %v454, %v670
      %v743 = vmax.f32 %v455, %v671
      %v744 = vmax.f32 %v456, %v672
      %v745 = vmax.f32 %v457, %v673
      %v746 = vmax.f32 %v458, %v674
      %v747 = vmax.f32 %v459, %v675
      %v748 = vmax.f32 %v460, %v676
      %v749 = vmax.f32 %v461, %v677
      %v750 = vmax.f32 %v462, %v678
      %v751 = vmax.f32 %v463, %v679
      %v752 = vmax.f32 %v464, %v680
      %v753 = vmax.f32 %v465, %v681
      %v754 = vmax.f32 %v466, %v682
      %v755 = vmax.f32 %v467, %v683
      %v756 = vmax.f32 %v468, %v684
      %v757 = vmax.f32 %v469, %v685
      %v758 = vmax.f32 %v470, %v686
      %v759 = vmax.f32 %v471, %v687
      %v760 = vmax.f32 %v472, %v688
      %v761 = vmax.f32 %v473, %v689
      %762 = vst [vmem:[%s257] sm:$0xff] %v690
      %763 = vst [vmem:[%s257 + $0x8] sm:$0xff] %v691
      %764 = vst [vmem:[%s257 + $0x10] sm:$0xff] %v692
      %765 = vst [vmem:[%s257 + $0x18] sm:$0xff] %v693
      %766 = vst [vmem:[%s257 + $0x20] sm:$0xff] %v694
      %767 = vst [vmem:[%s257 + $0x28] sm:$0xff] %v695
      %768 = vst [vmem:[%s257 + $0x30] sm:$0xff] %v696
      %769 = vst [vmem:[%s257 + $0x38] sm:$0xff] %v697
      %770 = vst [vmem:[%s257 + $0x40] sm:$0xff] %v698
      %771 = vst [vmem:[%s257 + $0x48] sm:$0xff] %v699
      %772 = vst [vmem:[%s257 + $0x50] sm:$0xff] %v700
      %773 = vst [vmem:[%s257 + $0x58] sm:$0xff] %v701
      %774 = vst [vmem:[%s257 + $0x60] sm:$0xff] %v702
      %775 = vst [vmem:[%s257 + $0x68] sm:$0xff] %v703
      %776 = vst [vmem:[%s257 + $0x70] sm:$0xff] %v704
      %777 = vst [vmem:[%s257 + $0x78] sm:$0xff] %v705
      %778 = vst [vmem:[%s257 + $0x80] sm:$0xff] %v706
      %779 = vst [vmem:[%s257 + $0x88] sm:$0xff] %v707
      %780 = vst [vmem:[%s257 + $0x90] sm:$0xff] %v708
      %781 = vst [vmem:[%s257 + $0x98] sm:$0xff] %v709
      %782 = vst [vmem:[%s257 + $0xa0] sm:$0xff] %v710
      %783 = vst [vmem:[%s257 + $0xa8] sm:$0xff] %v711
      %784 = vst [vmem:[%s257 + $0xb0] sm:$0xff] %v712
      %785 = vst [vmem:[%s257 + $0xb8] sm:$0xff] %v713
      %786 = vst [vmem:[%s257 + $0xc0] sm:$0xff] %v714
      %787 = vst [vmem:[%s257 + $0xc8] sm:$0xff] %v715
      %788 = vst [vmem:[%s257 + $0xd0] sm:$0xff] %v716
      %789 = vst [vmem:[%s257 + $0xd8] sm:$0xff] %v717
      %790 = vst [vmem:[%s257 + $0xe0] sm:$0xff] %v718
      %791 = vst [vmem:[%s257 + $0xe8] sm:$0xff] %v719
      %792 = vst [vmem:[%s257 + $0xf0] sm:$0xff] %v720
      %793 = vst [vmem:[%s257 + $0xf8] sm:$0xff] %v721
      %794 = vst [vmem:[%s257 + $0x100] sm:$0xff] %v722
      %795 = vst [vmem:[%s257 + $0x108] sm:$0xff] %v723
      %796 = vst [vmem:[%s257 + $0x110] sm:$0xff] %v724
      %797 = vst [vmem:[%s257 + $0x118] sm:$0xff] %v725
      %798 = vst [vmem:[%s257 + $0x120] sm:$0xff] %v726
      %799 = vst [vmem:[%s257 + $0x128] sm:$0xff] %v727
      %800 = vst [vmem:[%s257 + $0x130] sm:$0xff] %v728
      %801 = vst [vmem:[%s257 + $0x138] sm:$0xff] %v729
      %802 = vst [vmem:[%s257 + $0x140] sm:$0xff] %v730
      %803 = vst [vmem:[%s257 + $0x148] sm:$0xff] %v731
      %804 = vst [vmem:[%s257 + $0x150] sm:$0xff] %v732
      %805 = vst [vmem:[%s257 + $0x158] sm:$0xff] %v733
      %806 = vst [vmem:[%s257 + $0x160] sm:$0xff] %v734
      %807 = vst [vmem:[%s257 + $0x168] sm:$0xff] %v735
      %808 = vst [vmem:[%s257 + $0x170] sm:$0xff] %v736
      %809 = vst [vmem:[%s257 + $0x178] sm:$0xff] %v737
      %810 = vst [vmem:[%s257 + $0x180] sm:$0xff] %v738
      %811 = vst [vmem:[%s257 + $0x188] sm:$0xff] %v739
      %812 = vst [vmem:[%s257 + $0x190] sm:$0xff] %v740
      %813 = vst [vmem:[%s257 + $0x198] sm:$0xff] %v741
      %814 = vst [vmem:[%s257 + $0x1a0] sm:$0xff] %v742
      %815 = vst [vmem:[%s257 + $0x1a8] sm:$0xff] %v743
      %816 = vst [vmem:[%s257 + $0x1b0] sm:$0xff] %v744
      %817 = vst [vmem:[%s257 + $0x1b8] sm:$0xff] %v745
      %818 = vst [vmem:[%s257 + $0x1c0] sm:$0xff] %v746
      %819 = vst [vmem:[%s257 + $0x1c8] sm:$0xff] %v747
      %820 = vst [vmem:[%s257 + $0x1d0] sm:$0xff] %v748
      %821 = vst [vmem:[%s257 + $0x1d8] sm:$0xff] %v749
      %822 = vst [vmem:[%s257 + $0x1e0] sm:$0xff] %v750
      %823 = vst [vmem:[%s257 + $0x1e8] sm:$0xff] %v751
      %824 = vst [vmem:[%s257 + $0x1f0] sm:$0xff] %v752
      %825 = vst [vmem:[%s257 + $0x1f8] sm:$0xff] %v753
      %826 = vst [vmem:[%s257 + $0x200] sm:$0xff] %v754
      %827 = vst [vmem:[%s257 + $0x208] sm:$0xff] %v755
      %828 = vst [vmem:[%s257 + $0x210] sm:$0xff] %v756
      %829 = vst [vmem:[%s257 + $0x218] sm:$0xff] %v757
      %830 = vst [vmem:[%s257 + $0x220] sm:$0xff] %v758
      %831 = vst [vmem:[%s257 + $0x228] sm:$0xff] %v759
      %832 = vst [vmem:[%s257 + $0x230] sm:$0xff] %v760
      %833 = vst [vmem:[%s257 + $0x238] sm:$0xff] %v761
      %p834 = scmp.lt.s32.totalorder %s15, 1
      %s835 = scalar_select %p834, %s15, 1
      %s836 = smul.addr %s835, 72
      %s837 = smul.addr %s836, 8
      %s838 = scalar_lea.vmem %s4, %s837
      // Predicated region
      $region37: #{feature_extractor_forward.8} parent=35 // pred_check
        %p839 = pneg %p137
      $region38: #{feature_extractor_forward.8} parent=35 // pred_check_branch
        %841 = sbr.rel (%p839) target = $region40
      $region39: #{feature_extractor_forward.8} parent=35 // pred_region
        _
      $region40: #{feature_extractor_forward.8} parent=35 // pred_fallthru
        _
    $region36: #{feature_extractor_forward.8} parent=5 // pred_fallthru
      _
    %p842 = scmp.le.s32.totalorder 2, %s10
    // Predicated region
    $region41: #{feature_extractor_forward.8} parent=5 // pred_check
      %p843 = pneg %p842
    $region42: #{feature_extractor_forward.8} parent=5 // pred_check_branch
      %845 = sbr.rel (%p843) target = $region44
    $region43: #{feature_extractor_forward.8} parent=5 // pred_region
      %s846 = ssub.s32 %s10, 2
      // Predicated region
      $region45: #{feature_extractor_forward.8} parent=43 // pred_check
        %p847 = pneg %p143
      $region46: #{feature_extractor_forward.8} parent=43 // pred_check_branch
        %849 = sbr.rel (%p847) target = $region48
      $region47: #{feature_extractor_forward.8} parent=43 // pred_region
        %p850 = scmp.lt.s32.totalorder %s16, 1
        %s851 = scalar_select %p850, %s16, 1
        %s852 = smul.addr %s851, 72
        %s853 = smul.addr %s852, 8
        %s854 = scalar_lea.vmem %s4, %s853
      $region48: #{feature_extractor_forward.8} parent=43 // pred_fallthru
        _
    $region44: #{feature_extractor_forward.8} parent=5 // pred_fallthru
      _
  $region6: #{feature_extractor_forward.8} parent=0 // loop_footer
    %s14 = sadd.s32 1, %s10
  $region7: #{feature_extractor_forward.8} parent=0 // loop_footer_branch
    %9 = sbr.rel target = $region3
  $region8: #{feature_extractor_forward.8} parent=0 // loop_exit
    _

// kernel: feature_extractor_forward.9
$region0: #{feature_extractor_forward.9}
  #allocation0 [shape = 'u32[]', space=smem, size = 0x4, offset = 0x4, fixed_abs, tag = 'smem constant byte address 0x4 - core index']
  #allocation1 [shape = 'u32[144,128]{1,0:T(1,128)}', space=vmem, size = 0x12000, scoped, tag = 'internal scratch']
  %s0 = inlined_call_operand.vmem [shape: f32[4608,288], index: 0, kind: input, shape index: {}]
  %s1 = inlined_call_operand.vmem [shape: f32[288,64], index: 1, kind: input, shape index: {}]
  %s2 = inlined_call_operand.vmem [shape: f32[1,64], index: 2, kind: input, shape index: {}]
  %s3 = inlined_call_operand.vmem [shape: f32[4608,64], index: 3, kind: output, shape index: {}]
  %s4 = sld [smem:[#allocation0]]
  $region45: #{feature_extractor_forward.9} parent=0
    _
  %s6 = ssub.s32 1, %s4
  %s7 = scalar_select 0, %s6, %s4
  loop: start=0, step=1, limit=8
  $region2: #{feature_extractor_forward.9} parent=0 // loop_pre_header
    _
  $region3: #{feature_extractor_forward.9} parent=0 // loop_header
    %s9 = sphi 0, %s13
    %p10 = scmp.ge.s32.totalorder %s9, 8
    %s19 = sphi 0, %s21
    %s22 = sphi 0, %s19
    %s23 = sphi 0, %s22
    %s39 = sphi 0, %s23
    %s43 = sphi 0, %s43
    %s45 = sphi 0, %s43
    %s46 = sphi 0, %s45
    %s60 = sphi 0, %s46
    %s64 = sphi 0, %s64
    %s66 = sphi 0, %s64
    %s67 = sphi 0, %s66
    %s81 = sphi 0, %s67
    %s87 = sphi 0, %s89
    %s90 = sphi 0, %s87
    %s91 = sphi 0, %s90
    %s107 = sphi 0, %s91
  $region4: #{feature_extractor_forward.9} parent=0 // loop_header_branch
    %12 = sbr.rel (%p10) target = $region8
  $region5: #{feature_extractor_forward.9} parent=0 // loop_body
    %s14 = ssub.s32 %s9, 1
    %s15 = ssub.s32 %s9, 2
    %s16 = sadd.s32 %s9, 1
    %s17 = ssub.s32 %s9, %s16
    %p18 = scmp.eq.s32.totalorder %s17, 0
    %s20 = sadd.s32 %s19, 1
    %s21 = scalar_select %p18, %s19, %s20
    %p24 = pneg %p18
    %p25 = scmp.eq.s32.totalorder %s9, 5
    %p26 = por %p24, %p25
    %p27 = scmp.ne.s32.totalorder %s19, %s22
    %p28 = scmp.eq.s32.totalorder %s9, 0
    %p29 = por %p27, %p28
    %p30 = scmp.ne.s32.totalorder %s19, %s22
    %p31 = scmp.eq.s32.totalorder %s14, 5
    %p32 = por %p30, %p31
    %p33 = scmp.ne.s32.totalorder %s22, %s23
    %p34 = scmp.eq.s32.totalorder %s14, 0
    %p35 = por %p33, %p34
    %p36 = scmp.ne.s32.totalorder %s22, %s23
    %p37 = scmp.eq.s32.totalorder %s15, 5
    %p38 = por %p36, %p37
    %p40 = scmp.ne.s32.totalorder %s23, %s39
    %p41 = scmp.eq.s32.totalorder %s15, 0
    %p42 = por %p40, %p41
    %s44 = sadd.s32 %s43, 1
    %p47 = scmp.eq.s32.totalorder %s9, 5
    %p48 = scmp.ne.s32.totalorder %s43, %s45
    %p49 = scmp.eq.s32.totalorder %s9, 0
    %p50 = por %p48, %p49
    %p51 = scmp.ne.s32.totalorder %s43, %s45
    %p52 = scmp.eq.s32.totalorder %s14, 5
    %p53 = por %p51, %p52
    %p54 = scmp.ne.s32.totalorder %s45, %s46
    %p55 = scmp.eq.s32.totalorder %s14, 0
    %p56 = por %p54, %p55
    %p57 = scmp.ne.s32.totalorder %s45, %s46
    %p58 = scmp.eq.s32.totalorder %s15, 5
    %p59 = por %p57, %p58
    %p61 = scmp.ne.s32.totalorder %s46, %s60
    %p62 = scmp.eq.s32.totalorder %s15, 0
    %p63 = por %p61, %p62
    %s65 = sadd.s32 %s64, 1
    %p68 = scmp.eq.s32.totalorder %s9, 5
    %p69 = scmp.ne.s32.totalorder %s64, %s66
    %p70 = scmp.eq.s32.totalorder %s9, 0
    %p71 = por %p69, %p70
    %p72 = scmp.ne.s32.totalorder %s64, %s66
    %p73 = scmp.eq.s32.totalorder %s14, 5
    %p74 = por %p72, %p73
    %p75 = scmp.ne.s32.totalorder %s66, %s67
    %p76 = scmp.eq.s32.totalorder %s14, 0
    %p77 = por %p75, %p76
    %p78 = scmp.ne.s32.totalorder %s66, %s67
    %p79 = scmp.eq.s32.totalorder %s15, 5
    %p80 = por %p78, %p79
    %p82 = scmp.ne.s32.totalorder %s67, %s81
    %p83 = scmp.eq.s32.totalorder %s15, 0
    %p84 = por %p82, %p83
    %s85 = ssub.s32 %s9, %s16
    %p86 = scmp.eq.s32.totalorder %s85, 0
    %s88 = sadd.s32 %s87, 1
    %s89 = scalar_select %p86, %s87, %s88
    %p92 = pneg %p86
    %p93 = scmp.eq.s32.totalorder %s9, 5
    %p94 = por %p92, %p93
    %p95 = scmp.ne.s32.totalorder %s87, %s90
    %p96 = scmp.eq.s32.totalorder %s9, 0
    %p97 = por %p95, %p96
    %p98 = scmp.ne.s32.totalorder %s87, %s90
    %p99 = scmp.eq.s32.totalorder %s14, 5
    %p100 = por %p98, %p99
    %p101 = scmp.ne.s32.totalorder %s90, %s91
    %p102 = scmp.eq.s32.totalorder %s14, 0
    %p103 = por %p101, %p102
    %p104 = scmp.ne.s32.totalorder %s90, %s91
    %p105 = scmp.eq.s32.totalorder %s15, 5
    %p106 = por %p104, %p105
    %p108 = scmp.ne.s32.totalorder %s91, %s107
    %p109 = scmp.eq.s32.totalorder %s15, 0
    %p110 = por %p108, %p109
    %p111 = scmp.le.s32.totalorder 1, %s9
    %p112 = scmp.lt.s32.totalorder %s9, 7
    %p113 = pnand %p111, %p112
    %p114 = pneg %p113
    // Predicated region
    $region9: #{feature_extractor_forward.9} parent=5 // pred_check
      _
    $region10: #{feature_extractor_forward.9} parent=5 // pred_check_branch
      %116 = sbr.rel (%p113) target = $region12
    $region11: #{feature_extractor_forward.9} parent=5 // pred_region
      %s117 = ssub.s32 %s9, 1
      // Predicated region
      $region13: #{feature_extractor_forward.9} parent=11 // pred_check
        %p118 = pneg %p56
      $region14: #{feature_extractor_forward.9} parent=11 // pred_check_branch
        %120 = sbr.rel (%p118) target = $region16
      $region15: #{feature_extractor_forward.9} parent=11 // pred_region
        _
      $region16: #{feature_extractor_forward.9} parent=11 // pred_fallthru
        _
      // Predicated region
      $region17: #{feature_extractor_forward.9} parent=11 // pred_check
        %p121 = pneg %p77
      $region18: #{feature_extractor_forward.9} parent=11 // pred_check_branch
        %123 = sbr.rel (%p121) target = $region20
      $region19: #{feature_extractor_forward.9} parent=11 // pred_region
        _
      $region20: #{feature_extractor_forward.9} parent=11 // pred_fallthru
        _
    $region12: #{feature_extractor_forward.9} parent=5 // pred_fallthru
      _
    %p124 = scmp.lt.s32.totalorder %s9, 6
    // Predicated region
    $region21: #{feature_extractor_forward.9} parent=5 // pred_check
      %p125 = pneg %p124
    $region22: #{feature_extractor_forward.9} parent=5 // pred_check_branch
      %127 = sbr.rel (%p125) target = $region24
    $region23: #{feature_extractor_forward.9} parent=5 // pred_region
      // Predicated region
      $region25: #{feature_extractor_forward.9} parent=23 // pred_check
        %p128 = pneg %p29
      $region26: #{feature_extractor_forward.9} parent=23 // pred_check_branch
        %130 = sbr.rel (%p128) target = $region28
      $region27: #{feature_extractor_forward.9} parent=23 // pred_region
        %s131 = smul.u32 96, %s9
        %p132 = scmp.lt.s32.totalorder %s131, 575
        %s133 = scalar_select %p132, %s131, 575
        %s134 = smul.addr %s133, 3
        %s135 = smul.addr %s134, 8
        %s136 = scalar_lea.vmem %s0, %s135
        %s137 = smul.u32 96, %s9
      $region28: #{feature_extractor_forward.9} parent=23 // pred_fallthru
        _
    $region24: #{feature_extractor_forward.9} parent=5 // pred_fallthru
      _
    %p138 = scmp.le.s32.totalorder 1, %s9
    %p139 = scmp.lt.s32.totalorder %s9, 7
    %p140 = pnand %p138, %p139
    %p141 = pneg %p140
    // Predicated region
    $region29: #{feature_extractor_forward.9} parent=5 // pred_check
      _
    $region30: #{feature_extractor_forward.9} parent=5 // pred_check_branch
      %143 = sbr.rel (%p140) target = $region32
    $region31: #{feature_extractor_forward.9} parent=5 // pred_region
      %s144 = ssub.s32 %s9, 1
      %s145 = smul.u32 96, %s14
      %p146 = scmp.lt.s32.totalorder %s145, 575
      %s147 = scalar_select %p146, %s145, 575
      %s148 = smul.addr %s147, 3
      %s149 = smul.addr %s148, 8
      %s150 = scalar_lea.vmem %s0, %s149
      %p151 = pneg %p35
      %p152 = pneg %p32
      %p153 = pneg %p56
      %p154 = pneg %p53
      %p155 = pneg %p77
      %p156 = pneg %p74
      %p157 = pneg %p103
      %p158 = pneg %p100
      %s159 = smul.u32 96, %s14
      %p160 = scmp.lt.s32.totalorder %s159, 575
      %s161 = scalar_select %p160, %s159, 575
      %s162 = smul.addr %s161, 8
      %s163 = scalar_lea.vmem %s3, %s162
      %s164 = smul.u32 96, %s14
      %p165 = scmp.lt.s32.totalorder %s164, 575
      %s166 = scalar_select %p165, %s164, 575
      %s167 = smul.addr %s166, 3
      %s168 = smul.addr %s167, 8
      %s169 = scalar_lea.vmem %s0, %s168
      %s170 = smul.u32 96, %s14
      %s171 = smul.u32 96, %s14
      %p172 = scmp.lt.s32.totalorder %s171, 575
      %s173 = scalar_select %p172, %s171, 575
      %s174 = smul.addr %s173, 8
      %s175 = scalar_lea.vmem %s3, %s174
      %s176 = smul.u32 96, %s14
      %v177 = vld [vmem:[%s169] sm:$0xff]
      %v178 = vld [vmem:[%s169 + $0x8] sm:$0xff]
      %v179 = vld [vmem:[%s169 + $0x10] sm:$0xff]
      %v180 = vld [vmem:[%s169 + $0x18] sm:$0xff]
      %v181 = vld [vmem:[%s169 + $0x20] sm:$0xff]
      %v182 = vld [vmem:[%s169 + $0x28] sm:$0xff]
      %v183 = vld [vmem:[%s169 + $0x30] sm:$0xff]
      %v184 = vld [vmem:[%s169 + $0x38] sm:$0xff]
      %v185 = vld [vmem:[%s169 + $0x40] sm:$0xff]
      %v186 = vld [vmem:[%s169 + $0x48] sm:$0xff]
      %v187 = vld [vmem:[%s169 + $0x50] sm:$0xff]
      %v188 = vld [vmem:[%s169 + $0x58] sm:$0xff]
      %v189 = vld [vmem:[%s169 + $0x60] sm:$0xff]
      %v190 = vld [vmem:[%s169 + $0x68] sm:$0xff]
      %v191 = vld [vmem:[%s169 + $0x70] sm:$0xff]
      %v192 = vld [vmem:[%s169 + $0x78] sm:$0xff]
      %v193 = vld [vmem:[%s169 + $0x80] sm:$0xff]
      %v194 = vld [vmem:[%s169 + $0x88] sm:$0xff]
      %v195 = vld [vmem:[%s169 + $0x90] sm:$0xff]
      %v196 = vld [vmem:[%s169 + $0x98] sm:$0xff]
      %v197 = vld [vmem:[%s169 + $0xa0] sm:$0xff]
      %v198 = vld [vmem:[%s169 + $0xa8] sm:$0xff]
      %v199 = vld [vmem:[%s169 + $0xb0] sm:$0xff]
      %v200 = vld [vmem:[%s169 + $0xb8] sm:$0xff]
      %v201 = vld [vmem:[%s169 + $0xc0] sm:$0xff]
      %v202 = vld [vmem:[%s169 + $0xc8] sm:$0xff]
      %v203 = vld [vmem:[%s169 + $0xd0] sm:$0xff]
      %v204 = vld [vmem:[%s169 + $0xd8] sm:$0xff]
      %v205 = vld [vmem:[%s169 + $0xe0] sm:$0xff]
      %v206 = vld [vmem:[%s169 + $0xe8] sm:$0xff]
      %v207 = vld [vmem:[%s169 + $0xf0] sm:$0xff]
      %v208 = vld [vmem:[%s169 + $0xf8] sm:$0xff]
      %v209 = vld [vmem:[%s169 + $0x100] sm:$0xff]
      %v210 = vld [vmem:[%s169 + $0x108] sm:$0xff]
      %v211 = vld [vmem:[%s169 + $0x110] sm:$0xff]
      %v212 = vld [vmem:[%s169 + $0x118] sm:$0xff]
      %v213 = vld [vmem:[%s169 + $0x120] sm:$0xff]
      %v214 = vld [vmem:[%s169 + $0x128] sm:$0xff]
      %v215 = vld [vmem:[%s169 + $0x130] sm:$0xff]
      %v216 = vld [vmem:[%s169 + $0x138] sm:$0xff]
      %v217 = vld [vmem:[%s169 + $0x140] sm:$0xff]
      %v218 = vld [vmem:[%s169 + $0x148] sm:$0xff]
      %v219 = vld [vmem:[%s169 + $0x150] sm:$0xff]
      %v220 = vld [vmem:[%s169 + $0x158] sm:$0xff]
      %v221 = vld [vmem:[%s169 + $0x160] sm:$0xff]
      %v222 = vld [vmem:[%s169 + $0x168] sm:$0xff]
      %v223 = vld [vmem:[%s169 + $0x170] sm:$0xff]
      %v224 = vld [vmem:[%s169 + $0x178] sm:$0xff]
      %v225 = vld [vmem:[%s169 + $0x180] sm:$0xff]
      %v226 = vld [vmem:[%s169 + $0x188] sm:$0xff]
      %v227 = vld [vmem:[%s169 + $0x190] sm:$0xff]
      %v228 = vld [vmem:[%s169 + $0x198] sm:$0xff]
      %v229 = vld [vmem:[%s169 + $0x1a0] sm:$0xff]
      %v230 = vld [vmem:[%s169 + $0x1a8] sm:$0xff]
      %v231 = vld [vmem:[%s169 + $0x1b0] sm:$0xff]
      %v232 = vld [vmem:[%s169 + $0x1b8] sm:$0xff]
      %v233 = vld [vmem:[%s169 + $0x1c0] sm:$0xff]
      %v234 = vld [vmem:[%s169 + $0x1c8] sm:$0xff]
      %v235 = vld [vmem:[%s169 + $0x1d0] sm:$0xff]
      %v236 = vld [vmem:[%s169 + $0x1d8] sm:$0xff]
      %v237 = vld [vmem:[%s169 + $0x1e0] sm:$0xff]
      %v238 = vld [vmem:[%s169 + $0x1e8] sm:$0xff]
      %v239 = vld [vmem:[%s169 + $0x1f0] sm:$0xff]
      %v240 = vld [vmem:[%s169 + $0x1f8] sm:$0xff]
      %v241 = vld [vmem:[%s169 + $0x200] sm:$0xff]
      %v242 = vld [vmem:[%s169 + $0x208] sm:$0xff]
      %v243 = vld [vmem:[%s169 + $0x210] sm:$0xff]
      %v244 = vld [vmem:[%s169 + $0x218] sm:$0xff]
      %v245 = vld [vmem:[%s169 + $0x220] sm:$0xff]
      %v246 = vld [vmem:[%s169 + $0x228] sm:$0xff]
      %v247 = vld [vmem:[%s169 + $0x230] sm:$0xff]
      %v248 = vld [vmem:[%s169 + $0x238] sm:$0xff]
      %v249 = vld [vmem:[%s169 + $0x240] sm:$0xff]
      %v250 = vld [vmem:[%s169 + $0x248] sm:$0xff]
      %v251 = vld [vmem:[%s169 + $0x250] sm:$0xff]
      %v252 = vld [vmem:[%s169 + $0x258] sm:$0xff]
      %v253 = vld [vmem:[%s169 + $0x260] sm:$0xff]
      %v254 = vld [vmem:[%s169 + $0x268] sm:$0xff]
      %v255 = vld [vmem:[%s169 + $0x270] sm:$0xff]
      %v256 = vld [vmem:[%s169 + $0x278] sm:$0xff]
      %v257 = vld [vmem:[%s169 + $0x280] sm:$0xff]
      %v258 = vld [vmem:[%s169 + $0x288] sm:$0xff]
      %v259 = vld [vmem:[%s169 + $0x290] sm:$0xff]
      %v260 = vld [vmem:[%s169 + $0x298] sm:$0xff]
      %v261 = vld [vmem:[%s169 + $0x2a0] sm:$0xff]
      %v262 = vld [vmem:[%s169 + $0x2a8] sm:$0xff]
      %v263 = vld [vmem:[%s169 + $0x2b0] sm:$0xff]
      %v264 = vld [vmem:[%s169 + $0x2b8] sm:$0xff]
      %v265 = vld [vmem:[%s169 + $0x2c0] sm:$0xff]
      %v266 = vld [vmem:[%s169 + $0x2c8] sm:$0xff]
      %v267 = vld [vmem:[%s169 + $0x2d0] sm:$0xff]
      %v268 = vld [vmem:[%s169 + $0x2d8] sm:$0xff]
      %v269 = vld [vmem:[%s169 + $0x2e0] sm:$0xff]
      %v270 = vld [vmem:[%s169 + $0x2e8] sm:$0xff]
      %v271 = vld [vmem:[%s169 + $0x2f0] sm:$0xff]
      %v272 = vld [vmem:[%s169 + $0x2f8] sm:$0xff]
      %v273 = vld [vmem:[%s169 + $0x300] sm:$0xff]
      %v274 = vld [vmem:[%s169 + $0x308] sm:$0xff]
      %v275 = vld [vmem:[%s169 + $0x310] sm:$0xff]
      %v276 = vld [vmem:[%s169 + $0x318] sm:$0xff]
      %v277 = vld [vmem:[%s169 + $0x320] sm:$0xff]
      %v278 = vld [vmem:[%s169 + $0x328] sm:$0xff]
      %v279 = vld [vmem:[%s169 + $0x330] sm:$0xff]
      %v280 = vld [vmem:[%s169 + $0x338] sm:$0xff]
      %v281 = vld [vmem:[%s169 + $0x340] sm:$0xff]
      %v282 = vld [vmem:[%s169 + $0x348] sm:$0xff]
      %v283 = vld [vmem:[%s169 + $0x350] sm:$0xff]
      %v284 = vld [vmem:[%s169 + $0x358] sm:$0xff]
      %v285 = vld [vmem:[%s169 + $0x360] sm:$0xff]
      %v286 = vld [vmem:[%s169 + $0x368] sm:$0xff]
      %v287 = vld [vmem:[%s169 + $0x370] sm:$0xff]
      %v288 = vld [vmem:[%s169 + $0x378] sm:$0xff]
      %v289 = vld [vmem:[%s169 + $0x380] sm:$0xff]
      %v290 = vld [vmem:[%s169 + $0x388] sm:$0xff]
      %v291 = vld [vmem:[%s169 + $0x390] sm:$0xff]
      %v292 = vld [vmem:[%s169 + $0x398] sm:$0xff]
      %v293 = vld [vmem:[%s169 + $0x3a0] sm:$0xff]
      %v294 = vld [vmem:[%s169 + $0x3a8] sm:$0xff]
      %v295 = vld [vmem:[%s169 + $0x3b0] sm:$0xff]
      %v296 = vld [vmem:[%s169 + $0x3b8] sm:$0xff]
      %v297 = vld [vmem:[%s169 + $0x3c0] sm:$0xff]
      %v298 = vld [vmem:[%s169 + $0x3c8] sm:$0xff]
      %v299 = vld [vmem:[%s169 + $0x3d0] sm:$0xff]
      %v300 = vld [vmem:[%s169 + $0x3d8] sm:$0xff]
      %v301 = vld [vmem:[%s169 + $0x3e0] sm:$0xff]
      %v302 = vld [vmem:[%s169 + $0x3e8] sm:$0xff]
      %v303 = vld [vmem:[%s169 + $0x3f0] sm:$0xff]
      %v304 = vld [vmem:[%s169 + $0x3f8] sm:$0xff]
      %v305 = vld [vmem:[%s169 + $0x400] sm:$0xff]
      %v306 = vld [vmem:[%s169 + $0x408] sm:$0xff]
      %v307 = vld [vmem:[%s169 + $0x410] sm:$0xff]
      %v308 = vld [vmem:[%s169 + $0x418] sm:$0xff]
      %v309 = vld [vmem:[%s169 + $0x420] sm:$0xff]
      %v310 = vld [vmem:[%s169 + $0x428] sm:$0xff]
      %v311 = vld [vmem:[%s169 + $0x430] sm:$0xff]
      %v312 = vld [vmem:[%s169 + $0x438] sm:$0xff]
      %v313 = vld [vmem:[%s169 + $0x440] sm:$0xff]
      %v314 = vld [vmem:[%s169 + $0x448] sm:$0xff]
      %v315 = vld [vmem:[%s169 + $0x450] sm:$0xff]
      %v316 = vld [vmem:[%s169 + $0x458] sm:$0xff]
      %v317 = vld [vmem:[%s169 + $0x460] sm:$0xff]
      %v318 = vld [vmem:[%s169 + $0x468] sm:$0xff]
      %v319 = vld [vmem:[%s169 + $0x470] sm:$0xff]
      %v320 = vld [vmem:[%s169 + $0x478] sm:$0xff]
      %v321 = vld [vmem:[%s169 + $0x480] sm:$0xff]
      %v322 = vld [vmem:[%s169 + $0x488] sm:$0xff]
      %v323 = vld [vmem:[%s169 + $0x490] sm:$0xff]
      %v324 = vld [vmem:[%s169 + $0x498] sm:$0xff]
      %v325 = vld [vmem:[%s169 + $0x4a0] sm:$0xff]
      %v326 = vld [vmem:[%s169 + $0x4a8] sm:$0xff]
      %v327 = vld [vmem:[%s169 + $0x4b0] sm:$0xff]
      %v328 = vld [vmem:[%s169 + $0x4b8] sm:$0xff]
      %v329 = vld [vmem:[%s169 + $0x4c0] sm:$0xff]
      %v330 = vld [vmem:[%s169 + $0x4c8] sm:$0xff]
      %v331 = vld [vmem:[%s169 + $0x4d0] sm:$0xff]
      %v332 = vld [vmem:[%s169 + $0x4d8] sm:$0xff]
      %v333 = vld [vmem:[%s169 + $0x4e0] sm:$0xff]
      %v334 = vld [vmem:[%s169 + $0x4e8] sm:$0xff]
      %v335 = vld [vmem:[%s169 + $0x4f0] sm:$0xff]
      %v336 = vld [vmem:[%s169 + $0x4f8] sm:$0xff]
      %v337 = vld [vmem:[%s169 + $0x500] sm:$0xff]
      %v338 = vld [vmem:[%s169 + $0x508] sm:$0xff]
      %v339 = vld [vmem:[%s169 + $0x510] sm:$0xff]
      %v340 = vld [vmem:[%s169 + $0x518] sm:$0xff]
      %v341 = vld [vmem:[%s169 + $0x520] sm:$0xff]
      %v342 = vld [vmem:[%s169 + $0x528] sm:$0xff]
      %v343 = vld [vmem:[%s169 + $0x530] sm:$0xff]
      %v344 = vld [vmem:[%s169 + $0x538] sm:$0xff]
      %v345 = vld [vmem:[%s169 + $0x540] sm:$0xff]
      %v346 = vld [vmem:[%s169 + $0x548] sm:$0xff]
      %v347 = vld [vmem:[%s169 + $0x550] sm:$0xff]
      %v348 = vld [vmem:[%s169 + $0x558] sm:$0xff]
      %v349 = vld [vmem:[%s169 + $0x560] sm:$0xff]
      %v350 = vld [vmem:[%s169 + $0x568] sm:$0xff]
      %v351 = vld [vmem:[%s169 + $0x570] sm:$0xff]
      %v352 = vld [vmem:[%s169 + $0x578] sm:$0xff]
      %v353 = vld [vmem:[%s169 + $0x580] sm:$0xff]
      %v354 = vld [vmem:[%s169 + $0x588] sm:$0xff]
      %v355 = vld [vmem:[%s169 + $0x590] sm:$0xff]
      %v356 = vld [vmem:[%s169 + $0x598] sm:$0xff]
      %v357 = vld [vmem:[%s169 + $0x5a0] sm:$0xff]
      %v358 = vld [vmem:[%s169 + $0x5a8] sm:$0xff]
      %v359 = vld [vmem:[%s169 + $0x5b0] sm:$0xff]
      %v360 = vld [vmem:[%s169 + $0x5b8] sm:$0xff]
      %v361 = vld [vmem:[%s169 + $0x5c0] sm:$0xff]
      %v362 = vld [vmem:[%s169 + $0x5c8] sm:$0xff]
      %v363 = vld [vmem:[%s169 + $0x5d0] sm:$0xff]
      %v364 = vld [vmem:[%s169 + $0x5d8] sm:$0xff]
      %v365 = vld [vmem:[%s169 + $0x5e0] sm:$0xff]
      %v366 = vld [vmem:[%s169 + $0x5e8] sm:$0xff]
      %v367 = vld [vmem:[%s169 + $0x5f0] sm:$0xff]
      %v368 = vld [vmem:[%s169 + $0x5f8] sm:$0xff]
      %v369 = vld [vmem:[%s169 + $0x600] sm:$0xff]
      %v370 = vld [vmem:[%s169 + $0x608] sm:$0xff]
      %v371 = vld [vmem:[%s169 + $0x610] sm:$0xff]
      %v372 = vld [vmem:[%s169 + $0x618] sm:$0xff]
      %v373 = vld [vmem:[%s169 + $0x620] sm:$0xff]
      %v374 = vld [vmem:[%s169 + $0x628] sm:$0xff]
      %v375 = vld [vmem:[%s169 + $0x630] sm:$0xff]
      %v376 = vld [vmem:[%s169 + $0x638] sm:$0xff]
      %v377 = vld [vmem:[%s169 + $0x640] sm:$0xff]
      %v378 = vld [vmem:[%s169 + $0x648] sm:$0xff]
      %v379 = vld [vmem:[%s169 + $0x650] sm:$0xff]
      %v380 = vld [vmem:[%s169 + $0x658] sm:$0xff]
      %v381 = vld [vmem:[%s169 + $0x660] sm:$0xff]
      %v382 = vld [vmem:[%s169 + $0x668] sm:$0xff]
      %v383 = vld [vmem:[%s169 + $0x670] sm:$0xff]
      %v384 = vld [vmem:[%s169 + $0x678] sm:$0xff]
      %v385 = vld [vmem:[%s169 + $0x680] sm:$0xff]
      %v386 = vld [vmem:[%s169 + $0x688] sm:$0xff]
      %v387 = vld [vmem:[%s169 + $0x690] sm:$0xff]
      %v388 = vld [vmem:[%s169 + $0x698] sm:$0xff]
      %v389 = vld [vmem:[%s169 + $0x6a0] sm:$0xff]
      %v390 = vld [vmem:[%s169 + $0x6a8] sm:$0xff]
      %v391 = vld [vmem:[%s169 + $0x6b0] sm:$0xff]
      %v392 = vld [vmem:[%s169 + $0x6b8] sm:$0xff]
      %v393 = vld [vmem:[%s169 + $0x6c0] sm:$0xff]
      %v394 = vld [vmem:[%s169 + $0x6c8] sm:$0xff]
      %v395 = vld [vmem:[%s169 + $0x6d0] sm:$0xff]
      %v396 = vld [vmem:[%s169 + $0x6d8] sm:$0xff]
      %v397 = vld [vmem:[%s169 + $0x6e0] sm:$0xff]
      %v398 = vld [vmem:[%s169 + $0x6e8] sm:$0xff]
      %v399 = vld [vmem:[%s169 + $0x6f0] sm:$0xff]
      %v400 = vld [vmem:[%s169 + $0x6f8] sm:$0xff]
      %v401 = vld [vmem:[%s169 + $0x700] sm:$0xff]
      %v402 = vld [vmem:[%s169 + $0x708] sm:$0xff]
      %v403 = vld [vmem:[%s169 + $0x710] sm:$0xff]
      %v404 = vld [vmem:[%s169 + $0x718] sm:$0xff]
      %v405 = vld [vmem:[%s169 + $0x720] sm:$0xff]
      %v406 = vld [vmem:[%s169 + $0x728] sm:$0xff]
      %v407 = vld [vmem:[%s169 + $0x730] sm:$0xff]
      %v408 = vld [vmem:[%s169 + $0x738] sm:$0xff]
      %v409 = vld [vmem:[%s169 + $0x740] sm:$0xff]
      %v410 = vld [vmem:[%s169 + $0x748] sm:$0xff]
      %v411 = vld [vmem:[%s169 + $0x750] sm:$0xff]
      %v412 = vld [vmem:[%s169 + $0x758] sm:$0xff]
      %v413 = vld [vmem:[%s169 + $0x760] sm:$0xff]
      %v414 = vld [vmem:[%s169 + $0x768] sm:$0xff]
      %v415 = vld [vmem:[%s169 + $0x770] sm:$0xff]
      %v416 = vld [vmem:[%s169 + $0x778] sm:$0xff]
      %v417 = vld [vmem:[%s169 + $0x780] sm:$0xff]
      %v418 = vld [vmem:[%s169 + $0x788] sm:$0xff]
      %v419 = vld [vmem:[%s169 + $0x790] sm:$0xff]
      %v420 = vld [vmem:[%s169 + $0x798] sm:$0xff]
      %v421 = vld [vmem:[%s169 + $0x7a0] sm:$0xff]
      %v422 = vld [vmem:[%s169 + $0x7a8] sm:$0xff]
      %v423 = vld [vmem:[%s169 + $0x7b0] sm:$0xff]
      %v424 = vld [vmem:[%s169 + $0x7b8] sm:$0xff]
      %v425 = vld [vmem:[%s169 + $0x7c0] sm:$0xff]
      %v426 = vld [vmem:[%s169 + $0x7c8] sm:$0xff]
      %v427 = vld [vmem:[%s169 + $0x7d0] sm:$0xff]
      %v428 = vld [vmem:[%s169 + $0x7d8] sm:$0xff]
      %v429 = vld [vmem:[%s169 + $0x7e0] sm:$0xff]
      %v430 = vld [vmem:[%s169 + $0x7e8] sm:$0xff]
      %v431 = vld [vmem:[%s169 + $0x7f0] sm:$0xff]
      %v432 = vld [vmem:[%s169 + $0x7f8] sm:$0xff]
      %v433 = vld [vmem:[%s169 + $0x800] sm:$0xff]
      %v434 = vld [vmem:[%s169 + $0x808] sm:$0xff]
      %v435 = vld [vmem:[%s169 + $0x810] sm:$0xff]
      %v436 = vld [vmem:[%s169 + $0x818] sm:$0xff]
      %v437 = vld [vmem:[%s169 + $0x820] sm:$0xff]
      %v438 = vld [vmem:[%s169 + $0x828] sm:$0xff]
      %v439 = vld [vmem:[%s169 + $0x830] sm:$0xff]
      %v440 = vld [vmem:[%s169 + $0x838] sm:$0xff]
      %v441 = vld [vmem:[%s169 + $0x840] sm:$0xff]
      %v442 = vld [vmem:[%s169 + $0x848] sm:$0xff]
      %v443 = vld [vmem:[%s169 + $0x850] sm:$0xff]
      %v444 = vld [vmem:[%s169 + $0x858] sm:$0xff]
      %v445 = vld [vmem:[%s169 + $0x860] sm:$0xff]
      %v446 = vld [vmem:[%s169 + $0x868] sm:$0xff]
      %v447 = vld [vmem:[%s169 + $0x870] sm:$0xff]
      %v448 = vld [vmem:[%s169 + $0x878] sm:$0xff]
      %v449 = vld [vmem:[%s169 + $0x880] sm:$0xff]
      %v450 = vld [vmem:[%s169 + $0x888] sm:$0xff]
      %v451 = vld [vmem:[%s169 + $0x890] sm:$0xff]
      %v452 = vld [vmem:[%s169 + $0x898] sm:$0xff]
      %v453 = vld [vmem:[%s169 + $0x8a0] sm:$0xff]
      %v454 = vld [vmem:[%s169 + $0x8a8] sm:$0xff]
      %v455 = vld [vmem:[%s169 + $0x8b0] sm:$0xff]
      %v456 = vld [vmem:[%s169 + $0x8b8] sm:$0xff]
      %v457 = vld [vmem:[%s169 + $0x8c0] sm:$0xff]
      %v458 = vld [vmem:[%s169 + $0x8c8] sm:$0xff]
      %v459 = vld [vmem:[%s169 + $0x8d0] sm:$0xff]
      %v460 = vld [vmem:[%s169 + $0x8d8] sm:$0xff]
      %v461 = vld [vmem:[%s169 + $0x8e0] sm:$0xff]
      %v462 = vld [vmem:[%s169 + $0x8e8] sm:$0xff]
      %v463 = vld [vmem:[%s169 + $0x8f0] sm:$0xff]
      %v464 = vld [vmem:[%s169 + $0x8f8] sm:$0xff]
      %v465 = vld [vmem:[%s1] sm:$0xff]
      %v466 = vld [vmem:[%s1 + $0x8] sm:$0xff]
      %v467 = vld [vmem:[%s1 + $0x10] sm:$0xff]
      %v468 = vld [vmem:[%s1 + $0x18] sm:$0xff]
      %v469 = vld [vmem:[%s1 + $0x20] sm:$0xff]
      %v470 = vld [vmem:[%s1 + $0x28] sm:$0xff]
      %v471 = vld [vmem:[%s1 + $0x30] sm:$0xff]
      %v472 = vld [vmem:[%s1 + $0x38] sm:$0xff]
      %v473 = vld [vmem:[%s1 + $0x40] sm:$0xff]
      %v474 = vld [vmem:[%s1 + $0x48] sm:$0xff]
      %v475 = vld [vmem:[%s1 + $0x50] sm:$0xff]
      %v476 = vld [vmem:[%s1 + $0x58] sm:$0xff]
      %v477 = vld [vmem:[%s1 + $0x60] sm:$0xff]
      %v478 = vld [vmem:[%s1 + $0x68] sm:$0xff]
      %v479 = vld [vmem:[%s1 + $0x70] sm:$0xff]
      %v480 = vld [vmem:[%s1 + $0x78] sm:$0xff]
      %v481 = vld [vmem:[%s1 + $0x80] sm:$0xff]
      %v482 = vld [vmem:[%s1 + $0x88] sm:$0xff]
      %v483 = vld [vmem:[%s1 + $0x90] sm:$0xff]
      %v484 = vld [vmem:[%s1 + $0x98] sm:$0xff]
      %v485 = vld [vmem:[%s1 + $0xa0] sm:$0xff]
      %v486 = vld [vmem:[%s1 + $0xa8] sm:$0xff]
      %v487 = vld [vmem:[%s1 + $0xb0] sm:$0xff]
      %v488 = vld [vmem:[%s1 + $0xb8] sm:$0xff]
      %v489 = vld [vmem:[%s1 + $0xc0] sm:$0xff]
      %v490 = vld [vmem:[%s1 + $0xc8] sm:$0xff]
      %v491 = vld [vmem:[%s1 + $0xd0] sm:$0xff]
      %v492 = vld [vmem:[%s1 + $0xd8] sm:$0xff]
      %v493 = vld [vmem:[%s1 + $0xe0] sm:$0xff]
      %v494 = vld [vmem:[%s1 + $0xe8] sm:$0xff]
      %v495 = vld [vmem:[%s1 + $0xf0] sm:$0xff]
      %v496 = vld [vmem:[%s1 + $0xf8] sm:$0xff]
      %v497 = vld [vmem:[%s1 + $0x100] sm:$0xff]
      %v498 = vld [vmem:[%s1 + $0x108] sm:$0xff]
      %v499 = vld [vmem:[%s1 + $0x110] sm:$0xff]
      %v500 = vld [vmem:[%s1 + $0x118] sm:$0xff]
      %v501 = vld [vmem:[%s2] sm:$0x1]
      %v503 = vlaneseq
      %v504 = vshrl.u32 %v503, 7
      %v505 = vsub.s32 0, %v504
      %v506 = vrot.slane %v501, %v505
      %vm508 = vcmask 261120
      %v510 = vsel %vm508, %v179, 0
      %v513 = vsel %vm508, %v182, 0
      %v516 = vsel %vm508, %v185, 0
      %v519 = vsel %vm508, %v188, 0
      %v522 = vsel %vm508, %v191, 0
      %v525 = vsel %vm508, %v194, 0
      %v528 = vsel %vm508, %v197, 0
      %v531 = vsel %vm508, %v200, 0
      %v534 = vsel %vm508, %v203, 0
      %v537 = vsel %vm508, %v206, 0
      %v540 = vsel %vm508, %v209, 0
      %v543 = vsel %vm508, %v212, 0
      %v546 = vsel %vm508, %v215, 0
      %v549 = vsel %vm508, %v218, 0
      %v552 = vsel %vm508, %v221, 0
      %v555 = vsel %vm508, %v224, 0
      %v558 = vsel %vm508, %v227, 0
      %v561 = vsel %vm508, %v230, 0
      %v564 = vsel %vm508, %v233, 0
      %v567 = vsel %vm508, %v236, 0
      %v570 = vsel %vm508, %v239, 0
      %v573 = vsel %vm508, %v242, 0
      %v576 = vsel %vm508, %v245, 0
      %v579 = vsel %vm508, %v248, 0
      %v582 = vsel %vm508, %v251, 0
      %v585 = vsel %vm508, %v254, 0
      %v588 = vsel %vm508, %v257, 0
      %v591 = vsel %vm508, %v260, 0
      %v594 = vsel %vm508, %v263, 0
      %v597 = vsel %vm508, %v266, 0
      %v600 = vsel %vm508, %v269, 0
      %v603 = vsel %vm508, %v272, 0
      %v606 = vsel %vm508, %v275, 0
      %v609 = vsel %vm508, %v278, 0
      %v612 = vsel %vm508, %v281, 0
      %v615 = vsel %vm508, %v284, 0
      %v618 = vsel %vm508, %v287, 0
      %v621 = vsel %vm508, %v290, 0
      %v624 = vsel %vm508, %v293, 0
      %v627 = vsel %vm508, %v296, 0
      %v630 = vsel %vm508, %v299, 0
      %v633 = vsel %vm508, %v302, 0
      %v636 = vsel %vm508, %v305, 0
      %v639 = vsel %vm508, %v308, 0
      %v642 = vsel %vm508, %v311, 0
      %v645 = vsel %vm508, %v314, 0
      %v648 = vsel %vm508, %v317, 0
      %v651 = vsel %vm508, %v320, 0
      %v654 = vsel %vm508, %v323, 0
      %v657 = vsel %vm508, %v326, 0
      %v660 = vsel %vm508, %v329, 0
      %v663 = vsel %vm508, %v332, 0
      %v666 = vsel %vm508, %v335, 0
      %v669 = vsel %vm508, %v338, 0
      %v672 = vsel %vm508, %v341, 0
      %v675 = vsel %vm508, %v344, 0
      %v678 = vsel %vm508, %v347, 0
      %v681 = vsel %vm508, %v350, 0
      %v684 = vsel %vm508, %v353, 0
      %v687 = vsel %vm508, %v356, 0
      %v690 = vsel %vm508, %v359, 0
      %v693 = vsel %vm508, %v362, 0
      %v696 = vsel %vm508, %v365, 0
      %v699 = vsel %vm508, %v368, 0
      %v702 = vsel %vm508, %v371, 0
      %v705 = vsel %vm508, %v374, 0
      %v708 = vsel %vm508, %v377, 0
      %v711 = vsel %vm508, %v380, 0
      %v714 = vsel %vm508, %v383, 0
      %v717 = vsel %vm508, %v386, 0
      %v720 = vsel %vm508, %v389, 0
      %v723 = vsel %vm508, %v392, 0
      %v726 = vsel %vm508, %v395, 0
      %v729 = vsel %vm508, %v398, 0
      %v732 = vsel %vm508, %v401, 0
      %v735 = vsel %vm508, %v404, 0
      %v738 = vsel %vm508, %v407, 0
      %v741 = vsel %vm508, %v410, 0
      %v744 = vsel %vm508, %v413, 0
      %v747 = vsel %vm508, %v416, 0
      %v750 = vsel %vm508, %v419, 0
      %v753 = vsel %vm508, %v422, 0
      %v756 = vsel %vm508, %v425, 0
      %v759 = vsel %vm508, %v428, 0
      %v762 = vsel %vm508, %v431, 0
      %v765 = vsel %vm508, %v434, 0
      %v768 = vsel %vm508, %v437, 0
      %v771 = vsel %vm508, %v440, 0
      %v774 = vsel %vm508, %v443, 0
      %v777 = vsel %vm508, %v446, 0
      %v780 = vsel %vm508, %v449, 0
      %v783 = vsel %vm508, %v452, 0
      %v786 = vsel %vm508, %v455, 0
      %v789 = vsel %vm508, %v458, 0
      %v792 = vsel %vm508, %v461, 0
      %v795 = vsel %vm508, %v464, 0
      %797 = vmatprep.subr.mxu0 0.0
      %798 = vmatpush1.msra.mxu0 %v465
      %799 = vmatprep.subr.mxu0 0.0
      %800 = vmatpush1.msra.mxu0 %v466
      %801 = vmatprep.subr.mxu0 0.0
      %802 = vmatpush1.msra.mxu0 %v467
      %803 = vmatprep.subr.mxu0 0.0
      %804 = vmatpush1.msra.mxu0 %v468
      %805 = vmatprep.subr.mxu0 0.0
      %806 = vmatpush1.msra.mxu0 %v469
      %807 = vmatprep.subr.mxu0 0.0
      %808 = vmatpush1.msra.mxu0 %v470
      %809 = vmatprep.subr.mxu0 0.0
      %810 = vmatpush1.msra.mxu0 %v471
      %811 = vmatprep.subr.mxu0 0.0
      %812 = vmatpush1.msra.mxu0 %v472
      %813 = vmatprep.subr.mxu0 0.0
      %814 = vmatpush1.msra.mxu0 %v473
      %815 = vmatprep.subr.mxu0 0.0
      %816 = vmatpush1.msra.mxu0 %v474
      %817 = vmatprep.subr.mxu0 0.0
      %818 = vmatpush1.msra.mxu0 %v475
      %819 = vmatprep.subr.mxu0 0.0
      %820 = vmatpush1.msra.mxu0 %v476
      %821 = vmatprep.subr.mxu0 0.0
      %822 = vmatpush1.msra.mxu0 %v477
      %823 = vmatprep.subr.mxu0 0.0
      %824 = vmatpush1.msra.mxu0 %v478
      %825 = vmatprep.subr.mxu0 0.0
      %826 = vmatpush1.msra.mxu0 %v479
      %827 = vmatprep.subr.mxu0 0.0
      %828 = vmatpush1.msra.mxu0 %v480
      %829 = vmatprep.subr.mxu0 0.0
      %830 = vmatpush1.msra.mxu0 %v481
      %831 = vmatprep.subr.mxu0 0.0
      %832 = vmatpush1.msra.mxu0 %v482
      %833 = vmatprep.subr.mxu0 0.0
      %834 = vmatpush1.msra.mxu0 %v483
      %835 = vmatprep.subr.mxu0 0.0
      %836 = vmatpush1.msra.mxu0 %v484
      %837 = vmatprep.subr.mxu0 0.0
      %838 = vmatpush1.msra.mxu0 %v485
      %839 = vmatprep.subr.mxu0 0.0
      %840 = vmatpush1.msra.mxu0 %v486
      %841 = vmatprep.subr.mxu0 0.0
      %842 = vmatpush1.msra.mxu0 %v487
      %843 = vmatprep.subr.mxu0 0.0
      %844 = vmatpush1.msra.mxu0 %v488
      %845 = vmatprep.subr.mxu0 0.0
      %846 = vmatpush1.msra.mxu0 %v489
      %847 = vmatprep.subr.mxu0 0.0
      %848 = vmatpush1.msra.mxu0 %v490
      %849 = vmatprep.subr.mxu0 0.0
      %850 = vmatpush1.msra.mxu0 %v491
      %851 = vmatprep.subr.mxu0 0.0
      %852 = vmatpush1.msra.mxu0 %v492
      %853 = vmatprep.subr.mxu0 0.0
      %854 = vmatpush1.msra.mxu0 %v493
      %855 = vmatprep.subr.mxu0 0.0
      %856 = vmatpush1.msra.mxu0 %v494
      %857 = vmatprep.subr.mxu0 0.0
      %858 = vmatpush1.msra.mxu0 %v495
      %859 = vmatprep.subr.mxu0 0.0
      %860 = vmatpush1.msra.mxu0 %v496
      %861 = vmatprep.mubr.f32.mxu0 %v178
      %862 = vmatmul.mubr.f32.gmra.mrb[0].mxu0 %v177
      %v863 = vpop.f32.mrb[0].mxu0
      %v864 = vadd.f32 %v506, %v863
      %v865 = vpop.f32.mrb[0].mxu0
      %866 = vmatprep.mubr.f32.mxu0 %v181
      %867 = vmatmul.mubr.f32.gmra.mrb[0].mxu0 %v180
      %v868 = vpop.f32.mrb[0].mxu0
      %v869 = vadd.f32 %v506, %v868
      %v870 = vpop.f32.mrb[0].mxu0
      %871 = vmatprep.mubr.f32.mxu0 %v184
      %872 = vmatmul.mubr.f32.gmra.mrb[0].mxu0 %v183
      %v873 = vpop.f32.mrb[0].mxu0
      %v874 = vadd.f32 %v506, %v873
      %v875 = vpop.f32.mrb[0].mxu0
      %876 = vmatprep.mubr.f32.mxu0 %v187
      %877 = vmatmul.mubr.f32.gmra.mrb[0].mxu0 %v186
      %v878 = vpop.f32.mrb[0].mxu0
      %v879 = vadd.f32 %v506, %v878
      %v880 = vpop.f32.mrb[0].mxu0
      %881 = vmatprep.mubr.f32.mxu0 %v190
      %882 = vmatmul.mubr.f32.gmra.mrb[0].mxu0 %v189
      %v883 = vpop.f32.mrb[0].mxu0
      %v884 = vadd.f32 %v506, %v883
      %v885 = vpop.f32.mrb[0].mxu0
      %886 = vmatprep.mubr.f32.mxu0 %v193
      %887 = vmatmul.mubr.f32.gmra.mrb[0].mxu0 %v192
      %v888 = vpop.f32.mrb[0].mxu0
      %v889 = vadd.f32 %v506, %v888
      %v890 = vpop.f32.mrb[0].mxu0
      %891 = vmatprep.mubr.f32.mxu0 %v196
      %892 = vmatmul.mubr.f32.gmra.mrb[0].mxu0 %v195
      %v893 = vpop.f32.mrb[0].mxu0
      %v894 = vadd.f32 %v506, %v893
      %v895 = vpop.f32.mrb[0].mxu0
      %896 = vmatprep.mubr.f32.mxu0 %v199
      %897 = vmatmul.mubr.f32.gmra.mrb[0].mxu0 %v198
      %v898 = vpop.f32.mrb[0].mxu0
      %v899 = vadd.f32 %v506, %v898
      %v900 = vpop.f32.mrb[0].mxu0
      %901 = vmatprep.mubr.f32.mxu0 %v202
      %902 = vmatmul.mubr.f32.gmra.mrb[0].mxu0 %v201
      %v903 = vpop.f32.mrb[0].mxu0
      %v904 = vadd.f32 %v506, %v903
      %v905 = vpop.f32.mrb[0].mxu0
      %906 = vmatprep.mubr.f32.mxu0 %v205
      %907 = vmatmul.mubr.f32.gmra.mrb[0].mxu0 %v204
      %v908 = vpop.f32.mrb[0].mxu0
      %v909 = vadd.f32 %v506, %v908
      %v910 = vpop.f32.mrb[0].mxu0
      %911 = vmatprep.mubr.f32.mxu0 %v208
      %912 = vmatmul.mubr.f32.gmra.mrb[0].mxu0 %v207
      %v913 = vpop.f32.mrb[0].mxu0
      %v914 = vadd.f32 %v506, %v913
      %v915 = vpop.f32.mrb[0].mxu0
      %916 = vmatprep.mubr.f32.mxu0 %v211
      %917 = vmatmul.mubr.f32.gmra.mrb[0].mxu0 %v210
      %v918 = vpop.f32.mrb[0].mxu0
      %v919 = vadd.f32 %v506, %v918
      %v920 = vpop.f32.mrb[0].mxu0
      %921 = vmatprep.mubr.f32.mxu0 %v214
      %922 = vmatmul.mubr.f32.gmra.mrb[0].mxu0 %v213
      %v923 = vpop.f32.mrb[0].mxu0
      %v924 = vadd.f32 %v506, %v923
      %v925 = vpop.f32.mrb[0].mxu0
      %926 = vmatprep.mubr.f32.mxu0 %v217
      %927 = vmatmul.mubr.f32.gmra.mrb[0].mxu0 %v216
      %v928 = vpop.f32.mrb[0].mxu0
      %v929 = vadd.f32 %v506, %v928
      %v930 = vpop.f32.mrb[0].mxu0
      %931 = vmatprep.mubr.f32.mxu0 %v220
      %932 = vmatmul.mubr.f32.gmra.mrb[0].mxu0 %v219
      %v933 = vpop.f32.mrb[0].mxu0
      %v934 = vadd.f32 %v506, %v933
      %v935 = vpop.f32.mrb[0].mxu0
      %936 = vmatprep.mubr.f32.mxu0 %v223
      %937 = vmatmul.mubr.f32.gmra.mrb[0].mxu0 %v222
      %v938 = vpop.f32.mrb[0].mxu0
      %v939 = vadd.f32 %v506, %v938
      %v940 = vpop.f32.mrb[0].mxu0
      %941 = vmatprep.mubr.f32.mxu0 %v226
      %942 = vmatmul.mubr.f32.gmra.mrb[0].mxu0 %v225
      %v943 = vpop.f32.mrb[0].mxu0
      %v944 = vadd.f32 %v506, %v943
      %v945 = vpop.f32.mrb[0].mxu0
      %946 = vmatprep.mubr.f32.mxu0 %v229
      %947 = vmatmul.mubr.f32.gmra.mrb[0].mxu0 %v228
      %v948 = vpop.f32.mrb[0].mxu0
      %v949 = vadd.f32 %v506, %v948
      %v950 = vpop.f32.mrb[0].mxu0
      %951 = vmatprep.mubr.f32.mxu0 %v232
      %952 = vmatmul.mubr.f32.gmra.mrb[0].mxu0 %v231
      %v953 = vpop.f32.mrb[0].mxu0
      %v954 = vadd.f32 %v506, %v953
      %v955 = vpop.f32.mrb[0].mxu0
      %956 = vmatprep.mubr.f32.mxu0 %v235
      %957 = vmatmul.mubr.f32.gmra.mrb[0].mxu0 %v234
      %v958 = vpop.f32.mrb[0].mxu0
      %v959 = vadd.f32 %v506, %v958
      %v960 = vpop.f32.mrb[0].mxu0
      %961 = vmatprep.mubr.f32.mxu0 %v238
      %962 = vmatmul.mubr.f32.gmra.mrb[0].mxu0 %v237
      %v963 = vpop.f32.mrb[0].mxu0
      %v964 = vadd.f32 %v506, %v963
      %v965 = vpop.f32.mrb[0].mxu0
      %966 = vmatprep.mubr.f32.mxu0 %v241
      %967 = vmatmul.mubr.f32.gmra.mrb[0].mxu0 %v240
      %v968 = vpop.f32.mrb[0].mxu0
      %v969 = vadd.f32 %v506, %v968
      %v970 = vpop.f32.mrb[0].mxu0
      %971 = vmatprep.mubr.f32.mxu0 %v244
      %972 = vmatmul.mubr.f32.gmra.mrb[0].mxu0 %v243
      %v973 = vpop.f32.mrb[0].mxu0
      %v974 = vadd.f32 %v506, %v973
      %v975 = vpop.f32.mrb[0].mxu0
      %976 = vmatprep.mubr.f32.mxu0 %v247
      %977 = vmatmul.mubr.f32.gmra.mrb[0].mxu0 %v246
      %v978 = vpop.f32.mrb[0].mxu0
      %v979 = vadd.f32 %v506, %v978
      %v980 = vpop.f32.mrb[0].mxu0
      %981 = vmatprep.mubr.f32.mxu0 %v250
      %982 = vmatmul.mubr.f32.gmra.mrb[0].mxu0 %v249
      %v983 = vpop.f32.mrb[0].mxu0
      %v984 = vadd.f32 %v506, %v983
      %v985 = vpop.f32.mrb[0].mxu0
      %986 = vmatprep.mubr.f32.mxu0 %v253
      %987 = vmatmul.mubr.f32.gmra.mrb[0].mxu0 %v252
      %v988 = vpop.f32.mrb[0].mxu0
      %v989 = vadd.f32 %v506, %v988
      %v990 = vpop.f32.mrb[0].mxu0
      %991 = vmatprep.mubr.f32.mxu0 %v256
      %992 = vmatmul.mubr.f32.gmra.mrb[0].mxu0 %v255
      %v993 = vpop.f32.mrb[0].mxu0
      %v994 = vadd.f32 %v506, %v993
      %v995 = vpop.f32.mrb[0].mxu0
      %996 = vmatprep.mubr.f32.mxu0 %v259
      %997 = vmatmul.mubr.f32.gmra.mrb[0].mxu0 %v258
      %v998 = vpop.f32.mrb[0].mxu0
      %v999 = vadd.f32 %v506, %v998
      %v1000 = vpop.f32.mrb[0].mxu0
      %1001 = vmatprep.mubr.f32.mxu0 %v262
      %1002 = vmatmul.mubr.f32.gmra.mrb[0].mxu0 %v261
      %v1003 = vpop.f32.mrb[0].mxu0
      %v1004 = vadd.f32 %v506, %v1003
      %v1005 = vpop.f32.mrb[0].mxu0
      %1006 = vmatprep.mubr.f32.mxu0 %v265
      %1007 = vmatmul.mubr.f32.gmra.mrb[0].mxu0 %v264
      %v1008 = vpop.f32.mrb[0].mxu0
      %v1009 = vadd.f32 %v506, %v1008
      %v1010 = vpop.f32.mrb[0].mxu0
      %1011 = vmatprep.mubr.f32.mxu0 %v268
      %1012 = vmatmul.mubr.f32.gmra.mrb[0].mxu0 %v267
      %v1013 = vpop.f32.mrb[0].mxu0
      %v1014 = vadd.f32 %v506, %v1013
      %v1015 = vpop.f32.mrb[0].mxu0
      %1016 = vmatprep.mubr.f32.mxu0 %v271
      %1017 = vmatmul.mubr.f32.gmra.mrb[0].mxu0 %v270
      %v1018 = vpop.f32.mrb[0].mxu0
      %v1019 = vadd.f32 %v506, %v1018
      %v1020 = vpop.f32.mrb[0].mxu0
      %1021 = vmatprep.mubr.f32.mxu0 %v274
      %1022 = vmatmul.mubr.f32.gmra.mrb[0].mxu0 %v273
      %v1023 = vpop.f32.mrb[0].mxu0
      %v1024 = vadd.f32 %v506, %v1023
      %v1025 = vpop.f32.mrb[0].mxu0
      %1026 = vmatprep.mubr.f32.mxu0 %v277
      %1027 = vmatmul.mubr.f32.gmra.mrb[0].mxu0 %v276
      %v1028 = vpop.f32.mrb[0].mxu0
      %v1029 = vadd.f32 %v506, %v1028
      %v1030 = vpop.f32.mrb[0].mxu0
      %1031 = vmatprep.mubr.f32.mxu0 %v280
      %1032 = vmatmul.mubr.f32.gmra.mrb[0].mxu0 %v279
      %v1033 = vpop.f32.mrb[0].mxu0
      %v1034 = vadd.f32 %v506, %v1033
      %v1035 = vpop.f32.mrb[0].mxu0
      %1036 = vmatprep.mubr.f32.mxu0 %v283
      %1037 = vmatmul.mubr.f32.gmra.mrb[0].mxu0 %v282
      %v1038 = vpop.f32.mrb[0].mxu0
      %v1039 = vadd.f32 %v506, %v1038
      %v1040 = vpop.f32.mrb[0].mxu0
      %1041 = vmatprep.mubr.f32.mxu0 %v286
      %1042 = vmatmul.mubr.f32.gmra.mrb[0].mxu0 %v285
      %v1043 = vpop.f32.mrb[0].mxu0
      %v1044 = vadd.f32 %v506, %v1043
      %v1045 = vpop.f32.mrb[0].mxu0
      %1046 = vmatprep.mubr.f32.mxu0 %v289
      %1047 = vmatmul.mubr.f32.gmra.mrb[0].mxu0 %v288
      %v1048 = vpop.f32.mrb[0].mxu0
      %v1049 = vadd.f32 %v506, %v1048
      %v1050 = vpop.f32.mrb[0].mxu0
      %1051 = vmatprep.mubr.f32.mxu0 %v292
      %1052 = vmatmul.mubr.f32.gmra.mrb[0].mxu0 %v291
      %v1053 = vpop.f32.mrb[0].mxu0
      %v1054 = vadd.f32 %v506, %v1053
      %v1055 = vpop.f32.mrb[0].mxu0
      %1056 = vmatprep.mubr.f32.mxu0 %v295
      %1057 = vmatmul.mubr.f32.gmra.mrb[0].mxu0 %v294
      %v1058 = vpop.f32.mrb[0].mxu0
      %v1059 = vadd.f32 %v506, %v1058
      %v1060 = vpop.f32.mrb[0].mxu0
      %1061 = vmatprep.mubr.f32.mxu0 %v298
      %1062 = vmatmul.mubr.f32.gmra.mrb[0].mxu0 %v297
      %v1063 = vpop.f32.mrb[0].mxu0
      %v1064 = vadd.f32 %v506, %v1063
      %v1065 = vpop.f32.mrb[0].mxu0
      %1066 = vmatprep.mubr.f32.mxu0 %v301
      %1067 = vmatmul.mubr.f32.gmra.mrb[0].mxu0 %v300
      %v1068 = vpop.f32.mrb[0].mxu0
      %v1069 = vadd.f32 %v506, %v1068
      %v1070 = vpop.f32.mrb[0].mxu0
      %1071 = vmatprep.mubr.f32.mxu0 %v304
      %1072 = vmatmul.mubr.f32.gmra.mrb[0].mxu0 %v303
      %v1073 = vpop.f32.mrb[0].mxu0
      %v1074 = vadd.f32 %v506, %v1073
      %v1075 = vpop.f32.mrb[0].mxu0
      %1076 = vmatprep.mubr.f32.mxu0 %v307
      %1077 = vmatmul.mubr.f32.gmra.mrb[0].mxu0 %v306
      %v1078 = vpop.f32.mrb[0].mxu0
      %v1079 = vadd.f32 %v506, %v1078
      %v1080 = vpop.f32.mrb[0].mxu0
      %1081 = vmatprep.mubr.f32.mxu0 %v310
      %1082 = vmatmul.mubr.f32.gmra.mrb[0].mxu0 %v309
      %v1083 = vpop.f32.mrb[0].mxu0
      %v1084 = vadd.f32 %v506, %v1083
      %v1085 = vpop.f32.mrb[0].mxu0
      %1086 = vmatprep.mubr.f32.mxu0 %v313
      %1087 = vmatmul.mubr.f32.gmra.mrb[0].mxu0 %v312
      %v1088 = vpop.f32.mrb[0].mxu0
      %v1089 = vadd.f32 %v506, %v1088
      %v1090 = vpop.f32.mrb[0].mxu0
      %1091 = vmatprep.mubr.f32.mxu0 %v316
      %1092 = vmatmul.mubr.f32.gmra.mrb[0].mxu0 %v315
      %v1093 = vpop.f32.mrb[0].mxu0
      %v1094 = vadd.f32 %v506, %v1093
      %v1095 = vpop.f32.mrb[0].mxu0
      %1096 = vmatprep.mubr.f32.mxu0 %v319
      %1097 = vmatmul.mubr.f32.gmra.mrb[0].mxu0 %v318
      %v1098 = vpop.f32.mrb[0].mxu0
      %v1099 = vadd.f32 %v506, %v1098
      %v1100 = vpop.f32.mrb[0].mxu0
      %1101 = vmatprep.mubr.f32.mxu0 %v322
      %1102 = vmatmul.mubr.f32.gmra.mrb[0].mxu0 %v321
      %v1103 = vpop.f32.mrb[0].mxu0
      %v1104 = vadd.f32 %v506, %v1103
      %v1105 = vpop.f32.mrb[0].mxu0
      %1106 = vmatprep.mubr.f32.mxu0 %v325
      %1107 = vmatmul.mubr.f32.gmra.mrb[0].mxu0 %v324
      %v1108 = vpop.f32.mrb[0].mxu0
      %v1109 = vadd.f32 %v506, %v1108
      %v1110 = vpop.f32.mrb[0].mxu0
      %1111 = vmatprep.mubr.f32.mxu0 %v328
      %1112 = vmatmul.mubr.f32.gmra.mrb[0].mxu0 %v327
      %v1113 = vpop.f32.mrb[0].mxu0
      %v1114 = vadd.f32 %v506, %v1113
      %v1115 = vpop.f32.mrb[0].mxu0
      %1116 = vmatprep.mubr.f32.mxu0 %v331
      %1117 = vmatmul.mubr.f32.gmra.mrb[0].mxu0 %v330
      %v1118 = vpop.f32.mrb[0].mxu0
      %v1119 = vadd.f32 %v506, %v1118
      %v1120 = vpop.f32.mrb[0].mxu0
      %1121 = vmatprep.mubr.f32.mxu0 %v334
      %1122 = vmatmul.mubr.f32.gmra.mrb[0].mxu0 %v333
      %v1123 = vpop.f32.mrb[0].mxu0
      %v1124 = vadd.f32 %v506, %v1123
      %v1125 = vpop.f32.mrb[0].mxu0
      %1126 = vmatprep.mubr.f32.mxu0 %v337
      %1127 = vmatmul.mubr.f32.gmra.mrb[0].mxu0 %v336
      %v1128 = vpop.f32.mrb[0].mxu0
      %v1129 = vadd.f32 %v506, %v1128
      %v1130 = vpop.f32.mrb[0].mxu0
      %1131 = vmatprep.mubr.f32.mxu0 %v340
      %1132 = vmatmul.mubr.f32.gmra.mrb[0].mxu0 %v339
      %v1133 = vpop.f32.mrb[0].mxu0
      %v1134 = vadd.f32 %v506, %v1133
      %v1135 = vpop.f32.mrb[0].mxu0
      %1136 = vmatprep.mubr.f32.mxu0 %v343
      %1137 = vmatmul.mubr.f32.gmra.mrb[0].mxu0 %v342
      %v1138 = vpop.f32.mrb[0].mxu0
      %v1139 = vadd.f32 %v506, %v1138
      %v1140 = vpop.f32.mrb[0].mxu0
      %1141 = vmatprep.mubr.f32.mxu0 %v346
      %1142 = vmatmul.mubr.f32.gmra.mrb[0].mxu0 %v345
      %v1143 = vpop.f32.mrb[0].mxu0
      %v1144 = vadd.f32 %v506, %v1143
      %v1145 = vpop.f32.mrb[0].mxu0
      %1146 = vmatprep.mubr.f32.mxu0 %v349
      %1147 = vmatmul.mubr.f32.gmra.mrb[0].mxu0 %v348
      %v1148 = vpop.f32.mrb[0].mxu0
      %v1149 = vadd.f32 %v506, %v1148
      %v1150 = vpop.f32.mrb[0].mxu0
      %1151 = vmatprep.mubr.f32.mxu0 %v352
      %1152 = vmatmul.mubr.f32.gmra.mrb[0].mxu0 %v351
      %v1153 = vpop.f32.mrb[0].mxu0
      %v1154 = vadd.f32 %v506, %v1153
      %v1155 = vpop.f32.mrb[0].mxu0
      %1156 = vmatprep.mubr.f32.mxu0 %v355
      %1157 = vmatmul.mubr.f32.gmra.mrb[0].mxu0 %v354
      %v1158 = vpop.f32.mrb[0].mxu0
      %v1159 = vadd.f32 %v506, %v1158
      %v1160 = vpop.f32.mrb[0].mxu0
      %1161 = vmatprep.mubr.f32.mxu0 %v358
      %1162 = vmatmul.mubr.f32.gmra.mrb[0].mxu0 %v357
      %v1163 = vpop.f32.mrb[0].mxu0
      %v1164 = vadd.f32 %v506, %v1163
      %v1165 = vpop.f32.mrb[0].mxu0
      %1166 = vmatprep.mubr.f32.mxu0 %v361
      %1167 = vmatmul.mubr.f32.gmra.mrb[0].mxu0 %v360
      %v1168 = vpop.f32.mrb[0].mxu0
      %v1169 = vadd.f32 %v506, %v1168
      %v1170 = vpop.f32.mrb[0].mxu0
      %1171 = vmatprep.mubr.f32.mxu0 %v364
      %1172 = vmatmul.mubr.f32.gmra.mrb[0].mxu0 %v363
      %v1173 = vpop.f32.mrb[0].mxu0
      %v1174 = vadd.f32 %v506, %v1173
      %v1175 = vpop.f32.mrb[0].mxu0
      %1176 = vmatprep.mubr.f32.mxu0 %v367
      %1177 = vmatmul.mubr.f32.gmra.mrb[0].mxu0 %v366
      %v1178 = vpop.f32.mrb[0].mxu0
      %v1179 = vadd.f32 %v506, %v1178
      %v1180 = vpop.f32.mrb[0].mxu0
      %1181 = vmatprep.mubr.f32.mxu0 %v370
      %1182 = vmatmul.mubr.f32.gmra.mrb[0].mxu0 %v369
      %v1183 = vpop.f32.mrb[0].mxu0
      %v1184 = vadd.f32 %v506, %v1183
      %v1185 = vpop.f32.mrb[0].mxu0
      %1186 = vmatprep.mubr.f32.mxu0 %v373
      %1187 = vmatmul.mubr.f32.gmra.mrb[0].mxu0 %v372
      %v1188 = vpop.f32.mrb[0].mxu0
      %v1189 = vadd.f32 %v506, %v1188
      %v1190 = vpop.f32.mrb[0].mxu0
      %1191 = vmatprep.mubr.f32.mxu0 %v376
      %1192 = vmatmul.mubr.f32.gmra.mrb[0].mxu0 %v375
      %v1193 = vpop.f32.mrb[0].mxu0
      %v1194 = vadd.f32 %v506, %v1193
      %v1195 = vpop.f32.mrb[0].mxu0
      %1196 = vmatprep.mubr.f32.mxu0 %v379
      %1197 = vmatmul.mubr.f32.gmra.mrb[0].mxu0 %v378
      %v1198 = vpop.f32.mrb[0].mxu0
      %v1199 = vadd.f32 %v506, %v1198
      %v1200 = vpop.f32.mrb[0].mxu0
      %1201 = vmatprep.mubr.f32.mxu0 %v382
      %1202 = vmatmul.mubr.f32.gmra.mrb[0].mxu0 %v381
      %v1203 = vpop.f32.mrb[0].mxu0
      %v1204 = vadd.f32 %v506, %v1203
      %v1205 = vpop.f32.mrb[0].mxu0
      %1206 = vmatprep.mubr.f32.mxu0 %v385
      %1207 = vmatmul.mubr.f32.gmra.mrb[0].mxu0 %v384
      %v1208 = vpop.f32.mrb[0].mxu0
      %v1209 = vadd.f32 %v506, %v1208
      %v1210 = vpop.f32.mrb[0].mxu0
      %1211 = vmatprep.mubr.f32.mxu0 %v388
      %1212 = vmatmul.mubr.f32.gmra.mrb[0].mxu0 %v387
      %v1213 = vpop.f32.mrb[0].mxu0
      %v1214 = vadd.f32 %v506, %v1213
      %v1215 = vpop.f32.mrb[0].mxu0
      %1216 = vmatprep.mubr.f32.mxu0 %v391
      %1217 = vmatmul.mubr.f32.gmra.mrb[0].mxu0 %v390
      %v1218 = vpop.f32.mrb[0].mxu0
      %v1219 = vadd.f32 %v506, %v1218
      %v1220 = vpop.f32.mrb[0].mxu0
      %1221 = vmatprep.mubr.f32.mxu0 %v394
      %1222 = vmatmul.mubr.f32.gmra.mrb[0].mxu0 %v393
      %v1223 = vpop.f32.mrb[0].mxu0
      %v1224 = vadd.f32 %v506, %v1223
      %v1225 = vpop.f32.mrb[0].mxu0
      %1226 = vmatprep.mubr.f32.mxu0 %v397
      %1227 = vmatmul.mubr.f32.gmra.mrb[0].mxu0 %v396
      %v1228 = vpop.f32.mrb[0].mxu0
      %v1229 = vadd.f32 %v506, %v1228
      %v1230 = vpop.f32.mrb[0].mxu0
      %1231 = vmatprep.mubr.f32.mxu0 %v400
      %1232 = vmatmul.mubr.f32.gmra.mrb[0].mxu0 %v399
      %v1233 = vpop.f32.mrb[0].mxu0
      %v1234 = vadd.f32 %v506, %v1233
      %v1235 = vpop.f32.mrb[0].mxu0
      %1236 = vmatprep.mubr.f32.mxu0 %v403
      %1237 = vmatmul.mubr.f32.gmra.mrb[0].mxu0 %v402
      %v1238 = vpop.f32.mrb[0].mxu0
      %v1239 = vadd.f32 %v506, %v1238
      %v1240 = vpop.f32.mrb[0].mxu0
      %1241 = vmatprep.mubr.f32.mxu0 %v406
      %1242 = vmatmul.mubr.f32.gmra.mrb[0].mxu0 %v405
      %v1243 = vpop.f32.mrb[0].mxu0
      %v1244 = vadd.f32 %v506, %v1243
      %v1245 = vpop.f32.mrb[0].mxu0
      %1246 = vmatprep.mubr.f32.mxu0 %v409
      %1247 = vmatmul.mubr.f32.gmra.mrb[0].mxu0 %v408
      %v1248 = vpop.f32.mrb[0].mxu0
      %v1249 = vadd.f32 %v506, %v1248
      %v1250 = vpop.f32.mrb[0].mxu0
      %1251 = vmatprep.mubr.f32.mxu0 %v412
      %1252 = vmatmul.mubr.f32.gmra.mrb[0].mxu0 %v411
      %v1253 = vpop.f32.mrb[0].mxu0
      %v1254 = vadd.f32 %v506, %v1253
      %v1255 = vpop.f32.mrb[0].mxu0
      %1256 = vmatprep.mubr.f32.mxu0 %v415
      %1257 = vmatmul.mubr.f32.gmra.mrb[0].mxu0 %v414
      %v1258 = vpop.f32.mrb[0].mxu0
      %v1259 = vadd.f32 %v506, %v1258
      %v1260 = vpop.f32.mrb[0].mxu0
      %1261 = vmatprep.mubr.f32.mxu0 %v418
      %1262 = vmatmul.mubr.f32.gmra.mrb[0].mxu0 %v417
      %v1263 = vpop.f32.mrb[0].mxu0
      %v1264 = vadd.f32 %v506, %v1263
      %v1265 = vpop.f32.mrb[0].mxu0
      %1266 = vmatprep.mubr.f32.mxu0 %v421
      %1267 = vmatmul.mubr.f32.gmra.mrb[0].mxu0 %v420
      %v1268 = vpop.f32.mrb[0].mxu0
      %v1269 = vadd.f32 %v506, %v1268
      %v1270 = vpop.f32.mrb[0].mxu0
      %1271 = vmatprep.mubr.f32.mxu0 %v424
      %1272 = vmatmul.mubr.f32.gmra.mrb[0].mxu0 %v423
      %v1273 = vpop.f32.mrb[0].mxu0
      %v1274 = vadd.f32 %v506, %v1273
      %v1275 = vpop.f32.mrb[0].mxu0
      %1276 = vmatprep.mubr.f32.mxu0 %v427
      %1277 = vmatmul.mubr.f32.gmra.mrb[0].mxu0 %v426
      %v1278 = vpop.f32.mrb[0].mxu0
      %v1279 = vadd.f32 %v506, %v1278
      %v1280 = vpop.f32.mrb[0].mxu0
      %1281 = vmatprep.mubr.f32.mxu0 %v430
      %1282 = vmatmul.mubr.f32.gmra.mrb[0].mxu0 %v429
      %v1283 = vpop.f32.mrb[0].mxu0
      %v1284 = vadd.f32 %v506, %v1283
      %v1285 = vpop.f32.mrb[0].mxu0
      %1286 = vmatprep.mubr.f32.mxu0 %v433
      %1287 = vmatmul.mubr.f32.gmra.mrb[0].mxu0 %v432
      %v1288 = vpop.f32.mrb[0].mxu0
      %v1289 = vadd.f32 %v506, %v1288
      %v1290 = vpop.f32.mrb[0].mxu0
      %1291 = vmatprep.mubr.f32.mxu0 %v436
      %1292 = vmatmul.mubr.f32.gmra.mrb[0].mxu0 %v435
      %v1293 = vpop.f32.mrb[0].mxu0
      %v1294 = vadd.f32 %v506, %v1293
      %v1295 = vpop.f32.mrb[0].mxu0
      %1296 = vmatprep.mubr.f32.mxu0 %v439
      %1297 = vmatmul.mubr.f32.gmra.mrb[0].mxu0 %v438
      %v1298 = vpop.f32.mrb[0].mxu0
      %v1299 = vadd.f32 %v506, %v1298
      %v1300 = vpop.f32.mrb[0].mxu0
      %1301 = vmatprep.mubr.f32.mxu0 %v442
      %1302 = vmatmul.mubr.f32.gmra.mrb[0].mxu0 %v441
      %v1303 = vpop.f32.mrb[0].mxu0
      %v1304 = vadd.f32 %v506, %v1303
      %v1305 = vpop.f32.mrb[0].mxu0
      %1306 = vmatprep.mubr.f32.mxu0 %v445
      %1307 = vmatmul.mubr.f32.gmra.mrb[0].mxu0 %v444
      %v1308 = vpop.f32.mrb[0].mxu0
      %v1309 = vadd.f32 %v506, %v1308
      %v1310 = vpop.f32.mrb[0].mxu0
      %1311 = vmatprep.mubr.f32.mxu0 %v448
      %1312 = vmatmul.mubr.f32.gmra.mrb[0].mxu0 %v447
      %v1313 = vpop.f32.mrb[0].mxu0
      %v1314 = vadd.f32 %v506, %v1313
      %v1315 = vpop.f32.mrb[0].mxu0
      %1316 = vmatprep.mubr.f32.mxu0 %v451
      %1317 = vmatmul.mubr.f32.gmra.mrb[0].mxu0 %v450
      %v1318 = vpop.f32.mrb[0].mxu0
      %v1319 = vadd.f32 %v506, %v1318
      %v1320 = vpop.f32.mrb[0].mxu0
      %1321 = vmatprep.mubr.f32.mxu0 %v454
      %1322 = vmatmul.mubr.f32.gmra.mrb[0].mxu0 %v453
      %v1323 = vpop.f32.mrb[0].mxu0
      %v1324 = vadd.f32 %v506, %v1323
      %v1325 = vpop.f32.mrb[0].mxu0
      %1326 = vmatprep.mubr.f32.mxu0 %v457
      %1327 = vmatmul.mubr.f32.gmra.mrb[0].mxu0 %v456
      %v1328 = vpop.f32.mrb[0].mxu0
      %v1329 = vadd.f32 %v506, %v1328
      %v1330 = vpop.f32.mrb[0].mxu0
      %1331 = vmatprep.mubr.f32.mxu0 %v460
      %1332 = vmatmul.mubr.f32.gmra.mrb[0].mxu0 %v459
      %v1333 = vpop.f32.mrb[0].mxu0
      %v1334 = vadd.f32 %v506, %v1333
      %v1335 = vpop.f32.mrb[0].mxu0
      %1336 = vmatprep.mubr.f32.mxu0 %v463
      %1337 = vmatmul.mubr.f32.gmra.mrb[0].mxu0 %v462
      %v1338 = vpop.f32.mrb[0].mxu0
      %v1339 = vadd.f32 %v506, %v1338
      %v1340 = vpop.f32.mrb[0].mxu0
      %1341 = vdwg.mxu0
      %1342 = vmatprep.subr.mxu0 0.0
      %1343 = vmatpush1.msra.mxu0 %v497
      %1344 = vmatprep.subr.mxu0 0.0
      %1345 = vmatpush1.msra.mxu0 %v498
      %1346 = vmatprep.subr.mxu0 0.0
      %1347 = vmatpush1.msra.mxu0 %v499
      %1348 = vmatprep.subr.mxu0 0.0
      %1349 = vmatpush1.msra.mxu0 %v500
      %1350 = vmatprep.subr.mxu0 0.0
      %1351 = vmatpush1.msra.mxu0 0.0
      %1352 = vmatprep.subr.mxu0 0.0
      %1353 = vmatpush1.msra.mxu0 0.0
      %1354 = vmatprep.subr.mxu0 0.0
      %1355 = vmatpush1.msra.mxu0 0.0
      %1356 = vmatprep.subr.mxu0 0.0
      %1357 = vmatpush1.msra.mxu0 0.0
      %1358 = vmatprep.subr.mxu0 0.0
      %1359 = vmatpush1.msra.mxu0 0.0
      %1360 = vmatprep.subr.mxu0 0.0
      %1361 = vmatpush1.msra.mxu0 0.0
      %1362 = vmatprep.subr.mxu0 0.0
      %1363 = vmatpush1.msra.mxu0 0.0
      %1364 = vmatprep.subr.mxu0 0.0
      %1365 = vmatpush1.msra.mxu0 0.0
      %1366 = vmatprep.subr.mxu0 0.0
      %1367 = vmatpush1.msra.mxu0 0.0
      %1368 = vmatprep.subr.mxu0 0.0
      %1369 = vmatpush1.msra.mxu0 0.0
      %1370 = vmatprep.subr.mxu0 0.0
      %1371 = vmatpush1.msra.mxu0 0.0
      %1372 = vmatprep.subr.mxu0 0.0
      %1373 = vmatpush1.msra.mxu0 0.0
      %1374 = vmatprep.subr.mxu0 0.0
      %1375 = vmatpush1.msra.mxu0 0.0
      %1376 = vmatprep.subr.mxu0 0.0
      %1377 = vmatpush1.msra.mxu0 0.0
      %1378 = vmatprep.subr.mxu0 0.0
      %1379 = vmatpush1.msra.mxu0 0.0
      %1380 = vmatprep.subr.mxu0 0.0
      %1381 = vmatpush1.msra.mxu0 0.0
      %1382 = vmatprep.subr.mxu0 0.0
      %1383 = vmatpush1.msra.mxu0 0.0
      %1384 = vmatprep.subr.mxu0 0.0
      %1385 = vmatpush1.msra.mxu0 0.0
      %1386 = vmatprep.subr.mxu0 0.0
      %1387 = vmatpush1.msra.mxu0 0.0
      %1388 = vmatprep.subr.mxu0 0.0
      %1389 = vmatpush1.msra.mxu0 0.0
      %1390 = vmatprep.subr.mxu0 0.0
      %1391 = vmatpush1.msra.mxu0 0.0
      %1392 = vmatprep.subr.mxu0 0.0
      %1393 = vmatpush1.msra.mxu0 0.0
      %1394 = vmatprep.subr.mxu0 0.0
      %1395 = vmatpush1.msra.mxu0 0.0
      %1396 = vmatprep.subr.mxu0 0.0
      %1397 = vmatpush1.msra.mxu0 0.0
      %1398 = vmatprep.subr.mxu0 0.0
      %1399 = vmatpush1.msra.mxu0 0.0
      %1400 = vmatprep.subr.mxu0 0.0
      %1401 = vmatpush1.msra.mxu0 0.0
      %1402 = vmatprep.subr.mxu0 0.0
      %1403 = vmatpush1.msra.mxu0 0.0
      %1404 = vmatprep.subr.mxu0 0.0
      %1405 = vmatpush1.msra.mxu0 0.0
      %1406 = vmatprep.mubr.f32.mxu0 0.0
      %1407 = vmatmul.mubr.f32.gmra.mrb[0].mxu0 %v510
      %v1408 = vpop.f32.mrb[0].mxu0
      %v1409 = vadd.f32 %v864, %v1408
      %v1410 = vpop.f32.mrb[0].mxu0
      %1411 = vmatprep.mubr.f32.mxu0 0.0
      %1412 = vmatmul.mubr.f32.gmra.mrb[0].mxu0 %v513
      %v1413 = vpop.f32.mrb[0].mxu0
      %v1414 = vadd.f32 %v869, %v1413
      %v1415 = vpop.f32.mrb[0].mxu0
      %1416 = vmatprep.mubr.f32.mxu0 0.0
      %1417 = vmatmul.mubr.f32.gmra.mrb[0].mxu0 %v516
      %v1418 = vpop.f32.mrb[0].mxu0
      %v1419 = vadd.f32 %v874, %v1418
      %v1420 = vpop.f32.mrb[0].mxu0
      %1421 = vmatprep.mubr.f32.mxu0 0.0
      %1422 = vmatmul.mubr.f32.gmra.mrb[0].mxu0 %v519
      %v1423 = vpop.f32.mrb[0].mxu0
      %v1424 = vadd.f32 %v879, %v1423
      %v1425 = vpop.f32.mrb[0].mxu0
      %1426 = vmatprep.mubr.f32.mxu0 0.0
      %1427 = vmatmul.mubr.f32.gmra.mrb[0].mxu0 %v522
      %v1428 = vpop.f32.mrb[0].mxu0
      %v1429 = vadd.f32 %v884, %v1428
      %v1430 = vpop.f32.mrb[0].mxu0
      %1431 = vmatprep.mubr.f32.mxu0 0.0
      %1432 = vmatmul.mubr.f32.gmra.mrb[0].mxu0 %v525
      %v1433 = vpop.f32.mrb[0].mxu0
      %v1434 = vadd.f32 %v889, %v1433
      %v1435 = vpop.f32.mrb[0].mxu0
      %1436 = vmatprep.mubr.f32.mxu0 0.0
      %1437 = vmatmul.mubr.f32.gmra.mrb[0].mxu0 %v528
      %v1438 = vpop.f32.mrb[0].mxu0
      %v1439 = vadd.f32 %v894, %v1438
      %v1440 = vpop.f32.mrb[0].mxu0
      %1441 = vmatprep.mubr.f32.mxu0 0.0
      %1442 = vmatmul.mubr.f32.gmra.mrb[0].mxu0 %v531
      %v1443 = vpop.f32.mrb[0].mxu0
      %v1444 = vadd.f32 %v899, %v1443
      %v1445 = vpop.f32.mrb[0].mxu0
      %1446 = vmatprep.mubr.f32.mxu0 0.0
      %1447 = vmatmul.mubr.f32.gmra.mrb[0].mxu0 %v534
      %v1448 = vpop.f32.mrb[0].mxu0
      %v1449 = vadd.f32 %v904, %v1448
      %v1450 = vpop.f32.mrb[0].mxu0
      %1451 = vmatprep.mubr.f32.mxu0 0.0
      %1452 = vmatmul.mubr.f32.gmra.mrb[0].mxu0 %v537
      %v1453 = vpop.f32.mrb[0].mxu0
      %v1454 = vadd.f32 %v909, %v1453
      %v1455 = vpop.f32.mrb[0].mxu0
      %1456 = vmatprep.mubr.f32.mxu0 0.0
      %1457 = vmatmul.mubr.f32.gmra.mrb[0].mxu0 %v540
      %v1458 = vpop.f32.mrb[0].mxu0
      %v1459 = vadd.f32 %v914, %v1458
      %v1460 = vpop.f32.mrb[0].mxu0
      %1461 = vmatprep.mubr.f32.mxu0 0.0
      %1462 = vmatmul.mubr.f32.gmra.mrb[0].mxu0 %v543
      %v1463 = vpop.f32.mrb[0].mxu0
      %v1464 = vadd.f32 %v919, %v1463
      %v1465 = vpop.f32.mrb[0].mxu0
      %1466 = vmatprep.mubr.f32.mxu0 0.0
      %1467 = vmatmul.mubr.f32.gmra.mrb[0].mxu0 %v546
      %v1468 = vpop.f32.mrb[0].mxu0
      %v1469 = vadd.f32 %v924, %v1468
      %v1470 = vpop.f32.mrb[0].mxu0
      %1471 = vmatprep.mubr.f32.mxu0 0.0
      %1472 = vmatmul.mubr.f32.gmra.mrb[0].mxu0 %v549
      %v1473 = vpop.f32.mrb[0].mxu0
      %v1474 = vadd.f32 %v929, %v1473
      %v1475 = vpop.f32.mrb[0].mxu0
      %1476 = vmatprep.mubr.f32.mxu0 0.0
      %1477 = vmatmul.mubr.f32.gmra.mrb[0].mxu0 %v552
      %v1478 = vpop.f32.mrb[0].mxu0
      %v1479 = vadd.f32 %v934, %v1478
      %v1480 = vpop.f32.mrb[0].mxu0
      %1481 = vmatprep.mubr.f32.mxu0 0.0
      %1482 = vmatmul.mubr.f32.gmra.mrb[0].mxu0 %v555
      %v1483 = vpop.f32.mrb[0].mxu0
      %v1484 = vadd.f32 %v939, %v1483
      %v1485 = vpop.f32.mrb[0].mxu0
      %1486 = vmatprep.mubr.f32.mxu0 0.0
      %1487 = vmatmul.mubr.f32.gmra.mrb[0].mxu0 %v558
      %v1488 = vpop.f32.mrb[0].mxu0
      %v1489 = vadd.f32 %v944, %v1488
      %v1490 = vpop.f32.mrb[0].mxu0
      %1491 = vmatprep.mubr.f32.mxu0 0.0
      %1492 = vmatmul.mubr.f32.gmra.mrb[0].mxu0 %v561
      %v1493 = vpop.f32.mrb[0].mxu0
      %v1494 = vadd.f32 %v949, %v1493
      %v1495 = vpop.f32.mrb[0].mxu0
      %1496 = vmatprep.mubr.f32.mxu0 0.0
      %1497 = vmatmul.mubr.f32.gmra.mrb[0].mxu0 %v564
      %v1498 = vpop.f32.mrb[0].mxu0
      %v1499 = vadd.f32 %v954, %v1498
      %v1500 = vpop.f32.mrb[0].mxu0
      %1501 = vmatprep.mubr.f32.mxu0 0.0
      %1502 = vmatmul.mubr.f32.gmra.mrb[0].mxu0 %v567
      %v1503 = vpop.f32.mrb[0].mxu0
      %v1504 = vadd.f32 %v959, %v1503
      %v1505 = vpop.f32.mrb[0].mxu0
      %1506 = vmatprep.mubr.f32.mxu0 0.0
      %1507 = vmatmul.mubr.f32.gmra.mrb[0].mxu0 %v570
      %v1508 = vpop.f32.mrb[0].mxu0
      %v1509 = vadd.f32 %v964, %v1508
      %v1510 = vpop.f32.mrb[0].mxu0
      %1511 = vmatprep.mubr.f32.mxu0 0.0
      %1512 = vmatmul.mubr.f32.gmra.mrb[0].mxu0 %v573
      %v1513 = vpop.f32.mrb[0].mxu0
      %v1514 = vadd.f32 %v969, %v1513
      %v1515 = vpop.f32.mrb[0].mxu0
      %1516 = vmatprep.mubr.f32.mxu0 0.0
      %1517 = vmatmul.mubr.f32.gmra.mrb[0].mxu0 %v576
      %v1518 = vpop.f32.mrb[0].mxu0
      %v1519 = vadd.f32 %v974, %v1518
      %v1520 = vpop.f32.mrb[0].mxu0
      %1521 = vmatprep.mubr.f32.mxu0 0.0
      %1522 = vmatmul.mubr.f32.gmra.mrb[0].mxu0 %v579
      %v1523 = vpop.f32.mrb[0].mxu0
      %v1524 = vadd.f32 %v979, %v1523
      %v1525 = vpop.f32.mrb[0].mxu0
      %1526 = vmatprep.mubr.f32.mxu0 0.0
      %1527 = vmatmul.mubr.f32.gmra.mrb[0].mxu0 %v582
      %v1528 = vpop.f32.mrb[0].mxu0
      %v1529 = vadd.f32 %v984, %v1528
      %v1530 = vpop.f32.mrb[0].mxu0
      %1531 = vmatprep.mubr.f32.mxu0 0.0
      %1532 = vmatmul.mubr.f32.gmra.mrb[0].mxu0 %v585
      %v1533 = vpop.f32.mrb[0].mxu0
      %v1534 = vadd.f32 %v989, %v1533
      %v1535 = vpop.f32.mrb[0].mxu0
      %1536 = vmatprep.mubr.f32.mxu0 0.0
      %1537 = vmatmul.mubr.f32.gmra.mrb[0].mxu0 %v588
      %v1538 = vpop.f32.mrb[0].mxu0
      %v1539 = vadd.f32 %v994, %v1538
      %v1540 = vpop.f32.mrb[0].mxu0
      %1541 = vmatprep.mubr.f32.mxu0 0.0
      %1542 = vmatmul.mubr.f32.gmra.mrb[0].mxu0 %v591
      %v1543 = vpop.f32.mrb[0].mxu0
      %v1544 = vadd.f32 %v999, %v1543
      %v1545 = vpop.f32.mrb[0].mxu0
      %1546 = vmatprep.mubr.f32.mxu0 0.0
      %1547 = vmatmul.mubr.f32.gmra.mrb[0].mxu0 %v594
      %v1548 = vpop.f32.mrb[0].mxu0
      %v1549 = vadd.f32 %v1004, %v1548
      %v1550 = vpop.f32.mrb[0].mxu0
      %1551 = vmatprep.mubr.f32.mxu0 0.0
      %1552 = vmatmul.mubr.f32.gmra.mrb[0].mxu0 %v597
      %v1553 = vpop.f32.mrb[0].mxu0
      %v1554 = vadd.f32 %v1009, %v1553
      %v1555 = vpop.f32.mrb[0].mxu0
      %1556 = vmatprep.mubr.f32.mxu0 0.0
      %1557 = vmatmul.mubr.f32.gmra.mrb[0].mxu0 %v600
      %v1558 = vpop.f32.mrb[0].mxu0
      %v1559 = vadd.f32 %v1014, %v1558
      %v1560 = vpop.f32.mrb[0].mxu0
      %1561 = vmatprep.mubr.f32.mxu0 0.0
      %1562 = vmatmul.mubr.f32.gmra.mrb[0].mxu0 %v603
      %v1563 = vpop.f32.mrb[0].mxu0
      %v1564 = vadd.f32 %v1019, %v1563
      %v1565 = vpop.f32.mrb[0].mxu0
      %1566 = vmatprep.mubr.f32.mxu0 0.0
      %1567 = vmatmul.mubr.f32.gmra.mrb[0].mxu0 %v606
      %v1568 = vpop.f32.mrb[0].mxu0
      %v1569 = vadd.f32 %v1024, %v1568
      %v1570 = vpop.f32.mrb[0].mxu0
      %1571 = vmatprep.mubr.f32.mxu0 0.0
      %1572 = vmatmul.mubr.f32.gmra.mrb[0].mxu0 %v609
      %v1573 = vpop.f32.mrb[0].mxu0
      %v1574 = vadd.f32 %v1029, %v1573
      %v1575 = vpop.f32.mrb[0].mxu0
      %1576 = vmatprep.mubr.f32.mxu0 0.0
      %1577 = vmatmul.mubr.f32.gmra.mrb[0].mxu0 %v612
      %v1578 = vpop.f32.mrb[0].mxu0
      %v1579 = vadd.f32 %v1034, %v1578
      %v1580 = vpop.f32.mrb[0].mxu0
      %1581 = vmatprep.mubr.f32.mxu0 0.0
      %1582 = vmatmul.mubr.f32.gmra.mrb[0].mxu0 %v615
      %v1583 = vpop.f32.mrb[0].mxu0
      %v1584 = vadd.f32 %v1039, %v1583
      %v1585 = vpop.f32.mrb[0].mxu0
      %1586 = vmatprep.mubr.f32.mxu0 0.0
      %1587 = vmatmul.mubr.f32.gmra.mrb[0].mxu0 %v618
      %v1588 = vpop.f32.mrb[0].mxu0
      %v1589 = vadd.f32 %v1044, %v1588
      %v1590 = vpop.f32.mrb[0].mxu0
      %1591 = vmatprep.mubr.f32.mxu0 0.0
      %1592 = vmatmul.mubr.f32.gmra.mrb[0].mxu0 %v621
      %v1593 = vpop.f32.mrb[0].mxu0
      %v1594 = vadd.f32 %v1049, %v1593
      %v1595 = vpop.f32.mrb[0].mxu0
      %1596 = vmatprep.mubr.f32.mxu0 0.0
      %1597 = vmatmul.mubr.f32.gmra.mrb[0].mxu0 %v624
      %v1598 = vpop.f32.mrb[0].mxu0
      %v1599 = vadd.f32 %v1054, %v1598
      %v1600 = vpop.f32.mrb[0].mxu0
      %1601 = vmatprep.mubr.f32.mxu0 0.0
      %1602 = vmatmul.mubr.f32.gmra.mrb[0].mxu0 %v627
      %v1603 = vpop.f32.mrb[0].mxu0
      %v1604 = vadd.f32 %v1059, %v1603
      %v1605 = vpop.f32.mrb[0].mxu0
      %1606 = vmatprep.mubr.f32.mxu0 0.0
      %1607 = vmatmul.mubr.f32.gmra.mrb[0].mxu0 %v630
      %v1608 = vpop.f32.mrb[0].mxu0
      %v1609 = vadd.f32 %v1064, %v1608
      %v1610 = vpop.f32.mrb[0].mxu0
      %1611 = vmatprep.mubr.f32.mxu0 0.0
      %1612 = vmatmul.mubr.f32.gmra.mrb[0].mxu0 %v633
      %v1613 = vpop.f32.mrb[0].mxu0
      %v1614 = vadd.f32 %v1069, %v1613
      %v1615 = vpop.f32.mrb[0].mxu0
      %1616 = vmatprep.mubr.f32.mxu0 0.0
      %1617 = vmatmul.mubr.f32.gmra.mrb[0].mxu0 %v636
      %v1618 = vpop.f32.mrb[0].mxu0
      %v1619 = vadd.f32 %v1074, %v1618
      %v1620 = vpop.f32.mrb[0].mxu0
      %1621 = vmatprep.mubr.f32.mxu0 0.0
      %1622 = vmatmul.mubr.f32.gmra.mrb[0].mxu0 %v639
      %v1623 = vpop.f32.mrb[0].mxu0
      %v1624 = vadd.f32 %v1079, %v1623
      %v1625 = vpop.f32.mrb[0].mxu0
      %1626 = vmatprep.mubr.f32.mxu0 0.0
      %1627 = vmatmul.mubr.f32.gmra.mrb[0].mxu0 %v642
      %v1628 = vpop.f32.mrb[0].mxu0
      %v1629 = vadd.f32 %v1084, %v1628
      %v1630 = vpop.f32.mrb[0].mxu0
      %1631 = vmatprep.mubr.f32.mxu0 0.0
      %1632 = vmatmul.mubr.f32.gmra.mrb[0].mxu0 %v645
      %v1633 = vpop.f32.mrb[0].mxu0
      %v1634 = vadd.f32 %v1089, %v1633
      %v1635 = vpop.f32.mrb[0].mxu0
      %1636 = vmatprep.mubr.f32.mxu0 0.0
      %1637 = vmatmul.mubr.f32.gmra.mrb[0].mxu0 %v648
      %v1638 = vpop.f32.mrb[0].mxu0
      %v1639 = vadd.f32 %v1094, %v1638
      %v1640 = vpop.f32.mrb[0].mxu0
      %1641 = vmatprep.mubr.f32.mxu0 0.0
      %1642 = vmatmul.mubr.f32.gmra.mrb[0].mxu0 %v651
      %v1643 = vpop.f32.mrb[0].mxu0
      %v1644 = vadd.f32 %v1099, %v1643
      %v1645 = vpop.f32.mrb[0].mxu0
      %1646 = vmatprep.mubr.f32.mxu0 0.0
      %1647 = vmatmul.mubr.f32.gmra.mrb[0].mxu0 %v654
      %v1648 = vpop.f32.mrb[0].mxu0
      %v1649 = vadd.f32 %v1104, %v1648
      %v1650 = vpop.f32.mrb[0].mxu0
      %1651 = vmatprep.mubr.f32.mxu0 0.0
      %1652 = vmatmul.mubr.f32.gmra.mrb[0].mxu0 %v657
      %v1653 = vpop.f32.mrb[0].mxu0
      %v1654 = vadd.f32 %v1109, %v1653
      %v1655 = vpop.f32.mrb[0].mxu0
      %1656 = vmatprep.mubr.f32.mxu0 0.0
      %1657 = vmatmul.mubr.f32.gmra.mrb[0].mxu0 %v660
      %v1658 = vpop.f32.mrb[0].mxu0
      %v1659 = vadd.f32 %v1114, %v1658
      %v1660 = vpop.f32.mrb[0].mxu0
      %1661 = vmatprep.mubr.f32.mxu0 0.0
      %1662 = vmatmul.mubr.f32.gmra.mrb[0].mxu0 %v663
      %v1663 = vpop.f32.mrb[0].mxu0
      %v1664 = vadd.f32 %v1119, %v1663
      %v1665 = vpop.f32.mrb[0].mxu0
      %1666 = vmatprep.mubr.f32.mxu0 0.0
      %1667 = vmatmul.mubr.f32.gmra.mrb[0].mxu0 %v666
      %v1668 = vpop.f32.mrb[0].mxu0
      %v1669 = vadd.f32 %v1124, %v1668
      %v1670 = vpop.f32.mrb[0].mxu0
      %1671 = vmatprep.mubr.f32.mxu0 0.0
      %1672 = vmatmul.mubr.f32.gmra.mrb[0].mxu0 %v669
      %v1673 = vpop.f32.mrb[0].mxu0
      %v1674 = vadd.f32 %v1129, %v1673
      %v1675 = vpop.f32.mrb[0].mxu0
      %1676 = vmatprep.mubr.f32.mxu0 0.0
      %1677 = vmatmul.mubr.f32.gmra.mrb[0].mxu0 %v672
      %v1678 = vpop.f32.mrb[0].mxu0
      %v1679 = vadd.f32 %v1134, %v1678
      %v1680 = vpop.f32.mrb[0].mxu0
      %1681 = vmatprep.mubr.f32.mxu0 0.0
      %1682 = vmatmul.mubr.f32.gmra.mrb[0].mxu0 %v675
      %v1683 = vpop.f32.mrb[0].mxu0
      %v1684 = vadd.f32 %v1139, %v1683
      %v1685 = vpop.f32.mrb[0].mxu0
      %1686 = vmatprep.mubr.f32.mxu0 0.0
      %1687 = vmatmul.mubr.f32.gmra.mrb[0].mxu0 %v678
      %v1688 = vpop.f32.mrb[0].mxu0
      %v1689 = vadd.f32 %v1144, %v1688
      %v1690 = vpop.f32.mrb[0].mxu0
      %1691 = vmatprep.mubr.f32.mxu0 0.0
      %1692 = vmatmul.mubr.f32.gmra.mrb[0].mxu0 %v681
      %v1693 = vpop.f32.mrb[0].mxu0
      %v1694 = vadd.f32 %v1149, %v1693
      %v1695 = vpop.f32.mrb[0].mxu0
      %1696 = vmatprep.mubr.f32.mxu0 0.0
      %1697 = vmatmul.mubr.f32.gmra.mrb[0].mxu0 %v684
      %v1698 = vpop.f32.mrb[0].mxu0
      %v1699 = vadd.f32 %v1154, %v1698
      %v1700 = vpop.f32.mrb[0].mxu0
      %1701 = vmatprep.mubr.f32.mxu0 0.0
      %1702 = vmatmul.mubr.f32.gmra.mrb[0].mxu0 %v687
      %v1703 = vpop.f32.mrb[0].mxu0
      %v1704 = vadd.f32 %v1159, %v1703
      %v1705 = vpop.f32.mrb[0].mxu0
      %1706 = vmatprep.mubr.f32.mxu0 0.0
      %1707 = vmatmul.mubr.f32.gmra.mrb[0].mxu0 %v690
      %v1708 = vpop.f32.mrb[0].mxu0
      %v1709 = vadd.f32 %v1164, %v1708
      %v1710 = vpop.f32.mrb[0].mxu0
      %1711 = vmatprep.mubr.f32.mxu0 0.0
      %1712 = vmatmul.mubr.f32.gmra.mrb[0].mxu0 %v693
      %v1713 = vpop.f32.mrb[0].mxu0
      %v1714 = vadd.f32 %v1169, %v1713
      %v1715 = vpop.f32.mrb[0].mxu0
      %1716 = vmatprep.mubr.f32.mxu0 0.0
      %1717 = vmatmul.mubr.f32.gmra.mrb[0].mxu0 %v696
      %v1718 = vpop.f32.mrb[0].mxu0
      %v1719 = vadd.f32 %v1174, %v1718
      %v1720 = vpop.f32.mrb[0].mxu0
      %1721 = vmatprep.mubr.f32.mxu0 0.0
      %1722 = vmatmul.mubr.f32.gmra.mrb[0].mxu0 %v699
      %v1723 = vpop.f32.mrb[0].mxu0
      %v1724 = vadd.f32 %v1179, %v1723
      %v1725 = vpop.f32.mrb[0].mxu0
      %1726 = vmatprep.mubr.f32.mxu0 0.0
      %1727 = vmatmul.mubr.f32.gmra.mrb[0].mxu0 %v702
      %v1728 = vpop.f32.mrb[0].mxu0
      %v1729 = vadd.f32 %v1184, %v1728
      %v1730 = vpop.f32.mrb[0].mxu0
      %1731 = vmatprep.mubr.f32.mxu0 0.0
      %1732 = vmatmul.mubr.f32.gmra.mrb[0].mxu0 %v705
      %v1733 = vpop.f32.mrb[0].mxu0
      %v1734 = vadd.f32 %v1189, %v1733
      %v1735 = vpop.f32.mrb[0].mxu0
      %1736 = vmatprep.mubr.f32.mxu0 0.0
      %1737 = vmatmul.mubr.f32.gmra.mrb[0].mxu0 %v708
      %v1738 = vpop.f32.mrb[0].mxu0
      %v1739 = vadd.f32 %v1194, %v1738
      %v1740 = vpop.f32.mrb[0].mxu0
      %1741 = vmatprep.mubr.f32.mxu0 0.0
      %1742 = vmatmul.mubr.f32.gmra.mrb[0].mxu0 %v711
      %v1743 = vpop.f32.mrb[0].mxu0
      %v1744 = vadd.f32 %v1199, %v1743
      %v1745 = vpop.f32.mrb[0].mxu0
      %1746 = vmatprep.mubr.f32.mxu0 0.0
      %1747 = vmatmul.mubr.f32.gmra.mrb[0].mxu0 %v714
      %v1748 = vpop.f32.mrb[0].mxu0
      %v1749 = vadd.f32 %v1204, %v1748
      %v1750 = vpop.f32.mrb[0].mxu0
      %1751 = vmatprep.mubr.f32.mxu0 0.0
      %1752 = vmatmul.mubr.f32.gmra.mrb[0].mxu0 %v717
      %v1753 = vpop.f32.mrb[0].mxu0
      %v1754 = vadd.f32 %v1209, %v1753
      %v1755 = vpop.f32.mrb[0].mxu0
      %1756 = vmatprep.mubr.f32.mxu0 0.0
      %1757 = vmatmul.mubr.f32.gmra.mrb[0].mxu0 %v720
      %v1758 = vpop.f32.mrb[0].mxu0
      %v1759 = vadd.f32 %v1214, %v1758
      %v1760 = vpop.f32.mrb[0].mxu0
      %1761 = vmatprep.mubr.f32.mxu0 0.0
      %1762 = vmatmul.mubr.f32.gmra.mrb[0].mxu0 %v723
      %v1763 = vpop.f32.mrb[0].mxu0
      %v1764 = vadd.f32 %v1219, %v1763
      %v1765 = vpop.f32.mrb[0].mxu0
      %1766 = vmatprep.mubr.f32.mxu0 0.0
      %1767 = vmatmul.mubr.f32.gmra.mrb[0].mxu0 %v726
      %v1768 = vpop.f32.mrb[0].mxu0
      %v1769 = vadd.f32 %v1224, %v1768
      %v1770 = vpop.f32.mrb[0].mxu0
      %1771 = vmatprep.mubr.f32.mxu0 0.0
      %1772 = vmatmul.mubr.f32.gmra.mrb[0].mxu0 %v729
      %v1773 = vpop.f32.mrb[0].mxu0
      %v1774 = vadd.f32 %v1229, %v1773
      %v1775 = vpop.f32.mrb[0].mxu0
      %1776 = vmatprep.mubr.f32.mxu0 0.0
      %1777 = vmatmul.mubr.f32.gmra.mrb[0].mxu0 %v732
      %v1778 = vpop.f32.mrb[0].mxu0
      %v1779 = vadd.f32 %v1234, %v1778
      %v1780 = vpop.f32.mrb[0].mxu0
      %1781 = vmatprep.mubr.f32.mxu0 0.0
      %1782 = vmatmul.mubr.f32.gmra.mrb[0].mxu0 %v735
      %v1783 = vpop.f32.mrb[0].mxu0
      %v1784 = vadd.f32 %v1239, %v1783
      %v1785 = vpop.f32.mrb[0].mxu0
      %1786 = vmatprep.mubr.f32.mxu0 0.0
      %1787 = vmatmul.mubr.f32.gmra.mrb[0].mxu0 %v738
      %v1788 = vpop.f32.mrb[0].mxu0
      %v1789 = vadd.f32 %v1244, %v1788
      %v1790 = vpop.f32.mrb[0].mxu0
      %1791 = vmatprep.mubr.f32.mxu0 0.0
      %1792 = vmatmul.mubr.f32.gmra.mrb[0].mxu0 %v741
      %v1793 = vpop.f32.mrb[0].mxu0
      %v1794 = vadd.f32 %v1249, %v1793
      %v1795 = vpop.f32.mrb[0].mxu0
      %1796 = vmatprep.mubr.f32.mxu0 0.0
      %1797 = vmatmul.mubr.f32.gmra.mrb[0].mxu0 %v744
      %v1798 = vpop.f32.mrb[0].mxu0
      %v1799 = vadd.f32 %v1254, %v1798
      %v1800 = vpop.f32.mrb[0].mxu0
      %1801 = vmatprep.mubr.f32.mxu0 0.0
      %1802 = vmatmul.mubr.f32.gmra.mrb[0].mxu0 %v747
      %v1803 = vpop.f32.mrb[0].mxu0
      %v1804 = vadd.f32 %v1259, %v1803
      %v1805 = vpop.f32.mrb[0].mxu0
      %1806 = vmatprep.mubr.f32.mxu0 0.0
      %1807 = vmatmul.mubr.f32.gmra.mrb[0].mxu0 %v750
      %v1808 = vpop.f32.mrb[0].mxu0
      %v1809 = vadd.f32 %v1264, %v1808
      %v1810 = vpop.f32.mrb[0].mxu0
      %1811 = vmatprep.mubr.f32.mxu0 0.0
      %1812 = vmatmul.mubr.f32.gmra.mrb[0].mxu0 %v753
      %v1813 = vpop.f32.mrb[0].mxu0
      %v1814 = vadd.f32 %v1269, %v1813
      %v1815 = vpop.f32.mrb[0].mxu0
      %1816 = vmatprep.mubr.f32.mxu0 0.0
      %1817 = vmatmul.mubr.f32.gmra.mrb[0].mxu0 %v756
      %v1818 = vpop.f32.mrb[0].mxu0
      %v1819 = vadd.f32 %v1274, %v1818
      %v1820 = vpop.f32.mrb[0].mxu0
      %1821 = vmatprep.mubr.f32.mxu0 0.0
      %1822 = vmatmul.mubr.f32.gmra.mrb[0].mxu0 %v759
      %v1823 = vpop.f32.mrb[0].mxu0
      %v1824 = vadd.f32 %v1279, %v1823
      %v1825 = vpop.f32.mrb[0].mxu0
      %1826 = vmatprep.mubr.f32.mxu0 0.0
      %1827 = vmatmul.mubr.f32.gmra.mrb[0].mxu0 %v762
      %v1828 = vpop.f32.mrb[0].mxu0
      %v1829 = vadd.f32 %v1284, %v1828
      %v1830 = vpop.f32.mrb[0].mxu0
      %1831 = vmatprep.mubr.f32.mxu0 0.0
      %1832 = vmatmul.mubr.f32.gmra.mrb[0].mxu0 %v765
      %v1833 = vpop.f32.mrb[0].mxu0
      %v1834 = vadd.f32 %v1289, %v1833
      %v1835 = vpop.f32.mrb[0].mxu0
      %1836 = vmatprep.mubr.f32.mxu0 0.0
      %1837 = vmatmul.mubr.f32.gmra.mrb[0].mxu0 %v768
      %v1838 = vpop.f32.mrb[0].mxu0
      %v1839 = vadd.f32 %v1294, %v1838
      %v1840 = vpop.f32.mrb[0].mxu0
      %1841 = vmatprep.mubr.f32.mxu0 0.0
      %1842 = vmatmul.mubr.f32.gmra.mrb[0].mxu0 %v771
      %v1843 = vpop.f32.mrb[0].mxu0
      %v1844 = vadd.f32 %v1299, %v1843
      %v1845 = vpop.f32.mrb[0].mxu0
      %1846 = vmatprep.mubr.f32.mxu0 0.0
      %1847 = vmatmul.mubr.f32.gmra.mrb[0].mxu0 %v774
      %v1848 = vpop.f32.mrb[0].mxu0
      %v1849 = vadd.f32 %v1304, %v1848
      %v1850 = vpop.f32.mrb[0].mxu0
      %1851 = vmatprep.mubr.f32.mxu0 0.0
      %1852 = vmatmul.mubr.f32.gmra.mrb[0].mxu0 %v777
      %v1853 = vpop.f32.mrb[0].mxu0
      %v1854 = vadd.f32 %v1309, %v1853
      %v1855 = vpop.f32.mrb[0].mxu0
      %1856 = vmatprep.mubr.f32.mxu0 0.0
      %1857 = vmatmul.mubr.f32.gmra.mrb[0].mxu0 %v780
      %v1858 = vpop.f32.mrb[0].mxu0
      %v1859 = vadd.f32 %v1314, %v1858
      %v1860 = vpop.f32.mrb[0].mxu0
      %1861 = vmatprep.mubr.f32.mxu0 0.0
      %1862 = vmatmul.mubr.f32.gmra.mrb[0].mxu0 %v783
      %v1863 = vpop.f32.mrb[0].mxu0
      %v1864 = vadd.f32 %v1319, %v1863
      %v1865 = vpop.f32.mrb[0].mxu0
      %1866 = vmatprep.mubr.f32.mxu0 0.0
      %1867 = vmatmul.mubr.f32.gmra.mrb[0].mxu0 %v786
      %v1868 = vpop.f32.mrb[0].mxu0
      %v1869 = vadd.f32 %v1324, %v1868
      %v1870 = vpop.f32.mrb[0].mxu0
      %1871 = vmatprep.mubr.f32.mxu0 0.0
      %1872 = vmatmul.mubr.f32.gmra.mrb[0].mxu0 %v789
      %v1873 = vpop.f32.mrb[0].mxu0
      %v1874 = vadd.f32 %v1329, %v1873
      %v1875 = vpop.f32.mrb[0].mxu0
      %1876 = vmatprep.mubr.f32.mxu0 0.0
      %1877 = vmatmul.mubr.f32.gmra.mrb[0].mxu0 %v792
      %v1878 = vpop.f32.mrb[0].mxu0
      %v1879 = vadd.f32 %v1334, %v1878
      %v1880 = vpop.f32.mrb[0].mxu0
      %1881 = vmatprep.mubr.f32.mxu0 0.0
      %1882 = vmatmul.mubr.f32.gmra.mrb[0].mxu0 %v795
      %v1883 = vpop.f32.mrb[0].mxu0
      %v1884 = vadd.f32 %v1339, %v1883
      %v1885 = vpop.f32.mrb[0].mxu0
      %1886 = vdwg.mxu0
      %v1887 = vmax.f32 %v1409, 0.0
      %v1888 = vmax.f32 %v1414, 0.0
      %v1889 = vmax.f32 %v1419, 0.0
      %v1890 = vmax.f32 %v1424, 0.0
      %v1891 = vmax.f32 %v1429, 0.0
      %v1892 = vmax.f32 %v1434, 0.0
      %v1893 = vmax.f32 %v1439, 0.0
      %v1894 = vmax.f32 %v1444, 0.0
      %v1895 = vmax.f32 %v1449, 0.0
      %v1896 = vmax.f32 %v1454, 0.0
      %v1897 = vmax.f32 %v1459, 0.0
      %v1898 = vmax.f32 %v1464, 0.0
      %v1899 = vmax.f32 %v1469, 0.0
      %v1900 = vmax.f32 %v1474, 0.0
      %v1901 = vmax.f32 %v1479, 0.0
      %v1902 = vmax.f32 %v1484, 0.0
      %v1903 = vmax.f32 %v1489, 0.0
      %v1904 = vmax.f32 %v1494, 0.0
      %v1905 = vmax.f32 %v1499, 0.0
      %v1906 = vmax.f32 %v1504, 0.0
      %v1907 = vmax.f32 %v1509, 0.0
      %v1908 = vmax.f32 %v1514, 0.0
      %v1909 = vmax.f32 %v1519, 0.0
      %v1910 = vmax.f32 %v1524, 0.0
      %v1911 = vmax.f32 %v1529, 0.0
      %v1912 = vmax.f32 %v1534, 0.0
      %v1913 = vmax.f32 %v1539, 0.0
      %v1914 = vmax.f32 %v1544, 0.0
      %v1915 = vmax.f32 %v1549, 0.0
      %v1916 = vmax.f32 %v1554, 0.0
      %v1917 = vmax.f32 %v1559, 0.0
      %v1918 = vmax.f32 %v1564, 0.0
      %v1919 = vmax.f32 %v1569, 0.0
      %v1920 = vmax.f32 %v1574, 0.0
      %v1921 = vmax.f32 %v1579, 0.0
      %v1922 = vmax.f32 %v1584, 0.0
      %v1923 = vmax.f32 %v1589, 0.0
      %v1924 = vmax.f32 %v1594, 0.0
      %v1925 = vmax.f32 %v1599, 0.0
      %v1926 = vmax.f32 %v1604, 0.0
      %v1927 = vmax.f32 %v1609, 0.0
      %v1928 = vmax.f32 %v1614, 0.0
      %v1929 = vmax.f32 %v1619, 0.0
      %v1930 = vmax.f32 %v1624, 0.0
      %v1931 = vmax.f32 %v1629, 0.0
      %v1932 = vmax.f32 %v1634, 0.0
      %v1933 = vmax.f32 %v1639, 0.0
      %v1934 = vmax.f32 %v1644, 0.0
      %v1935 = vmax.f32 %v1649, 0.0
      %v1936 = vmax.f32 %v1654, 0.0
      %v1937 = vmax.f32 %v1659, 0.0
      %v1938 = vmax.f32 %v1664, 0.0
      %v1939 = vmax.f32 %v1669, 0.0
      %v1940 = vmax.f32 %v1674, 0.0
      %v1941 = vmax.f32 %v1679, 0.0
      %v1942 = vmax.f32 %v1684, 0.0
      %v1943 = vmax.f32 %v1689, 0.0
      %v1944 = vmax.f32 %v1694, 0.0
      %v1945 = vmax.f32 %v1699, 0.0
      %v1946 = vmax.f32 %v1704, 0.0
      %v1947 = vmax.f32 %v1709, 0.0
      %v1948 = vmax.f32 %v1714, 0.0
      %v1949 = vmax.f32 %v1719, 0.0
      %v1950 = vmax.f32 %v1724, 0.0
      %v1951 = vmax.f32 %v1729, 0.0
      %v1952 = vmax.f32 %v1734, 0.0
      %v1953 = vmax.f32 %v1739, 0.0
      %v1954 = vmax.f32 %v1744, 0.0
      %v1955 = vmax.f32 %v1749, 0.0
      %v1956 = vmax.f32 %v1754, 0.0
      %v1957 = vmax.f32 %v1759, 0.0
      %v1958 = vmax.f32 %v1764, 0.0
      %v1959 = vmax.f32 %v1769, 0.0
      %v1960 = vmax.f32 %v1774, 0.0
      %v1961 = vmax.f32 %v1779, 0.0
      %v1962 = vmax.f32 %v1784, 0.0
      %v1963 = vmax.f32 %v1789, 0.0
      %v1964 = vmax.f32 %v1794, 0.0
      %v1965 = vmax.f32 %v1799, 0.0
      %v1966 = vmax.f32 %v1804, 0.0
      %v1967 = vmax.f32 %v1809, 0.0
      %v1968 = vmax.f32 %v1814, 0.0
      %v1969 = vmax.f32 %v1819, 0.0
      %v1970 = vmax.f32 %v1824, 0.0
      %v1971 = vmax.f32 %v1829, 0.0
      %v1972 = vmax.f32 %v1834, 0.0
      %v1973 = vmax.f32 %v1839, 0.0
      %v1974 = vmax.f32 %v1844, 0.0
      %v1975 = vmax.f32 %v1849, 0.0
      %v1976 = vmax.f32 %v1854, 0.0
      %v1977 = vmax.f32 %v1859, 0.0
      %v1978 = vmax.f32 %v1864, 0.0
      %v1979 = vmax.f32 %v1869, 0.0
      %v1980 = vmax.f32 %v1874, 0.0
      %v1981 = vmax.f32 %v1879, 0.0
      %v1982 = vmax.f32 %v1884, 0.0
      %vm1983 = vcmask 523264
      %1984 = vst.msk [vmem:[%s175] sm:$0xff] %vm1983, %v1887
      %1985 = vst.msk [vmem:[%s175 + $0x8] sm:$0xff] %vm1983, %v1888
      %1986 = vst.msk [vmem:[%s175 + $0x10] sm:$0xff] %vm1983, %v1889
      %1987 = vst.msk [vmem:[%s175 + $0x18] sm:$0xff] %vm1983, %v1890
      %1988 = vst.msk [vmem:[%s175 + $0x20] sm:$0xff] %vm1983, %v1891
      %1989 = vst.msk [vmem:[%s175 + $0x28] sm:$0xff] %vm1983, %v1892
      %1990 = vst.msk [vmem:[%s175 + $0x30] sm:$0xff] %vm1983, %v1893
      %1991 = vst.msk [vmem:[%s175 + $0x38] sm:$0xff] %vm1983, %v1894
      %1992 = vst.msk [vmem:[%s175 + $0x40] sm:$0xff] %vm1983, %v1895
      %1993 = vst.msk [vmem:[%s175 + $0x48] sm:$0xff] %vm1983, %v1896
      %1994 = vst.msk [vmem:[%s175 + $0x50] sm:$0xff] %vm1983, %v1897
      %1995 = vst.msk [vmem:[%s175 + $0x58] sm:$0xff] %vm1983, %v1898
      %1996 = vst.msk [vmem:[%s175 + $0x60] sm:$0xff] %vm1983, %v1899
      %1997 = vst.msk [vmem:[%s175 + $0x68] sm:$0xff] %vm1983, %v1900
      %1998 = vst.msk [vmem:[%s175 + $0x70] sm:$0xff] %vm1983, %v1901
      %1999 = vst.msk [vmem:[%s175 + $0x78] sm:$0xff] %vm1983, %v1902
      %2000 = vst.msk [vmem:[%s175 + $0x80] sm:$0xff] %vm1983, %v1903
      %2001 = vst.msk [vmem:[%s175 + $0x88] sm:$0xff] %vm1983, %v1904
      %2002 = vst.msk [vmem:[%s175 + $0x90] sm:$0xff] %vm1983, %v1905
      %2003 = vst.msk [vmem:[%s175 + $0x98] sm:$0xff] %vm1983, %v1906
      %2004 = vst.msk [vmem:[%s175 + $0xa0] sm:$0xff] %vm1983, %v1907
      %2005 = vst.msk [vmem:[%s175 + $0xa8] sm:$0xff] %vm1983, %v1908
      %2006 = vst.msk [vmem:[%s175 + $0xb0] sm:$0xff] %vm1983, %v1909
      %2007 = vst.msk [vmem:[%s175 + $0xb8] sm:$0xff] %vm1983, %v1910
      %2008 = vst.msk [vmem:[%s175 + $0xc0] sm:$0xff] %vm1983, %v1911
      %2009 = vst.msk [vmem:[%s175 + $0xc8] sm:$0xff] %vm1983, %v1912
      %2010 = vst.msk [vmem:[%s175 + $0xd0] sm:$0xff] %vm1983, %v1913
      %2011 = vst.msk [vmem:[%s175 + $0xd8] sm:$0xff] %vm1983, %v1914
      %2012 = vst.msk [vmem:[%s175 + $0xe0] sm:$0xff] %vm1983, %v1915
      %2013 = vst.msk [vmem:[%s175 + $0xe8] sm:$0xff] %vm1983, %v1916
      %2014 = vst.msk [vmem:[%s175 + $0xf0] sm:$0xff] %vm1983, %v1917
      %2015 = vst.msk [vmem:[%s175 + $0xf8] sm:$0xff] %vm1983, %v1918
      %2016 = vst.msk [vmem:[%s175 + $0x100] sm:$0xff] %vm1983, %v1919
      %2017 = vst.msk [vmem:[%s175 + $0x108] sm:$0xff] %vm1983, %v1920
      %2018 = vst.msk [vmem:[%s175 + $0x110] sm:$0xff] %vm1983, %v1921
      %2019 = vst.msk [vmem:[%s175 + $0x118] sm:$0xff] %vm1983, %v1922
      %2020 = vst.msk [vmem:[%s175 + $0x120] sm:$0xff] %vm1983, %v1923
      %2021 = vst.msk [vmem:[%s175 + $0x128] sm:$0xff] %vm1983, %v1924
      %2022 = vst.msk [vmem:[%s175 + $0x130] sm:$0xff] %vm1983, %v1925
      %2023 = vst.msk [vmem:[%s175 + $0x138] sm:$0xff] %vm1983, %v1926
      %2024 = vst.msk [vmem:[%s175 + $0x140] sm:$0xff] %vm1983, %v1927
      %2025 = vst.msk [vmem:[%s175 + $0x148] sm:$0xff] %vm1983, %v1928
      %2026 = vst.msk [vmem:[%s175 + $0x150] sm:$0xff] %vm1983, %v1929
      %2027 = vst.msk [vmem:[%s175 + $0x158] sm:$0xff] %vm1983, %v1930
      %2028 = vst.msk [vmem:[%s175 + $0x160] sm:$0xff] %vm1983, %v1931
      %2029 = vst.msk [vmem:[%s175 + $0x168] sm:$0xff] %vm1983, %v1932
      %2030 = vst.msk [vmem:[%s175 + $0x170] sm:$0xff] %vm1983, %v1933
      %2031 = vst.msk [vmem:[%s175 + $0x178] sm:$0xff] %vm1983, %v1934
      %2032 = vst.msk [vmem:[%s175 + $0x180] sm:$0xff] %vm1983, %v1935
      %2033 = vst.msk [vmem:[%s175 + $0x188] sm:$0xff] %vm1983, %v1936
      %2034 = vst.msk [vmem:[%s175 + $0x190] sm:$0xff] %vm1983, %v1937
      %2035 = vst.msk [vmem:[%s175 + $0x198] sm:$0xff] %vm1983, %v1938
      %2036 = vst.msk [vmem:[%s175 + $0x1a0] sm:$0xff] %vm1983, %v1939
      %2037 = vst.msk [vmem:[%s175 + $0x1a8] sm:$0xff] %vm1983, %v1940
      %2038 = vst.msk [vmem:[%s175 + $0x1b0] sm:$0xff] %vm1983, %v1941
      %2039 = vst.msk [vmem:[%s175 + $0x1b8] sm:$0xff] %vm1983, %v1942
      %2040 = vst.msk [vmem:[%s175 + $0x1c0] sm:$0xff] %vm1983, %v1943
      %2041 = vst.msk [vmem:[%s175 + $0x1c8] sm:$0xff] %vm1983, %v1944
      %2042 = vst.msk [vmem:[%s175 + $0x1d0] sm:$0xff] %vm1983, %v1945
      %2043 = vst.msk [vmem:[%s175 + $0x1d8] sm:$0xff] %vm1983, %v1946
      %2044 = vst.msk [vmem:[%s175 + $0x1e0] sm:$0xff] %vm1983, %v1947
      %2045 = vst.msk [vmem:[%s175 + $0x1e8] sm:$0xff] %vm1983, %v1948
      %2046 = vst.msk [vmem:[%s175 + $0x1f0] sm:$0xff] %vm1983, %v1949
      %2047 = vst.msk [vmem:[%s175 + $0x1f8] sm:$0xff] %vm1983, %v1950
      %2048 = vst.msk [vmem:[%s175 + $0x200] sm:$0xff] %vm1983, %v1951
      %2049 = vst.msk [vmem:[%s175 + $0x208] sm:$0xff] %vm1983, %v1952
      %2050 = vst.msk [vmem:[%s175 + $0x210] sm:$0xff] %vm1983, %v1953
      %2051 = vst.msk [vmem:[%s175 + $0x218] sm:$0xff] %vm1983, %v1954
      %2052 = vst.msk [vmem:[%s175 + $0x220] sm:$0xff] %vm1983, %v1955
      %2053 = vst.msk [vmem:[%s175 + $0x228] sm:$0xff] %vm1983, %v1956
      %2054 = vst.msk [vmem:[%s175 + $0x230] sm:$0xff] %vm1983, %v1957
      %2055 = vst.msk [vmem:[%s175 + $0x238] sm:$0xff] %vm1983, %v1958
      %2056 = vst.msk [vmem:[%s175 + $0x240] sm:$0xff] %vm1983, %v1959
      %2057 = vst.msk [vmem:[%s175 + $0x248] sm:$0xff] %vm1983, %v1960
      %2058 = vst.msk [vmem:[%s175 + $0x250] sm:$0xff] %vm1983, %v1961
      %2059 = vst.msk [vmem:[%s175 + $0x258] sm:$0xff] %vm1983, %v1962
      %2060 = vst.msk [vmem:[%s175 + $0x260] sm:$0xff] %vm1983, %v1963
      %2061 = vst.msk [vmem:[%s175 + $0x268] sm:$0xff] %vm1983, %v1964
      %2062 = vst.msk [vmem:[%s175 + $0x270] sm:$0xff] %vm1983, %v1965
      %2063 = vst.msk [vmem:[%s175 + $0x278] sm:$0xff] %vm1983, %v1966
      %2064 = vst.msk [vmem:[%s175 + $0x280] sm:$0xff] %vm1983, %v1967
      %2065 = vst.msk [vmem:[%s175 + $0x288] sm:$0xff] %vm1983, %v1968
      %2066 = vst.msk [vmem:[%s175 + $0x290] sm:$0xff] %vm1983, %v1969
      %2067 = vst.msk [vmem:[%s175 + $0x298] sm:$0xff] %vm1983, %v1970
      %2068 = vst.msk [vmem:[%s175 + $0x2a0] sm:$0xff] %vm1983, %v1971
      %2069 = vst.msk [vmem:[%s175 + $0x2a8] sm:$0xff] %vm1983, %v1972
      %2070 = vst.msk [vmem:[%s175 + $0x2b0] sm:$0xff] %vm1983, %v1973
      %2071 = vst.msk [vmem:[%s175 + $0x2b8] sm:$0xff] %vm1983, %v1974
      %2072 = vst.msk [vmem:[%s175 + $0x2c0] sm:$0xff] %vm1983, %v1975
      %2073 = vst.msk [vmem:[%s175 + $0x2c8] sm:$0xff] %vm1983, %v1976
      %2074 = vst.msk [vmem:[%s175 + $0x2d0] sm:$0xff] %vm1983, %v1977
      %2075 = vst.msk [vmem:[%s175 + $0x2d8] sm:$0xff] %vm1983, %v1978
      %2076 = vst.msk [vmem:[%s175 + $0x2e0] sm:$0xff] %vm1983, %v1979
      %2077 = vst.msk [vmem:[%s175 + $0x2e8] sm:$0xff] %vm1983, %v1980
      %2078 = vst.msk [vmem:[%s175 + $0x2f0] sm:$0xff] %vm1983, %v1981
      %2079 = vst.msk [vmem:[%s175 + $0x2f8] sm:$0xff] %vm1983, %v1982
      %s2080 = smul.u32 96, %s14
      %p2081 = scmp.lt.s32.totalorder %s2080, 575
      %s2082 = scalar_select %p2081, %s2080, 575
      %s2083 = smul.addr %s2082, 8
      %s2084 = scalar_lea.vmem %s3, %s2083
      // Predicated region
      $region33: #{feature_extractor_forward.9} parent=31 // pred_check
        %p2085 = pneg %p100
      $region34: #{feature_extractor_forward.9} parent=31 // pred_check_branch
        %2087 = sbr.rel (%p2085) target = $region36
      $region35: #{feature_extractor_forward.9} parent=31 // pred_region
        %s2088 = smul.u32 96, %s14
      $region36: #{feature_extractor_forward.9} parent=31 // pred_fallthru
        _
    $region32: #{feature_extractor_forward.9} parent=5 // pred_fallthru
      _
    %p2089 = scmp.le.s32.totalorder 2, %s9
    // Predicated region
    $region37: #{feature_extractor_forward.9} parent=5 // pred_check
      %p2090 = pneg %p2089
    $region38: #{feature_extractor_forward.9} parent=5 // pred_check_branch
      %2092 = sbr.rel (%p2090) target = $region40
    $region39: #{feature_extractor_forward.9} parent=5 // pred_region
      %s2093 = ssub.s32 %s9, 2
      // Predicated region
      $region41: #{feature_extractor_forward.9} parent=39 // pred_check
        %p2094 = pneg %p106
      $region42: #{feature_extractor_forward.9} parent=39 // pred_check_branch
        %2096 = sbr.rel (%p2094) target = $region44
      $region43: #{feature_extractor_forward.9} parent=39 // pred_region
        %s2097 = smul.u32 96, %s15
        %p2098 = scmp.lt.s32.totalorder %s2097, 575
        %s2099 = scalar_select %p2098, %s2097, 575
        %s2100 = smul.addr %s2099, 8
        %s2101 = scalar_lea.vmem %s3, %s2100
      $region44: #{feature_extractor_forward.9} parent=39 // pred_fallthru
        _
    $region40: #{feature_extractor_forward.9} parent=5 // pred_fallthru
      _
  $region6: #{feature_extractor_forward.9} parent=0 // loop_footer
    %s13 = sadd.s32 1, %s9
  $region7: #{feature_extractor_forward.9} parent=0 // loop_footer_branch
    %8 = sbr.rel target = $region3
  $region8: #{feature_extractor_forward.9} parent=0 // loop_exit
    _

// kernel: feature_extractor_forward.10
$region0: #{feature_extractor_forward.10}
  #allocation0 [shape = 'u32[]', space=smem, size = 0x4, offset = 0x4, fixed_abs, tag = 'smem constant byte address 0x4 - core index']
  #allocation1 [shape = 'u32[144,128]{1,0:T(1,128)}', space=vmem, size = 0x12000, scoped, tag = 'internal scratch']
  %s0 = inlined_call_operand.vmem [shape: f32[2,24,1536], index: 0, kind: input, shape index: {}]
  %s1 = inlined_call_operand.vmem [shape: f32[2,24,1536], index: 1, kind: input, shape index: {}]
  %s2 = inlined_call_operand.vmem [shape: f32[2,24,1536], index: 2, kind: input, shape index: {}]
  %s3 = inlined_call_operand.vmem [shape: f32[2,24,1536], index: 3, kind: input, shape index: {}]
  %s4 = inlined_call_operand.vmem [shape: f32[2,24,1536], index: 4, kind: output, shape index: {}]
  %s5 = sld [smem:[#allocation0]]
  $region49: #{feature_extractor_forward.10} parent=0
    _
  %s7 = ssub.s32 1, %s5
  %s8 = scalar_select 0, %s7, %s5
  loop: start=0, step=1, limit=4
  $region2: #{feature_extractor_forward.10} parent=0 // loop_pre_header
    _
  $region3: #{feature_extractor_forward.10} parent=0 // loop_header
    %s10 = sphi 0, %s14
    %p11 = scmp.ge.s32.totalorder %s10, 4
    %s20 = sphi 0, %s22
    %s23 = sphi 0, %s20
    %s24 = sphi 0, %s23
    %s40 = sphi 0, %s24
    %s46 = sphi 0, %s48
    %s49 = sphi 0, %s46
    %s50 = sphi 0, %s49
    %s66 = sphi 0, %s50
    %s72 = sphi 0, %s74
    %s75 = sphi 0, %s72
    %s76 = sphi 0, %s75
    %s92 = sphi 0, %s76
    %s98 = sphi 0, %s100
    %s101 = sphi 0, %s98
    %s102 = sphi 0, %s101
    %s118 = sphi 0, %s102
    %s124 = sphi 0, %s126
    %s127 = sphi 0, %s124
    %s128 = sphi 0, %s127
    %s144 = sphi 0, %s128
  $region4: #{feature_extractor_forward.10} parent=0 // loop_header_branch
    %13 = sbr.rel (%p11) target = $region8
  $region5: #{feature_extractor_forward.10} parent=0 // loop_body
    %s15 = ssub.s32 %s10, 1
    %s16 = ssub.s32 %s10, 2
    %s17 = sadd.s32 %s10, 1
    %s18 = ssub.s32 %s10, %s17
    %p19 = scmp.eq.s32.totalorder %s18, 0
    %s21 = sadd.s32 %s20, 1
    %s22 = scalar_select %p19, %s20, %s21
    %p25 = pneg %p19
    %p26 = scmp.eq.s32.totalorder %s10, 1
    %p27 = por %p25, %p26
    %p28 = scmp.ne.s32.totalorder %s20, %s23
    %p29 = scmp.eq.s32.totalorder %s10, 0
    %p30 = por %p28, %p29
    %p31 = scmp.ne.s32.totalorder %s20, %s23
    %p32 = scmp.eq.s32.totalorder %s15, 1
    %p33 = por %p31, %p32
    %p34 = scmp.ne.s32.totalorder %s23, %s24
    %p35 = scmp.eq.s32.totalorder %s15, 0
    %p36 = por %p34, %p35
    %p37 = scmp.ne.s32.totalorder %s23, %s24
    %p38 = scmp.eq.s32.totalorder %s16, 1
    %p39 = por %p37, %p38
    %p41 = scmp.ne.s32.totalorder %s24, %s40
    %p42 = scmp.eq.s32.totalorder %s16, 0
    %p43 = por %p41, %p42
    %s44 = ssub.s32 %s10, %s17
    %p45 = scmp.eq.s32.totalorder %s44, 0
    %s47 = sadd.s32 %s46, 1
    %s48 = scalar_select %p45, %s46, %s47
    %p51 = pneg %p45
    %p52 = scmp.eq.s32.totalorder %s10, 1
    %p53 = por %p51, %p52
    %p54 = scmp.ne.s32.totalorder %s46, %s49
    %p55 = scmp.eq.s32.totalorder %s10, 0
    %p56 = por %p54, %p55
    %p57 = scmp.ne.s32.totalorder %s46, %s49
    %p58 = scmp.eq.s32.totalorder %s15, 1
    %p59 = por %p57, %p58
    %p60 = scmp.ne.s32.totalorder %s49, %s50
    %p61 = scmp.eq.s32.totalorder %s15, 0
    %p62 = por %p60, %p61
    %p63 = scmp.ne.s32.totalorder %s49, %s50
    %p64 = scmp.eq.s32.totalorder %s16, 1
    %p65 = por %p63, %p64
    %p67 = scmp.ne.s32.totalorder %s50, %s66
    %p68 = scmp.eq.s32.totalorder %s16, 0
    %p69 = por %p67, %p68
    %s70 = ssub.s32 %s10, %s17
    %p71 = scmp.eq.s32.totalorder %s70, 0
    %s73 = sadd.s32 %s72, 1
    %s74 = scalar_select %p71, %s72, %s73
    %p77 = pneg %p71
    %p78 = scmp.eq.s32.totalorder %s10, 1
    %p79 = por %p77, %p78
    %p80 = scmp.ne.s32.totalorder %s72, %s75
    %p81 = scmp.eq.s32.totalorder %s10, 0
    %p82 = por %p80, %p81
    %p83 = scmp.ne.s32.totalorder %s72, %s75
    %p84 = scmp.eq.s32.totalorder %s15, 1
    %p85 = por %p83, %p84
    %p86 = scmp.ne.s32.totalorder %s75, %s76
    %p87 = scmp.eq.s32.totalorder %s15, 0
    %p88 = por %p86, %p87
    %p89 = scmp.ne.s32.totalorder %s75, %s76
    %p90 = scmp.eq.s32.totalorder %s16, 1
    %p91 = por %p89, %p90
    %p93 = scmp.ne.s32.totalorder %s76, %s92
    %p94 = scmp.eq.s32.totalorder %s16, 0
    %p95 = por %p93, %p94
    %s96 = ssub.s32 %s10, %s17
    %p97 = scmp.eq.s32.totalorder %s96, 0
    %s99 = sadd.s32 %s98, 1
    %s100 = scalar_select %p97, %s98, %s99
    %p103 = pneg %p97
    %p104 = scmp.eq.s32.totalorder %s10, 1
    %p105 = por %p103, %p104
    %p106 = scmp.ne.s32.totalorder %s98, %s101
    %p107 = scmp.eq.s32.totalorder %s10, 0
    %p108 = por %p106, %p107
    %p109 = scmp.ne.s32.totalorder %s98, %s101
    %p110 = scmp.eq.s32.totalorder %s15, 1
    %p111 = por %p109, %p110
    %p112 = scmp.ne.s32.totalorder %s101, %s102
    %p113 = scmp.eq.s32.totalorder %s15, 0
    %p114 = por %p112, %p113
    %p115 = scmp.ne.s32.totalorder %s101, %s102
    %p116 = scmp.eq.s32.totalorder %s16, 1
    %p117 = por %p115, %p116
    %p119 = scmp.ne.s32.totalorder %s102, %s118
    %p120 = scmp.eq.s32.totalorder %s16, 0
    %p121 = por %p119, %p120
    %s122 = ssub.s32 %s10, %s17
    %p123 = scmp.eq.s32.totalorder %s122, 0
    %s125 = sadd.s32 %s124, 1
    %s126 = scalar_select %p123, %s124, %s125
    %p129 = pneg %p123
    %p130 = scmp.eq.s32.totalorder %s10, 1
    %p131 = por %p129, %p130
    %p132 = scmp.ne.s32.totalorder %s124, %s127
    %p133 = scmp.eq.s32.totalorder %s10, 0
    %p134 = por %p132, %p133
    %p135 = scmp.ne.s32.totalorder %s124, %s127
    %p136 = scmp.eq.s32.totalorder %s15, 1
    %p137 = por %p135, %p136
    %p138 = scmp.ne.s32.totalorder %s127, %s128
    %p139 = scmp.eq.s32.totalorder %s15, 0
    %p140 = por %p138, %p139
    %p141 = scmp.ne.s32.totalorder %s127, %s128
    %p142 = scmp.eq.s32.totalorder %s16, 1
    %p143 = por %p141, %p142
    %p145 = scmp.ne.s32.totalorder %s128, %s144
    %p146 = scmp.eq.s32.totalorder %s16, 0
    %p147 = por %p145, %p146
    %p148 = scmp.le.s32.totalorder 1, %s10
    %p149 = scmp.lt.s32.totalorder %s10, 3
    %p150 = pnand %p148, %p149
    %p151 = pneg %p150
    // Predicated region
    $region9: #{feature_extractor_forward.10} parent=5 // pred_check
      _
    $region10: #{feature_extractor_forward.10} parent=5 // pred_check_branch
      %153 = sbr.rel (%p150) target = $region12
    $region11: #{feature_extractor_forward.10} parent=5 // pred_region
      %s154 = ssub.s32 %s10, 1
    $region12: #{feature_extractor_forward.10} parent=5 // pred_fallthru
      _
    %p155 = scmp.lt.s32.totalorder %s10, 2
    // Predicated region
    $region13: #{feature_extractor_forward.10} parent=5 // pred_check
      %p156 = pneg %p155
    $region14: #{feature_extractor_forward.10} parent=5 // pred_check_branch
      %158 = sbr.rel (%p156) target = $region16
    $region15: #{feature_extractor_forward.10} parent=5 // pred_region
      // Predicated region
      $region17: #{feature_extractor_forward.10} parent=15 // pred_check
        %p159 = pneg %p30
      $region18: #{feature_extractor_forward.10} parent=15 // pred_check_branch
        %161 = sbr.rel (%p159) target = $region20
      $region19: #{feature_extractor_forward.10} parent=15 // pred_region
        %p162 = scmp.lt.s32.totalorder %s10, 1
        %s163 = scalar_select %p162, %s10, 1
        %s164 = smul.addr %s163, 36
        %s165 = smul.addr %s164, 8
        %s166 = scalar_lea.vmem %s0, %s165
      $region20: #{feature_extractor_forward.10} parent=15 // pred_fallthru
        _
      // Predicated region
      $region21: #{feature_extractor_forward.10} parent=15 // pred_check
        %p167 = pneg %p56
      $region22: #{feature_extractor_forward.10} parent=15 // pred_check_branch
        %169 = sbr.rel (%p167) target = $region24
      $region23: #{feature_extractor_forward.10} parent=15 // pred_region
        %p170 = scmp.lt.s32.totalorder %s10, 1
        %s171 = scalar_select %p170, %s10, 1
        %s172 = smul.addr %s171, 36
        %s173 = smul.addr %s172, 8
        %s174 = scalar_lea.vmem %s1, %s173
      $region24: #{feature_extractor_forward.10} parent=15 // pred_fallthru
        _
      // Predicated region
      $region25: #{feature_extractor_forward.10} parent=15 // pred_check
        %p175 = pneg %p82
      $region26: #{feature_extractor_forward.10} parent=15 // pred_check_branch
        %177 = sbr.rel (%p175) target = $region28
      $region27: #{feature_extractor_forward.10} parent=15 // pred_region
        %p178 = scmp.lt.s32.totalorder %s10, 1
        %s179 = scalar_select %p178, %s10, 1
        %s180 = smul.addr %s179, 36
        %s181 = smul.addr %s180, 8
        %s182 = scalar_lea.vmem %s2, %s181
      $region28: #{feature_extractor_forward.10} parent=15 // pred_fallthru
        _
      // Predicated region
      $region29: #{feature_extractor_forward.10} parent=15 // pred_check
        %p183 = pneg %p108
      $region30: #{feature_extractor_forward.10} parent=15 // pred_check_branch
        %185 = sbr.rel (%p183) target = $region32
      $region31: #{feature_extractor_forward.10} parent=15 // pred_region
        %p186 = scmp.lt.s32.totalorder %s10, 1
        %s187 = scalar_select %p186, %s10, 1
        %s188 = smul.addr %s187, 36
        %s189 = smul.addr %s188, 8
        %s190 = scalar_lea.vmem %s3, %s189
      $region32: #{feature_extractor_forward.10} parent=15 // pred_fallthru
        _
    $region16: #{feature_extractor_forward.10} parent=5 // pred_fallthru
      _
    %p191 = scmp.le.s32.totalorder 1, %s10
    %p192 = scmp.lt.s32.totalorder %s10, 3
    %p193 = pnand %p191, %p192
    %p194 = pneg %p193
    // Predicated region
    $region33: #{feature_extractor_forward.10} parent=5 // pred_check
      _
    $region34: #{feature_extractor_forward.10} parent=5 // pred_check_branch
      %196 = sbr.rel (%p193) target = $region36
    $region35: #{feature_extractor_forward.10} parent=5 // pred_region
      %s197 = ssub.s32 %s10, 1
      %p198 = scmp.lt.s32.totalorder %s15, 1
      %s199 = scalar_select %p198, %s15, 1
      %s200 = smul.addr %s199, 36
      %s201 = smul.addr %s200, 8
      %s202 = scalar_lea.vmem %s0, %s201
      %p203 = pneg %p36
      %p204 = pneg %p33
      %p205 = scmp.lt.s32.totalorder %s15, 1
      %s206 = scalar_select %p205, %s15, 1
      %s207 = smul.addr %s206, 36
      %s208 = smul.addr %s207, 8
      %s209 = scalar_lea.vmem %s1, %s208
      %p210 = pneg %p62
      %p211 = pneg %p59
      %p212 = scmp.lt.s32.totalorder %s15, 1
      %s213 = scalar_select %p212, %s15, 1
      %s214 = smul.addr %s213, 36
      %s215 = smul.addr %s214, 8
      %s216 = scalar_lea.vmem %s2, %s215
      %p217 = pneg %p88
      %p218 = pneg %p85
      %p219 = scmp.lt.s32.totalorder %s15, 1
      %s220 = scalar_select %p219, %s15, 1
      %s221 = smul.addr %s220, 36
      %s222 = smul.addr %s221, 8
      %s223 = scalar_lea.vmem %s3, %s222
      %p224 = pneg %p114
      %p225 = pneg %p111
      %p226 = pneg %p140
      %p227 = pneg %p137
      %p228 = scmp.lt.s32.totalorder %s15, 1
      %s229 = scalar_select %p228, %s15, 1
      %s230 = smul.addr %s229, 36
      %s231 = smul.addr %s230, 8
      %s232 = scalar_lea.vmem %s4, %s231
      %p233 = scmp.lt.s32.totalorder %s15, 1
      %s234 = scalar_select %p233, %s15, 1
      %s235 = smul.addr %s234, 36
      %s236 = smul.addr %s235, 8
      %s237 = scalar_lea.vmem %s0, %s236
      %p238 = scmp.lt.s32.totalorder %s15, 1
      %s239 = scalar_select %p238, %s15, 1
      %s240 = smul.addr %s239, 36
      %s241 = smul.addr %s240, 8
      %s242 = scalar_lea.vmem %s1, %s241
      %p243 = scmp.lt.s32.totalorder %s15, 1
      %s244 = scalar_select %p243, %s15, 1
      %s245 = smul.addr %s244, 36
      %s246 = smul.addr %s245, 8
      %s247 = scalar_lea.vmem %s2, %s246
      %p248 = scmp.lt.s32.totalorder %s15, 1
      %s249 = scalar_select %p248, %s15, 1
      %s250 = smul.addr %s249, 36
      %s251 = smul.addr %s250, 8
      %s252 = scalar_lea.vmem %s3, %s251
      %p253 = scmp.lt.s32.totalorder %s15, 1
      %s254 = scalar_select %p253, %s15, 1
      %s255 = smul.addr %s254, 36
      %s256 = smul.addr %s255, 8
      %s257 = scalar_lea.vmem %s4, %s256
      %v258 = vld [vmem:[%s237] sm:$0xff]
      %v259 = vld [vmem:[%s237 + $0x8] sm:$0xff]
      %v260 = vld [vmem:[%s237 + $0x10] sm:$0xff]
      %v261 = vld [vmem:[%s237 + $0x18] sm:$0xff]
      %v262 = vld [vmem:[%s237 + $0x20] sm:$0xff]
      %v263 = vld [vmem:[%s237 + $0x28] sm:$0xff]
      %v264 = vld [vmem:[%s237 + $0x30] sm:$0xff]
      %v265 = vld [vmem:[%s237 + $0x38] sm:$0xff]
      %v266 = vld [vmem:[%s237 + $0x40] sm:$0xff]
      %v267 = vld [vmem:[%s237 + $0x48] sm:$0xff]
      %v268 = vld [vmem:[%s237 + $0x50] sm:$0xff]
      %v269 = vld [vmem:[%s237 + $0x58] sm:$0xff]
      %v270 = vld [vmem:[%s237 + $0x60] sm:$0xff]
      %v271 = vld [vmem:[%s237 + $0x68] sm:$0xff]
      %v272 = vld [vmem:[%s237 + $0x70] sm:$0xff]
      %v273 = vld [vmem:[%s237 + $0x78] sm:$0xff]
      %v274 = vld [vmem:[%s237 + $0x80] sm:$0xff]
      %v275 = vld [vmem:[%s237 + $0x88] sm:$0xff]
      %v276 = vld [vmem:[%s237 + $0x90] sm:$0xff]
      %v277 = vld [vmem:[%s237 + $0x98] sm:$0xff]
      %v278 = vld [vmem:[%s237 + $0xa0] sm:$0xff]
      %v279 = vld [vmem:[%s237 + $0xa8] sm:$0xff]
      %v280 = vld [vmem:[%s237 + $0xb0] sm:$0xff]
      %v281 = vld [vmem:[%s237 + $0xb8] sm:$0xff]
      %v282 = vld [vmem:[%s237 + $0xc0] sm:$0xff]
      %v283 = vld [vmem:[%s237 + $0xc8] sm:$0xff]
      %v284 = vld [vmem:[%s237 + $0xd0] sm:$0xff]
      %v285 = vld [vmem:[%s237 + $0xd8] sm:$0xff]
      %v286 = vld [vmem:[%s237 + $0xe0] sm:$0xff]
      %v287 = vld [vmem:[%s237 + $0xe8] sm:$0xff]
      %v288 = vld [vmem:[%s237 + $0xf0] sm:$0xff]
      %v289 = vld [vmem:[%s237 + $0xf8] sm:$0xff]
      %v290 = vld [vmem:[%s237 + $0x100] sm:$0xff]
      %v291 = vld [vmem:[%s237 + $0x108] sm:$0xff]
      %v292 = vld [vmem:[%s237 + $0x110] sm:$0xff]
      %v293 = vld [vmem:[%s237 + $0x118] sm:$0xff]
      %v294 = vld [vmem:[%s242] sm:$0xff]
      %v295 = vld [vmem:[%s242 + $0x8] sm:$0xff]
      %v296 = vld [vmem:[%s242 + $0x10] sm:$0xff]
      %v297 = vld [vmem:[%s242 + $0x18] sm:$0xff]
      %v298 = vld [vmem:[%s242 + $0x20] sm:$0xff]
      %v299 = vld [vmem:[%s242 + $0x28] sm:$0xff]
      %v300 = vld [vmem:[%s242 + $0x30] sm:$0xff]
      %v301 = vld [vmem:[%s242 + $0x38] sm:$0xff]
      %v302 = vld [vmem:[%s242 + $0x40] sm:$0xff]
      %v303 = vld [vmem:[%s242 + $0x48] sm:$0xff]
      %v304 = vld [vmem:[%s242 + $0x50] sm:$0xff]
      %v305 = vld [vmem:[%s242 + $0x58] sm:$0xff]
      %v306 = vld [vmem:[%s242 + $0x60] sm:$0xff]
      %v307 = vld [vmem:[%s242 + $0x68] sm:$0xff]
      %v308 = vld [vmem:[%s242 + $0x70] sm:$0xff]
      %v309 = vld [vmem:[%s242 + $0x78] sm:$0xff]
      %v310 = vld [vmem:[%s242 + $0x80] sm:$0xff]
      %v311 = vld [vmem:[%s242 + $0x88] sm:$0xff]
      %v312 = vld [vmem:[%s242 + $0x90] sm:$0xff]
      %v313 = vld [vmem:[%s242 + $0x98] sm:$0xff]
      %v314 = vld [vmem:[%s242 + $0xa0] sm:$0xff]
      %v315 = vld [vmem:[%s242 + $0xa8] sm:$0xff]
      %v316 = vld [vmem:[%s242 + $0xb0] sm:$0xff]
      %v317 = vld [vmem:[%s242 + $0xb8] sm:$0xff]
      %v318 = vld [vmem:[%s242 + $0xc0] sm:$0xff]
      %v319 = vld [vmem:[%s242 + $0xc8] sm:$0xff]
      %v320 = vld [vmem:[%s242 + $0xd0] sm:$0xff]
      %v321 = vld [vmem:[%s242 + $0xd8] sm:$0xff]
      %v322 = vld [vmem:[%s242 + $0xe0] sm:$0xff]
      %v323 = vld [vmem:[%s242 + $0xe8] sm:$0xff]
      %v324 = vld [vmem:[%s242 + $0xf0] sm:$0xff]
      %v325 = vld [vmem:[%s242 + $0xf8] sm:$0xff]
      %v326 = vld [vmem:[%s242 + $0x100] sm:$0xff]
      %v327 = vld [vmem:[%s242 + $0x108] sm:$0xff]
      %v328 = vld [vmem:[%s242 + $0x110] sm:$0xff]
      %v329 = vld [vmem:[%s242 + $0x118] sm:$0xff]
      %v330 = vmax.f32 %v258, %v294
      %v331 = vmax.f32 %v259, %v295
      %v332 = vmax.f32 %v260, %v296
      %v333 = vmax.f32 %v261, %v297
      %v334 = vmax.f32 %v262, %v298
      %v335 = vmax.f32 %v263, %v299
      %v336 = vmax.f32 %v264, %v300
      %v337 = vmax.f32 %v265, %v301
      %v338 = vmax.f32 %v266, %v302
      %v339 = vmax.f32 %v267, %v303
      %v340 = vmax.f32 %v268, %v304
      %v341 = vmax.f32 %v269, %v305
      %v342 = vmax.f32 %v270, %v306
      %v343 = vmax.f32 %v271, %v307
      %v344 = vmax.f32 %v272, %v308
      %v345 = vmax.f32 %v273, %v309
      %v346 = vmax.f32 %v274, %v310
      %v347 = vmax.f32 %v275, %v311
      %v348 = vmax.f32 %v276, %v312
      %v349 = vmax.f32 %v277, %v313
      %v350 = vmax.f32 %v278, %v314
      %v351 = vmax.f32 %v279, %v315
      %v352 = vmax.f32 %v280, %v316
      %v353 = vmax.f32 %v281, %v317
      %v354 = vmax.f32 %v282, %v318
      %v355 = vmax.f32 %v283, %v319
      %v356 = vmax.f32 %v284, %v320
      %v357 = vmax.f32 %v285, %v321
      %v358 = vmax.f32 %v286, %v322
      %v359 = vmax.f32 %v287, %v323
      %v360 = vmax.f32 %v288, %v324
      %v361 = vmax.f32 %v289, %v325
      %v362 = vmax.f32 %v290, %v326
      %v363 = vmax.f32 %v291, %v327
      %v364 = vmax.f32 %v292, %v328
      %v365 = vmax.f32 %v293, %v329
      %v366 = vld [vmem:[%s247] sm:$0xff]
      %v367 = vld [vmem:[%s247 + $0x8] sm:$0xff]
      %v368 = vld [vmem:[%s247 + $0x10] sm:$0xff]
      %v369 = vld [vmem:[%s247 + $0x18] sm:$0xff]
      %v370 = vld [vmem:[%s247 + $0x20] sm:$0xff]
      %v371 = vld [vmem:[%s247 + $0x28] sm:$0xff]
      %v372 = vld [vmem:[%s247 + $0x30] sm:$0xff]
      %v373 = vld [vmem:[%s247 + $0x38] sm:$0xff]
      %v374 = vld [vmem:[%s247 + $0x40] sm:$0xff]
      %v375 = vld [vmem:[%s247 + $0x48] sm:$0xff]
      %v376 = vld [vmem:[%s247 + $0x50] sm:$0xff]
      %v377 = vld [vmem:[%s247 + $0x58] sm:$0xff]
      %v378 = vld [vmem:[%s247 + $0x60] sm:$0xff]
      %v379 = vld [vmem:[%s247 + $0x68] sm:$0xff]
      %v380 = vld [vmem:[%s247 + $0x70] sm:$0xff]
      %v381 = vld [vmem:[%s247 + $0x78] sm:$0xff]
      %v382 = vld [vmem:[%s247 + $0x80] sm:$0xff]
      %v383 = vld [vmem:[%s247 + $0x88] sm:$0xff]
      %v384 = vld [vmem:[%s247 + $0x90] sm:$0xff]
      %v385 = vld [vmem:[%s247 + $0x98] sm:$0xff]
      %v386 = vld [vmem:[%s247 + $0xa0] sm:$0xff]
      %v387 = vld [vmem:[%s247 + $0xa8] sm:$0xff]
      %v388 = vld [vmem:[%s247 + $0xb0] sm:$0xff]
      %v389 = vld [vmem:[%s247 + $0xb8] sm:$0xff]
      %v390 = vld [vmem:[%s247 + $0xc0] sm:$0xff]
      %v391 = vld [vmem:[%s247 + $0xc8] sm:$0xff]
      %v392 = vld [vmem:[%s247 + $0xd0] sm:$0xff]
      %v393 = vld [vmem:[%s247 + $0xd8] sm:$0xff]
      %v394 = vld [vmem:[%s247 + $0xe0] sm:$0xff]
      %v395 = vld [vmem:[%s247 + $0xe8] sm:$0xff]
      %v396 = vld [vmem:[%s247 + $0xf0] sm:$0xff]
      %v397 = vld [vmem:[%s247 + $0xf8] sm:$0xff]
      %v398 = vld [vmem:[%s247 + $0x100] sm:$0xff]
      %v399 = vld [vmem:[%s247 + $0x108] sm:$0xff]
      %v400 = vld [vmem:[%s247 + $0x110] sm:$0xff]
      %v401 = vld [vmem:[%s247 + $0x118] sm:$0xff]
      %v402 = vld [vmem:[%s252] sm:$0xff]
      %v403 = vld [vmem:[%s252 + $0x8] sm:$0xff]
      %v404 = vld [vmem:[%s252 + $0x10] sm:$0xff]
      %v405 = vld [vmem:[%s252 + $0x18] sm:$0xff]
      %v406 = vld [vmem:[%s252 + $0x20] sm:$0xff]
      %v407 = vld [vmem:[%s252 + $0x28] sm:$0xff]
      %v408 = vld [vmem:[%s252 + $0x30] sm:$0xff]
      %v409 = vld [vmem:[%s252 + $0x38] sm:$0xff]
      %v410 = vld [vmem:[%s252 + $0x40] sm:$0xff]
      %v411 = vld [vmem:[%s252 + $0x48] sm:$0xff]
      %v412 = vld [vmem:[%s252 + $0x50] sm:$0xff]
      %v413 = vld [vmem:[%s252 + $0x58] sm:$0xff]
      %v414 = vld [vmem:[%s252 + $0x60] sm:$0xff]
      %v415 = vld [vmem:[%s252 + $0x68] sm:$0xff]
      %v416 = vld [vmem:[%s252 + $0x70] sm:$0xff]
      %v417 = vld [vmem:[%s252 + $0x78] sm:$0xff]
      %v418 = vld [vmem:[%s252 + $0x80] sm:$0xff]
      %v419 = vld [vmem:[%s252 + $0x88] sm:$0xff]
      %v420 = vld [vmem:[%s252 + $0x90] sm:$0xff]
      %v421 = vld [vmem:[%s252 + $0x98] sm:$0xff]
      %v422 = vld [vmem:[%s252 + $0xa0] sm:$0xff]
      %v423 = vld [vmem:[%s252 + $0xa8] sm:$0xff]
      %v424 = vld [vmem:[%s252 + $0xb0] sm:$0xff]
      %v425 = vld [vmem:[%s252 + $0xb8] sm:$0xff]
      %v426 = vld [vmem:[%s252 + $0xc0] sm:$0xff]
      %v427 = vld [vmem:[%s252 + $0xc8] sm:$0xff]
      %v428 = vld [vmem:[%s252 + $0xd0] sm:$0xff]
      %v429 = vld [vmem:[%s252 + $0xd8] sm:$0xff]
      %v430 = vld [vmem:[%s252 + $0xe0] sm:$0xff]
      %v431 = vld [vmem:[%s252 + $0xe8] sm:$0xff]
      %v432 = vld [vmem:[%s252 + $0xf0] sm:$0xff]
      %v433 = vld [vmem:[%s252 + $0xf8] sm:$0xff]
      %v434 = vld [vmem:[%s252 + $0x100] sm:$0xff]
      %v435 = vld [vmem:[%s252 + $0x108] sm:$0xff]
      %v436 = vld [vmem:[%s252 + $0x110] sm:$0xff]
      %v437 = vld [vmem:[%s252 + $0x118] sm:$0xff]
      %v438 = vmax.f32 %v366, %v402
      %v439 = vmax.f32 %v367, %v403
      %v440 = vmax.f32 %v368, %v404
      %v441 = vmax.f32 %v369, %v405
      %v442 = vmax.f32 %v370, %v406
      %v443 = vmax.f32 %v371, %v407
      %v444 = vmax.f32 %v372, %v408
      %v445 = vmax.f32 %v373, %v409
      %v446 = vmax.f32 %v374, %v410
      %v447 = vmax.f32 %v375, %v411
      %v448 = vmax.f32 %v376, %v412
      %v449 = vmax.f32 %v377, %v413
      %v450 = vmax.f32 %v378, %v414
      %v451 = vmax.f32 %v379, %v415
      %v452 = vmax.f32 %v380, %v416
      %v453 = vmax.f32 %v381, %v417
      %v454 = vmax.f32 %v382, %v418
      %v455 = vmax.f32 %v383, %v419
      %v456 = vmax.f32 %v384, %v420
      %v457 = vmax.f32 %v385, %v421
      %v458 = vmax.f32 %v386, %v422
      %v459 = vmax.f32 %v387, %v423
      %v460 = vmax.f32 %v388, %v424
      %v461 = vmax.f32 %v389, %v425
      %v462 = vmax.f32 %v390, %v426
      %v463 = vmax.f32 %v391, %v427
      %v464 = vmax.f32 %v392, %v428
      %v465 = vmax.f32 %v393, %v429
      %v466 = vmax.f32 %v394, %v430
      %v467 = vmax.f32 %v395, %v431
      %v468 = vmax.f32 %v396, %v432
      %v469 = vmax.f32 %v397, %v433
      %v470 = vmax.f32 %v398, %v434
      %v471 = vmax.f32 %v399, %v435
      %v472 = vmax.f32 %v400, %v436
      %v473 = vmax.f32 %v401, %v437
      %v474 = vmax.f32 %v330, %v438
      %v475 = vmax.f32 %v331, %v439
      %v476 = vmax.f32 %v332, %v440
      %v477 = vmax.f32 %v333, %v441
      %v478 = vmax.f32 %v334, %v442
      %v479 = vmax.f32 %v335, %v443
      %v480 = vmax.f32 %v336, %v444
      %v481 = vmax.f32 %v337, %v445
      %v482 = vmax.f32 %v338, %v446
      %v483 = vmax.f32 %v339, %v447
      %v484 = vmax.f32 %v340, %v448
      %v485 = vmax.f32 %v341, %v449
      %v486 = vmax.f32 %v342, %v450
      %v487 = vmax.f32 %v343, %v451
      %v488 = vmax.f32 %v344, %v452
      %v489 = vmax.f32 %v345, %v453
      %v490 = vmax.f32 %v346, %v454
      %v491 = vmax.f32 %v347, %v455
      %v492 = vmax.f32 %v348, %v456
      %v493 = vmax.f32 %v349, %v457
      %v494 = vmax.f32 %v350, %v458
      %v495 = vmax.f32 %v351, %v459
      %v496 = vmax.f32 %v352, %v460
      %v497 = vmax.f32 %v353, %v461
      %v498 = vmax.f32 %v354, %v462
      %v499 = vmax.f32 %v355, %v463
      %v500 = vmax.f32 %v356, %v464
      %v501 = vmax.f32 %v357, %v465
      %v502 = vmax.f32 %v358, %v466
      %v503 = vmax.f32 %v359, %v467
      %v504 = vmax.f32 %v360, %v468
      %v505 = vmax.f32 %v361, %v469
      %v506 = vmax.f32 %v362, %v470
      %v507 = vmax.f32 %v363, %v471
      %v508 = vmax.f32 %v364, %v472
      %v509 = vmax.f32 %v365, %v473
      %510 = vst [vmem:[%s257] sm:$0xff] %v474
      %511 = vst [vmem:[%s257 + $0x8] sm:$0xff] %v475
      %512 = vst [vmem:[%s257 + $0x10] sm:$0xff] %v476
      %513 = vst [vmem:[%s257 + $0x18] sm:$0xff] %v477
      %514 = vst [vmem:[%s257 + $0x20] sm:$0xff] %v478
      %515 = vst [vmem:[%s257 + $0x28] sm:$0xff] %v479
      %516 = vst [vmem:[%s257 + $0x30] sm:$0xff] %v480
      %517 = vst [vmem:[%s257 + $0x38] sm:$0xff] %v481
      %518 = vst [vmem:[%s257 + $0x40] sm:$0xff] %v482
      %519 = vst [vmem:[%s257 + $0x48] sm:$0xff] %v483
      %520 = vst [vmem:[%s257 + $0x50] sm:$0xff] %v484
      %521 = vst [vmem:[%s257 + $0x58] sm:$0xff] %v485
      %522 = vst [vmem:[%s257 + $0x60] sm:$0xff] %v486
      %523 = vst [vmem:[%s257 + $0x68] sm:$0xff] %v487
      %524 = vst [vmem:[%s257 + $0x70] sm:$0xff] %v488
      %525 = vst [vmem:[%s257 + $0x78] sm:$0xff] %v489
      %526 = vst [vmem:[%s257 + $0x80] sm:$0xff] %v490
      %527 = vst [vmem:[%s257 + $0x88] sm:$0xff] %v491
      %528 = vst [vmem:[%s257 + $0x90] sm:$0xff] %v492
      %529 = vst [vmem:[%s257 + $0x98] sm:$0xff] %v493
      %530 = vst [vmem:[%s257 + $0xa0] sm:$0xff] %v494
      %531 = vst [vmem:[%s257 + $0xa8] sm:$0xff] %v495
      %532 = vst [vmem:[%s257 + $0xb0] sm:$0xff] %v496
      %533 = vst [vmem:[%s257 + $0xb8] sm:$0xff] %v497
      %534 = vst [vmem:[%s257 + $0xc0] sm:$0xff] %v498
      %535 = vst [vmem:[%s257 + $0xc8] sm:$0xff] %v499
      %536 = vst [vmem:[%s257 + $0xd0] sm:$0xff] %v500
      %537 = vst [vmem:[%s257 + $0xd8] sm:$0xff] %v501
      %538 = vst [vmem:[%s257 + $0xe0] sm:$0xff] %v502
      %539 = vst [vmem:[%s257 + $0xe8] sm:$0xff] %v503
      %540 = vst [vmem:[%s257 + $0xf0] sm:$0xff] %v504
      %541 = vst [vmem:[%s257 + $0xf8] sm:$0xff] %v505
      %542 = vst [vmem:[%s257 + $0x100] sm:$0xff] %v506
      %543 = vst [vmem:[%s257 + $0x108] sm:$0xff] %v507
      %544 = vst [vmem:[%s257 + $0x110] sm:$0xff] %v508
      %545 = vst [vmem:[%s257 + $0x118] sm:$0xff] %v509
      %p546 = scmp.lt.s32.totalorder %s15, 1
      %s547 = scalar_select %p546, %s15, 1
      %s548 = smul.addr %s547, 36
      %s549 = smul.addr %s548, 8
      %s550 = scalar_lea.vmem %s4, %s549
      // Predicated region
      $region37: #{feature_extractor_forward.10} parent=35 // pred_check
        %p551 = pneg %p137
      $region38: #{feature_extractor_forward.10} parent=35 // pred_check_branch
        %553 = sbr.rel (%p551) target = $region40
      $region39: #{feature_extractor_forward.10} parent=35 // pred_region
        _
      $region40: #{feature_extractor_forward.10} parent=35 // pred_fallthru
        _
    $region36: #{feature_extractor_forward.10} parent=5 // pred_fallthru
      _
    %p554 = scmp.le.s32.totalorder 2, %s10
    // Predicated region
    $region41: #{feature_extractor_forward.10} parent=5 // pred_check
      %p555 = pneg %p554
    $region42: #{feature_extractor_forward.10} parent=5 // pred_check_branch
      %557 = sbr.rel (%p555) target = $region44
    $region43: #{feature_extractor_forward.10} parent=5 // pred_region
      %s558 = ssub.s32 %s10, 2
      // Predicated region
      $region45: #{feature_extractor_forward.10} parent=43 // pred_check
        %p559 = pneg %p143
      $region46: #{feature_extractor_forward.10} parent=43 // pred_check_branch
        %561 = sbr.rel (%p559) target = $region48
      $region47: #{feature_extractor_forward.10} parent=43 // pred_region
        %p562 = scmp.lt.s32.totalorder %s16, 1
        %s563 = scalar_select %p562, %s16, 1
        %s564 = smul.addr %s563, 36
        %s565 = smul.addr %s564, 8
        %s566 = scalar_lea.vmem %s4, %s565
      $region48: #{feature_extractor_forward.10} parent=43 // pred_fallthru
        _
    $region44: #{feature_extractor_forward.10} parent=5 // pred_fallthru
      _
  $region6: #{feature_extractor_forward.10} parent=0 // loop_footer
    %s14 = sadd.s32 1, %s10
  $region7: #{feature_extractor_forward.10} parent=0 // loop_footer_branch
    %9 = sbr.rel target = $region3
  $region8: #{feature_extractor_forward.10} parent=0 // loop_exit
    _

// kernel: feature_extractor_forward.11
$region0: #{feature_extractor_forward.11}
  #allocation0 [shape = 'u32[]', space=smem, size = 0x4, offset = 0x4, fixed_abs, tag = 'smem constant byte address 0x4 - core index']
  #allocation1 [shape = 'u32[144,128]{1,0:T(1,128)}', space=vmem, size = 0x12000, scoped, tag = 'internal scratch']
  %s0 = inlined_call_operand.vmem [shape: f32[1152,576], index: 0, kind: input, shape index: {}]
  %s1 = inlined_call_operand.vmem [shape: f32[576,128], index: 1, kind: input, shape index: {}]
  %s2 = inlined_call_operand.vmem [shape: f32[1,128], index: 2, kind: input, shape index: {}]
  %s3 = inlined_call_operand.vmem [shape: f32[1152,128], index: 3, kind: output, shape index: {}]
  %s4 = sld [smem:[#allocation0]]
  $region45: #{feature_extractor_forward.11} parent=0
    _
  %s6 = ssub.s32 1, %s4
  %s7 = scalar_select 0, %s6, %s4
  loop: start=0, step=1, limit=5
  $region2: #{feature_extractor_forward.11} parent=0 // loop_pre_header
    _
  $region3: #{feature_extractor_forward.11} parent=0 // loop_header
    %s9 = sphi 0, %s13
    %p10 = scmp.ge.s32.totalorder %s9, 5
    %s19 = sphi 0, %s21
    %s22 = sphi 0, %s19
    %s23 = sphi 0, %s22
    %s39 = sphi 0, %s23
    %s43 = sphi 0, %s43
    %s45 = sphi 0, %s43
    %s46 = sphi 0, %s45
    %s60 = sphi 0, %s46
    %s64 = sphi 0, %s64
    %s66 = sphi 0, %s64
    %s67 = sphi 0, %s66
    %s81 = sphi 0, %s67
    %s87 = sphi 0, %s89
    %s90 = sphi 0, %s87
    %s91 = sphi 0, %s90
    %s107 = sphi 0, %s91
  $region4: #{feature_extractor_forward.11} parent=0 // loop_header_branch
    %12 = sbr.rel (%p10) target = $region8
  $region5: #{feature_extractor_forward.11} parent=0 // loop_body
    %s14 = ssub.s32 %s9, 1
    %s15 = ssub.s32 %s9, 2
    %s16 = sadd.s32 %s9, 1
    %s17 = ssub.s32 %s9, %s16
    %p18 = scmp.eq.s32.totalorder %s17, 0
    %s20 = sadd.s32 %s19, 1
    %s21 = scalar_select %p18, %s19, %s20
    %p24 = pneg %p18
    %p25 = scmp.eq.s32.totalorder %s9, 2
    %p26 = por %p24, %p25
    %p27 = scmp.ne.s32.totalorder %s19, %s22
    %p28 = scmp.eq.s32.totalorder %s9, 0
    %p29 = por %p27, %p28
    %p30 = scmp.ne.s32.totalorder %s19, %s22
    %p31 = scmp.eq.s32.totalorder %s14, 2
    %p32 = por %p30, %p31
    %p33 = scmp.ne.s32.totalorder %s22, %s23
    %p34 = scmp.eq.s32.totalorder %s14, 0
    %p35 = por %p33, %p34
    %p36 = scmp.ne.s32.totalorder %s22, %s23
    %p37 = scmp.eq.s32.totalorder %s15, 2
    %p38 = por %p36, %p37
    %p40 = scmp.ne.s32.totalorder %s23, %s39
    %p41 = scmp.eq.s32.totalorder %s15, 0
    %p42 = por %p40, %p41
    %s44 = sadd.s32 %s43, 1
    %p47 = scmp.eq.s32.totalorder %s9, 2
    %p48 = scmp.ne.s32.totalorder %s43, %s45
    %p49 = scmp.eq.s32.totalorder %s9, 0
    %p50 = por %p48, %p49
    %p51 = scmp.ne.s32.totalorder %s43, %s45
    %p52 = scmp.eq.s32.totalorder %s14, 2
    %p53 = por %p51, %p52
    %p54 = scmp.ne.s32.totalorder %s45, %s46
    %p55 = scmp.eq.s32.totalorder %s14, 0
    %p56 = por %p54, %p55
    %p57 = scmp.ne.s32.totalorder %s45, %s46
    %p58 = scmp.eq.s32.totalorder %s15, 2
    %p59 = por %p57, %p58
    %p61 = scmp.ne.s32.totalorder %s46, %s60
    %p62 = scmp.eq.s32.totalorder %s15, 0
    %p63 = por %p61, %p62
    %s65 = sadd.s32 %s64, 1
    %p68 = scmp.eq.s32.totalorder %s9, 2
    %p69 = scmp.ne.s32.totalorder %s64, %s66
    %p70 = scmp.eq.s32.totalorder %s9, 0
    %p71 = por %p69, %p70
    %p72 = scmp.ne.s32.totalorder %s64, %s66
    %p73 = scmp.eq.s32.totalorder %s14, 2
    %p74 = por %p72, %p73
    %p75 = scmp.ne.s32.totalorder %s66, %s67
    %p76 = scmp.eq.s32.totalorder %s14, 0
    %p77 = por %p75, %p76
    %p78 = scmp.ne.s32.totalorder %s66, %s67
    %p79 = scmp.eq.s32.totalorder %s15, 2
    %p80 = por %p78, %p79
    %p82 = scmp.ne.s32.totalorder %s67, %s81
    %p83 = scmp.eq.s32.totalorder %s15, 0
    %p84 = por %p82, %p83
    %s85 = ssub.s32 %s9, %s16
    %p86 = scmp.eq.s32.totalorder %s85, 0
    %s88 = sadd.s32 %s87, 1
    %s89 = scalar_select %p86, %s87, %s88
    %p92 = pneg %p86
    %p93 = scmp.eq.s32.totalorder %s9, 2
    %p94 = por %p92, %p93
    %p95 = scmp.ne.s32.totalorder %s87, %s90
    %p96 = scmp.eq.s32.totalorder %s9, 0
    %p97 = por %p95, %p96
    %p98 = scmp.ne.s32.totalorder %s87, %s90
    %p99 = scmp.eq.s32.totalorder %s14, 2
    %p100 = por %p98, %p99
    %p101 = scmp.ne.s32.totalorder %s90, %s91
    %p102 = scmp.eq.s32.totalorder %s14, 0
    %p103 = por %p101, %p102
    %p104 = scmp.ne.s32.totalorder %s90, %s91
    %p105 = scmp.eq.s32.totalorder %s15, 2
    %p106 = por %p104, %p105
    %p108 = scmp.ne.s32.totalorder %s91, %s107
    %p109 = scmp.eq.s32.totalorder %s15, 0
    %p110 = por %p108, %p109
    %p111 = scmp.le.s32.totalorder 1, %s9
    %p112 = scmp.lt.s32.totalorder %s9, 4
    %p113 = pnand %p111, %p112
    %p114 = pneg %p113
    // Predicated region
    $region9: #{feature_extractor_forward.11} parent=5 // pred_check
      _
    $region10: #{feature_extractor_forward.11} parent=5 // pred_check_branch
      %116 = sbr.rel (%p113) target = $region12
    $region11: #{feature_extractor_forward.11} parent=5 // pred_region
      %s117 = ssub.s32 %s9, 1
      // Predicated region
      $region13: #{feature_extractor_forward.11} parent=11 // pred_check
        %p118 = pneg %p56
      $region14: #{feature_extractor_forward.11} parent=11 // pred_check_branch
        %120 = sbr.rel (%p118) target = $region16
      $region15: #{feature_extractor_forward.11} parent=11 // pred_region
        _
      $region16: #{feature_extractor_forward.11} parent=11 // pred_fallthru
        _
      // Predicated region
      $region17: #{feature_extractor_forward.11} parent=11 // pred_check
        %p121 = pneg %p77
      $region18: #{feature_extractor_forward.11} parent=11 // pred_check_branch
        %123 = sbr.rel (%p121) target = $region20
      $region19: #{feature_extractor_forward.11} parent=11 // pred_region
        _
      $region20: #{feature_extractor_forward.11} parent=11 // pred_fallthru
        _
    $region12: #{feature_extractor_forward.11} parent=5 // pred_fallthru
      _
    %p124 = scmp.lt.s32.totalorder %s9, 3
    // Predicated region
    $region21: #{feature_extractor_forward.11} parent=5 // pred_check
      %p125 = pneg %p124
    $region22: #{feature_extractor_forward.11} parent=5 // pred_check_branch
      %127 = sbr.rel (%p125) target = $region24
    $region23: #{feature_extractor_forward.11} parent=5 // pred_region
      // Predicated region
      $region25: #{feature_extractor_forward.11} parent=23 // pred_check
        %p128 = pneg %p29
      $region26: #{feature_extractor_forward.11} parent=23 // pred_check_branch
        %130 = sbr.rel (%p128) target = $region28
      $region27: #{feature_extractor_forward.11} parent=23 // pred_region
        %s131 = smul.u32 48, %s9
        %p132 = scmp.lt.s32.totalorder %s131, 143
        %s133 = scalar_select %p132, %s131, 143
        %s134 = smul.addr %s133, 5
        %s135 = smul.addr %s134, 8
        %s136 = scalar_lea.vmem %s0, %s135
        %s137 = smul.u32 48, %s9
      $region28: #{feature_extractor_forward.11} parent=23 // pred_fallthru
        _
    $region24: #{feature_extractor_forward.11} parent=5 // pred_fallthru
      _
    %p138 = scmp.le.s32.totalorder 1, %s9
    %p139 = scmp.lt.s32.totalorder %s9, 4
    %p140 = pnand %p138, %p139
    %p141 = pneg %p140
    // Predicated region
    $region29: #{feature_extractor_forward.11} parent=5 // pred_check
      _
    $region30: #{feature_extractor_forward.11} parent=5 // pred_check_branch
      %143 = sbr.rel (%p140) target = $region32
    $region31: #{feature_extractor_forward.11} parent=5 // pred_region
      %s144 = ssub.s32 %s9, 1
      %s145 = smul.u32 48, %s14
      %p146 = scmp.lt.s32.totalorder %s145, 143
      %s147 = scalar_select %p146, %s145, 143
      %s148 = smul.addr %s147, 5
      %s149 = smul.addr %s148, 8
      %s150 = scalar_lea.vmem %s0, %s149
      %p151 = pneg %p35
      %p152 = pneg %p32
      %p153 = pneg %p56
      %p154 = pneg %p53
      %p155 = pneg %p77
      %p156 = pneg %p74
      %p157 = pneg %p103
      %p158 = pneg %p100
      %s159 = smul.u32 48, %s14
      %p160 = scmp.lt.s32.totalorder %s159, 143
      %s161 = scalar_select %p160, %s159, 143
      %s162 = smul.addr %s161, 8
      %s163 = scalar_lea.vmem %s3, %s162
      %s164 = smul.u32 48, %s14
      %p165 = scmp.lt.s32.totalorder %s164, 143
      %s166 = scalar_select %p165, %s164, 143
      %s167 = smul.addr %s166, 5
      %s168 = smul.addr %s167, 8
      %s169 = scalar_lea.vmem %s0, %s168
      %s170 = smul.u32 48, %s14
      %s171 = smul.u32 48, %s14
      %p172 = scmp.lt.s32.totalorder %s171, 143
      %s173 = scalar_select %p172, %s171, 143
      %s174 = smul.addr %s173, 8
      %s175 = scalar_lea.vmem %s3, %s174
      %s176 = smul.u32 48, %s14
      %v177 = vld [vmem:[%s169] sm:$0xff]
      %v178 = vld [vmem:[%s169 + $0x8] sm:$0xff]
      %v179 = vld [vmem:[%s169 + $0x10] sm:$0xff]
      %v180 = vld [vmem:[%s169 + $0x18] sm:$0xff]
      %v181 = vld [vmem:[%s169 + $0x20] sm:$0xff]
      %v182 = vld [vmem:[%s169 + $0x28] sm:$0xff]
      %v183 = vld [vmem:[%s169 + $0x30] sm:$0xff]
      %v184 = vld [vmem:[%s169 + $0x38] sm:$0xff]
      %v185 = vld [vmem:[%s169 + $0x40] sm:$0xff]
      %v186 = vld [vmem:[%s169 + $0x48] sm:$0xff]
      %v187 = vld [vmem:[%s169 + $0x50] sm:$0xff]
      %v188 = vld [vmem:[%s169 + $0x58] sm:$0xff]
      %v189 = vld [vmem:[%s169 + $0x60] sm:$0xff]
      %v190 = vld [vmem:[%s169 + $0x68] sm:$0xff]
      %v191 = vld [vmem:[%s169 + $0x70] sm:$0xff]
      %v192 = vld [vmem:[%s169 + $0x78] sm:$0xff]
      %v193 = vld [vmem:[%s169 + $0x80] sm:$0xff]
      %v194 = vld [vmem:[%s169 + $0x88] sm:$0xff]
      %v195 = vld [vmem:[%s169 + $0x90] sm:$0xff]
      %v196 = vld [vmem:[%s169 + $0x98] sm:$0xff]
      %v197 = vld [vmem:[%s169 + $0xa0] sm:$0xff]
      %v198 = vld [vmem:[%s169 + $0xa8] sm:$0xff]
      %v199 = vld [vmem:[%s169 + $0xb0] sm:$0xff]
      %v200 = vld [vmem:[%s169 + $0xb8] sm:$0xff]
      %v201 = vld [vmem:[%s169 + $0xc0] sm:$0xff]
      %v202 = vld [vmem:[%s169 + $0xc8] sm:$0xff]
      %v203 = vld [vmem:[%s169 + $0xd0] sm:$0xff]
      %v204 = vld [vmem:[%s169 + $0xd8] sm:$0xff]
      %v205 = vld [vmem:[%s169 + $0xe0] sm:$0xff]
      %v206 = vld [vmem:[%s169 + $0xe8] sm:$0xff]
      %v207 = vld [vmem:[%s169 + $0xf0] sm:$0xff]
      %v208 = vld [vmem:[%s169 + $0xf8] sm:$0xff]
      %v209 = vld [vmem:[%s169 + $0x100] sm:$0xff]
      %v210 = vld [vmem:[%s169 + $0x108] sm:$0xff]
      %v211 = vld [vmem:[%s169 + $0x110] sm:$0xff]
      %v212 = vld [vmem:[%s169 + $0x118] sm:$0xff]
      %v213 = vld [vmem:[%s169 + $0x120] sm:$0xff]
      %v214 = vld [vmem:[%s169 + $0x128] sm:$0xff]
      %v215 = vld [vmem:[%s169 + $0x130] sm:$0xff]
      %v216 = vld [vmem:[%s169 + $0x138] sm:$0xff]
      %v217 = vld [vmem:[%s169 + $0x140] sm:$0xff]
      %v218 = vld [vmem:[%s169 + $0x148] sm:$0xff]
      %v219 = vld [vmem:[%s169 + $0x150] sm:$0xff]
      %v220 = vld [vmem:[%s169 + $0x158] sm:$0xff]
      %v221 = vld [vmem:[%s169 + $0x160] sm:$0xff]
      %v222 = vld [vmem:[%s169 + $0x168] sm:$0xff]
      %v223 = vld [vmem:[%s169 + $0x170] sm:$0xff]
      %v224 = vld [vmem:[%s169 + $0x178] sm:$0xff]
      %v225 = vld [vmem:[%s169 + $0x180] sm:$0xff]
      %v226 = vld [vmem:[%s169 + $0x188] sm:$0xff]
      %v227 = vld [vmem:[%s169 + $0x190] sm:$0xff]
      %v228 = vld [vmem:[%s169 + $0x198] sm:$0xff]
      %v229 = vld [vmem:[%s169 + $0x1a0] sm:$0xff]
      %v230 = vld [vmem:[%s169 + $0x1a8] sm:$0xff]
      %v231 = vld [vmem:[%s169 + $0x1b0] sm:$0xff]
      %v232 = vld [vmem:[%s169 + $0x1b8] sm:$0xff]
      %v233 = vld [vmem:[%s169 + $0x1c0] sm:$0xff]
      %v234 = vld [vmem:[%s169 + $0x1c8] sm:$0xff]
      %v235 = vld [vmem:[%s169 + $0x1d0] sm:$0xff]
      %v236 = vld [vmem:[%s169 + $0x1d8] sm:$0xff]
      %v237 = vld [vmem:[%s169 + $0x1e0] sm:$0xff]
      %v238 = vld [vmem:[%s169 + $0x1e8] sm:$0xff]
      %v239 = vld [vmem:[%s169 + $0x1f0] sm:$0xff]
      %v240 = vld [vmem:[%s169 + $0x1f8] sm:$0xff]
      %v241 = vld [vmem:[%s169 + $0x200] sm:$0xff]
      %v242 = vld [vmem:[%s169 + $0x208] sm:$0xff]
      %v243 = vld [vmem:[%s169 + $0x210] sm:$0xff]
      %v244 = vld [vmem:[%s169 + $0x218] sm:$0xff]
      %v245 = vld [vmem:[%s169 + $0x220] sm:$0xff]
      %v246 = vld [vmem:[%s169 + $0x228] sm:$0xff]
      %v247 = vld [vmem:[%s169 + $0x230] sm:$0xff]
      %v248 = vld [vmem:[%s169 + $0x238] sm:$0xff]
      %v249 = vld [vmem:[%s169 + $0x240] sm:$0xff]
      %v250 = vld [vmem:[%s169 + $0x248] sm:$0xff]
      %v251 = vld [vmem:[%s169 + $0x250] sm:$0xff]
      %v252 = vld [vmem:[%s169 + $0x258] sm:$0xff]
      %v253 = vld [vmem:[%s169 + $0x260] sm:$0xff]
      %v254 = vld [vmem:[%s169 + $0x268] sm:$0xff]
      %v255 = vld [vmem:[%s169 + $0x270] sm:$0xff]
      %v256 = vld [vmem:[%s169 + $0x278] sm:$0xff]
      %v257 = vld [vmem:[%s169 + $0x280] sm:$0xff]
      %v258 = vld [vmem:[%s169 + $0x288] sm:$0xff]
      %v259 = vld [vmem:[%s169 + $0x290] sm:$0xff]
      %v260 = vld [vmem:[%s169 + $0x298] sm:$0xff]
      %v261 = vld [vmem:[%s169 + $0x2a0] sm:$0xff]
      %v262 = vld [vmem:[%s169 + $0x2a8] sm:$0xff]
      %v263 = vld [vmem:[%s169 + $0x2b0] sm:$0xff]
      %v264 = vld [vmem:[%s169 + $0x2b8] sm:$0xff]
      %v265 = vld [vmem:[%s169 + $0x2c0] sm:$0xff]
      %v266 = vld [vmem:[%s169 + $0x2c8] sm:$0xff]
      %v267 = vld [vmem:[%s169 + $0x2d0] sm:$0xff]
      %v268 = vld [vmem:[%s169 + $0x2d8] sm:$0xff]
      %v269 = vld [vmem:[%s169 + $0x2e0] sm:$0xff]
      %v270 = vld [vmem:[%s169 + $0x2e8] sm:$0xff]
      %v271 = vld [vmem:[%s169 + $0x2f0] sm:$0xff]
      %v272 = vld [vmem:[%s169 + $0x2f8] sm:$0xff]
      %v273 = vld [vmem:[%s169 + $0x300] sm:$0xff]
      %v274 = vld [vmem:[%s169 + $0x308] sm:$0xff]
      %v275 = vld [vmem:[%s169 + $0x310] sm:$0xff]
      %v276 = vld [vmem:[%s169 + $0x318] sm:$0xff]
      %v277 = vld [vmem:[%s169 + $0x320] sm:$0xff]
      %v278 = vld [vmem:[%s169 + $0x328] sm:$0xff]
      %v279 = vld [vmem:[%s169 + $0x330] sm:$0xff]
      %v280 = vld [vmem:[%s169 + $0x338] sm:$0xff]
      %v281 = vld [vmem:[%s169 + $0x340] sm:$0xff]
      %v282 = vld [vmem:[%s169 + $0x348] sm:$0xff]
      %v283 = vld [vmem:[%s169 + $0x350] sm:$0xff]
      %v284 = vld [vmem:[%s169 + $0x358] sm:$0xff]
      %v285 = vld [vmem:[%s169 + $0x360] sm:$0xff]
      %v286 = vld [vmem:[%s169 + $0x368] sm:$0xff]
      %v287 = vld [vmem:[%s169 + $0x370] sm:$0xff]
      %v288 = vld [vmem:[%s169 + $0x378] sm:$0xff]
      %v289 = vld [vmem:[%s169 + $0x380] sm:$0xff]
      %v290 = vld [vmem:[%s169 + $0x388] sm:$0xff]
      %v291 = vld [vmem:[%s169 + $0x390] sm:$0xff]
      %v292 = vld [vmem:[%s169 + $0x398] sm:$0xff]
      %v293 = vld [vmem:[%s169 + $0x3a0] sm:$0xff]
      %v294 = vld [vmem:[%s169 + $0x3a8] sm:$0xff]
      %v295 = vld [vmem:[%s169 + $0x3b0] sm:$0xff]
      %v296 = vld [vmem:[%s169 + $0x3b8] sm:$0xff]
      %v297 = vld [vmem:[%s169 + $0x3c0] sm:$0xff]
      %v298 = vld [vmem:[%s169 + $0x3c8] sm:$0xff]
      %v299 = vld [vmem:[%s169 + $0x3d0] sm:$0xff]
      %v300 = vld [vmem:[%s169 + $0x3d8] sm:$0xff]
      %v301 = vld [vmem:[%s169 + $0x3e0] sm:$0xff]
      %v302 = vld [vmem:[%s169 + $0x3e8] sm:$0xff]
      %v303 = vld [vmem:[%s169 + $0x3f0] sm:$0xff]
      %v304 = vld [vmem:[%s169 + $0x3f8] sm:$0xff]
      %v305 = vld [vmem:[%s169 + $0x400] sm:$0xff]
      %v306 = vld [vmem:[%s169 + $0x408] sm:$0xff]
      %v307 = vld [vmem:[%s169 + $0x410] sm:$0xff]
      %v308 = vld [vmem:[%s169 + $0x418] sm:$0xff]
      %v309 = vld [vmem:[%s169 + $0x420] sm:$0xff]
      %v310 = vld [vmem:[%s169 + $0x428] sm:$0xff]
      %v311 = vld [vmem:[%s169 + $0x430] sm:$0xff]
      %v312 = vld [vmem:[%s169 + $0x438] sm:$0xff]
      %v313 = vld [vmem:[%s169 + $0x440] sm:$0xff]
      %v314 = vld [vmem:[%s169 + $0x448] sm:$0xff]
      %v315 = vld [vmem:[%s169 + $0x450] sm:$0xff]
      %v316 = vld [vmem:[%s169 + $0x458] sm:$0xff]
      %v317 = vld [vmem:[%s169 + $0x460] sm:$0xff]
      %v318 = vld [vmem:[%s169 + $0x468] sm:$0xff]
      %v319 = vld [vmem:[%s169 + $0x470] sm:$0xff]
      %v320 = vld [vmem:[%s169 + $0x478] sm:$0xff]
      %v321 = vld [vmem:[%s169 + $0x480] sm:$0xff]
      %v322 = vld [vmem:[%s169 + $0x488] sm:$0xff]
      %v323 = vld [vmem:[%s169 + $0x490] sm:$0xff]
      %v324 = vld [vmem:[%s169 + $0x498] sm:$0xff]
      %v325 = vld [vmem:[%s169 + $0x4a0] sm:$0xff]
      %v326 = vld [vmem:[%s169 + $0x4a8] sm:$0xff]
      %v327 = vld [vmem:[%s169 + $0x4b0] sm:$0xff]
      %v328 = vld [vmem:[%s169 + $0x4b8] sm:$0xff]
      %v329 = vld [vmem:[%s169 + $0x4c0] sm:$0xff]
      %v330 = vld [vmem:[%s169 + $0x4c8] sm:$0xff]
      %v331 = vld [vmem:[%s169 + $0x4d0] sm:$0xff]
      %v332 = vld [vmem:[%s169 + $0x4d8] sm:$0xff]
      %v333 = vld [vmem:[%s169 + $0x4e0] sm:$0xff]
      %v334 = vld [vmem:[%s169 + $0x4e8] sm:$0xff]
      %v335 = vld [vmem:[%s169 + $0x4f0] sm:$0xff]
      %v336 = vld [vmem:[%s169 + $0x4f8] sm:$0xff]
      %v337 = vld [vmem:[%s169 + $0x500] sm:$0xff]
      %v338 = vld [vmem:[%s169 + $0x508] sm:$0xff]
      %v339 = vld [vmem:[%s169 + $0x510] sm:$0xff]
      %v340 = vld [vmem:[%s169 + $0x518] sm:$0xff]
      %v341 = vld [vmem:[%s169 + $0x520] sm:$0xff]
      %v342 = vld [vmem:[%s169 + $0x528] sm:$0xff]
      %v343 = vld [vmem:[%s169 + $0x530] sm:$0xff]
      %v344 = vld [vmem:[%s169 + $0x538] sm:$0xff]
      %v345 = vld [vmem:[%s169 + $0x540] sm:$0xff]
      %v346 = vld [vmem:[%s169 + $0x548] sm:$0xff]
      %v347 = vld [vmem:[%s169 + $0x550] sm:$0xff]
      %v348 = vld [vmem:[%s169 + $0x558] sm:$0xff]
      %v349 = vld [vmem:[%s169 + $0x560] sm:$0xff]
      %v350 = vld [vmem:[%s169 + $0x568] sm:$0xff]
      %v351 = vld [vmem:[%s169 + $0x570] sm:$0xff]
      %v352 = vld [vmem:[%s169 + $0x578] sm:$0xff]
      %v353 = vld [vmem:[%s169 + $0x580] sm:$0xff]
      %v354 = vld [vmem:[%s169 + $0x588] sm:$0xff]
      %v355 = vld [vmem:[%s169 + $0x590] sm:$0xff]
      %v356 = vld [vmem:[%s169 + $0x598] sm:$0xff]
      %v357 = vld [vmem:[%s169 + $0x5a0] sm:$0xff]
      %v358 = vld [vmem:[%s169 + $0x5a8] sm:$0xff]
      %v359 = vld [vmem:[%s169 + $0x5b0] sm:$0xff]
      %v360 = vld [vmem:[%s169 + $0x5b8] sm:$0xff]
      %v361 = vld [vmem:[%s169 + $0x5c0] sm:$0xff]
      %v362 = vld [vmem:[%s169 + $0x5c8] sm:$0xff]
      %v363 = vld [vmem:[%s169 + $0x5d0] sm:$0xff]
      %v364 = vld [vmem:[%s169 + $0x5d8] sm:$0xff]
      %v365 = vld [vmem:[%s169 + $0x5e0] sm:$0xff]
      %v366 = vld [vmem:[%s169 + $0x5e8] sm:$0xff]
      %v367 = vld [vmem:[%s169 + $0x5f0] sm:$0xff]
      %v368 = vld [vmem:[%s169 + $0x5f8] sm:$0xff]
      %v369 = vld [vmem:[%s169 + $0x600] sm:$0xff]
      %v370 = vld [vmem:[%s169 + $0x608] sm:$0xff]
      %v371 = vld [vmem:[%s169 + $0x610] sm:$0xff]
      %v372 = vld [vmem:[%s169 + $0x618] sm:$0xff]
      %v373 = vld [vmem:[%s169 + $0x620] sm:$0xff]
      %v374 = vld [vmem:[%s169 + $0x628] sm:$0xff]
      %v375 = vld [vmem:[%s169 + $0x630] sm:$0xff]
      %v376 = vld [vmem:[%s169 + $0x638] sm:$0xff]
      %v377 = vld [vmem:[%s169 + $0x640] sm:$0xff]
      %v378 = vld [vmem:[%s169 + $0x648] sm:$0xff]
      %v379 = vld [vmem:[%s169 + $0x650] sm:$0xff]
      %v380 = vld [vmem:[%s169 + $0x658] sm:$0xff]
      %v381 = vld [vmem:[%s169 + $0x660] sm:$0xff]
      %v382 = vld [vmem:[%s169 + $0x668] sm:$0xff]
      %v383 = vld [vmem:[%s169 + $0x670] sm:$0xff]
      %v384 = vld [vmem:[%s169 + $0x678] sm:$0xff]
      %v385 = vld [vmem:[%s169 + $0x680] sm:$0xff]
      %v386 = vld [vmem:[%s169 + $0x688] sm:$0xff]
      %v387 = vld [vmem:[%s169 + $0x690] sm:$0xff]
      %v388 = vld [vmem:[%s169 + $0x698] sm:$0xff]
      %v389 = vld [vmem:[%s169 + $0x6a0] sm:$0xff]
      %v390 = vld [vmem:[%s169 + $0x6a8] sm:$0xff]
      %v391 = vld [vmem:[%s169 + $0x6b0] sm:$0xff]
      %v392 = vld [vmem:[%s169 + $0x6b8] sm:$0xff]
      %v393 = vld [vmem:[%s169 + $0x6c0] sm:$0xff]
      %v394 = vld [vmem:[%s169 + $0x6c8] sm:$0xff]
      %v395 = vld [vmem:[%s169 + $0x6d0] sm:$0xff]
      %v396 = vld [vmem:[%s169 + $0x6d8] sm:$0xff]
      %v397 = vld [vmem:[%s169 + $0x6e0] sm:$0xff]
      %v398 = vld [vmem:[%s169 + $0x6e8] sm:$0xff]
      %v399 = vld [vmem:[%s169 + $0x6f0] sm:$0xff]
      %v400 = vld [vmem:[%s169 + $0x6f8] sm:$0xff]
      %v401 = vld [vmem:[%s169 + $0x700] sm:$0xff]
      %v402 = vld [vmem:[%s169 + $0x708] sm:$0xff]
      %v403 = vld [vmem:[%s169 + $0x710] sm:$0xff]
      %v404 = vld [vmem:[%s169 + $0x718] sm:$0xff]
      %v405 = vld [vmem:[%s169 + $0x720] sm:$0xff]
      %v406 = vld [vmem:[%s169 + $0x728] sm:$0xff]
      %v407 = vld [vmem:[%s169 + $0x730] sm:$0xff]
      %v408 = vld [vmem:[%s169 + $0x738] sm:$0xff]
      %v409 = vld [vmem:[%s169 + $0x740] sm:$0xff]
      %v410 = vld [vmem:[%s169 + $0x748] sm:$0xff]
      %v411 = vld [vmem:[%s169 + $0x750] sm:$0xff]
      %v412 = vld [vmem:[%s169 + $0x758] sm:$0xff]
      %v413 = vld [vmem:[%s169 + $0x760] sm:$0xff]
      %v414 = vld [vmem:[%s169 + $0x768] sm:$0xff]
      %v415 = vld [vmem:[%s169 + $0x770] sm:$0xff]
      %v416 = vld [vmem:[%s169 + $0x778] sm:$0xff]
      %v417 = vld [vmem:[%s1] sm:$0xff]
      %v418 = vld [vmem:[%s1 + $0x8] sm:$0xff]
      %v419 = vld [vmem:[%s1 + $0x10] sm:$0xff]
      %v420 = vld [vmem:[%s1 + $0x18] sm:$0xff]
      %v421 = vld [vmem:[%s1 + $0x20] sm:$0xff]
      %v422 = vld [vmem:[%s1 + $0x28] sm:$0xff]
      %v423 = vld [vmem:[%s1 + $0x30] sm:$0xff]
      %v424 = vld [vmem:[%s1 + $0x38] sm:$0xff]
      %v425 = vld [vmem:[%s1 + $0x40] sm:$0xff]
      %v426 = vld [vmem:[%s1 + $0x48] sm:$0xff]
      %v427 = vld [vmem:[%s1 + $0x50] sm:$0xff]
      %v428 = vld [vmem:[%s1 + $0x58] sm:$0xff]
      %v429 = vld [vmem:[%s1 + $0x60] sm:$0xff]
      %v430 = vld [vmem:[%s1 + $0x68] sm:$0xff]
      %v431 = vld [vmem:[%s1 + $0x70] sm:$0xff]
      %v432 = vld [vmem:[%s1 + $0x78] sm:$0xff]
      %v433 = vld [vmem:[%s1 + $0x80] sm:$0xff]
      %v434 = vld [vmem:[%s1 + $0x88] sm:$0xff]
      %v435 = vld [vmem:[%s1 + $0x90] sm:$0xff]
      %v436 = vld [vmem:[%s1 + $0x98] sm:$0xff]
      %v437 = vld [vmem:[%s1 + $0xa0] sm:$0xff]
      %v438 = vld [vmem:[%s1 + $0xa8] sm:$0xff]
      %v439 = vld [vmem:[%s1 + $0xb0] sm:$0xff]
      %v440 = vld [vmem:[%s1 + $0xb8] sm:$0xff]
      %v441 = vld [vmem:[%s1 + $0xc0] sm:$0xff]
      %v442 = vld [vmem:[%s1 + $0xc8] sm:$0xff]
      %v443 = vld [vmem:[%s1 + $0xd0] sm:$0xff]
      %v444 = vld [vmem:[%s1 + $0xd8] sm:$0xff]
      %v445 = vld [vmem:[%s1 + $0xe0] sm:$0xff]
      %v446 = vld [vmem:[%s1 + $0xe8] sm:$0xff]
      %v447 = vld [vmem:[%s1 + $0xf0] sm:$0xff]
      %v448 = vld [vmem:[%s1 + $0xf8] sm:$0xff]
      %v449 = vld [vmem:[%s1 + $0x100] sm:$0xff]
      %v450 = vld [vmem:[%s1 + $0x108] sm:$0xff]
      %v451 = vld [vmem:[%s1 + $0x110] sm:$0xff]
      %v452 = vld [vmem:[%s1 + $0x118] sm:$0xff]
      %v453 = vld [vmem:[%s1 + $0x120] sm:$0xff]
      %v454 = vld [vmem:[%s1 + $0x128] sm:$0xff]
      %v455 = vld [vmem:[%s1 + $0x130] sm:$0xff]
      %v456 = vld [vmem:[%s1 + $0x138] sm:$0xff]
      %v457 = vld [vmem:[%s1 + $0x140] sm:$0xff]
      %v458 = vld [vmem:[%s1 + $0x148] sm:$0xff]
      %v459 = vld [vmem:[%s1 + $0x150] sm:$0xff]
      %v460 = vld [vmem:[%s1 + $0x158] sm:$0xff]
      %v461 = vld [vmem:[%s1 + $0x160] sm:$0xff]
      %v462 = vld [vmem:[%s1 + $0x168] sm:$0xff]
      %v463 = vld [vmem:[%s1 + $0x170] sm:$0xff]
      %v464 = vld [vmem:[%s1 + $0x178] sm:$0xff]
      %v465 = vld [vmem:[%s1 + $0x180] sm:$0xff]
      %v466 = vld [vmem:[%s1 + $0x188] sm:$0xff]
      %v467 = vld [vmem:[%s1 + $0x190] sm:$0xff]
      %v468 = vld [vmem:[%s1 + $0x198] sm:$0xff]
      %v469 = vld [vmem:[%s1 + $0x1a0] sm:$0xff]
      %v470 = vld [vmem:[%s1 + $0x1a8] sm:$0xff]
      %v471 = vld [vmem:[%s1 + $0x1b0] sm:$0xff]
      %v472 = vld [vmem:[%s1 + $0x1b8] sm:$0xff]
      %v473 = vld [vmem:[%s1 + $0x1c0] sm:$0xff]
      %v474 = vld [vmem:[%s1 + $0x1c8] sm:$0xff]
      %v475 = vld [vmem:[%s1 + $0x1d0] sm:$0xff]
      %v476 = vld [vmem:[%s1 + $0x1d8] sm:$0xff]
      %v477 = vld [vmem:[%s1 + $0x1e0] sm:$0xff]
      %v478 = vld [vmem:[%s1 + $0x1e8] sm:$0xff]
      %v479 = vld [vmem:[%s1 + $0x1f0] sm:$0xff]
      %v480 = vld [vmem:[%s1 + $0x1f8] sm:$0xff]
      %v481 = vld [vmem:[%s1 + $0x200] sm:$0xff]
      %v482 = vld [vmem:[%s1 + $0x208] sm:$0xff]
      %v483 = vld [vmem:[%s1 + $0x210] sm:$0xff]
      %v484 = vld [vmem:[%s1 + $0x218] sm:$0xff]
      %v485 = vld [vmem:[%s1 + $0x220] sm:$0xff]
      %v486 = vld [vmem:[%s1 + $0x228] sm:$0xff]
      %v487 = vld [vmem:[%s1 + $0x230] sm:$0xff]
      %v488 = vld [vmem:[%s1 + $0x238] sm:$0xff]
      %v489 = vld [vmem:[%s2] sm:$0x1]
      %v491 = vlaneseq
      %v492 = vshrl.u32 %v491, 7
      %v493 = vsub.s32 0, %v492
      %v494 = vrot.slane %v489, %v493
      %vm496 = vcmask 523264
      %v498 = vsel %vm496, %v181, 0
      %v501 = vsel %vm496, %v186, 0
      %v504 = vsel %vm496, %v191, 0
      %v507 = vsel %vm496, %v196, 0
      %v510 = vsel %vm496, %v201, 0
      %v513 = vsel %vm496, %v206, 0
      %v516 = vsel %vm496, %v211, 0
      %v519 = vsel %vm496, %v216, 0
      %v522 = vsel %vm496, %v221, 0
      %v525 = vsel %vm496, %v226, 0
      %v528 = vsel %vm496, %v231, 0
      %v531 = vsel %vm496, %v236, 0
      %v534 = vsel %vm496, %v241, 0
      %v537 = vsel %vm496, %v246, 0
      %v540 = vsel %vm496, %v251, 0
      %v543 = vsel %vm496, %v256, 0
      %v546 = vsel %vm496, %v261, 0
      %v549 = vsel %vm496, %v266, 0
      %v552 = vsel %vm496, %v271, 0
      %v555 = vsel %vm496, %v276, 0
      %v558 = vsel %vm496, %v281, 0
      %v561 = vsel %vm496, %v286, 0
      %v564 = vsel %vm496, %v291, 0
      %v567 = vsel %vm496, %v296, 0
      %v570 = vsel %vm496, %v301, 0
      %v573 = vsel %vm496, %v306, 0
      %v576 = vsel %vm496, %v311, 0
      %v579 = vsel %vm496, %v316, 0
      %v582 = vsel %vm496, %v321, 0
      %v585 = vsel %vm496, %v326, 0
      %v588 = vsel %vm496, %v331, 0
      %v591 = vsel %vm496, %v336, 0
      %v594 = vsel %vm496, %v341, 0
      %v597 = vsel %vm496, %v346, 0
      %v600 = vsel %vm496, %v351, 0
      %v603 = vsel %vm496, %v356, 0
      %v606 = vsel %vm496, %v361, 0
      %v609 = vsel %vm496, %v366, 0
      %v612 = vsel %vm496, %v371, 0
      %v615 = vsel %vm496, %v376, 0
      %v618 = vsel %vm496, %v381, 0
      %v621 = vsel %vm496, %v386, 0
      %v624 = vsel %vm496, %v391, 0
      %v627 = vsel %vm496, %v396, 0
      %v630 = vsel %vm496, %v401, 0
      %v633 = vsel %vm496, %v406, 0
      %v636 = vsel %vm496, %v411, 0
      %v639 = vsel %vm496, %v416, 0
      %641 = vmatprep.subr.mxu0 0.0
      %642 = vmatpush1.msra.mxu0 %v417
      %643 = vmatprep.subr.mxu0 0.0
      %644 = vmatpush1.msra.mxu0 %v418
      %645 = vmatprep.subr.mxu0 0.0
      %646 = vmatpush1.msra.mxu0 %v419
      %647 = vmatprep.subr.mxu0 0.0
      %648 = vmatpush1.msra.mxu0 %v420
      %649 = vmatprep.subr.mxu0 0.0
      %650 = vmatpush1.msra.mxu0 %v421
      %651 = vmatprep.subr.mxu0 0.0
      %652 = vmatpush1.msra.mxu0 %v422
      %653 = vmatprep.subr.mxu0 0.0
      %654 = vmatpush1.msra.mxu0 %v423
      %655 = vmatprep.subr.mxu0 0.0
      %656 = vmatpush1.msra.mxu0 %v424
      %657 = vmatprep.subr.mxu0 0.0
      %658 = vmatpush1.msra.mxu0 %v425
      %659 = vmatprep.subr.mxu0 0.0
      %660 = vmatpush1.msra.mxu0 %v426
      %661 = vmatprep.subr.mxu0 0.0
      %662 = vmatpush1.msra.mxu0 %v427
      %663 = vmatprep.subr.mxu0 0.0
      %664 = vmatpush1.msra.mxu0 %v428
      %665 = vmatprep.subr.mxu0 0.0
      %666 = vmatpush1.msra.mxu0 %v429
      %667 = vmatprep.subr.mxu0 0.0
      %668 = vmatpush1.msra.mxu0 %v430
      %669 = vmatprep.subr.mxu0 0.0
      %670 = vmatpush1.msra.mxu0 %v431
      %671 = vmatprep.subr.mxu0 0.0
      %672 = vmatpush1.msra.mxu0 %v432
      %673 = vmatprep.subr.mxu0 0.0
      %674 = vmatpush1.msra.mxu0 %v433
      %675 = vmatprep.subr.mxu0 0.0
      %676 = vmatpush1.msra.mxu0 %v434
      %677 = vmatprep.subr.mxu0 0.0
      %678 = vmatpush1.msra.mxu0 %v435
      %679 = vmatprep.subr.mxu0 0.0
      %680 = vmatpush1.msra.mxu0 %v436
      %681 = vmatprep.subr.mxu0 0.0
      %682 = vmatpush1.msra.mxu0 %v437
      %683 = vmatprep.subr.mxu0 0.0
      %684 = vmatpush1.msra.mxu0 %v438
      %685 = vmatprep.subr.mxu0 0.0
      %686 = vmatpush1.msra.mxu0 %v439
      %687 = vmatprep.subr.mxu0 0.0
      %688 = vmatpush1.msra.mxu0 %v440
      %689 = vmatprep.subr.mxu0 0.0
      %690 = vmatpush1.msra.mxu0 %v441
      %691 = vmatprep.subr.mxu0 0.0
      %692 = vmatpush1.msra.mxu0 %v442
      %693 = vmatprep.subr.mxu0 0.0
      %694 = vmatpush1.msra.mxu0 %v443
      %695 = vmatprep.subr.mxu0 0.0
      %696 = vmatpush1.msra.mxu0 %v444
      %697 = vmatprep.subr.mxu0 0.0
      %698 = vmatpush1.msra.mxu0 %v445
      %699 = vmatprep.subr.mxu0 0.0
      %700 = vmatpush1.msra.mxu0 %v446
      %701 = vmatprep.subr.mxu0 0.0
      %702 = vmatpush1.msra.mxu0 %v447
      %703 = vmatprep.subr.mxu0 0.0
      %704 = vmatpush1.msra.mxu0 %v448
      %705 = vmatprep.mubr.f32.mxu0 %v178
      %706 = vmatmul.mubr.f32.gmra.mrb[0].mxu0 %v177
      %v707 = vpop.f32.mrb[0].mxu0
      %v708 = vadd.f32 %v494, %v707
      %v709 = vpop.f32.mrb[0].mxu0
      %710 = vmatprep.mubr.f32.mxu0 %v183
      %711 = vmatmul.mubr.f32.gmra.mrb[0].mxu0 %v182
      %v712 = vpop.f32.mrb[0].mxu0
      %v713 = vadd.f32 %v494, %v712
      %v714 = vpop.f32.mrb[0].mxu0
      %715 = vmatprep.mubr.f32.mxu0 %v188
      %716 = vmatmul.mubr.f32.gmra.mrb[0].mxu0 %v187
      %v717 = vpop.f32.mrb[0].mxu0
      %v718 = vadd.f32 %v494, %v717
      %v719 = vpop.f32.mrb[0].mxu0
      %720 = vmatprep.mubr.f32.mxu0 %v193
      %721 = vmatmul.mubr.f32.gmra.mrb[0].mxu0 %v192
      %v722 = vpop.f32.mrb[0].mxu0
      %v723 = vadd.f32 %v494, %v722
      %v724 = vpop.f32.mrb[0].mxu0
      %725 = vmatprep.mubr.f32.mxu0 %v198
      %726 = vmatmul.mubr.f32.gmra.mrb[0].mxu0 %v197
      %v727 = vpop.f32.mrb[0].mxu0
      %v728 = vadd.f32 %v494, %v727
      %v729 = vpop.f32.mrb[0].mxu0
      %730 = vmatprep.mubr.f32.mxu0 %v203
      %731 = vmatmul.mubr.f32.gmra.mrb[0].mxu0 %v202
      %v732 = vpop.f32.mrb[0].mxu0
      %v733 = vadd.f32 %v494, %v732
      %v734 = vpop.f32.mrb[0].mxu0
      %735 = vmatprep.mubr.f32.mxu0 %v208
      %736 = vmatmul.mubr.f32.gmra.mrb[0].mxu0 %v207
      %v737 = vpop.f32.mrb[0].mxu0
      %v738 = vadd.f32 %v494, %v737
      %v739 = vpop.f32.mrb[0].mxu0
      %740 = vmatprep.mubr.f32.mxu0 %v213
      %741 = vmatmul.mubr.f32.gmra.mrb[0].mxu0 %v212
      %v742 = vpop.f32.mrb[0].mxu0
      %v743 = vadd.f32 %v494, %v742
      %v744 = vpop.f32.mrb[0].mxu0
      %745 = vmatprep.mubr.f32.mxu0 %v218
      %746 = vmatmul.mubr.f32.gmra.mrb[0].mxu0 %v217
      %v747 = vpop.f32.mrb[0].mxu0
      %v748 = vadd.f32 %v494, %v747
      %v749 = vpop.f32.mrb[0].mxu0
      %750 = vmatprep.mubr.f32.mxu0 %v223
      %751 = vmatmul.mubr.f32.gmra.mrb[0].mxu0 %v222
      %v752 = vpop.f32.mrb[0].mxu0
      %v753 = vadd.f32 %v494, %v752
      %v754 = vpop.f32.mrb[0].mxu0
      %755 = vmatprep.mubr.f32.mxu0 %v228
      %756 = vmatmul.mubr.f32.gmra.mrb[0].mxu0 %v227
      %v757 = vpop.f32.mrb[0].mxu0
      %v758 = vadd.f32 %v494, %v757
      %v759 = vpop.f32.mrb[0].mxu0
      %760 = vmatprep.mubr.f32.mxu0 %v233
      %761 = vmatmul.mubr.f32.gmra.mrb[0].mxu0 %v232
      %v762 = vpop.f32.mrb[0].mxu0
      %v763 = vadd.f32 %v494, %v762
      %v764 = vpop.f32.mrb[0].mxu0
      %765 = vmatprep.mubr.f32.mxu0 %v238
      %766 = vmatmul.mubr.f32.gmra.mrb[0].mxu0 %v237
      %v767 = vpop.f32.mrb[0].mxu0
      %v768 = vadd.f32 %v494, %v767
      %v769 = vpop.f32.mrb[0].mxu0
      %770 = vmatprep.mubr.f32.mxu0 %v243
      %771 = vmatmul.mubr.f32.gmra.mrb[0].mxu0 %v242
      %v772 = vpop.f32.mrb[0].mxu0
      %v773 = vadd.f32 %v494, %v772
      %v774 = vpop.f32.mrb[0].mxu0
      %775 = vmatprep.mubr.f32.mxu0 %v248
      %776 = vmatmul.mubr.f32.gmra.mrb[0].mxu0 %v247
      %v777 = vpop.f32.mrb[0].mxu0
      %v778 = vadd.f32 %v494, %v777
      %v779 = vpop.f32.mrb[0].mxu0
      %780 = vmatprep.mubr.f32.mxu0 %v253
      %781 = vmatmul.mubr.f32.gmra.mrb[0].mxu0 %v252
      %v782 = vpop.f32.mrb[0].mxu0
      %v783 = vadd.f32 %v494, %v782
      %v784 = vpop.f32.mrb[0].mxu0
      %785 = vmatprep.mubr.f32.mxu0 %v258
      %786 = vmatmul.mubr.f32.gmra.mrb[0].mxu0 %v257
      %v787 = vpop.f32.mrb[0].mxu0
      %v788 = vadd.f32 %v494, %v787
      %v789 = vpop.f32.mrb[0].mxu0
      %790 = vmatprep.mubr.f32.mxu0 %v263
      %791 = vmatmul.mubr.f32.gmra.mrb[0].mxu0 %v262
      %v792 = vpop.f32.mrb[0].mxu0
      %v793 = vadd.f32 %v494, %v792
      %v794 = vpop.f32.mrb[0].mxu0
      %795 = vmatprep.mubr.f32.mxu0 %v268
      %796 = vmatmul.mubr.f32.gmra.mrb[0].mxu0 %v267
      %v797 = vpop.f32.mrb[0].mxu0
      %v798 = vadd.f32 %v494, %v797
      %v799 = vpop.f32.mrb[0].mxu0
      %800 = vmatprep.mubr.f32.mxu0 %v273
      %801 = vmatmul.mubr.f32.gmra.mrb[0].mxu0 %v272
      %v802 = vpop.f32.mrb[0].mxu0
      %v803 = vadd.f32 %v494, %v802
      %v804 = vpop.f32.mrb[0].mxu0
      %805 = vmatprep.mubr.f32.mxu0 %v278
      %806 = vmatmul.mubr.f32.gmra.mrb[0].mxu0 %v277
      %v807 = vpop.f32.mrb[0].mxu0
      %v808 = vadd.f32 %v494, %v807
      %v809 = vpop.f32.mrb[0].mxu0
      %810 = vmatprep.mubr.f32.mxu0 %v283
      %811 = vmatmul.mubr.f32.gmra.mrb[0].mxu0 %v282
      %v812 = vpop.f32.mrb[0].mxu0
      %v813 = vadd.f32 %v494, %v812
      %v814 = vpop.f32.mrb[0].mxu0
      %815 = vmatprep.mubr.f32.mxu0 %v288
      %816 = vmatmul.mubr.f32.gmra.mrb[0].mxu0 %v287
      %v817 = vpop.f32.mrb[0].mxu0
      %v818 = vadd.f32 %v494, %v817
      %v819 = vpop.f32.mrb[0].mxu0
      %820 = vmatprep.mubr.f32.mxu0 %v293
      %821 = vmatmul.mubr.f32.gmra.mrb[0].mxu0 %v292
      %v822 = vpop.f32.mrb[0].mxu0
      %v823 = vadd.f32 %v494, %v822
      %v824 = vpop.f32.mrb[0].mxu0
      %825 = vmatprep.mubr.f32.mxu0 %v298
      %826 = vmatmul.mubr.f32.gmra.mrb[0].mxu0 %v297
      %v827 = vpop.f32.mrb[0].mxu0
      %v828 = vadd.f32 %v494, %v827
      %v829 = vpop.f32.mrb[0].mxu0
      %830 = vmatprep.mubr.f32.mxu0 %v303
      %831 = vmatmul.mubr.f32.gmra.mrb[0].mxu0 %v302
      %v832 = vpop.f32.mrb[0].mxu0
      %v833 = vadd.f32 %v494, %v832
      %v834 = vpop.f32.mrb[0].mxu0
      %835 = vmatprep.mubr.f32.mxu0 %v308
      %836 = vmatmul.mubr.f32.gmra.mrb[0].mxu0 %v307
      %v837 = vpop.f32.mrb[0].mxu0
      %v838 = vadd.f32 %v494, %v837
      %v839 = vpop.f32.mrb[0].mxu0
      %840 = vmatprep.mubr.f32.mxu0 %v313
      %841 = vmatmul.mubr.f32.gmra.mrb[0].mxu0 %v312
      %v842 = vpop.f32.mrb[0].mxu0
      %v843 = vadd.f32 %v494, %v842
      %v844 = vpop.f32.mrb[0].mxu0
      %845 = vmatprep.mubr.f32.mxu0 %v318
      %846 = vmatmul.mubr.f32.gmra.mrb[0].mxu0 %v317
      %v847 = vpop.f32.mrb[0].mxu0
      %v848 = vadd.f32 %v494, %v847
      %v849 = vpop.f32.mrb[0].mxu0
      %850 = vmatprep.mubr.f32.mxu0 %v323
      %851 = vmatmul.mubr.f32.gmra.mrb[0].mxu0 %v322
      %v852 = vpop.f32.mrb[0].mxu0
      %v853 = vadd.f32 %v494, %v852
      %v854 = vpop.f32.mrb[0].mxu0
      %855 = vmatprep.mubr.f32.mxu0 %v328
      %856 = vmatmul.mubr.f32.gmra.mrb[0].mxu0 %v327
      %v857 = vpop.f32.mrb[0].mxu0
      %v858 = vadd.f32 %v494, %v857
      %v859 = vpop.f32.mrb[0].mxu0
      %860 = vmatprep.mubr.f32.mxu0 %v333
      %861 = vmatmul.mubr.f32.gmra.mrb[0].mxu0 %v332
      %v862 = vpop.f32.mrb[0].mxu0
      %v863 = vadd.f32 %v494, %v862
      %v864 = vpop.f32.mrb[0].mxu0
      %865 = vmatprep.mubr.f32.mxu0 %v338
      %866 = vmatmul.mubr.f32.gmra.mrb[0].mxu0 %v337
      %v867 = vpop.f32.mrb[0].mxu0
      %v868 = vadd.f32 %v494, %v867
      %v869 = vpop.f32.mrb[0].mxu0
      %870 = vmatprep.mubr.f32.mxu0 %v343
      %871 = vmatmul.mubr.f32.gmra.mrb[0].mxu0 %v342
      %v872 = vpop.f32.mrb[0].mxu0
      %v873 = vadd.f32 %v494, %v872
      %v874 = vpop.f32.mrb[0].mxu0
      %875 = vmatprep.mubr.f32.mxu0 %v348
      %876 = vmatmul.mubr.f32.gmra.mrb[0].mxu0 %v347
      %v877 = vpop.f32.mrb[0].mxu0
      %v878 = vadd.f32 %v494, %v877
      %v879 = vpop.f32.mrb[0].mxu0
      %880 = vmatprep.mubr.f32.mxu0 %v353
      %881 = vmatmul.mubr.f32.gmra.mrb[0].mxu0 %v352
      %v882 = vpop.f32.mrb[0].mxu0
      %v883 = vadd.f32 %v494, %v882
      %v884 = vpop.f32.mrb[0].mxu0
      %885 = vmatprep.mubr.f32.mxu0 %v358
      %886 = vmatmul.mubr.f32.gmra.mrb[0].mxu0 %v357
      %v887 = vpop.f32.mrb[0].mxu0
      %v888 = vadd.f32 %v494, %v887
      %v889 = vpop.f32.mrb[0].mxu0
      %890 = vmatprep.mubr.f32.mxu0 %v363
      %891 = vmatmul.mubr.f32.gmra.mrb[0].mxu0 %v362
      %v892 = vpop.f32.mrb[0].mxu0
      %v893 = vadd.f32 %v494, %v892
      %v894 = vpop.f32.mrb[0].mxu0
      %895 = vmatprep.mubr.f32.mxu0 %v368
      %896 = vmatmul.mubr.f32.gmra.mrb[0].mxu0 %v367
      %v897 = vpop.f32.mrb[0].mxu0
      %v898 = vadd.f32 %v494, %v897
      %v899 = vpop.f32.mrb[0].mxu0
      %900 = vmatprep.mubr.f32.mxu0 %v373
      %901 = vmatmul.mubr.f32.gmra.mrb[0].mxu0 %v372
      %v902 = vpop.f32.mrb[0].mxu0
      %v903 = vadd.f32 %v494, %v902
      %v904 = vpop.f32.mrb[0].mxu0
      %905 = vmatprep.mubr.f32.mxu0 %v378
      %906 = vmatmul.mubr.f32.gmra.mrb[0].mxu0 %v377
      %v907 = vpop.f32.mrb[0].mxu0
      %v908 = vadd.f32 %v494, %v907
      %v909 = vpop.f32.mrb[0].mxu0
      %910 = vmatprep.mubr.f32.mxu0 %v383
      %911 = vmatmul.mubr.f32.gmra.mrb[0].mxu0 %v382
      %v912 = vpop.f32.mrb[0].mxu0
      %v913 = vadd.f32 %v494, %v912
      %v914 = vpop.f32.mrb[0].mxu0
      %915 = vmatprep.mubr.f32.mxu0 %v388
      %916 = vmatmul.mubr.f32.gmra.mrb[0].mxu0 %v387
      %v917 = vpop.f32.mrb[0].mxu0
      %v918 = vadd.f32 %v494, %v917
      %v919 = vpop.f32.mrb[0].mxu0
      %920 = vmatprep.mubr.f32.mxu0 %v393
      %921 = vmatmul.mubr.f32.gmra.mrb[0].mxu0 %v392
      %v922 = vpop.f32.mrb[0].mxu0
      %v923 = vadd.f32 %v494, %v922
      %v924 = vpop.f32.mrb[0].mxu0
      %925 = vmatprep.mubr.f32.mxu0 %v398
      %926 = vmatmul.mubr.f32.gmra.mrb[0].mxu0 %v397
      %v927 = vpop.f32.mrb[0].mxu0
      %v928 = vadd.f32 %v494, %v927
      %v929 = vpop.f32.mrb[0].mxu0
      %930 = vmatprep.mubr.f32.mxu0 %v403
      %931 = vmatmul.mubr.f32.gmra.mrb[0].mxu0 %v402
      %v932 = vpop.f32.mrb[0].mxu0
      %v933 = vadd.f32 %v494, %v932
      %v934 = vpop.f32.mrb[0].mxu0
      %935 = vmatprep.mubr.f32.mxu0 %v408
      %936 = vmatmul.mubr.f32.gmra.mrb[0].mxu0 %v407
      %v937 = vpop.f32.mrb[0].mxu0
      %v938 = vadd.f32 %v494, %v937
      %v939 = vpop.f32.mrb[0].mxu0
      %940 = vmatprep.mubr.f32.mxu0 %v413
      %941 = vmatmul.mubr.f32.gmra.mrb[0].mxu0 %v412
      %v942 = vpop.f32.mrb[0].mxu0
      %v943 = vadd.f32 %v494, %v942
      %v944 = vpop.f32.mrb[0].mxu0
      %945 = vdwg.mxu0
      %946 = vmatprep.subr.mxu0 0.0
      %947 = vmatpush1.msra.mxu0 %v449
      %948 = vmatprep.subr.mxu0 0.0
      %949 = vmatpush1.msra.mxu0 %v450
      %950 = vmatprep.subr.mxu0 0.0
      %951 = vmatpush1.msra.mxu0 %v451
      %952 = vmatprep.subr.mxu0 0.0
      %953 = vmatpush1.msra.mxu0 %v452
      %954 = vmatprep.subr.mxu0 0.0
      %955 = vmatpush1.msra.mxu0 %v453
      %956 = vmatprep.subr.mxu0 0.0
      %957 = vmatpush1.msra.mxu0 %v454
      %958 = vmatprep.subr.mxu0 0.0
      %959 = vmatpush1.msra.mxu0 %v455
      %960 = vmatprep.subr.mxu0 0.0
      %961 = vmatpush1.msra.mxu0 %v456
      %962 = vmatprep.subr.mxu0 0.0
      %963 = vmatpush1.msra.mxu0 %v457
      %964 = vmatprep.subr.mxu0 0.0
      %965 = vmatpush1.msra.mxu0 %v458
      %966 = vmatprep.subr.mxu0 0.0
      %967 = vmatpush1.msra.mxu0 %v459
      %968 = vmatprep.subr.mxu0 0.0
      %969 = vmatpush1.msra.mxu0 %v460
      %970 = vmatprep.subr.mxu0 0.0
      %971 = vmatpush1.msra.mxu0 %v461
      %972 = vmatprep.subr.mxu0 0.0
      %973 = vmatpush1.msra.mxu0 %v462
      %974 = vmatprep.subr.mxu0 0.0
      %975 = vmatpush1.msra.mxu0 %v463
      %976 = vmatprep.subr.mxu0 0.0
      %977 = vmatpush1.msra.mxu0 %v464
      %978 = vmatprep.subr.mxu0 0.0
      %979 = vmatpush1.msra.mxu0 %v465
      %980 = vmatprep.subr.mxu0 0.0
      %981 = vmatpush1.msra.mxu0 %v466
      %982 = vmatprep.subr.mxu0 0.0
      %983 = vmatpush1.msra.mxu0 %v467
      %984 = vmatprep.subr.mxu0 0.0
      %985 = vmatpush1.msra.mxu0 %v468
      %986 = vmatprep.subr.mxu0 0.0
      %987 = vmatpush1.msra.mxu0 %v469
      %988 = vmatprep.subr.mxu0 0.0
      %989 = vmatpush1.msra.mxu0 %v470
      %990 = vmatprep.subr.mxu0 0.0
      %991 = vmatpush1.msra.mxu0 %v471
      %992 = vmatprep.subr.mxu0 0.0
      %993 = vmatpush1.msra.mxu0 %v472
      %994 = vmatprep.subr.mxu0 0.0
      %995 = vmatpush1.msra.mxu0 %v473
      %996 = vmatprep.subr.mxu0 0.0
      %997 = vmatpush1.msra.mxu0 %v474
      %998 = vmatprep.subr.mxu0 0.0
      %999 = vmatpush1.msra.mxu0 %v475
      %1000 = vmatprep.subr.mxu0 0.0
      %1001 = vmatpush1.msra.mxu0 %v476
      %1002 = vmatprep.subr.mxu0 0.0
      %1003 = vmatpush1.msra.mxu0 %v477
      %1004 = vmatprep.subr.mxu0 0.0
      %1005 = vmatpush1.msra.mxu0 %v478
      %1006 = vmatprep.subr.mxu0 0.0
      %1007 = vmatpush1.msra.mxu0 %v479
      %1008 = vmatprep.subr.mxu0 0.0
      %1009 = vmatpush1.msra.mxu0 %v480
      %1010 = vmatprep.mubr.f32.mxu0 %v180
      %1011 = vmatmul.mubr.f32.gmra.mrb[0].mxu0 %v179
      %v1012 = vpop.f32.mrb[0].mxu0
      %v1013 = vadd.f32 %v708, %v1012
      %v1014 = vpop.f32.mrb[0].mxu0
      %1015 = vmatprep.mubr.f32.mxu0 %v185
      %1016 = vmatmul.mubr.f32.gmra.mrb[0].mxu0 %v184
      %v1017 = vpop.f32.mrb[0].mxu0
      %v1018 = vadd.f32 %v713, %v1017
      %v1019 = vpop.f32.mrb[0].mxu0
      %1020 = vmatprep.mubr.f32.mxu0 %v190
      %1021 = vmatmul.mubr.f32.gmra.mrb[0].mxu0 %v189
      %v1022 = vpop.f32.mrb[0].mxu0
      %v1023 = vadd.f32 %v718, %v1022
      %v1024 = vpop.f32.mrb[0].mxu0
      %1025 = vmatprep.mubr.f32.mxu0 %v195
      %1026 = vmatmul.mubr.f32.gmra.mrb[0].mxu0 %v194
      %v1027 = vpop.f32.mrb[0].mxu0
      %v1028 = vadd.f32 %v723, %v1027
      %v1029 = vpop.f32.mrb[0].mxu0
      %1030 = vmatprep.mubr.f32.mxu0 %v200
      %1031 = vmatmul.mubr.f32.gmra.mrb[0].mxu0 %v199
      %v1032 = vpop.f32.mrb[0].mxu0
      %v1033 = vadd.f32 %v728, %v1032
      %v1034 = vpop.f32.mrb[0].mxu0
      %1035 = vmatprep.mubr.f32.mxu0 %v205
      %1036 = vmatmul.mubr.f32.gmra.mrb[0].mxu0 %v204
      %v1037 = vpop.f32.mrb[0].mxu0
      %v1038 = vadd.f32 %v733, %v1037
      %v1039 = vpop.f32.mrb[0].mxu0
      %1040 = vmatprep.mubr.f32.mxu0 %v210
      %1041 = vmatmul.mubr.f32.gmra.mrb[0].mxu0 %v209
      %v1042 = vpop.f32.mrb[0].mxu0
      %v1043 = vadd.f32 %v738, %v1042
      %v1044 = vpop.f32.mrb[0].mxu0
      %1045 = vmatprep.mubr.f32.mxu0 %v215
      %1046 = vmatmul.mubr.f32.gmra.mrb[0].mxu0 %v214
      %v1047 = vpop.f32.mrb[0].mxu0
      %v1048 = vadd.f32 %v743, %v1047
      %v1049 = vpop.f32.mrb[0].mxu0
      %1050 = vmatprep.mubr.f32.mxu0 %v220
      %1051 = vmatmul.mubr.f32.gmra.mrb[0].mxu0 %v219
      %v1052 = vpop.f32.mrb[0].mxu0
      %v1053 = vadd.f32 %v748, %v1052
      %v1054 = vpop.f32.mrb[0].mxu0
      %1055 = vmatprep.mubr.f32.mxu0 %v225
      %1056 = vmatmul.mubr.f32.gmra.mrb[0].mxu0 %v224
      %v1057 = vpop.f32.mrb[0].mxu0
      %v1058 = vadd.f32 %v753, %v1057
      %v1059 = vpop.f32.mrb[0].mxu0
      %1060 = vmatprep.mubr.f32.mxu0 %v230
      %1061 = vmatmul.mubr.f32.gmra.mrb[0].mxu0 %v229
      %v1062 = vpop.f32.mrb[0].mxu0
      %v1063 = vadd.f32 %v758, %v1062
      %v1064 = vpop.f32.mrb[0].mxu0
      %1065 = vmatprep.mubr.f32.mxu0 %v235
      %1066 = vmatmul.mubr.f32.gmra.mrb[0].mxu0 %v234
      %v1067 = vpop.f32.mrb[0].mxu0
      %v1068 = vadd.f32 %v763, %v1067
      %v1069 = vpop.f32.mrb[0].mxu0
      %1070 = vmatprep.mubr.f32.mxu0 %v240
      %1071 = vmatmul.mubr.f32.gmra.mrb[0].mxu0 %v239
      %v1072 = vpop.f32.mrb[0].mxu0
      %v1073 = vadd.f32 %v768, %v1072
      %v1074 = vpop.f32.mrb[0].mxu0
      %1075 = vmatprep.mubr.f32.mxu0 %v245
      %1076 = vmatmul.mubr.f32.gmra.mrb[0].mxu0 %v244
      %v1077 = vpop.f32.mrb[0].mxu0
      %v1078 = vadd.f32 %v773, %v1077
      %v1079 = vpop.f32.mrb[0].mxu0
      %1080 = vmatprep.mubr.f32.mxu0 %v250
      %1081 = vmatmul.mubr.f32.gmra.mrb[0].mxu0 %v249
      %v1082 = vpop.f32.mrb[0].mxu0
      %v1083 = vadd.f32 %v778, %v1082
      %v1084 = vpop.f32.mrb[0].mxu0
      %1085 = vmatprep.mubr.f32.mxu0 %v255
      %1086 = vmatmul.mubr.f32.gmra.mrb[0].mxu0 %v254
      %v1087 = vpop.f32.mrb[0].mxu0
      %v1088 = vadd.f32 %v783, %v1087
      %v1089 = vpop.f32.mrb[0].mxu0
      %1090 = vmatprep.mubr.f32.mxu0 %v260
      %1091 = vmatmul.mubr.f32.gmra.mrb[0].mxu0 %v259
      %v1092 = vpop.f32.mrb[0].mxu0
      %v1093 = vadd.f32 %v788, %v1092
      %v1094 = vpop.f32.mrb[0].mxu0
      %1095 = vmatprep.mubr.f32.mxu0 %v265
      %1096 = vmatmul.mubr.f32.gmra.mrb[0].mxu0 %v264
      %v1097 = vpop.f32.mrb[0].mxu0
      %v1098 = vadd.f32 %v793, %v1097
      %v1099 = vpop.f32.mrb[0].mxu0
      %1100 = vmatprep.mubr.f32.mxu0 %v270
      %1101 = vmatmul.mubr.f32.gmra.mrb[0].mxu0 %v269
      %v1102 = vpop.f32.mrb[0].mxu0
      %v1103 = vadd.f32 %v798, %v1102
      %v1104 = vpop.f32.mrb[0].mxu0
      %1105 = vmatprep.mubr.f32.mxu0 %v275
      %1106 = vmatmul.mubr.f32.gmra.mrb[0].mxu0 %v274
      %v1107 = vpop.f32.mrb[0].mxu0
      %v1108 = vadd.f32 %v803, %v1107
      %v1109 = vpop.f32.mrb[0].mxu0
      %1110 = vmatprep.mubr.f32.mxu0 %v280
      %1111 = vmatmul.mubr.f32.gmra.mrb[0].mxu0 %v279
      %v1112 = vpop.f32.mrb[0].mxu0
      %v1113 = vadd.f32 %v808, %v1112
      %v1114 = vpop.f32.mrb[0].mxu0
      %1115 = vmatprep.mubr.f32.mxu0 %v285
      %1116 = vmatmul.mubr.f32.gmra.mrb[0].mxu0 %v284
      %v1117 = vpop.f32.mrb[0].mxu0
      %v1118 = vadd.f32 %v813, %v1117
      %v1119 = vpop.f32.mrb[0].mxu0
      %1120 = vmatprep.mubr.f32.mxu0 %v290
      %1121 = vmatmul.mubr.f32.gmra.mrb[0].mxu0 %v289
      %v1122 = vpop.f32.mrb[0].mxu0
      %v1123 = vadd.f32 %v818, %v1122
      %v1124 = vpop.f32.mrb[0].mxu0
      %1125 = vmatprep.mubr.f32.mxu0 %v295
      %1126 = vmatmul.mubr.f32.gmra.mrb[0].mxu0 %v294
      %v1127 = vpop.f32.mrb[0].mxu0
      %v1128 = vadd.f32 %v823, %v1127
      %v1129 = vpop.f32.mrb[0].mxu0
      %1130 = vmatprep.mubr.f32.mxu0 %v300
      %1131 = vmatmul.mubr.f32.gmra.mrb[0].mxu0 %v299
      %v1132 = vpop.f32.mrb[0].mxu0
      %v1133 = vadd.f32 %v828, %v1132
      %v1134 = vpop.f32.mrb[0].mxu0
      %1135 = vmatprep.mubr.f32.mxu0 %v305
      %1136 = vmatmul.mubr.f32.gmra.mrb[0].mxu0 %v304
      %v1137 = vpop.f32.mrb[0].mxu0
      %v1138 = vadd.f32 %v833, %v1137
      %v1139 = vpop.f32.mrb[0].mxu0
      %1140 = vmatprep.mubr.f32.mxu0 %v310
      %1141 = vmatmul.mubr.f32.gmra.mrb[0].mxu0 %v309
      %v1142 = vpop.f32.mrb[0].mxu0
      %v1143 = vadd.f32 %v838, %v1142
      %v1144 = vpop.f32.mrb[0].mxu0
      %1145 = vmatprep.mubr.f32.mxu0 %v315
      %1146 = vmatmul.mubr.f32.gmra.mrb[0].mxu0 %v314
      %v1147 = vpop.f32.mrb[0].mxu0
      %v1148 = vadd.f32 %v843, %v1147
      %v1149 = vpop.f32.mrb[0].mxu0
      %1150 = vmatprep.mubr.f32.mxu0 %v320
      %1151 = vmatmul.mubr.f32.gmra.mrb[0].mxu0 %v319
      %v1152 = vpop.f32.mrb[0].mxu0
      %v1153 = vadd.f32 %v848, %v1152
      %v1154 = vpop.f32.mrb[0].mxu0
      %1155 = vmatprep.mubr.f32.mxu0 %v325
      %1156 = vmatmul.mubr.f32.gmra.mrb[0].mxu0 %v324
      %v1157 = vpop.f32.mrb[0].mxu0
      %v1158 = vadd.f32 %v853, %v1157
      %v1159 = vpop.f32.mrb[0].mxu0
      %1160 = vmatprep.mubr.f32.mxu0 %v330
      %1161 = vmatmul.mubr.f32.gmra.mrb[0].mxu0 %v329
      %v1162 = vpop.f32.mrb[0].mxu0
      %v1163 = vadd.f32 %v858, %v1162
      %v1164 = vpop.f32.mrb[0].mxu0
      %1165 = vmatprep.mubr.f32.mxu0 %v335
      %1166 = vmatmul.mubr.f32.gmra.mrb[0].mxu0 %v334
      %v1167 = vpop.f32.mrb[0].mxu0
      %v1168 = vadd.f32 %v863, %v1167
      %v1169 = vpop.f32.mrb[0].mxu0
      %1170 = vmatprep.mubr.f32.mxu0 %v340
      %1171 = vmatmul.mubr.f32.gmra.mrb[0].mxu0 %v339
      %v1172 = vpop.f32.mrb[0].mxu0
      %v1173 = vadd.f32 %v868, %v1172
      %v1174 = vpop.f32.mrb[0].mxu0
      %1175 = vmatprep.mubr.f32.mxu0 %v345
      %1176 = vmatmul.mubr.f32.gmra.mrb[0].mxu0 %v344
      %v1177 = vpop.f32.mrb[0].mxu0
      %v1178 = vadd.f32 %v873, %v1177
      %v1179 = vpop.f32.mrb[0].mxu0
      %1180 = vmatprep.mubr.f32.mxu0 %v350
      %1181 = vmatmul.mubr.f32.gmra.mrb[0].mxu0 %v349
      %v1182 = vpop.f32.mrb[0].mxu0
      %v1183 = vadd.f32 %v878, %v1182
      %v1184 = vpop.f32.mrb[0].mxu0
      %1185 = vmatprep.mubr.f32.mxu0 %v355
      %1186 = vmatmul.mubr.f32.gmra.mrb[0].mxu0 %v354
      %v1187 = vpop.f32.mrb[0].mxu0
      %v1188 = vadd.f32 %v883, %v1187
      %v1189 = vpop.f32.mrb[0].mxu0
      %1190 = vmatprep.mubr.f32.mxu0 %v360
      %1191 = vmatmul.mubr.f32.gmra.mrb[0].mxu0 %v359
      %v1192 = vpop.f32.mrb[0].mxu0
      %v1193 = vadd.f32 %v888, %v1192
      %v1194 = vpop.f32.mrb[0].mxu0
      %1195 = vmatprep.mubr.f32.mxu0 %v365
      %1196 = vmatmul.mubr.f32.gmra.mrb[0].mxu0 %v364
      %v1197 = vpop.f32.mrb[0].mxu0
      %v1198 = vadd.f32 %v893, %v1197
      %v1199 = vpop.f32.mrb[0].mxu0
      %1200 = vmatprep.mubr.f32.mxu0 %v370
      %1201 = vmatmul.mubr.f32.gmra.mrb[0].mxu0 %v369
      %v1202 = vpop.f32.mrb[0].mxu0
      %v1203 = vadd.f32 %v898, %v1202
      %v1204 = vpop.f32.mrb[0].mxu0
      %1205 = vmatprep.mubr.f32.mxu0 %v375
      %1206 = vmatmul.mubr.f32.gmra.mrb[0].mxu0 %v374
      %v1207 = vpop.f32.mrb[0].mxu0
      %v1208 = vadd.f32 %v903, %v1207
      %v1209 = vpop.f32.mrb[0].mxu0
      %1210 = vmatprep.mubr.f32.mxu0 %v380
      %1211 = vmatmul.mubr.f32.gmra.mrb[0].mxu0 %v379
      %v1212 = vpop.f32.mrb[0].mxu0
      %v1213 = vadd.f32 %v908, %v1212
      %v1214 = vpop.f32.mrb[0].mxu0
      %1215 = vmatprep.mubr.f32.mxu0 %v385
      %1216 = vmatmul.mubr.f32.gmra.mrb[0].mxu0 %v384
      %v1217 = vpop.f32.mrb[0].mxu0
      %v1218 = vadd.f32 %v913, %v1217
      %v1219 = vpop.f32.mrb[0].mxu0
      %1220 = vmatprep.mubr.f32.mxu0 %v390
      %1221 = vmatmul.mubr.f32.gmra.mrb[0].mxu0 %v389
      %v1222 = vpop.f32.mrb[0].mxu0
      %v1223 = vadd.f32 %v918, %v1222
      %v1224 = vpop.f32.mrb[0].mxu0
      %1225 = vmatprep.mubr.f32.mxu0 %v395
      %1226 = vmatmul.mubr.f32.gmra.mrb[0].mxu0 %v394
      %v1227 = vpop.f32.mrb[0].mxu0
      %v1228 = vadd.f32 %v923, %v1227
      %v1229 = vpop.f32.mrb[0].mxu0
      %1230 = vmatprep.mubr.f32.mxu0 %v400
      %1231 = vmatmul.mubr.f32.gmra.mrb[0].mxu0 %v399
      %v1232 = vpop.f32.mrb[0].mxu0
      %v1233 = vadd.f32 %v928, %v1232
      %v1234 = vpop.f32.mrb[0].mxu0
      %1235 = vmatprep.mubr.f32.mxu0 %v405
      %1236 = vmatmul.mubr.f32.gmra.mrb[0].mxu0 %v404
      %v1237 = vpop.f32.mrb[0].mxu0
      %v1238 = vadd.f32 %v933, %v1237
      %v1239 = vpop.f32.mrb[0].mxu0
      %1240 = vmatprep.mubr.f32.mxu0 %v410
      %1241 = vmatmul.mubr.f32.gmra.mrb[0].mxu0 %v409
      %v1242 = vpop.f32.mrb[0].mxu0
      %v1243 = vadd.f32 %v938, %v1242
      %v1244 = vpop.f32.mrb[0].mxu0
      %1245 = vmatprep.mubr.f32.mxu0 %v415
      %1246 = vmatmul.mubr.f32.gmra.mrb[0].mxu0 %v414
      %v1247 = vpop.f32.mrb[0].mxu0
      %v1248 = vadd.f32 %v943, %v1247
      %v1249 = vpop.f32.mrb[0].mxu0
      %1250 = vdwg.mxu0
      %1251 = vmatprep.subr.mxu0 0.0
      %1252 = vmatpush1.msra.mxu0 %v481
      %1253 = vmatprep.subr.mxu0 0.0
      %1254 = vmatpush1.msra.mxu0 %v482
      %1255 = vmatprep.subr.mxu0 0.0
      %1256 = vmatpush1.msra.mxu0 %v483
      %1257 = vmatprep.subr.mxu0 0.0
      %1258 = vmatpush1.msra.mxu0 %v484
      %1259 = vmatprep.subr.mxu0 0.0
      %1260 = vmatpush1.msra.mxu0 %v485
      %1261 = vmatprep.subr.mxu0 0.0
      %1262 = vmatpush1.msra.mxu0 %v486
      %1263 = vmatprep.subr.mxu0 0.0
      %1264 = vmatpush1.msra.mxu0 %v487
      %1265 = vmatprep.subr.mxu0 0.0
      %1266 = vmatpush1.msra.mxu0 %v488
      %1267 = vmatprep.subr.mxu0 0.0
      %1268 = vmatpush1.msra.mxu0 0.0
      %1269 = vmatprep.subr.mxu0 0.0
      %1270 = vmatpush1.msra.mxu0 0.0
      %1271 = vmatprep.subr.mxu0 0.0
      %1272 = vmatpush1.msra.mxu0 0.0
      %1273 = vmatprep.subr.mxu0 0.0
      %1274 = vmatpush1.msra.mxu0 0.0
      %1275 = vmatprep.subr.mxu0 0.0
      %1276 = vmatpush1.msra.mxu0 0.0
      %1277 = vmatprep.subr.mxu0 0.0
      %1278 = vmatpush1.msra.mxu0 0.0
      %1279 = vmatprep.subr.mxu0 0.0
      %1280 = vmatpush1.msra.mxu0 0.0
      %1281 = vmatprep.subr.mxu0 0.0
      %1282 = vmatpush1.msra.mxu0 0.0
      %1283 = vmatprep.subr.mxu0 0.0
      %1284 = vmatpush1.msra.mxu0 0.0
      %1285 = vmatprep.subr.mxu0 0.0
      %1286 = vmatpush1.msra.mxu0 0.0
      %1287 = vmatprep.subr.mxu0 0.0
      %1288 = vmatpush1.msra.mxu0 0.0
      %1289 = vmatprep.subr.mxu0 0.0
      %1290 = vmatpush1.msra.mxu0 0.0
      %1291 = vmatprep.subr.mxu0 0.0
      %1292 = vmatpush1.msra.mxu0 0.0
      %1293 = vmatprep.subr.mxu0 0.0
      %1294 = vmatpush1.msra.mxu0 0.0
      %1295 = vmatprep.subr.mxu0 0.0
      %1296 = vmatpush1.msra.mxu0 0.0
      %1297 = vmatprep.subr.mxu0 0.0
      %1298 = vmatpush1.msra.mxu0 0.0
      %1299 = vmatprep.subr.mxu0 0.0
      %1300 = vmatpush1.msra.mxu0 0.0
      %1301 = vmatprep.subr.mxu0 0.0
      %1302 = vmatpush1.msra.mxu0 0.0
      %1303 = vmatprep.subr.mxu0 0.0
      %1304 = vmatpush1.msra.mxu0 0.0
      %1305 = vmatprep.subr.mxu0 0.0
      %1306 = vmatpush1.msra.mxu0 0.0
      %1307 = vmatprep.subr.mxu0 0.0
      %1308 = vmatpush1.msra.mxu0 0.0
      %1309 = vmatprep.subr.mxu0 0.0
      %1310 = vmatpush1.msra.mxu0 0.0
      %1311 = vmatprep.subr.mxu0 0.0
      %1312 = vmatpush1.msra.mxu0 0.0
      %1313 = vmatprep.subr.mxu0 0.0
      %1314 = vmatpush1.msra.mxu0 0.0
      %1315 = vmatprep.mubr.f32.mxu0 0.0
      %1316 = vmatmul.mubr.f32.gmra.mrb[0].mxu0 %v498
      %v1317 = vpop.f32.mrb[0].mxu0
      %v1318 = vadd.f32 %v1013, %v1317
      %v1319 = vpop.f32.mrb[0].mxu0
      %1320 = vmatprep.mubr.f32.mxu0 0.0
      %1321 = vmatmul.mubr.f32.gmra.mrb[0].mxu0 %v501
      %v1322 = vpop.f32.mrb[0].mxu0
      %v1323 = vadd.f32 %v1018, %v1322
      %v1324 = vpop.f32.mrb[0].mxu0
      %1325 = vmatprep.mubr.f32.mxu0 0.0
      %1326 = vmatmul.mubr.f32.gmra.mrb[0].mxu0 %v504
      %v1327 = vpop.f32.mrb[0].mxu0
      %v1328 = vadd.f32 %v1023, %v1327
      %v1329 = vpop.f32.mrb[0].mxu0
      %1330 = vmatprep.mubr.f32.mxu0 0.0
      %1331 = vmatmul.mubr.f32.gmra.mrb[0].mxu0 %v507
      %v1332 = vpop.f32.mrb[0].mxu0
      %v1333 = vadd.f32 %v1028, %v1332
      %v1334 = vpop.f32.mrb[0].mxu0
      %1335 = vmatprep.mubr.f32.mxu0 0.0
      %1336 = vmatmul.mubr.f32.gmra.mrb[0].mxu0 %v510
      %v1337 = vpop.f32.mrb[0].mxu0
      %v1338 = vadd.f32 %v1033, %v1337
      %v1339 = vpop.f32.mrb[0].mxu0
      %1340 = vmatprep.mubr.f32.mxu0 0.0
      %1341 = vmatmul.mubr.f32.gmra.mrb[0].mxu0 %v513
      %v1342 = vpop.f32.mrb[0].mxu0
      %v1343 = vadd.f32 %v1038, %v1342
      %v1344 = vpop.f32.mrb[0].mxu0
      %1345 = vmatprep.mubr.f32.mxu0 0.0
      %1346 = vmatmul.mubr.f32.gmra.mrb[0].mxu0 %v516
      %v1347 = vpop.f32.mrb[0].mxu0
      %v1348 = vadd.f32 %v1043, %v1347
      %v1349 = vpop.f32.mrb[0].mxu0
      %1350 = vmatprep.mubr.f32.mxu0 0.0
      %1351 = vmatmul.mubr.f32.gmra.mrb[0].mxu0 %v519
      %v1352 = vpop.f32.mrb[0].mxu0
      %v1353 = vadd.f32 %v1048, %v1352
      %v1354 = vpop.f32.mrb[0].mxu0
      %1355 = vmatprep.mubr.f32.mxu0 0.0
      %1356 = vmatmul.mubr.f32.gmra.mrb[0].mxu0 %v522
      %v1357 = vpop.f32.mrb[0].mxu0
      %v1358 = vadd.f32 %v1053, %v1357
      %v1359 = vpop.f32.mrb[0].mxu0
      %1360 = vmatprep.mubr.f32.mxu0 0.0
      %1361 = vmatmul.mubr.f32.gmra.mrb[0].mxu0 %v525
      %v1362 = vpop.f32.mrb[0].mxu0
      %v1363 = vadd.f32 %v1058, %v1362
      %v1364 = vpop.f32.mrb[0].mxu0
      %1365 = vmatprep.mubr.f32.mxu0 0.0
      %1366 = vmatmul.mubr.f32.gmra.mrb[0].mxu0 %v528
      %v1367 = vpop.f32.mrb[0].mxu0
      %v1368 = vadd.f32 %v1063, %v1367
      %v1369 = vpop.f32.mrb[0].mxu0
      %1370 = vmatprep.mubr.f32.mxu0 0.0
      %1371 = vmatmul.mubr.f32.gmra.mrb[0].mxu0 %v531
      %v1372 = vpop.f32.mrb[0].mxu0
      %v1373 = vadd.f32 %v1068, %v1372
      %v1374 = vpop.f32.mrb[0].mxu0
      %1375 = vmatprep.mubr.f32.mxu0 0.0
      %1376 = vmatmul.mubr.f32.gmra.mrb[0].mxu0 %v534
      %v1377 = vpop.f32.mrb[0].mxu0
      %v1378 = vadd.f32 %v1073, %v1377
      %v1379 = vpop.f32.mrb[0].mxu0
      %1380 = vmatprep.mubr.f32.mxu0 0.0
      %1381 = vmatmul.mubr.f32.gmra.mrb[0].mxu0 %v537
      %v1382 = vpop.f32.mrb[0].mxu0
      %v1383 = vadd.f32 %v1078, %v1382
      %v1384 = vpop.f32.mrb[0].mxu0
      %1385 = vmatprep.mubr.f32.mxu0 0.0
      %1386 = vmatmul.mubr.f32.gmra.mrb[0].mxu0 %v540
      %v1387 = vpop.f32.mrb[0].mxu0
      %v1388 = vadd.f32 %v1083, %v1387
      %v1389 = vpop.f32.mrb[0].mxu0
      %1390 = vmatprep.mubr.f32.mxu0 0.0
      %1391 = vmatmul.mubr.f32.gmra.mrb[0].mxu0 %v543
      %v1392 = vpop.f32.mrb[0].mxu0
      %v1393 = vadd.f32 %v1088, %v1392
      %v1394 = vpop.f32.mrb[0].mxu0
      %1395 = vmatprep.mubr.f32.mxu0 0.0
      %1396 = vmatmul.mubr.f32.gmra.mrb[0].mxu0 %v546
      %v1397 = vpop.f32.mrb[0].mxu0
      %v1398 = vadd.f32 %v1093, %v1397
      %v1399 = vpop.f32.mrb[0].mxu0
      %1400 = vmatprep.mubr.f32.mxu0 0.0
      %1401 = vmatmul.mubr.f32.gmra.mrb[0].mxu0 %v549
      %v1402 = vpop.f32.mrb[0].mxu0
      %v1403 = vadd.f32 %v1098, %v1402
      %v1404 = vpop.f32.mrb[0].mxu0
      %1405 = vmatprep.mubr.f32.mxu0 0.0
      %1406 = vmatmul.mubr.f32.gmra.mrb[0].mxu0 %v552
      %v1407 = vpop.f32.mrb[0].mxu0
      %v1408 = vadd.f32 %v1103, %v1407
      %v1409 = vpop.f32.mrb[0].mxu0
      %1410 = vmatprep.mubr.f32.mxu0 0.0
      %1411 = vmatmul.mubr.f32.gmra.mrb[0].mxu0 %v555
      %v1412 = vpop.f32.mrb[0].mxu0
      %v1413 = vadd.f32 %v1108, %v1412
      %v1414 = vpop.f32.mrb[0].mxu0
      %1415 = vmatprep.mubr.f32.mxu0 0.0
      %1416 = vmatmul.mubr.f32.gmra.mrb[0].mxu0 %v558
      %v1417 = vpop.f32.mrb[0].mxu0
      %v1418 = vadd.f32 %v1113, %v1417
      %v1419 = vpop.f32.mrb[0].mxu0
      %1420 = vmatprep.mubr.f32.mxu0 0.0
      %1421 = vmatmul.mubr.f32.gmra.mrb[0].mxu0 %v561
      %v1422 = vpop.f32.mrb[0].mxu0
      %v1423 = vadd.f32 %v1118, %v1422
      %v1424 = vpop.f32.mrb[0].mxu0
      %1425 = vmatprep.mubr.f32.mxu0 0.0
      %1426 = vmatmul.mubr.f32.gmra.mrb[0].mxu0 %v564
      %v1427 = vpop.f32.mrb[0].mxu0
      %v1428 = vadd.f32 %v1123, %v1427
      %v1429 = vpop.f32.mrb[0].mxu0
      %1430 = vmatprep.mubr.f32.mxu0 0.0
      %1431 = vmatmul.mubr.f32.gmra.mrb[0].mxu0 %v567
      %v1432 = vpop.f32.mrb[0].mxu0
      %v1433 = vadd.f32 %v1128, %v1432
      %v1434 = vpop.f32.mrb[0].mxu0
      %1435 = vmatprep.mubr.f32.mxu0 0.0
      %1436 = vmatmul.mubr.f32.gmra.mrb[0].mxu0 %v570
      %v1437 = vpop.f32.mrb[0].mxu0
      %v1438 = vadd.f32 %v1133, %v1437
      %v1439 = vpop.f32.mrb[0].mxu0
      %1440 = vmatprep.mubr.f32.mxu0 0.0
      %1441 = vmatmul.mubr.f32.gmra.mrb[0].mxu0 %v573
      %v1442 = vpop.f32.mrb[0].mxu0
      %v1443 = vadd.f32 %v1138, %v1442
      %v1444 = vpop.f32.mrb[0].mxu0
      %1445 = vmatprep.mubr.f32.mxu0 0.0
      %1446 = vmatmul.mubr.f32.gmra.mrb[0].mxu0 %v576
      %v1447 = vpop.f32.mrb[0].mxu0
      %v1448 = vadd.f32 %v1143, %v1447
      %v1449 = vpop.f32.mrb[0].mxu0
      %1450 = vmatprep.mubr.f32.mxu0 0.0
      %1451 = vmatmul.mubr.f32.gmra.mrb[0].mxu0 %v579
      %v1452 = vpop.f32.mrb[0].mxu0
      %v1453 = vadd.f32 %v1148, %v1452
      %v1454 = vpop.f32.mrb[0].mxu0
      %1455 = vmatprep.mubr.f32.mxu0 0.0
      %1456 = vmatmul.mubr.f32.gmra.mrb[0].mxu0 %v582
      %v1457 = vpop.f32.mrb[0].mxu0
      %v1458 = vadd.f32 %v1153, %v1457
      %v1459 = vpop.f32.mrb[0].mxu0
      %1460 = vmatprep.mubr.f32.mxu0 0.0
      %1461 = vmatmul.mubr.f32.gmra.mrb[0].mxu0 %v585
      %v1462 = vpop.f32.mrb[0].mxu0
      %v1463 = vadd.f32 %v1158, %v1462
      %v1464 = vpop.f32.mrb[0].mxu0
      %1465 = vmatprep.mubr.f32.mxu0 0.0
      %1466 = vmatmul.mubr.f32.gmra.mrb[0].mxu0 %v588
      %v1467 = vpop.f32.mrb[0].mxu0
      %v1468 = vadd.f32 %v1163, %v1467
      %v1469 = vpop.f32.mrb[0].mxu0
      %1470 = vmatprep.mubr.f32.mxu0 0.0
      %1471 = vmatmul.mubr.f32.gmra.mrb[0].mxu0 %v591
      %v1472 = vpop.f32.mrb[0].mxu0
      %v1473 = vadd.f32 %v1168, %v1472
      %v1474 = vpop.f32.mrb[0].mxu0
      %1475 = vmatprep.mubr.f32.mxu0 0.0
      %1476 = vmatmul.mubr.f32.gmra.mrb[0].mxu0 %v594
      %v1477 = vpop.f32.mrb[0].mxu0
      %v1478 = vadd.f32 %v1173, %v1477
      %v1479 = vpop.f32.mrb[0].mxu0
      %1480 = vmatprep.mubr.f32.mxu0 0.0
      %1481 = vmatmul.mubr.f32.gmra.mrb[0].mxu0 %v597
      %v1482 = vpop.f32.mrb[0].mxu0
      %v1483 = vadd.f32 %v1178, %v1482
      %v1484 = vpop.f32.mrb[0].mxu0
      %1485 = vmatprep.mubr.f32.mxu0 0.0
      %1486 = vmatmul.mubr.f32.gmra.mrb[0].mxu0 %v600
      %v1487 = vpop.f32.mrb[0].mxu0
      %v1488 = vadd.f32 %v1183, %v1487
      %v1489 = vpop.f32.mrb[0].mxu0
      %1490 = vmatprep.mubr.f32.mxu0 0.0
      %1491 = vmatmul.mubr.f32.gmra.mrb[0].mxu0 %v603
      %v1492 = vpop.f32.mrb[0].mxu0
      %v1493 = vadd.f32 %v1188, %v1492
      %v1494 = vpop.f32.mrb[0].mxu0
      %1495 = vmatprep.mubr.f32.mxu0 0.0
      %1496 = vmatmul.mubr.f32.gmra.mrb[0].mxu0 %v606
      %v1497 = vpop.f32.mrb[0].mxu0
      %v1498 = vadd.f32 %v1193, %v1497
      %v1499 = vpop.f32.mrb[0].mxu0
      %1500 = vmatprep.mubr.f32.mxu0 0.0
      %1501 = vmatmul.mubr.f32.gmra.mrb[0].mxu0 %v609
      %v1502 = vpop.f32.mrb[0].mxu0
      %v1503 = vadd.f32 %v1198, %v1502
      %v1504 = vpop.f32.mrb[0].mxu0
      %1505 = vmatprep.mubr.f32.mxu0 0.0
      %1506 = vmatmul.mubr.f32.gmra.mrb[0].mxu0 %v612
      %v1507 = vpop.f32.mrb[0].mxu0
      %v1508 = vadd.f32 %v1203, %v1507
      %v1509 = vpop.f32.mrb[0].mxu0
      %1510 = vmatprep.mubr.f32.mxu0 0.0
      %1511 = vmatmul.mubr.f32.gmra.mrb[0].mxu0 %v615
      %v1512 = vpop.f32.mrb[0].mxu0
      %v1513 = vadd.f32 %v1208, %v1512
      %v1514 = vpop.f32.mrb[0].mxu0
      %1515 = vmatprep.mubr.f32.mxu0 0.0
      %1516 = vmatmul.mubr.f32.gmra.mrb[0].mxu0 %v618
      %v1517 = vpop.f32.mrb[0].mxu0
      %v1518 = vadd.f32 %v1213, %v1517
      %v1519 = vpop.f32.mrb[0].mxu0
      %1520 = vmatprep.mubr.f32.mxu0 0.0
      %1521 = vmatmul.mubr.f32.gmra.mrb[0].mxu0 %v621
      %v1522 = vpop.f32.mrb[0].mxu0
      %v1523 = vadd.f32 %v1218, %v1522
      %v1524 = vpop.f32.mrb[0].mxu0
      %1525 = vmatprep.mubr.f32.mxu0 0.0
      %1526 = vmatmul.mubr.f32.gmra.mrb[0].mxu0 %v624
      %v1527 = vpop.f32.mrb[0].mxu0
      %v1528 = vadd.f32 %v1223, %v1527
      %v1529 = vpop.f32.mrb[0].mxu0
      %1530 = vmatprep.mubr.f32.mxu0 0.0
      %1531 = vmatmul.mubr.f32.gmra.mrb[0].mxu0 %v627
      %v1532 = vpop.f32.mrb[0].mxu0
      %v1533 = vadd.f32 %v1228, %v1532
      %v1534 = vpop.f32.mrb[0].mxu0
      %1535 = vmatprep.mubr.f32.mxu0 0.0
      %1536 = vmatmul.mubr.f32.gmra.mrb[0].mxu0 %v630
      %v1537 = vpop.f32.mrb[0].mxu0
      %v1538 = vadd.f32 %v1233, %v1537
      %v1539 = vpop.f32.mrb[0].mxu0
      %1540 = vmatprep.mubr.f32.mxu0 0.0
      %1541 = vmatmul.mubr.f32.gmra.mrb[0].mxu0 %v633
      %v1542 = vpop.f32.mrb[0].mxu0
      %v1543 = vadd.f32 %v1238, %v1542
      %v1544 = vpop.f32.mrb[0].mxu0
      %1545 = vmatprep.mubr.f32.mxu0 0.0
      %1546 = vmatmul.mubr.f32.gmra.mrb[0].mxu0 %v636
      %v1547 = vpop.f32.mrb[0].mxu0
      %v1548 = vadd.f32 %v1243, %v1547
      %v1549 = vpop.f32.mrb[0].mxu0
      %1550 = vmatprep.mubr.f32.mxu0 0.0
      %1551 = vmatmul.mubr.f32.gmra.mrb[0].mxu0 %v639
      %v1552 = vpop.f32.mrb[0].mxu0
      %v1553 = vadd.f32 %v1248, %v1552
      %v1554 = vpop.f32.mrb[0].mxu0
      %1555 = vdwg.mxu0
      %v1556 = vmax.f32 %v1318, 0.0
      %v1557 = vmax.f32 %v1323, 0.0
      %v1558 = vmax.f32 %v1328, 0.0
      %v1559 = vmax.f32 %v1333, 0.0
      %v1560 = vmax.f32 %v1338, 0.0
      %v1561 = vmax.f32 %v1343, 0.0
      %v1562 = vmax.f32 %v1348, 0.0
      %v1563 = vmax.f32 %v1353, 0.0
      %v1564 = vmax.f32 %v1358, 0.0
      %v1565 = vmax.f32 %v1363, 0.0
      %v1566 = vmax.f32 %v1368, 0.0
      %v1567 = vmax.f32 %v1373, 0.0
      %v1568 = vmax.f32 %v1378, 0.0
      %v1569 = vmax.f32 %v1383, 0.0
      %v1570 = vmax.f32 %v1388, 0.0
      %v1571 = vmax.f32 %v1393, 0.0
      %v1572 = vmax.f32 %v1398, 0.0
      %v1573 = vmax.f32 %v1403, 0.0
      %v1574 = vmax.f32 %v1408, 0.0
      %v1575 = vmax.f32 %v1413, 0.0
      %v1576 = vmax.f32 %v1418, 0.0
      %v1577 = vmax.f32 %v1423, 0.0
      %v1578 = vmax.f32 %v1428, 0.0
      %v1579 = vmax.f32 %v1433, 0.0
      %v1580 = vmax.f32 %v1438, 0.0
      %v1581 = vmax.f32 %v1443, 0.0
      %v1582 = vmax.f32 %v1448, 0.0
      %v1583 = vmax.f32 %v1453, 0.0
      %v1584 = vmax.f32 %v1458, 0.0
      %v1585 = vmax.f32 %v1463, 0.0
      %v1586 = vmax.f32 %v1468, 0.0
      %v1587 = vmax.f32 %v1473, 0.0
      %v1588 = vmax.f32 %v1478, 0.0
      %v1589 = vmax.f32 %v1483, 0.0
      %v1590 = vmax.f32 %v1488, 0.0
      %v1591 = vmax.f32 %v1493, 0.0
      %v1592 = vmax.f32 %v1498, 0.0
      %v1593 = vmax.f32 %v1503, 0.0
      %v1594 = vmax.f32 %v1508, 0.0
      %v1595 = vmax.f32 %v1513, 0.0
      %v1596 = vmax.f32 %v1518, 0.0
      %v1597 = vmax.f32 %v1523, 0.0
      %v1598 = vmax.f32 %v1528, 0.0
      %v1599 = vmax.f32 %v1533, 0.0
      %v1600 = vmax.f32 %v1538, 0.0
      %v1601 = vmax.f32 %v1543, 0.0
      %v1602 = vmax.f32 %v1548, 0.0
      %v1603 = vmax.f32 %v1553, 0.0
      %1604 = vst [vmem:[%s175] sm:$0xff] %v1556
      %1605 = vst [vmem:[%s175 + $0x8] sm:$0xff] %v1557
      %1606 = vst [vmem:[%s175 + $0x10] sm:$0xff] %v1558
      %1607 = vst [vmem:[%s175 + $0x18] sm:$0xff] %v1559
      %1608 = vst [vmem:[%s175 + $0x20] sm:$0xff] %v1560
      %1609 = vst [vmem:[%s175 + $0x28] sm:$0xff] %v1561
      %1610 = vst [vmem:[%s175 + $0x30] sm:$0xff] %v1562
      %1611 = vst [vmem:[%s175 + $0x38] sm:$0xff] %v1563
      %1612 = vst [vmem:[%s175 + $0x40] sm:$0xff] %v1564
      %1613 = vst [vmem:[%s175 + $0x48] sm:$0xff] %v1565
      %1614 = vst [vmem:[%s175 + $0x50] sm:$0xff] %v1566
      %1615 = vst [vmem:[%s175 + $0x58] sm:$0xff] %v1567
      %1616 = vst [vmem:[%s175 + $0x60] sm:$0xff] %v1568
      %1617 = vst [vmem:[%s175 + $0x68] sm:$0xff] %v1569
      %1618 = vst [vmem:[%s175 + $0x70] sm:$0xff] %v1570
      %1619 = vst [vmem:[%s175 + $0x78] sm:$0xff] %v1571
      %1620 = vst [vmem:[%s175 + $0x80] sm:$0xff] %v1572
      %1621 = vst [vmem:[%s175 + $0x88] sm:$0xff] %v1573
      %1622 = vst [vmem:[%s175 + $0x90] sm:$0xff] %v1574
      %1623 = vst [vmem:[%s175 + $0x98] sm:$0xff] %v1575
      %1624 = vst [vmem:[%s175 + $0xa0] sm:$0xff] %v1576
      %1625 = vst [vmem:[%s175 + $0xa8] sm:$0xff] %v1577
      %1626 = vst [vmem:[%s175 + $0xb0] sm:$0xff] %v1578
      %1627 = vst [vmem:[%s175 + $0xb8] sm:$0xff] %v1579
      %1628 = vst [vmem:[%s175 + $0xc0] sm:$0xff] %v1580
      %1629 = vst [vmem:[%s175 + $0xc8] sm:$0xff] %v1581
      %1630 = vst [vmem:[%s175 + $0xd0] sm:$0xff] %v1582
      %1631 = vst [vmem:[%s175 + $0xd8] sm:$0xff] %v1583
      %1632 = vst [vmem:[%s175 + $0xe0] sm:$0xff] %v1584
      %1633 = vst [vmem:[%s175 + $0xe8] sm:$0xff] %v1585
      %1634 = vst [vmem:[%s175 + $0xf0] sm:$0xff] %v1586
      %1635 = vst [vmem:[%s175 + $0xf8] sm:$0xff] %v1587
      %1636 = vst [vmem:[%s175 + $0x100] sm:$0xff] %v1588
      %1637 = vst [vmem:[%s175 + $0x108] sm:$0xff] %v1589
      %1638 = vst [vmem:[%s175 + $0x110] sm:$0xff] %v1590
      %1639 = vst [vmem:[%s175 + $0x118] sm:$0xff] %v1591
      %1640 = vst [vmem:[%s175 + $0x120] sm:$0xff] %v1592
      %1641 = vst [vmem:[%s175 + $0x128] sm:$0xff] %v1593
      %1642 = vst [vmem:[%s175 + $0x130] sm:$0xff] %v1594
      %1643 = vst [vmem:[%s175 + $0x138] sm:$0xff] %v1595
      %1644 = vst [vmem:[%s175 + $0x140] sm:$0xff] %v1596
      %1645 = vst [vmem:[%s175 + $0x148] sm:$0xff] %v1597
      %1646 = vst [vmem:[%s175 + $0x150] sm:$0xff] %v1598
      %1647 = vst [vmem:[%s175 + $0x158] sm:$0xff] %v1599
      %1648 = vst [vmem:[%s175 + $0x160] sm:$0xff] %v1600
      %1649 = vst [vmem:[%s175 + $0x168] sm:$0xff] %v1601
      %1650 = vst [vmem:[%s175 + $0x170] sm:$0xff] %v1602
      %1651 = vst [vmem:[%s175 + $0x178] sm:$0xff] %v1603
      %s1652 = smul.u32 48, %s14
      %p1653 = scmp.lt.s32.totalorder %s1652, 143
      %s1654 = scalar_select %p1653, %s1652, 143
      %s1655 = smul.addr %s1654, 8
      %s1656 = scalar_lea.vmem %s3, %s1655
      // Predicated region
      $region33: #{feature_extractor_forward.11} parent=31 // pred_check
        %p1657 = pneg %p100
      $region34: #{feature_extractor_forward.11} parent=31 // pred_check_branch
        %1659 = sbr.rel (%p1657) target = $region36
      $region35: #{feature_extractor_forward.11} parent=31 // pred_region
        %s1660 = smul.u32 48, %s14
      $region36: #{feature_extractor_forward.11} parent=31 // pred_fallthru
        _
    $region32: #{feature_extractor_forward.11} parent=5 // pred_fallthru
      _
    %p1661 = scmp.le.s32.totalorder 2, %s9
    // Predicated region
    $region37: #{feature_extractor_forward.11} parent=5 // pred_check
      %p1662 = pneg %p1661
    $region38: #{feature_extractor_forward.11} parent=5 // pred_check_branch
      %1664 = sbr.rel (%p1662) target = $region40
    $region39: #{feature_extractor_forward.11} parent=5 // pred_region
      %s1665 = ssub.s32 %s9, 2
      // Predicated region
      $region41: #{feature_extractor_forward.11} parent=39 // pred_check
        %p1666 = pneg %p106
      $region42: #{feature_extractor_forward.11} parent=39 // pred_check_branch
        %1668 = sbr.rel (%p1666) target = $region44
      $region43: #{feature_extractor_forward.11} parent=39 // pred_region
        %s1669 = smul.u32 48, %s15
        %p1670 = scmp.lt.s32.totalorder %s1669, 143
        %s1671 = scalar_select %p1670, %s1669, 143
        %s1672 = smul.addr %s1671, 8
        %s1673 = scalar_lea.vmem %s3, %s1672
      $region44: #{feature_extractor_forward.11} parent=39 // pred_fallthru
        _
    $region40: #{feature_extractor_forward.11} parent=5 // pred_fallthru
      _
  $region6: #{feature_extractor_forward.11} parent=0 // loop_footer
    %s13 = sadd.s32 1, %s9
  $region7: #{feature_extractor_forward.11} parent=0 // loop_footer_branch
    %8 = sbr.rel target = $region3
  $region8: #{feature_extractor_forward.11} parent=0 // loop_exit
    _

// kernel: feature_extractor_forward.12
$region0: #{feature_extractor_forward.12}
  #allocation0 [shape = 'u32[]', space=smem, size = 0x4, offset = 0x4, fixed_abs, tag = 'smem constant byte address 0x4 - core index']
  #allocation1 [shape = 'u32[144,128]{1,0:T(1,128)}', space=vmem, size = 0x12000, scoped, tag = 'internal scratch']
  %s0 = inlined_call_operand.vmem [shape: f32[2,12,1536], index: 0, kind: input, shape index: {}]
  %s1 = inlined_call_operand.vmem [shape: f32[2,12,1536], index: 1, kind: input, shape index: {}]
  %s2 = inlined_call_operand.vmem [shape: f32[2,12,1536], index: 2, kind: input, shape index: {}]
  %s3 = inlined_call_operand.vmem [shape: f32[2,12,1536], index: 3, kind: input, shape index: {}]
  %s4 = inlined_call_operand.vmem [shape: f32[2,12,1536], index: 4, kind: output, shape index: {}]
  %s5 = sld [smem:[#allocation0]]
  $region49: #{feature_extractor_forward.12} parent=0
    _
  %s7 = ssub.s32 1, %s5
  %s8 = scalar_select 0, %s7, %s5
  loop: start=0, step=1, limit=4
  $region2: #{feature_extractor_forward.12} parent=0 // loop_pre_header
    _
  $region3: #{feature_extractor_forward.12} parent=0 // loop_header
    %s10 = sphi 0, %s14
    %p11 = scmp.ge.s32.totalorder %s10, 4
    %s20 = sphi 0, %s22
    %s23 = sphi 0, %s20
    %s24 = sphi 0, %s23
    %s40 = sphi 0, %s24
    %s46 = sphi 0, %s48
    %s49 = sphi 0, %s46
    %s50 = sphi 0, %s49
    %s66 = sphi 0, %s50
    %s72 = sphi 0, %s74
    %s75 = sphi 0, %s72
    %s76 = sphi 0, %s75
    %s92 = sphi 0, %s76
    %s98 = sphi 0, %s100
    %s101 = sphi 0, %s98
    %s102 = sphi 0, %s101
    %s118 = sphi 0, %s102
    %s124 = sphi 0, %s126
    %s127 = sphi 0, %s124
    %s128 = sphi 0, %s127
    %s144 = sphi 0, %s128
  $region4: #{feature_extractor_forward.12} parent=0 // loop_header_branch
    %13 = sbr.rel (%p11) target = $region8
  $region5: #{feature_extractor_forward.12} parent=0 // loop_body
    %s15 = ssub.s32 %s10, 1
    %s16 = ssub.s32 %s10, 2
    %s17 = sadd.s32 %s10, 1
    %s18 = ssub.s32 %s10, %s17
    %p19 = scmp.eq.s32.totalorder %s18, 0
    %s21 = sadd.s32 %s20, 1
    %s22 = scalar_select %p19, %s20, %s21
    %p25 = pneg %p19
    %p26 = scmp.eq.s32.totalorder %s10, 1
    %p27 = por %p25, %p26
    %p28 = scmp.ne.s32.totalorder %s20, %s23
    %p29 = scmp.eq.s32.totalorder %s10, 0
    %p30 = por %p28, %p29
    %p31 = scmp.ne.s32.totalorder %s20, %s23
    %p32 = scmp.eq.s32.totalorder %s15, 1
    %p33 = por %p31, %p32
    %p34 = scmp.ne.s32.totalorder %s23, %s24
    %p35 = scmp.eq.s32.totalorder %s15, 0
    %p36 = por %p34, %p35
    %p37 = scmp.ne.s32.totalorder %s23, %s24
    %p38 = scmp.eq.s32.totalorder %s16, 1
    %p39 = por %p37, %p38
    %p41 = scmp.ne.s32.totalorder %s24, %s40
    %p42 = scmp.eq.s32.totalorder %s16, 0
    %p43 = por %p41, %p42
    %s44 = ssub.s32 %s10, %s17
    %p45 = scmp.eq.s32.totalorder %s44, 0
    %s47 = sadd.s32 %s46, 1
    %s48 = scalar_select %p45, %s46, %s47
    %p51 = pneg %p45
    %p52 = scmp.eq.s32.totalorder %s10, 1
    %p53 = por %p51, %p52
    %p54 = scmp.ne.s32.totalorder %s46, %s49
    %p55 = scmp.eq.s32.totalorder %s10, 0
    %p56 = por %p54, %p55
    %p57 = scmp.ne.s32.totalorder %s46, %s49
    %p58 = scmp.eq.s32.totalorder %s15, 1
    %p59 = por %p57, %p58
    %p60 = scmp.ne.s32.totalorder %s49, %s50
    %p61 = scmp.eq.s32.totalorder %s15, 0
    %p62 = por %p60, %p61
    %p63 = scmp.ne.s32.totalorder %s49, %s50
    %p64 = scmp.eq.s32.totalorder %s16, 1
    %p65 = por %p63, %p64
    %p67 = scmp.ne.s32.totalorder %s50, %s66
    %p68 = scmp.eq.s32.totalorder %s16, 0
    %p69 = por %p67, %p68
    %s70 = ssub.s32 %s10, %s17
    %p71 = scmp.eq.s32.totalorder %s70, 0
    %s73 = sadd.s32 %s72, 1
    %s74 = scalar_select %p71, %s72, %s73
    %p77 = pneg %p71
    %p78 = scmp.eq.s32.totalorder %s10, 1
    %p79 = por %p77, %p78
    %p80 = scmp.ne.s32.totalorder %s72, %s75
    %p81 = scmp.eq.s32.totalorder %s10, 0
    %p82 = por %p80, %p81
    %p83 = scmp.ne.s32.totalorder %s72, %s75
    %p84 = scmp.eq.s32.totalorder %s15, 1
    %p85 = por %p83, %p84
    %p86 = scmp.ne.s32.totalorder %s75, %s76
    %p87 = scmp.eq.s32.totalorder %s15, 0
    %p88 = por %p86, %p87
    %p89 = scmp.ne.s32.totalorder %s75, %s76
    %p90 = scmp.eq.s32.totalorder %s16, 1
    %p91 = por %p89, %p90
    %p93 = scmp.ne.s32.totalorder %s76, %s92
    %p94 = scmp.eq.s32.totalorder %s16, 0
    %p95 = por %p93, %p94
    %s96 = ssub.s32 %s10, %s17
    %p97 = scmp.eq.s32.totalorder %s96, 0
    %s99 = sadd.s32 %s98, 1
    %s100 = scalar_select %p97, %s98, %s99
    %p103 = pneg %p97
    %p104 = scmp.eq.s32.totalorder %s10, 1
    %p105 = por %p103, %p104
    %p106 = scmp.ne.s32.totalorder %s98, %s101
    %p107 = scmp.eq.s32.totalorder %s10, 0
    %p108 = por %p106, %p107
    %p109 = scmp.ne.s32.totalorder %s98, %s101
    %p110 = scmp.eq.s32.totalorder %s15, 1
    %p111 = por %p109, %p110
    %p112 = scmp.ne.s32.totalorder %s101, %s102
    %p113 = scmp.eq.s32.totalorder %s15, 0
    %p114 = por %p112, %p113
    %p115 = scmp.ne.s32.totalorder %s101, %s102
    %p116 = scmp.eq.s32.totalorder %s16, 1
    %p117 = por %p115, %p116
    %p119 = scmp.ne.s32.totalorder %s102, %s118
    %p120 = scmp.eq.s32.totalorder %s16, 0
    %p121 = por %p119, %p120
    %s122 = ssub.s32 %s10, %s17
    %p123 = scmp.eq.s32.totalorder %s122, 0
    %s125 = sadd.s32 %s124, 1
    %s126 = scalar_select %p123, %s124, %s125
    %p129 = pneg %p123
    %p130 = scmp.eq.s32.totalorder %s10, 1
    %p131 = por %p129, %p130
    %p132 = scmp.ne.s32.totalorder %s124, %s127
    %p133 = scmp.eq.s32.totalorder %s10, 0
    %p134 = por %p132, %p133
    %p135 = scmp.ne.s32.totalorder %s124, %s127
    %p136 = scmp.eq.s32.totalorder %s15, 1
    %p137 = por %p135, %p136
    %p138 = scmp.ne.s32.totalorder %s127, %s128
    %p139 = scmp.eq.s32.totalorder %s15, 0
    %p140 = por %p138, %p139
    %p141 = scmp.ne.s32.totalorder %s127, %s128
    %p142 = scmp.eq.s32.totalorder %s16, 1
    %p143 = por %p141, %p142
    %p145 = scmp.ne.s32.totalorder %s128, %s144
    %p146 = scmp.eq.s32.totalorder %s16, 0
    %p147 = por %p145, %p146
    %p148 = scmp.le.s32.totalorder 1, %s10
    %p149 = scmp.lt.s32.totalorder %s10, 3
    %p150 = pnand %p148, %p149
    %p151 = pneg %p150
    // Predicated region
    $region9: #{feature_extractor_forward.12} parent=5 // pred_check
      _
    $region10: #{feature_extractor_forward.12} parent=5 // pred_check_branch
      %153 = sbr.rel (%p150) target = $region12
    $region11: #{feature_extractor_forward.12} parent=5 // pred_region
      %s154 = ssub.s32 %s10, 1
    $region12: #{feature_extractor_forward.12} parent=5 // pred_fallthru
      _
    %p155 = scmp.lt.s32.totalorder %s10, 2
    // Predicated region
    $region13: #{feature_extractor_forward.12} parent=5 // pred_check
      %p156 = pneg %p155
    $region14: #{feature_extractor_forward.12} parent=5 // pred_check_branch
      %158 = sbr.rel (%p156) target = $region16
    $region15: #{feature_extractor_forward.12} parent=5 // pred_region
      // Predicated region
      $region17: #{feature_extractor_forward.12} parent=15 // pred_check
        %p159 = pneg %p30
      $region18: #{feature_extractor_forward.12} parent=15 // pred_check_branch
        %161 = sbr.rel (%p159) target = $region20
      $region19: #{feature_extractor_forward.12} parent=15 // pred_region
        %p162 = scmp.lt.s32.totalorder %s10, 1
        %s163 = scalar_select %p162, %s10, 1
        %s164 = smul.addr %s163, 24
        %s165 = smul.addr %s164, 8
        %s166 = scalar_lea.vmem %s0, %s165
      $region20: #{feature_extractor_forward.12} parent=15 // pred_fallthru
        _
      // Predicated region
      $region21: #{feature_extractor_forward.12} parent=15 // pred_check
        %p167 = pneg %p56
      $region22: #{feature_extractor_forward.12} parent=15 // pred_check_branch
        %169 = sbr.rel (%p167) target = $region24
      $region23: #{feature_extractor_forward.12} parent=15 // pred_region
        %p170 = scmp.lt.s32.totalorder %s10, 1
        %s171 = scalar_select %p170, %s10, 1
        %s172 = smul.addr %s171, 24
        %s173 = smul.addr %s172, 8
        %s174 = scalar_lea.vmem %s1, %s173
      $region24: #{feature_extractor_forward.12} parent=15 // pred_fallthru
        _
      // Predicated region
      $region25: #{feature_extractor_forward.12} parent=15 // pred_check
        %p175 = pneg %p82
      $region26: #{feature_extractor_forward.12} parent=15 // pred_check_branch
        %177 = sbr.rel (%p175) target = $region28
      $region27: #{feature_extractor_forward.12} parent=15 // pred_region
        %p178 = scmp.lt.s32.totalorder %s10, 1
        %s179 = scalar_select %p178, %s10, 1
        %s180 = smul.addr %s179, 24
        %s181 = smul.addr %s180, 8
        %s182 = scalar_lea.vmem %s2, %s181
      $region28: #{feature_extractor_forward.12} parent=15 // pred_fallthru
        _
      // Predicated region
      $region29: #{feature_extractor_forward.12} parent=15 // pred_check
        %p183 = pneg %p108
      $region30: #{feature_extractor_forward.12} parent=15 // pred_check_branch
        %185 = sbr.rel (%p183) target = $region32
      $region31: #{feature_extractor_forward.12} parent=15 // pred_region
        %p186 = scmp.lt.s32.totalorder %s10, 1
        %s187 = scalar_select %p186, %s10, 1
        %s188 = smul.addr %s187, 24
        %s189 = smul.addr %s188, 8
        %s190 = scalar_lea.vmem %s3, %s189
      $region32: #{feature_extractor_forward.12} parent=15 // pred_fallthru
        _
    $region16: #{feature_extractor_forward.12} parent=5 // pred_fallthru
      _
    %p191 = scmp.le.s32.totalorder 1, %s10
    %p192 = scmp.lt.s32.totalorder %s10, 3
    %p193 = pnand %p191, %p192
    %p194 = pneg %p193
    // Predicated region
    $region33: #{feature_extractor_forward.12} parent=5 // pred_check
      _
    $region34: #{feature_extractor_forward.12} parent=5 // pred_check_branch
      %196 = sbr.rel (%p193) target = $region36
    $region35: #{feature_extractor_forward.12} parent=5 // pred_region
      %s197 = ssub.s32 %s10, 1
      %p198 = scmp.lt.s32.totalorder %s15, 1
      %s199 = scalar_select %p198, %s15, 1
      %s200 = smul.addr %s199, 24
      %s201 = smul.addr %s200, 8
      %s202 = scalar_lea.vmem %s0, %s201
      %p203 = pneg %p36
      %p204 = pneg %p33
      %p205 = scmp.lt.s32.totalorder %s15, 1
      %s206 = scalar_select %p205, %s15, 1
      %s207 = smul.addr %s206, 24
      %s208 = smul.addr %s207, 8
      %s209 = scalar_lea.vmem %s1, %s208
      %p210 = pneg %p62
      %p211 = pneg %p59
      %p212 = scmp.lt.s32.totalorder %s15, 1
      %s213 = scalar_select %p212, %s15, 1
      %s214 = smul.addr %s213, 24
      %s215 = smul.addr %s214, 8
      %s216 = scalar_lea.vmem %s2, %s215
      %p217 = pneg %p88
      %p218 = pneg %p85
      %p219 = scmp.lt.s32.totalorder %s15, 1
      %s220 = scalar_select %p219, %s15, 1
      %s221 = smul.addr %s220, 24
      %s222 = smul.addr %s221, 8
      %s223 = scalar_lea.vmem %s3, %s222
      %p224 = pneg %p114
      %p225 = pneg %p111
      %p226 = pneg %p140
      %p227 = pneg %p137
      %p228 = scmp.lt.s32.totalorder %s15, 1
      %s229 = scalar_select %p228, %s15, 1
      %s230 = smul.addr %s229, 24
      %s231 = smul.addr %s230, 8
      %s232 = scalar_lea.vmem %s4, %s231
      %p233 = scmp.lt.s32.totalorder %s15, 1
      %s234 = scalar_select %p233, %s15, 1
      %s235 = smul.addr %s234, 24
      %s236 = smul.addr %s235, 8
      %s237 = scalar_lea.vmem %s0, %s236
      %p238 = scmp.lt.s32.totalorder %s15, 1
      %s239 = scalar_select %p238, %s15, 1
      %s240 = smul.addr %s239, 24
      %s241 = smul.addr %s240, 8
      %s242 = scalar_lea.vmem %s1, %s241
      %p243 = scmp.lt.s32.totalorder %s15, 1
      %s244 = scalar_select %p243, %s15, 1
      %s245 = smul.addr %s244, 24
      %s246 = smul.addr %s245, 8
      %s247 = scalar_lea.vmem %s2, %s246
      %p248 = scmp.lt.s32.totalorder %s15, 1
      %s249 = scalar_select %p248, %s15, 1
      %s250 = smul.addr %s249, 24
      %s251 = smul.addr %s250, 8
      %s252 = scalar_lea.vmem %s3, %s251
      %p253 = scmp.lt.s32.totalorder %s15, 1
      %s254 = scalar_select %p253, %s15, 1
      %s255 = smul.addr %s254, 24
      %s256 = smul.addr %s255, 8
      %s257 = scalar_lea.vmem %s4, %s256
      %v258 = vld [vmem:[%s237] sm:$0xff]
      %v259 = vld [vmem:[%s237 + $0x8] sm:$0xff]
      %v260 = vld [vmem:[%s237 + $0x10] sm:$0xff]
      %v261 = vld [vmem:[%s237 + $0x18] sm:$0xff]
      %v262 = vld [vmem:[%s237 + $0x20] sm:$0xff]
      %v263 = vld [vmem:[%s237 + $0x28] sm:$0xff]
      %v264 = vld [vmem:[%s237 + $0x30] sm:$0xff]
      %v265 = vld [vmem:[%s237 + $0x38] sm:$0xff]
      %v266 = vld [vmem:[%s237 + $0x40] sm:$0xff]
      %v267 = vld [vmem:[%s237 + $0x48] sm:$0xff]
      %v268 = vld [vmem:[%s237 + $0x50] sm:$0xff]
      %v269 = vld [vmem:[%s237 + $0x58] sm:$0xff]
      %v270 = vld [vmem:[%s237 + $0x60] sm:$0xf]
      %v271 = vld [vmem:[%s237 + $0x68] sm:$0xf]
      %v272 = vld [vmem:[%s237 + $0x70] sm:$0xf]
      %v273 = vld [vmem:[%s237 + $0x78] sm:$0xf]
      %v274 = vld [vmem:[%s237 + $0x80] sm:$0xf]
      %v275 = vld [vmem:[%s237 + $0x88] sm:$0xf]
      %v276 = vld [vmem:[%s237 + $0x90] sm:$0xf]
      %v277 = vld [vmem:[%s237 + $0x98] sm:$0xf]
      %v278 = vld [vmem:[%s237 + $0xa0] sm:$0xf]
      %v279 = vld [vmem:[%s237 + $0xa8] sm:$0xf]
      %v280 = vld [vmem:[%s237 + $0xb0] sm:$0xf]
      %v281 = vld [vmem:[%s237 + $0xb8] sm:$0xf]
      %v282 = vld [vmem:[%s242] sm:$0xff]
      %v283 = vld [vmem:[%s242 + $0x8] sm:$0xff]
      %v284 = vld [vmem:[%s242 + $0x10] sm:$0xff]
      %v285 = vld [vmem:[%s242 + $0x18] sm:$0xff]
      %v286 = vld [vmem:[%s242 + $0x20] sm:$0xff]
      %v287 = vld [vmem:[%s242 + $0x28] sm:$0xff]
      %v288 = vld [vmem:[%s242 + $0x30] sm:$0xff]
      %v289 = vld [vmem:[%s242 + $0x38] sm:$0xff]
      %v290 = vld [vmem:[%s242 + $0x40] sm:$0xff]
      %v291 = vld [vmem:[%s242 + $0x48] sm:$0xff]
      %v292 = vld [vmem:[%s242 + $0x50] sm:$0xff]
      %v293 = vld [vmem:[%s242 + $0x58] sm:$0xff]
      %v294 = vld [vmem:[%s242 + $0x60] sm:$0xf]
      %v295 = vld [vmem:[%s242 + $0x68] sm:$0xf]
      %v296 = vld [vmem:[%s242 + $0x70] sm:$0xf]
      %v297 = vld [vmem:[%s242 + $0x78] sm:$0xf]
      %v298 = vld [vmem:[%s242 + $0x80] sm:$0xf]
      %v299 = vld [vmem:[%s242 + $0x88] sm:$0xf]
      %v300 = vld [vmem:[%s242 + $0x90] sm:$0xf]
      %v301 = vld [vmem:[%s242 + $0x98] sm:$0xf]
      %v302 = vld [vmem:[%s242 + $0xa0] sm:$0xf]
      %v303 = vld [vmem:[%s242 + $0xa8] sm:$0xf]
      %v304 = vld [vmem:[%s242 + $0xb0] sm:$0xf]
      %v305 = vld [vmem:[%s242 + $0xb8] sm:$0xf]
      %v306 = vmax.f32 %v258, %v282
      %v307 = vmax.f32 %v259, %v283
      %v308 = vmax.f32 %v260, %v284
      %v309 = vmax.f32 %v261, %v285
      %v310 = vmax.f32 %v262, %v286
      %v311 = vmax.f32 %v263, %v287
      %v312 = vmax.f32 %v264, %v288
      %v313 = vmax.f32 %v265, %v289
      %v314 = vmax.f32 %v266, %v290
      %v315 = vmax.f32 %v267, %v291
      %v316 = vmax.f32 %v268, %v292
      %v317 = vmax.f32 %v269, %v293
      %v318 = vmax.f32 %v270, %v294
      %v319 = vmax.f32 %v271, %v295
      %v320 = vmax.f32 %v272, %v296
      %v321 = vmax.f32 %v273, %v297
      %v322 = vmax.f32 %v274, %v298
      %v323 = vmax.f32 %v275, %v299
      %v324 = vmax.f32 %v276, %v300
      %v325 = vmax.f32 %v277, %v301
      %v326 = vmax.f32 %v278, %v302
      %v327 = vmax.f32 %v279, %v303
      %v328 = vmax.f32 %v280, %v304
      %v329 = vmax.f32 %v281, %v305
      %v330 = vld [vmem:[%s247] sm:$0xff]
      %v331 = vld [vmem:[%s247 + $0x8] sm:$0xff]
      %v332 = vld [vmem:[%s247 + $0x10] sm:$0xff]
      %v333 = vld [vmem:[%s247 + $0x18] sm:$0xff]
      %v334 = vld [vmem:[%s247 + $0x20] sm:$0xff]
      %v335 = vld [vmem:[%s247 + $0x28] sm:$0xff]
      %v336 = vld [vmem:[%s247 + $0x30] sm:$0xff]
      %v337 = vld [vmem:[%s247 + $0x38] sm:$0xff]
      %v338 = vld [vmem:[%s247 + $0x40] sm:$0xff]
      %v339 = vld [vmem:[%s247 + $0x48] sm:$0xff]
      %v340 = vld [vmem:[%s247 + $0x50] sm:$0xff]
      %v341 = vld [vmem:[%s247 + $0x58] sm:$0xff]
      %v342 = vld [vmem:[%s247 + $0x60] sm:$0xf]
      %v343 = vld [vmem:[%s247 + $0x68] sm:$0xf]
      %v344 = vld [vmem:[%s247 + $0x70] sm:$0xf]
      %v345 = vld [vmem:[%s247 + $0x78] sm:$0xf]
      %v346 = vld [vmem:[%s247 + $0x80] sm:$0xf]
      %v347 = vld [vmem:[%s247 + $0x88] sm:$0xf]
      %v348 = vld [vmem:[%s247 + $0x90] sm:$0xf]
      %v349 = vld [vmem:[%s247 + $0x98] sm:$0xf]
      %v350 = vld [vmem:[%s247 + $0xa0] sm:$0xf]
      %v351 = vld [vmem:[%s247 + $0xa8] sm:$0xf]
      %v352 = vld [vmem:[%s247 + $0xb0] sm:$0xf]
      %v353 = vld [vmem:[%s247 + $0xb8] sm:$0xf]
      %v354 = vld [vmem:[%s252] sm:$0xff]
      %v355 = vld [vmem:[%s252 + $0x8] sm:$0xff]
      %v356 = vld [vmem:[%s252 + $0x10] sm:$0xff]
      %v357 = vld [vmem:[%s252 + $0x18] sm:$0xff]
      %v358 = vld [vmem:[%s252 + $0x20] sm:$0xff]
      %v359 = vld [vmem:[%s252 + $0x28] sm:$0xff]
      %v360 = vld [vmem:[%s252 + $0x30] sm:$0xff]
      %v361 = vld [vmem:[%s252 + $0x38] sm:$0xff]
      %v362 = vld [vmem:[%s252 + $0x40] sm:$0xff]
      %v363 = vld [vmem:[%s252 + $0x48] sm:$0xff]
      %v364 = vld [vmem:[%s252 + $0x50] sm:$0xff]
      %v365 = vld [vmem:[%s252 + $0x58] sm:$0xff]
      %v366 = vld [vmem:[%s252 + $0x60] sm:$0xf]
      %v367 = vld [vmem:[%s252 + $0x68] sm:$0xf]
      %v368 = vld [vmem:[%s252 + $0x70] sm:$0xf]
      %v369 = vld [vmem:[%s252 + $0x78] sm:$0xf]
      %v370 = vld [vmem:[%s252 + $0x80] sm:$0xf]
      %v371 = vld [vmem:[%s252 + $0x88] sm:$0xf]
      %v372 = vld [vmem:[%s252 + $0x90] sm:$0xf]
      %v373 = vld [vmem:[%s252 + $0x98] sm:$0xf]
      %v374 = vld [vmem:[%s252 + $0xa0] sm:$0xf]
      %v375 = vld [vmem:[%s252 + $0xa8] sm:$0xf]
      %v376 = vld [vmem:[%s252 + $0xb0] sm:$0xf]
      %v377 = vld [vmem:[%s252 + $0xb8] sm:$0xf]
      %v378 = vmax.f32 %v330, %v354
      %v379 = vmax.f32 %v331, %v355
      %v380 = vmax.f32 %v332, %v356
      %v381 = vmax.f32 %v333, %v357
      %v382 = vmax.f32 %v334, %v358
      %v383 = vmax.f32 %v335, %v359
      %v384 = vmax.f32 %v336, %v360
      %v385 = vmax.f32 %v337, %v361
      %v386 = vmax.f32 %v338, %v362
      %v387 = vmax.f32 %v339, %v363
      %v388 = vmax.f32 %v340, %v364
      %v389 = vmax.f32 %v341, %v365
      %v390 = vmax.f32 %v342, %v366
      %v391 = vmax.f32 %v343, %v367
      %v392 = vmax.f32 %v344, %v368
      %v393 = vmax.f32 %v345, %v369
      %v394 = vmax.f32 %v346, %v370
      %v395 = vmax.f32 %v347, %v371
      %v396 = vmax.f32 %v348, %v372
      %v397 = vmax.f32 %v349, %v373
      %v398 = vmax.f32 %v350, %v374
      %v399 = vmax.f32 %v351, %v375
      %v400 = vmax.f32 %v352, %v376
      %v401 = vmax.f32 %v353, %v377
      %v402 = vmax.f32 %v306, %v378
      %v403 = vmax.f32 %v307, %v379
      %v404 = vmax.f32 %v308, %v380
      %v405 = vmax.f32 %v309, %v381
      %v406 = vmax.f32 %v310, %v382
      %v407 = vmax.f32 %v311, %v383
      %v408 = vmax.f32 %v312, %v384
      %v409 = vmax.f32 %v313, %v385
      %v410 = vmax.f32 %v314, %v386
      %v411 = vmax.f32 %v315, %v387
      %v412 = vmax.f32 %v316, %v388
      %v413 = vmax.f32 %v317, %v389
      %v414 = vmax.f32 %v318, %v390
      %v415 = vmax.f32 %v319, %v391
      %v416 = vmax.f32 %v320, %v392
      %v417 = vmax.f32 %v321, %v393
      %v418 = vmax.f32 %v322, %v394
      %v419 = vmax.f32 %v323, %v395
      %v420 = vmax.f32 %v324, %v396
      %v421 = vmax.f32 %v325, %v397
      %v422 = vmax.f32 %v326, %v398
      %v423 = vmax.f32 %v327, %v399
      %v424 = vmax.f32 %v328, %v400
      %v425 = vmax.f32 %v329, %v401
      %426 = vst [vmem:[%s257] sm:$0xff] %v402
      %427 = vst [vmem:[%s257 + $0x8] sm:$0xff] %v403
      %428 = vst [vmem:[%s257 + $0x10] sm:$0xff] %v404
      %429 = vst [vmem:[%s257 + $0x18] sm:$0xff] %v405
      %430 = vst [vmem:[%s257 + $0x20] sm:$0xff] %v406
      %431 = vst [vmem:[%s257 + $0x28] sm:$0xff] %v407
      %432 = vst [vmem:[%s257 + $0x30] sm:$0xff] %v408
      %433 = vst [vmem:[%s257 + $0x38] sm:$0xff] %v409
      %434 = vst [vmem:[%s257 + $0x40] sm:$0xff] %v410
      %435 = vst [vmem:[%s257 + $0x48] sm:$0xff] %v411
      %436 = vst [vmem:[%s257 + $0x50] sm:$0xff] %v412
      %437 = vst [vmem:[%s257 + $0x58] sm:$0xff] %v413
      %438 = vst [vmem:[%s257 + $0x60] sm:$0xf] %v414
      %439 = vst [vmem:[%s257 + $0x68] sm:$0xf] %v415
      %440 = vst [vmem:[%s257 + $0x70] sm:$0xf] %v416
      %441 = vst [vmem:[%s257 + $0x78] sm:$0xf] %v417
      %442 = vst [vmem:[%s257 + $0x80] sm:$0xf] %v418
      %443 = vst [vmem:[%s257 + $0x88] sm:$0xf] %v419
      %444 = vst [vmem:[%s257 + $0x90] sm:$0xf] %v420
      %445 = vst [vmem:[%s257 + $0x98] sm:$0xf] %v421
      %446 = vst [vmem:[%s257 + $0xa0] sm:$0xf] %v422
      %447 = vst [vmem:[%s257 + $0xa8] sm:$0xf] %v423
      %448 = vst [vmem:[%s257 + $0xb0] sm:$0xf] %v424
      %449 = vst [vmem:[%s257 + $0xb8] sm:$0xf] %v425
      %p450 = scmp.lt.s32.totalorder %s15, 1
      %s451 = scalar_select %p450, %s15, 1
      %s452 = smul.addr %s451, 24
      %s453 = smul.addr %s452, 8
      %s454 = scalar_lea.vmem %s4, %s453
      // Predicated region
      $region37: #{feature_extractor_forward.12} parent=35 // pred_check
        %p455 = pneg %p137
      $region38: #{feature_extractor_forward.12} parent=35 // pred_check_branch
        %457 = sbr.rel (%p455) target = $region40
      $region39: #{feature_extractor_forward.12} parent=35 // pred_region
        _
      $region40: #{feature_extractor_forward.12} parent=35 // pred_fallthru
        _
    $region36: #{feature_extractor_forward.12} parent=5 // pred_fallthru
      _
    %p458 = scmp.le.s32.totalorder 2, %s10
    // Predicated region
    $region41: #{feature_extractor_forward.12} parent=5 // pred_check
      %p459 = pneg %p458
    $region42: #{feature_extractor_forward.12} parent=5 // pred_check_branch
      %461 = sbr.rel (%p459) target = $region44
    $region43: #{feature_extractor_forward.12} parent=5 // pred_region
      %s462 = ssub.s32 %s10, 2
      // Predicated region
      $region45: #{feature_extractor_forward.12} parent=43 // pred_check
        %p463 = pneg %p143
      $region46: #{feature_extractor_forward.12} parent=43 // pred_check_branch
        %465 = sbr.rel (%p463) target = $region48
      $region47: #{feature_extractor_forward.12} parent=43 // pred_region
        %p466 = scmp.lt.s32.totalorder %s16, 1
        %s467 = scalar_select %p466, %s16, 1
        %s468 = smul.addr %s467, 24
        %s469 = smul.addr %s468, 8
        %s470 = scalar_lea.vmem %s4, %s469
      $region48: #{feature_extractor_forward.12} parent=43 // pred_fallthru
        _
    $region44: #{feature_extractor_forward.12} parent=5 // pred_fallthru
      _
  $region6: #{feature_extractor_forward.12} parent=0 // loop_footer
    %s14 = sadd.s32 1, %s10
  $region7: #{feature_extractor_forward.12} parent=0 // loop_footer_branch
    %9 = sbr.rel target = $region3
  $region8: #{feature_extractor_forward.12} parent=0 // loop_exit
    _

// kernel: feature_extractor_forward.13
$region0: #{feature_extractor_forward.13}
  #allocation0 [shape = 'u32[]', space=smem, size = 0x4, offset = 0x4, fixed_abs, tag = 'smem constant byte address 0x4 - core index']
  #allocation1 [shape = 'u32[144,128]{1,0:T(1,128)}', space=vmem, size = 0x12000, scoped, tag = 'internal scratch']
  #allocation2 [shape = 'f32[2,256]{1,0:T(2,128)}', space=vmem, size = 0x800, scoped, tag = 'scratch operand']
  %s0 = inlined_call_operand.vmem [shape: f32[2,18432], index: 0, kind: input, shape index: {}]
  %s1 = inlined_call_operand.vmem [shape: f32[18432,256], index: 1, kind: input, shape index: {}]
  %s2 = inlined_call_operand.vmem [shape: f32[1,256], index: 2, kind: input, shape index: {}]
  %s3 = inlined_call_operand.vmem [shape: f32[256,8], index: 3, kind: input, shape index: {}]
  %s4 = inlined_call_operand.vmem [shape: f32[1,8], index: 4, kind: input, shape index: {}]
  %s5 = inlined_call_operand.hbm [shape: f32[2,8], index: 5, kind: output, shape index: {}]
  %s6 = sld [smem:[#allocation0]]
  $region61: #{feature_extractor_forward.13} parent=0
    _
  %s8 = ssub.s32 1, %s6
  %s9 = scalar_select 0, %s8, %s6
  $region1: #{feature_extractor_forward.13} parent=0
    #allocation3 [shape = 'u8[1024]{0}', space=vmem, size = 0x400, scoped, tag = 'output window, operand 0, single buffered']
    #allocation4 [shape = 's32[2]{0}', space=sflag, size = 0x8, scoped, tag = 'scoped memory for feature_extractor_forward.13']
    %10 = vsyncpa [#allocation4], 0
    loop: start=0, step=1, limit=10
    $region2: #{feature_extractor_forward.13} parent=1 // loop_pre_header
      _
    $region3: #{feature_extractor_forward.13} parent=1 // loop_header
      %s12 = sphi 0, %s16
      %p13 = scmp.ge.s32.totalorder %s12, 10
      %s22 = sphi 0, %s24
      %s25 = sphi 0, %s22
      %s26 = sphi 0, %s25
      %s42 = sphi 0, %s26
      %s48 = sphi 0, %s50
      %s51 = sphi 0, %s48
      %s52 = sphi 0, %s51
      %s68 = sphi 0, %s52
      %s72 = sphi 0, %s72
      %s74 = sphi 0, %s72
      %s75 = sphi 0, %s74
      %s89 = sphi 0, %s75
      %s93 = sphi 0, %s93
      %s95 = sphi 0, %s93
      %s96 = sphi 0, %s95
      %s110 = sphi 0, %s96
      %s114 = sphi 0, %s114
      %s116 = sphi 0, %s114
      %s117 = sphi 0, %s116
      %s131 = sphi 0, %s117
      %s135 = sphi 0, %s135
      %s137 = sphi 0, %s135
      %s138 = sphi 0, %s137
      %s152 = sphi 0, %s138
    $region4: #{feature_extractor_forward.13} parent=1 // loop_header_branch
      %15 = sbr.rel (%p13) target = $region8
    $region5: #{feature_extractor_forward.13} parent=1 // loop_body
      %s17 = ssub.s32 %s12, 1
      %s18 = ssub.s32 %s12, 2
      %s19 = sadd.s32 %s12, 1
      %s20 = ssub.s32 %s12, %s19
      %p21 = scmp.eq.s32.totalorder %s20, 0
      %s23 = sadd.s32 %s22, 1
      %s24 = scalar_select %p21, %s22, %s23
      %p27 = pneg %p21
      %p28 = scmp.eq.s32.totalorder %s12, 7
      %p29 = por %p27, %p28
      %p30 = scmp.ne.s32.totalorder %s22, %s25
      %p31 = scmp.eq.s32.totalorder %s12, 0
      %p32 = por %p30, %p31
      %p33 = scmp.ne.s32.totalorder %s22, %s25
      %p34 = scmp.eq.s32.totalorder %s17, 7
      %p35 = por %p33, %p34
      %p36 = scmp.ne.s32.totalorder %s25, %s26
      %p37 = scmp.eq.s32.totalorder %s17, 0
      %p38 = por %p36, %p37
      %p39 = scmp.ne.s32.totalorder %s25, %s26
      %p40 = scmp.eq.s32.totalorder %s18, 7
      %p41 = por %p39, %p40
      %p43 = scmp.ne.s32.totalorder %s26, %s42
      %p44 = scmp.eq.s32.totalorder %s18, 0
      %p45 = por %p43, %p44
      %s46 = ssub.s32 %s12, %s19
      %p47 = scmp.eq.s32.totalorder %s46, 0
      %s49 = sadd.s32 %s48, 1
      %s50 = scalar_select %p47, %s48, %s49
      %p53 = pneg %p47
      %p54 = scmp.eq.s32.totalorder %s12, 7
      %p55 = por %p53, %p54
      %p56 = scmp.ne.s32.totalorder %s48, %s51
      %p57 = scmp.eq.s32.totalorder %s12, 0
      %p58 = por %p56, %p57
      %p59 = scmp.ne.s32.totalorder %s48, %s51
      %p60 = scmp.eq.s32.totalorder %s17, 7
      %p61 = por %p59, %p60
      %p62 = scmp.ne.s32.totalorder %s51, %s52
      %p63 = scmp.eq.s32.totalorder %s17, 0
      %p64 = por %p62, %p63
      %p65 = scmp.ne.s32.totalorder %s51, %s52
      %p66 = scmp.eq.s32.totalorder %s18, 7
      %p67 = por %p65, %p66
      %p69 = scmp.ne.s32.totalorder %s52, %s68
      %p70 = scmp.eq.s32.totalorder %s18, 0
      %p71 = por %p69, %p70
      %s73 = sadd.s32 %s72, 1
      %p76 = scmp.eq.s32.totalorder %s12, 7
      %p77 = scmp.ne.s32.totalorder %s72, %s74
      %p78 = scmp.eq.s32.totalorder %s12, 0
      %p79 = por %p77, %p78
      %p80 = scmp.ne.s32.totalorder %s72, %s74
      %p81 = scmp.eq.s32.totalorder %s17, 7
      %p82 = por %p80, %p81
      %p83 = scmp.ne.s32.totalorder %s74, %s75
      %p84 = scmp.eq.s32.totalorder %s17, 0
      %p85 = por %p83, %p84
      %p86 = scmp.ne.s32.totalorder %s74, %s75
      %p87 = scmp.eq.s32.totalorder %s18, 7
      %p88 = por %p86, %p87
      %p90 = scmp.ne.s32.totalorder %s75, %s89
      %p91 = scmp.eq.s32.totalorder %s18, 0
      %p92 = por %p90, %p91
      %s94 = sadd.s32 %s93, 1
      %p97 = scmp.eq.s32.totalorder %s12, 7
      %p98 = scmp.ne.s32.totalorder %s93, %s95
      %p99 = scmp.eq.s32.totalorder %s12, 0
      %p100 = por %p98, %p99
      %p101 = scmp.ne.s32.totalorder %s93, %s95
      %p102 = scmp.eq.s32.totalorder %s17, 7
      %p103 = por %p101, %p102
      %p104 = scmp.ne.s32.totalorder %s95, %s96
      %p105 = scmp.eq.s32.totalorder %s17, 0
      %p106 = por %p104, %p105
      %p107 = scmp.ne.s32.totalorder %s95, %s96
      %p108 = scmp.eq.s32.totalorder %s18, 7
      %p109 = por %p107, %p108
      %p111 = scmp.ne.s32.totalorder %s96, %s110
      %p112 = scmp.eq.s32.totalorder %s18, 0
      %p113 = por %p111, %p112
      %s115 = sadd.s32 %s114, 1
      %p118 = scmp.eq.s32.totalorder %s12, 7
      %p119 = scmp.ne.s32.totalorder %s114, %s116
      %p120 = scmp.eq.s32.totalorder %s12, 0
      %p121 = por %p119, %p120
      %p122 = scmp.ne.s32.totalorder %s114, %s116
      %p123 = scmp.eq.s32.totalorder %s17, 7
      %p124 = por %p122, %p123
      %p125 = scmp.ne.s32.totalorder %s116, %s117
      %p126 = scmp.eq.s32.totalorder %s17, 0
      %p127 = por %p125, %p126
      %p128 = scmp.ne.s32.totalorder %s116, %s117
      %p129 = scmp.eq.s32.totalorder %s18, 7
      %p130 = por %p128, %p129
      %p132 = scmp.ne.s32.totalorder %s117, %s131
      %p133 = scmp.eq.s32.totalorder %s18, 0
      %p134 = por %p132, %p133
      %s136 = sadd.s32 %s135, 1
      %p139 = scmp.eq.s32.totalorder %s12, 7
      %p140 = scmp.ne.s32.totalorder %s135, %s137
      %p141 = scmp.eq.s32.totalorder %s12, 0
      %p142 = por %p140, %p141
      %p143 = scmp.ne.s32.totalorder %s135, %s137
      %p144 = scmp.eq.s32.totalorder %s17, 7
      %p145 = por %p143, %p144
      %p146 = scmp.ne.s32.totalorder %s137, %s138
      %p147 = scmp.eq.s32.totalorder %s17, 0
      %p148 = por %p146, %p147
      %p149 = scmp.ne.s32.totalorder %s137, %s138
      %p150 = scmp.eq.s32.totalorder %s18, 7
      %p151 = por %p149, %p150
      %p153 = scmp.ne.s32.totalorder %s138, %s152
      %p154 = scmp.eq.s32.totalorder %s18, 0
      %p155 = por %p153, %p154
      %p156 = scmp.le.s32.totalorder 1, %s12
      %p157 = scmp.lt.s32.totalorder %s12, 9
      %p158 = pnand %p156, %p157
      %p159 = pneg %p158
      // Predicated region
      $region9: #{feature_extractor_forward.13} parent=5 // pred_check
        _
      $region10: #{feature_extractor_forward.13} parent=5 // pred_check_branch
        %161 = sbr.rel (%p158) target = $region12
      $region11: #{feature_extractor_forward.13} parent=5 // pred_region
        %s162 = ssub.s32 %s12, 1
        // Predicated region
        $region13: #{feature_extractor_forward.13} parent=11 // pred_check
          %p163 = pneg %p85
        $region14: #{feature_extractor_forward.13} parent=11 // pred_check_branch
          %165 = sbr.rel (%p163) target = $region16
        $region15: #{feature_extractor_forward.13} parent=11 // pred_region
          _
        $region16: #{feature_extractor_forward.13} parent=11 // pred_fallthru
          _
        // Predicated region
        $region17: #{feature_extractor_forward.13} parent=11 // pred_check
          %p166 = pneg %p106
        $region18: #{feature_extractor_forward.13} parent=11 // pred_check_branch
          %168 = sbr.rel (%p166) target = $region20
        $region19: #{feature_extractor_forward.13} parent=11 // pred_region
          _
        $region20: #{feature_extractor_forward.13} parent=11 // pred_fallthru
          _
        // Predicated region
        $region21: #{feature_extractor_forward.13} parent=11 // pred_check
          %p169 = pneg %p127
        $region22: #{feature_extractor_forward.13} parent=11 // pred_check_branch
          %171 = sbr.rel (%p169) target = $region24
        $region23: #{feature_extractor_forward.13} parent=11 // pred_region
          _
        $region24: #{feature_extractor_forward.13} parent=11 // pred_fallthru
          _
      $region12: #{feature_extractor_forward.13} parent=5 // pred_fallthru
        _
      %p172 = scmp.lt.s32.totalorder %s12, 8
      // Predicated region
      $region25: #{feature_extractor_forward.13} parent=5 // pred_check
        %p173 = pneg %p172
      $region26: #{feature_extractor_forward.13} parent=5 // pred_check_branch
        %175 = sbr.rel (%p173) target = $region28
      $region27: #{feature_extractor_forward.13} parent=5 // pred_region
        // Predicated region
        $region29: #{feature_extractor_forward.13} parent=27 // pred_check
          %p176 = pneg %p32
        $region30: #{feature_extractor_forward.13} parent=27 // pred_check_branch
          %178 = sbr.rel (%p176) target = $region32
        $region31: #{feature_extractor_forward.13} parent=27 // pred_region
          %s179 = smul.u32 18, %s12
          %p180 = scmp.lt.s32.totalorder %s179, 143
          %s181 = scalar_select %p180, %s179, 143
          %s182 = smul.addr %s181, 2
          %s183 = scalar_lea.vmem %s0, %s182
          %s184 = smul.u32 18, %s12
        $region32: #{feature_extractor_forward.13} parent=27 // pred_fallthru
          _
        // Predicated region
        $region33: #{feature_extractor_forward.13} parent=27 // pred_check
          %p185 = pneg %p58
        $region34: #{feature_extractor_forward.13} parent=27 // pred_check_branch
          %187 = sbr.rel (%p185) target = $region36
        $region35: #{feature_extractor_forward.13} parent=27 // pred_region
          %s188 = smul.u32 288, %s12
          %p189 = scmp.lt.s32.totalorder %s188, 2303
          %s190 = scalar_select %p189, %s188, 2303
          %s191 = smul.addr %s190, 2
          %s192 = smul.addr %s191, 8
          %s193 = scalar_lea.vmem %s1, %s192
          %s194 = smul.u32 288, %s12
        $region36: #{feature_extractor_forward.13} parent=27 // pred_fallthru
          _
      $region28: #{feature_extractor_forward.13} parent=5 // pred_fallthru
        _
      %p195 = scmp.le.s32.totalorder 1, %s12
      %p196 = scmp.lt.s32.totalorder %s12, 9
      %p197 = pnand %p195, %p196
      %p198 = pneg %p197
      // Predicated region
      $region37: #{feature_extractor_forward.13} parent=5 // pred_check
        _
      $region38: #{feature_extractor_forward.13} parent=5 // pred_check_branch
        %200 = sbr.rel (%p197) target = $region40
      $region39: #{feature_extractor_forward.13} parent=5 // pred_region
        %s201 = ssub.s32 %s12, 1
        %s202 = smul.u32 18, %s17
        %p203 = scmp.lt.s32.totalorder %s202, 143
        %s204 = scalar_select %p203, %s202, 143
        %s205 = smul.addr %s204, 2
        %s206 = scalar_lea.vmem %s0, %s205
        %p207 = pneg %p38
        %p208 = pneg %p35
        %s209 = smul.u32 288, %s17
        %p210 = scmp.lt.s32.totalorder %s209, 2303
        %s211 = scalar_select %p210, %s209, 2303
        %s212 = smul.addr %s211, 2
        %s213 = smul.addr %s212, 8
        %s214 = scalar_lea.vmem %s1, %s213
        %p215 = pneg %p64
        %p216 = pneg %p61
        %p217 = pneg %p85
        %p218 = pneg %p82
        %p219 = pneg %p106
        %p220 = pneg %p103
        %p221 = pneg %p127
        %p222 = pneg %p124
        %p223 = pneg %p148
        %p224 = pneg %p145
        %s225 = smul.u32 18, %s17
        %p226 = scmp.lt.s32.totalorder %s225, 143
        %s227 = scalar_select %p226, %s225, 143
        %s228 = smul.addr %s227, 2
        %s229 = scalar_lea.vmem %s0, %s228
        %s230 = smul.u32 18, %s17
        %s231 = smul.u32 288, %s17
        %p232 = scmp.lt.s32.totalorder %s231, 2303
        %s233 = scalar_select %p232, %s231, 2303
        %s234 = smul.addr %s233, 2
        %s235 = smul.addr %s234, 8
        %s236 = scalar_lea.vmem %s1, %s235
        %s237 = smul.u32 288, %s17
        %p238 = scmp.eq.s32.totalorder %s17, 0
        // Predicated region
        $region41: #{feature_extractor_forward.13} parent=39 // pred_check
          %p239 = pneg %p238
        $region42: #{feature_extractor_forward.13} parent=39 // pred_check_branch
          %241 = sbr.rel (%p239) target = $region44
        $region43: #{feature_extractor_forward.13} parent=39 // pred_region
          %242 = vst [vmem:[#allocation2] sm:$0xf] 0.0
        $region44: #{feature_extractor_forward.13} parent=39 // pred_fallthru
          _
        %v243 = vld [vmem:[#allocation2] sm:$0xf]
        %v244 = vld [vmem:[%s229] sm:$0xff]
        %v245 = vld [vmem:[%s229 + $0x8] sm:$0xff]
        %v246 = vld [vmem:[%s229 + $0x10] sm:$0xff]
        %v247 = vld [vmem:[%s229 + $0x18] sm:$0xff]
        %v248 = vld [vmem:[%s229 + $0x20] sm:$0xf]
        %v249 = vld [vmem:[%s236] sm:$0xff]
        %v250 = vld [vmem:[%s236 + $0x8] sm:$0xff]
        %v251 = vld [vmem:[%s236 + $0x10] sm:$0xff]
        %v252 = vld [vmem:[%s236 + $0x18] sm:$0xff]
        %v253 = vld [vmem:[%s236 + $0x20] sm:$0xff]
        %v254 = vld [vmem:[%s236 + $0x28] sm:$0xff]
        %v255 = vld [vmem:[%s236 + $0x30] sm:$0xff]
        %v256 = vld [vmem:[%s236 + $0x38] sm:$0xff]
        %v257 = vld [vmem:[%s236 + $0x40] sm:$0xff]
        %v258 = vld [vmem:[%s236 + $0x48] sm:$0xff]
        %v259 = vld [vmem:[%s236 + $0x50] sm:$0xff]
        %v260 = vld [vmem:[%s236 + $0x58] sm:$0xff]
        %v261 = vld [vmem:[%s236 + $0x60] sm:$0xff]
        %v262 = vld [vmem:[%s236 + $0x68] sm:$0xff]
        %v263 = vld [vmem:[%s236 + $0x70] sm:$0xff]
        %v264 = vld [vmem:[%s236 + $0x78] sm:$0xff]
        %v265 = vld [vmem:[%s236 + $0x80] sm:$0xff]
        %v266 = vld [vmem:[%s236 + $0x88] sm:$0xff]
        %v267 = vld [vmem:[%s236 + $0x90] sm:$0xff]
        %v268 = vld [vmem:[%s236 + $0x98] sm:$0xff]
        %v269 = vld [vmem:[%s236 + $0xa0] sm:$0xff]
        %v270 = vld [vmem:[%s236 + $0xa8] sm:$0xff]
        %v271 = vld [vmem:[%s236 + $0xb0] sm:$0xff]
        %v272 = vld [vmem:[%s236 + $0xb8] sm:$0xff]
        %v273 = vld [vmem:[%s236 + $0xc0] sm:$0xff]
        %v274 = vld [vmem:[%s236 + $0xc8] sm:$0xff]
        %v275 = vld [vmem:[%s236 + $0xd0] sm:$0xff]
        %v276 = vld [vmem:[%s236 + $0xd8] sm:$0xff]
        %v277 = vld [vmem:[%s236 + $0xe0] sm:$0xff]
        %v278 = vld [vmem:[%s236 + $0xe8] sm:$0xff]
        %v279 = vld [vmem:[%s236 + $0xf0] sm:$0xff]
        %v280 = vld [vmem:[%s236 + $0xf8] sm:$0xff]
        %v281 = vld [vmem:[%s236 + $0x100] sm:$0xff]
        %v282 = vld [vmem:[%s236 + $0x108] sm:$0xff]
        %v283 = vld [vmem:[%s236 + $0x110] sm:$0xff]
        %v284 = vld [vmem:[%s236 + $0x118] sm:$0xff]
        %v285 = vld [vmem:[%s236 + $0x120] sm:$0xff]
        %v286 = vld [vmem:[%s236 + $0x128] sm:$0xff]
        %v287 = vld [vmem:[%s236 + $0x130] sm:$0xff]
        %v288 = vld [vmem:[%s236 + $0x138] sm:$0xff]
        %v289 = vld [vmem:[%s236 + $0x140] sm:$0xff]
        %v290 = vld [vmem:[%s236 + $0x148] sm:$0xff]
        %v291 = vld [vmem:[%s236 + $0x150] sm:$0xff]
        %v292 = vld [vmem:[%s236 + $0x158] sm:$0xff]
        %v293 = vld [vmem:[%s236 + $0x160] sm:$0xff]
        %v294 = vld [vmem:[%s236 + $0x168] sm:$0xff]
        %v295 = vld [vmem:[%s236 + $0x170] sm:$0xff]
        %v296 = vld [vmem:[%s236 + $0x178] sm:$0xff]
        %v297 = vld [vmem:[%s236 + $0x180] sm:$0xff]
        %v298 = vld [vmem:[%s236 + $0x188] sm:$0xff]
        %v299 = vld [vmem:[%s236 + $0x190] sm:$0xff]
        %v300 = vld [vmem:[%s236 + $0x198] sm:$0xff]
        %v301 = vld [vmem:[%s236 + $0x1a0] sm:$0xff]
        %v302 = vld [vmem:[%s236 + $0x1a8] sm:$0xff]
        %v303 = vld [vmem:[%s236 + $0x1b0] sm:$0xff]
        %v304 = vld [vmem:[%s236 + $0x1b8] sm:$0xff]
        %v305 = vld [vmem:[%s236 + $0x1c0] sm:$0xff]
        %v306 = vld [vmem:[%s236 + $0x1c8] sm:$0xff]
        %v307 = vld [vmem:[%s236 + $0x1d0] sm:$0xff]
        %v308 = vld [vmem:[%s236 + $0x1d8] sm:$0xff]
        %v309 = vld [vmem:[%s236 + $0x1e0] sm:$0xff]
        %v310 = vld [vmem:[%s236 + $0x1e8] sm:$0xff]
        %v311 = vld [vmem:[%s236 + $0x1f0] sm:$0xff]
        %v312 = vld [vmem:[%s236 + $0x1f8] sm:$0xff]
        %v313 = vld [vmem:[%s236 + $0x200] sm:$0xff]
        %v314 = vld [vmem:[%s236 + $0x208] sm:$0xff]
        %v315 = vld [vmem:[%s236 + $0x210] sm:$0xff]
        %v316 = vld [vmem:[%s236 + $0x218] sm:$0xff]
        %v317 = vld [vmem:[%s236 + $0x220] sm:$0xff]
        %v318 = vld [vmem:[%s236 + $0x228] sm:$0xff]
        %v319 = vld [vmem:[%s236 + $0x230] sm:$0xff]
        %v320 = vld [vmem:[%s236 + $0x238] sm:$0xff]
        %v321 = vld [vmem:[%s236 + $0x240] sm:$0xff]
        %v322 = vld [vmem:[%s236 + $0x248] sm:$0xff]
        %v323 = vld [vmem:[%s236 + $0x250] sm:$0xff]
        %v324 = vld [vmem:[%s236 + $0x258] sm:$0xff]
        %v325 = vld [vmem:[%s236 + $0x260] sm:$0xff]
        %v326 = vld [vmem:[%s236 + $0x268] sm:$0xff]
        %v327 = vld [vmem:[%s236 + $0x270] sm:$0xff]
        %v328 = vld [vmem:[%s236 + $0x278] sm:$0xff]
        %v329 = vld [vmem:[%s236 + $0x280] sm:$0xff]
        %v330 = vld [vmem:[%s236 + $0x288] sm:$0xff]
        %v331 = vld [vmem:[%s236 + $0x290] sm:$0xff]
        %v332 = vld [vmem:[%s236 + $0x298] sm:$0xff]
        %v333 = vld [vmem:[%s236 + $0x2a0] sm:$0xff]
        %v334 = vld [vmem:[%s236 + $0x2a8] sm:$0xff]
        %v335 = vld [vmem:[%s236 + $0x2b0] sm:$0xff]
        %v336 = vld [vmem:[%s236 + $0x2b8] sm:$0xff]
        %v337 = vld [vmem:[%s236 + $0x2c0] sm:$0xff]
        %v338 = vld [vmem:[%s236 + $0x2c8] sm:$0xff]
        %v339 = vld [vmem:[%s236 + $0x2d0] sm:$0xff]
        %v340 = vld [vmem:[%s236 + $0x2d8] sm:$0xff]
        %v341 = vld [vmem:[%s236 + $0x2e0] sm:$0xff]
        %v342 = vld [vmem:[%s236 + $0x2e8] sm:$0xff]
        %v343 = vld [vmem:[%s236 + $0x2f0] sm:$0xff]
        %v344 = vld [vmem:[%s236 + $0x2f8] sm:$0xff]
        %v345 = vld [vmem:[%s236 + $0x300] sm:$0xff]
        %v346 = vld [vmem:[%s236 + $0x308] sm:$0xff]
        %v347 = vld [vmem:[%s236 + $0x310] sm:$0xff]
        %v348 = vld [vmem:[%s236 + $0x318] sm:$0xff]
        %v349 = vld [vmem:[%s236 + $0x320] sm:$0xff]
        %v350 = vld [vmem:[%s236 + $0x328] sm:$0xff]
        %v351 = vld [vmem:[%s236 + $0x330] sm:$0xff]
        %v352 = vld [vmem:[%s236 + $0x338] sm:$0xff]
        %v353 = vld [vmem:[%s236 + $0x340] sm:$0xff]
        %v354 = vld [vmem:[%s236 + $0x348] sm:$0xff]
        %v355 = vld [vmem:[%s236 + $0x350] sm:$0xff]
        %v356 = vld [vmem:[%s236 + $0x358] sm:$0xff]
        %v357 = vld [vmem:[%s236 + $0x360] sm:$0xff]
        %v358 = vld [vmem:[%s236 + $0x368] sm:$0xff]
        %v359 = vld [vmem:[%s236 + $0x370] sm:$0xff]
        %v360 = vld [vmem:[%s236 + $0x378] sm:$0xff]
        %v361 = vld [vmem:[%s236 + $0x380] sm:$0xff]
        %v362 = vld [vmem:[%s236 + $0x388] sm:$0xff]
        %v363 = vld [vmem:[%s236 + $0x390] sm:$0xff]
        %v364 = vld [vmem:[%s236 + $0x398] sm:$0xff]
        %v365 = vld [vmem:[%s236 + $0x3a0] sm:$0xff]
        %v366 = vld [vmem:[%s236 + $0x3a8] sm:$0xff]
        %v367 = vld [vmem:[%s236 + $0x3b0] sm:$0xff]
        %v368 = vld [vmem:[%s236 + $0x3b8] sm:$0xff]
        %v369 = vld [vmem:[%s236 + $0x3c0] sm:$0xff]
        %v370 = vld [vmem:[%s236 + $0x3c8] sm:$0xff]
        %v371 = vld [vmem:[%s236 + $0x3d0] sm:$0xff]
        %v372 = vld [vmem:[%s236 + $0x3d8] sm:$0xff]
        %v373 = vld [vmem:[%s236 + $0x3e0] sm:$0xff]
        %v374 = vld [vmem:[%s236 + $0x3e8] sm:$0xff]
        %v375 = vld [vmem:[%s236 + $0x3f0] sm:$0xff]
        %v376 = vld [vmem:[%s236 + $0x3f8] sm:$0xff]
        %v377 = vld [vmem:[%s236 + $0x400] sm:$0xff]
        %v378 = vld [vmem:[%s236 + $0x408] sm:$0xff]
        %v379 = vld [vmem:[%s236 + $0x410] sm:$0xff]
        %v380 = vld [vmem:[%s236 + $0x418] sm:$0xff]
        %v381 = vld [vmem:[%s236 + $0x420] sm:$0xff]
        %v382 = vld [vmem:[%s236 + $0x428] sm:$0xff]
        %v383 = vld [vmem:[%s236 + $0x430] sm:$0xff]
        %v384 = vld [vmem:[%s236 + $0x438] sm:$0xff]
        %v385 = vld [vmem:[%s236 + $0x440] sm:$0xff]
        %v386 = vld [vmem:[%s236 + $0x448] sm:$0xff]
        %v387 = vld [vmem:[%s236 + $0x450] sm:$0xff]
        %v388 = vld [vmem:[%s236 + $0x458] sm:$0xff]
        %v389 = vld [vmem:[%s236 + $0x460] sm:$0xff]
        %v390 = vld [vmem:[%s236 + $0x468] sm:$0xff]
        %v391 = vld [vmem:[%s236 + $0x470] sm:$0xff]
        %v392 = vld [vmem:[%s236 + $0x478] sm:$0xff]
        %v393 = vld [vmem:[%s236 + $0x480] sm:$0xff]
        %v394 = vld [vmem:[%s236 + $0x488] sm:$0xff]
        %v395 = vld [vmem:[%s236 + $0x490] sm:$0xff]
        %v396 = vld [vmem:[%s236 + $0x498] sm:$0xff]
        %v397 = vld [vmem:[%s236 + $0x4a0] sm:$0xff]
        %v398 = vld [vmem:[%s236 + $0x4a8] sm:$0xff]
        %v399 = vld [vmem:[%s236 + $0x4b0] sm:$0xff]
        %v400 = vld [vmem:[%s236 + $0x4b8] sm:$0xff]
        %v401 = vld [vmem:[%s236 + $0x4c0] sm:$0xff]
        %v402 = vld [vmem:[%s236 + $0x4c8] sm:$0xff]
        %v403 = vld [vmem:[%s236 + $0x4d0] sm:$0xff]
        %v404 = vld [vmem:[%s236 + $0x4d8] sm:$0xff]
        %v405 = vld [vmem:[%s236 + $0x4e0] sm:$0xff]
        %v406 = vld [vmem:[%s236 + $0x4e8] sm:$0xff]
        %v407 = vld [vmem:[%s236 + $0x4f0] sm:$0xff]
        %v408 = vld [vmem:[%s236 + $0x4f8] sm:$0xff]
        %v409 = vld [vmem:[%s236 + $0x500] sm:$0xff]
        %v410 = vld [vmem:[%s236 + $0x508] sm:$0xff]
        %v411 = vld [vmem:[%s236 + $0x510] sm:$0xff]
        %v412 = vld [vmem:[%s236 + $0x518] sm:$0xff]
        %v413 = vld [vmem:[%s236 + $0x520] sm:$0xff]
        %v414 = vld [vmem:[%s236 + $0x528] sm:$0xff]
        %v415 = vld [vmem:[%s236 + $0x530] sm:$0xff]
        %v416 = vld [vmem:[%s236 + $0x538] sm:$0xff]
        %v417 = vld [vmem:[%s236 + $0x540] sm:$0xff]
        %v418 = vld [vmem:[%s236 + $0x548] sm:$0xff]
        %v419 = vld [vmem:[%s236 + $0x550] sm:$0xff]
        %v420 = vld [vmem:[%s236 + $0x558] sm:$0xff]
        %v421 = vld [vmem:[%s236 + $0x560] sm:$0xff]
        %v422 = vld [vmem:[%s236 + $0x568] sm:$0xff]
        %v423 = vld [vmem:[%s236 + $0x570] sm:$0xff]
        %v424 = vld [vmem:[%s236 + $0x578] sm:$0xff]
        %v425 = vld [vmem:[%s236 + $0x580] sm:$0xff]
        %v426 = vld [vmem:[%s236 + $0x588] sm:$0xff]
        %v427 = vld [vmem:[%s236 + $0x590] sm:$0xff]
        %v428 = vld [vmem:[%s236 + $0x598] sm:$0xff]
        %v429 = vld [vmem:[%s236 + $0x5a0] sm:$0xff]
        %v430 = vld [vmem:[%s236 + $0x5a8] sm:$0xff]
        %v431 = vld [vmem:[%s236 + $0x5b0] sm:$0xff]
        %v432 = vld [vmem:[%s236 + $0x5b8] sm:$0xff]
        %v433 = vld [vmem:[%s236 + $0x5c0] sm:$0xff]
        %v434 = vld [vmem:[%s236 + $0x5c8] sm:$0xff]
        %v435 = vld [vmem:[%s236 + $0x5d0] sm:$0xff]
        %v436 = vld [vmem:[%s236 + $0x5d8] sm:$0xff]
        %v437 = vld [vmem:[%s236 + $0x5e0] sm:$0xff]
        %v438 = vld [vmem:[%s236 + $0x5e8] sm:$0xff]
        %v439 = vld [vmem:[%s236 + $0x5f0] sm:$0xff]
        %v440 = vld [vmem:[%s236 + $0x5f8] sm:$0xff]
        %v441 = vld [vmem:[%s236 + $0x600] sm:$0xff]
        %v442 = vld [vmem:[%s236 + $0x608] sm:$0xff]
        %v443 = vld [vmem:[%s236 + $0x610] sm:$0xff]
        %v444 = vld [vmem:[%s236 + $0x618] sm:$0xff]
        %v445 = vld [vmem:[%s236 + $0x620] sm:$0xff]
        %v446 = vld [vmem:[%s236 + $0x628] sm:$0xff]
        %v447 = vld [vmem:[%s236 + $0x630] sm:$0xff]
        %v448 = vld [vmem:[%s236 + $0x638] sm:$0xff]
        %v449 = vld [vmem:[%s236 + $0x640] sm:$0xff]
        %v450 = vld [vmem:[%s236 + $0x648] sm:$0xff]
        %v451 = vld [vmem:[%s236 + $0x650] sm:$0xff]
        %v452 = vld [vmem:[%s236 + $0x658] sm:$0xff]
        %v453 = vld [vmem:[%s236 + $0x660] sm:$0xff]
        %v454 = vld [vmem:[%s236 + $0x668] sm:$0xff]
        %v455 = vld [vmem:[%s236 + $0x670] sm:$0xff]
        %v456 = vld [vmem:[%s236 + $0x678] sm:$0xff]
        %v457 = vld [vmem:[%s236 + $0x680] sm:$0xff]
        %v458 = vld [vmem:[%s236 + $0x688] sm:$0xff]
        %v459 = vld [vmem:[%s236 + $0x690] sm:$0xff]
        %v460 = vld [vmem:[%s236 + $0x698] sm:$0xff]
        %v461 = vld [vmem:[%s236 + $0x6a0] sm:$0xff]
        %v462 = vld [vmem:[%s236 + $0x6a8] sm:$0xff]
        %v463 = vld [vmem:[%s236 + $0x6b0] sm:$0xff]
        %v464 = vld [vmem:[%s236 + $0x6b8] sm:$0xff]
        %v465 = vld [vmem:[%s236 + $0x6c0] sm:$0xff]
        %v466 = vld [vmem:[%s236 + $0x6c8] sm:$0xff]
        %v467 = vld [vmem:[%s236 + $0x6d0] sm:$0xff]
        %v468 = vld [vmem:[%s236 + $0x6d8] sm:$0xff]
        %v469 = vld [vmem:[%s236 + $0x6e0] sm:$0xff]
        %v470 = vld [vmem:[%s236 + $0x6e8] sm:$0xff]
        %v471 = vld [vmem:[%s236 + $0x6f0] sm:$0xff]
        %v472 = vld [vmem:[%s236 + $0x6f8] sm:$0xff]
        %v473 = vld [vmem:[%s236 + $0x700] sm:$0xff]
        %v474 = vld [vmem:[%s236 + $0x708] sm:$0xff]
        %v475 = vld [vmem:[%s236 + $0x710] sm:$0xff]
        %v476 = vld [vmem:[%s236 + $0x718] sm:$0xff]
        %v477 = vld [vmem:[%s236 + $0x720] sm:$0xff]
        %v478 = vld [vmem:[%s236 + $0x728] sm:$0xff]
        %v479 = vld [vmem:[%s236 + $0x730] sm:$0xff]
        %v480 = vld [vmem:[%s236 + $0x738] sm:$0xff]
        %v481 = vld [vmem:[%s236 + $0x740] sm:$0xff]
        %v482 = vld [vmem:[%s236 + $0x748] sm:$0xff]
        %v483 = vld [vmem:[%s236 + $0x750] sm:$0xff]
        %v484 = vld [vmem:[%s236 + $0x758] sm:$0xff]
        %v485 = vld [vmem:[%s236 + $0x760] sm:$0xff]
        %v486 = vld [vmem:[%s236 + $0x768] sm:$0xff]
        %v487 = vld [vmem:[%s236 + $0x770] sm:$0xff]
        %v488 = vld [vmem:[%s236 + $0x778] sm:$0xff]
        %v489 = vld [vmem:[%s236 + $0x780] sm:$0xff]
        %v490 = vld [vmem:[%s236 + $0x788] sm:$0xff]
        %v491 = vld [vmem:[%s236 + $0x790] sm:$0xff]
        %v492 = vld [vmem:[%s236 + $0x798] sm:$0xff]
        %v493 = vld [vmem:[%s236 + $0x7a0] sm:$0xff]
        %v494 = vld [vmem:[%s236 + $0x7a8] sm:$0xff]
        %v495 = vld [vmem:[%s236 + $0x7b0] sm:$0xff]
        %v496 = vld [vmem:[%s236 + $0x7b8] sm:$0xff]
        %v497 = vld [vmem:[%s236 + $0x7c0] sm:$0xff]
        %v498 = vld [vmem:[%s236 + $0x7c8] sm:$0xff]
        %v499 = vld [vmem:[%s236 + $0x7d0] sm:$0xff]
        %v500 = vld [vmem:[%s236 + $0x7d8] sm:$0xff]
        %v501 = vld [vmem:[%s236 + $0x7e0] sm:$0xff]
        %v502 = vld [vmem:[%s236 + $0x7e8] sm:$0xff]
        %v503 = vld [vmem:[%s236 + $0x7f0] sm:$0xff]
        %v504 = vld [vmem:[%s236 + $0x7f8] sm:$0xff]
        %v505 = vld [vmem:[%s236 + $0x800] sm:$0xff]
        %v506 = vld [vmem:[%s236 + $0x808] sm:$0xff]
        %v507 = vld [vmem:[%s236 + $0x810] sm:$0xff]
        %v508 = vld [vmem:[%s236 + $0x818] sm:$0xff]
        %v509 = vld [vmem:[%s236 + $0x820] sm:$0xff]
        %v510 = vld [vmem:[%s236 + $0x828] sm:$0xff]
        %v511 = vld [vmem:[%s236 + $0x830] sm:$0xff]
        %v512 = vld [vmem:[%s236 + $0x838] sm:$0xff]
        %v513 = vld [vmem:[%s236 + $0x840] sm:$0xff]
        %v514 = vld [vmem:[%s236 + $0x848] sm:$0xff]
        %v515 = vld [vmem:[%s236 + $0x850] sm:$0xff]
        %v516 = vld [vmem:[%s236 + $0x858] sm:$0xff]
        %v517 = vld [vmem:[%s236 + $0x860] sm:$0xff]
        %v518 = vld [vmem:[%s236 + $0x868] sm:$0xff]
        %v519 = vld [vmem:[%s236 + $0x870] sm:$0xff]
        %v520 = vld [vmem:[%s236 + $0x878] sm:$0xff]
        %v521 = vld [vmem:[%s236 + $0x880] sm:$0xff]
        %v522 = vld [vmem:[%s236 + $0x888] sm:$0xff]
        %v523 = vld [vmem:[%s236 + $0x890] sm:$0xff]
        %v524 = vld [vmem:[%s236 + $0x898] sm:$0xff]
        %v525 = vld [vmem:[%s236 + $0x8a0] sm:$0xff]
        %v526 = vld [vmem:[%s236 + $0x8a8] sm:$0xff]
        %v527 = vld [vmem:[%s236 + $0x8b0] sm:$0xff]
        %v528 = vld [vmem:[%s236 + $0x8b8] sm:$0xff]
        %v529 = vld [vmem:[%s236 + $0x8c0] sm:$0xff]
        %v530 = vld [vmem:[%s236 + $0x8c8] sm:$0xff]
        %v531 = vld [vmem:[%s236 + $0x8d0] sm:$0xff]
        %v532 = vld [vmem:[%s236 + $0x8d8] sm:$0xff]
        %v533 = vld [vmem:[%s236 + $0x8e0] sm:$0xff]
        %v534 = vld [vmem:[%s236 + $0x8e8] sm:$0xff]
        %v535 = vld [vmem:[%s236 + $0x8f0] sm:$0xff]
        %v536 = vld [vmem:[%s236 + $0x8f8] sm:$0xff]
        %v537 = vld [vmem:[%s236 + $0x900] sm:$0xff]
        %v538 = vld [vmem:[%s236 + $0x908] sm:$0xff]
        %v539 = vld [vmem:[%s236 + $0x910] sm:$0xff]
        %v540 = vld [vmem:[%s236 + $0x918] sm:$0xff]
        %v541 = vld [vmem:[%s236 + $0x920] sm:$0xff]
        %v542 = vld [vmem:[%s236 + $0x928] sm:$0xff]
        %v543 = vld [vmem:[%s236 + $0x930] sm:$0xff]
        %v544 = vld [vmem:[%s236 + $0x938] sm:$0xff]
        %v545 = vld [vmem:[%s236 + $0x940] sm:$0xff]
        %v546 = vld [vmem:[%s236 + $0x948] sm:$0xff]
        %v547 = vld [vmem:[%s236 + $0x950] sm:$0xff]
        %v548 = vld [vmem:[%s236 + $0x958] sm:$0xff]
        %v549 = vld [vmem:[%s236 + $0x960] sm:$0xff]
        %v550 = vld [vmem:[%s236 + $0x968] sm:$0xff]
        %v551 = vld [vmem:[%s236 + $0x970] sm:$0xff]
        %v552 = vld [vmem:[%s236 + $0x978] sm:$0xff]
        %v553 = vld [vmem:[%s236 + $0x980] sm:$0xff]
        %v554 = vld [vmem:[%s236 + $0x988] sm:$0xff]
        %v555 = vld [vmem:[%s236 + $0x990] sm:$0xff]
        %v556 = vld [vmem:[%s236 + $0x998] sm:$0xff]
        %v557 = vld [vmem:[%s236 + $0x9a0] sm:$0xff]
        %v558 = vld [vmem:[%s236 + $0x9a8] sm:$0xff]
        %v559 = vld [vmem:[%s236 + $0x9b0] sm:$0xff]
        %v560 = vld [vmem:[%s236 + $0x9b8] sm:$0xff]
        %v561 = vld [vmem:[%s236 + $0x9c0] sm:$0xff]
        %v562 = vld [vmem:[%s236 + $0x9c8] sm:$0xff]
        %v563 = vld [vmem:[%s236 + $0x9d0] sm:$0xff]
        %v564 = vld [vmem:[%s236 + $0x9d8] sm:$0xff]
        %v565 = vld [vmem:[%s236 + $0x9e0] sm:$0xff]
        %v566 = vld [vmem:[%s236 + $0x9e8] sm:$0xff]
        %v567 = vld [vmem:[%s236 + $0x9f0] sm:$0xff]
        %v568 = vld [vmem:[%s236 + $0x9f8] sm:$0xff]
        %v569 = vld [vmem:[%s236 + $0xa00] sm:$0xff]
        %v570 = vld [vmem:[%s236 + $0xa08] sm:$0xff]
        %v571 = vld [vmem:[%s236 + $0xa10] sm:$0xff]
        %v572 = vld [vmem:[%s236 + $0xa18] sm:$0xff]
        %v573 = vld [vmem:[%s236 + $0xa20] sm:$0xff]
        %v574 = vld [vmem:[%s236 + $0xa28] sm:$0xff]
        %v575 = vld [vmem:[%s236 + $0xa30] sm:$0xff]
        %v576 = vld [vmem:[%s236 + $0xa38] sm:$0xff]
        %v577 = vld [vmem:[%s236 + $0xa40] sm:$0xff]
        %v578 = vld [vmem:[%s236 + $0xa48] sm:$0xff]
        %v579 = vld [vmem:[%s236 + $0xa50] sm:$0xff]
        %v580 = vld [vmem:[%s236 + $0xa58] sm:$0xff]
        %v581 = vld [vmem:[%s236 + $0xa60] sm:$0xff]
        %v582 = vld [vmem:[%s236 + $0xa68] sm:$0xff]
        %v583 = vld [vmem:[%s236 + $0xa70] sm:$0xff]
        %v584 = vld [vmem:[%s236 + $0xa78] sm:$0xff]
        %v585 = vld [vmem:[%s236 + $0xa80] sm:$0xff]
        %v586 = vld [vmem:[%s236 + $0xa88] sm:$0xff]
        %v587 = vld [vmem:[%s236 + $0xa90] sm:$0xff]
        %v588 = vld [vmem:[%s236 + $0xa98] sm:$0xff]
        %v589 = vld [vmem:[%s236 + $0xaa0] sm:$0xff]
        %v590 = vld [vmem:[%s236 + $0xaa8] sm:$0xff]
        %v591 = vld [vmem:[%s236 + $0xab0] sm:$0xff]
        %v592 = vld [vmem:[%s236 + $0xab8] sm:$0xff]
        %v593 = vld [vmem:[%s236 + $0xac0] sm:$0xff]
        %v594 = vld [vmem:[%s236 + $0xac8] sm:$0xff]
        %v595 = vld [vmem:[%s236 + $0xad0] sm:$0xff]
        %v596 = vld [vmem:[%s236 + $0xad8] sm:$0xff]
        %v597 = vld [vmem:[%s236 + $0xae0] sm:$0xff]
        %v598 = vld [vmem:[%s236 + $0xae8] sm:$0xff]
        %v599 = vld [vmem:[%s236 + $0xaf0] sm:$0xff]
        %v600 = vld [vmem:[%s236 + $0xaf8] sm:$0xff]
        %v601 = vld [vmem:[%s236 + $0xb00] sm:$0xff]
        %v602 = vld [vmem:[%s236 + $0xb08] sm:$0xff]
        %v603 = vld [vmem:[%s236 + $0xb10] sm:$0xff]
        %v604 = vld [vmem:[%s236 + $0xb18] sm:$0xff]
        %v605 = vld [vmem:[%s236 + $0xb20] sm:$0xff]
        %v606 = vld [vmem:[%s236 + $0xb28] sm:$0xff]
        %v607 = vld [vmem:[%s236 + $0xb30] sm:$0xff]
        %v608 = vld [vmem:[%s236 + $0xb38] sm:$0xff]
        %v609 = vld [vmem:[%s236 + $0xb40] sm:$0xff]
        %v610 = vld [vmem:[%s236 + $0xb48] sm:$0xff]
        %v611 = vld [vmem:[%s236 + $0xb50] sm:$0xff]
        %v612 = vld [vmem:[%s236 + $0xb58] sm:$0xff]
        %v613 = vld [vmem:[%s236 + $0xb60] sm:$0xff]
        %v614 = vld [vmem:[%s236 + $0xb68] sm:$0xff]
        %v615 = vld [vmem:[%s236 + $0xb70] sm:$0xff]
        %v616 = vld [vmem:[%s236 + $0xb78] sm:$0xff]
        %v617 = vld [vmem:[%s236 + $0xb80] sm:$0xff]
        %v618 = vld [vmem:[%s236 + $0xb88] sm:$0xff]
        %v619 = vld [vmem:[%s236 + $0xb90] sm:$0xff]
        %v620 = vld [vmem:[%s236 + $0xb98] sm:$0xff]
        %v621 = vld [vmem:[%s236 + $0xba0] sm:$0xff]
        %v622 = vld [vmem:[%s236 + $0xba8] sm:$0xff]
        %v623 = vld [vmem:[%s236 + $0xbb0] sm:$0xff]
        %v624 = vld [vmem:[%s236 + $0xbb8] sm:$0xff]
        %v625 = vld [vmem:[%s236 + $0xbc0] sm:$0xff]
        %v626 = vld [vmem:[%s236 + $0xbc8] sm:$0xff]
        %v627 = vld [vmem:[%s236 + $0xbd0] sm:$0xff]
        %v628 = vld [vmem:[%s236 + $0xbd8] sm:$0xff]
        %v629 = vld [vmem:[%s236 + $0xbe0] sm:$0xff]
        %v630 = vld [vmem:[%s236 + $0xbe8] sm:$0xff]
        %v631 = vld [vmem:[%s236 + $0xbf0] sm:$0xff]
        %v632 = vld [vmem:[%s236 + $0xbf8] sm:$0xff]
        %v633 = vld [vmem:[%s236 + $0xc00] sm:$0xff]
        %v634 = vld [vmem:[%s236 + $0xc08] sm:$0xff]
        %v635 = vld [vmem:[%s236 + $0xc10] sm:$0xff]
        %v636 = vld [vmem:[%s236 + $0xc18] sm:$0xff]
        %v637 = vld [vmem:[%s236 + $0xc20] sm:$0xff]
        %v638 = vld [vmem:[%s236 + $0xc28] sm:$0xff]
        %v639 = vld [vmem:[%s236 + $0xc30] sm:$0xff]
        %v640 = vld [vmem:[%s236 + $0xc38] sm:$0xff]
        %v641 = vld [vmem:[%s236 + $0xc40] sm:$0xff]
        %v642 = vld [vmem:[%s236 + $0xc48] sm:$0xff]
        %v643 = vld [vmem:[%s236 + $0xc50] sm:$0xff]
        %v644 = vld [vmem:[%s236 + $0xc58] sm:$0xff]
        %v645 = vld [vmem:[%s236 + $0xc60] sm:$0xff]
        %v646 = vld [vmem:[%s236 + $0xc68] sm:$0xff]
        %v647 = vld [vmem:[%s236 + $0xc70] sm:$0xff]
        %v648 = vld [vmem:[%s236 + $0xc78] sm:$0xff]
        %v649 = vld [vmem:[%s236 + $0xc80] sm:$0xff]
        %v650 = vld [vmem:[%s236 + $0xc88] sm:$0xff]
        %v651 = vld [vmem:[%s236 + $0xc90] sm:$0xff]
        %v652 = vld [vmem:[%s236 + $0xc98] sm:$0xff]
        %v653 = vld [vmem:[%s236 + $0xca0] sm:$0xff]
        %v654 = vld [vmem:[%s236 + $0xca8] sm:$0xff]
        %v655 = vld [vmem:[%s236 + $0xcb0] sm:$0xff]
        %v656 = vld [vmem:[%s236 + $0xcb8] sm:$0xff]
        %v657 = vld [vmem:[%s236 + $0xcc0] sm:$0xff]
        %v658 = vld [vmem:[%s236 + $0xcc8] sm:$0xff]
        %v659 = vld [vmem:[%s236 + $0xcd0] sm:$0xff]
        %v660 = vld [vmem:[%s236 + $0xcd8] sm:$0xff]
        %v661 = vld [vmem:[%s236 + $0xce0] sm:$0xff]
        %v662 = vld [vmem:[%s236 + $0xce8] sm:$0xff]
        %v663 = vld [vmem:[%s236 + $0xcf0] sm:$0xff]
        %v664 = vld [vmem:[%s236 + $0xcf8] sm:$0xff]
        %v665 = vld [vmem:[%s236 + $0xd00] sm:$0xff]
        %v666 = vld [vmem:[%s236 + $0xd08] sm:$0xff]
        %v667 = vld [vmem:[%s236 + $0xd10] sm:$0xff]
        %v668 = vld [vmem:[%s236 + $0xd18] sm:$0xff]
        %v669 = vld [vmem:[%s236 + $0xd20] sm:$0xff]
        %v670 = vld [vmem:[%s236 + $0xd28] sm:$0xff]
        %v671 = vld [vmem:[%s236 + $0xd30] sm:$0xff]
        %v672 = vld [vmem:[%s236 + $0xd38] sm:$0xff]
        %v673 = vld [vmem:[%s236 + $0xd40] sm:$0xff]
        %v674 = vld [vmem:[%s236 + $0xd48] sm:$0xff]
        %v675 = vld [vmem:[%s236 + $0xd50] sm:$0xff]
        %v676 = vld [vmem:[%s236 + $0xd58] sm:$0xff]
        %v677 = vld [vmem:[%s236 + $0xd60] sm:$0xff]
        %v678 = vld [vmem:[%s236 + $0xd68] sm:$0xff]
        %v679 = vld [vmem:[%s236 + $0xd70] sm:$0xff]
        %v680 = vld [vmem:[%s236 + $0xd78] sm:$0xff]
        %v681 = vld [vmem:[%s236 + $0xd80] sm:$0xff]
        %v682 = vld [vmem:[%s236 + $0xd88] sm:$0xff]
        %v683 = vld [vmem:[%s236 + $0xd90] sm:$0xff]
        %v684 = vld [vmem:[%s236 + $0xd98] sm:$0xff]
        %v685 = vld [vmem:[%s236 + $0xda0] sm:$0xff]
        %v686 = vld [vmem:[%s236 + $0xda8] sm:$0xff]
        %v687 = vld [vmem:[%s236 + $0xdb0] sm:$0xff]
        %v688 = vld [vmem:[%s236 + $0xdb8] sm:$0xff]
        %v689 = vld [vmem:[%s236 + $0xdc0] sm:$0xff]
        %v690 = vld [vmem:[%s236 + $0xdc8] sm:$0xff]
        %v691 = vld [vmem:[%s236 + $0xdd0] sm:$0xff]
        %v692 = vld [vmem:[%s236 + $0xdd8] sm:$0xff]
        %v693 = vld [vmem:[%s236 + $0xde0] sm:$0xff]
        %v694 = vld [vmem:[%s236 + $0xde8] sm:$0xff]
        %v695 = vld [vmem:[%s236 + $0xdf0] sm:$0xff]
        %v696 = vld [vmem:[%s236 + $0xdf8] sm:$0xff]
        %v697 = vld [vmem:[%s236 + $0xe00] sm:$0xff]
        %v698 = vld [vmem:[%s236 + $0xe08] sm:$0xff]
        %v699 = vld [vmem:[%s236 + $0xe10] sm:$0xff]
        %v700 = vld [vmem:[%s236 + $0xe18] sm:$0xff]
        %v701 = vld [vmem:[%s236 + $0xe20] sm:$0xff]
        %v702 = vld [vmem:[%s236 + $0xe28] sm:$0xff]
        %v703 = vld [vmem:[%s236 + $0xe30] sm:$0xff]
        %v704 = vld [vmem:[%s236 + $0xe38] sm:$0xff]
        %v705 = vld [vmem:[%s236 + $0xe40] sm:$0xff]
        %v706 = vld [vmem:[%s236 + $0xe48] sm:$0xff]
        %v707 = vld [vmem:[%s236 + $0xe50] sm:$0xff]
        %v708 = vld [vmem:[%s236 + $0xe58] sm:$0xff]
        %v709 = vld [vmem:[%s236 + $0xe60] sm:$0xff]
        %v710 = vld [vmem:[%s236 + $0xe68] sm:$0xff]
        %v711 = vld [vmem:[%s236 + $0xe70] sm:$0xff]
        %v712 = vld [vmem:[%s236 + $0xe78] sm:$0xff]
        %v713 = vld [vmem:[%s236 + $0xe80] sm:$0xff]
        %v714 = vld [vmem:[%s236 + $0xe88] sm:$0xff]
        %v715 = vld [vmem:[%s236 + $0xe90] sm:$0xff]
        %v716 = vld [vmem:[%s236 + $0xe98] sm:$0xff]
        %v717 = vld [vmem:[%s236 + $0xea0] sm:$0xff]
        %v718 = vld [vmem:[%s236 + $0xea8] sm:$0xff]
        %v719 = vld [vmem:[%s236 + $0xeb0] sm:$0xff]
        %v720 = vld [vmem:[%s236 + $0xeb8] sm:$0xff]
        %v721 = vld [vmem:[%s236 + $0xec0] sm:$0xff]
        %v722 = vld [vmem:[%s236 + $0xec8] sm:$0xff]
        %v723 = vld [vmem:[%s236 + $0xed0] sm:$0xff]
        %v724 = vld [vmem:[%s236 + $0xed8] sm:$0xff]
        %v725 = vld [vmem:[%s236 + $0xee0] sm:$0xff]
        %v726 = vld [vmem:[%s236 + $0xee8] sm:$0xff]
        %v727 = vld [vmem:[%s236 + $0xef0] sm:$0xff]
        %v728 = vld [vmem:[%s236 + $0xef8] sm:$0xff]
        %v729 = vld [vmem:[%s236 + $0xf00] sm:$0xff]
        %v730 = vld [vmem:[%s236 + $0xf08] sm:$0xff]
        %v731 = vld [vmem:[%s236 + $0xf10] sm:$0xff]
        %v732 = vld [vmem:[%s236 + $0xf18] sm:$0xff]
        %v733 = vld [vmem:[%s236 + $0xf20] sm:$0xff]
        %v734 = vld [vmem:[%s236 + $0xf28] sm:$0xff]
        %v735 = vld [vmem:[%s236 + $0xf30] sm:$0xff]
        %v736 = vld [vmem:[%s236 + $0xf38] sm:$0xff]
        %v737 = vld [vmem:[%s236 + $0xf40] sm:$0xff]
        %v738 = vld [vmem:[%s236 + $0xf48] sm:$0xff]
        %v739 = vld [vmem:[%s236 + $0xf50] sm:$0xff]
        %v740 = vld [vmem:[%s236 + $0xf58] sm:$0xff]
        %v741 = vld [vmem:[%s236 + $0xf60] sm:$0xff]
        %v742 = vld [vmem:[%s236 + $0xf68] sm:$0xff]
        %v743 = vld [vmem:[%s236 + $0xf70] sm:$0xff]
        %v744 = vld [vmem:[%s236 + $0xf78] sm:$0xff]
        %v745 = vld [vmem:[%s236 + $0xf80] sm:$0xff]
        %v746 = vld [vmem:[%s236 + $0xf88] sm:$0xff]
        %v747 = vld [vmem:[%s236 + $0xf90] sm:$0xff]
        %v748 = vld [vmem:[%s236 + $0xf98] sm:$0xff]
        %v749 = vld [vmem:[%s236 + $0xfa0] sm:$0xff]
        %v750 = vld [vmem:[%s236 + $0xfa8] sm:$0xff]
        %v751 = vld [vmem:[%s236 + $0xfb0] sm:$0xff]
        %v752 = vld [vmem:[%s236 + $0xfb8] sm:$0xff]
        %v753 = vld [vmem:[%s236 + $0xfc0] sm:$0xff]
        %v754 = vld [vmem:[%s236 + $0xfc8] sm:$0xff]
        %v755 = vld [vmem:[%s236 + $0xfd0] sm:$0xff]
        %v756 = vld [vmem:[%s236 + $0xfd8] sm:$0xff]
        %v757 = vld [vmem:[%s236 + $0xfe0] sm:$0xff]
        %v758 = vld [vmem:[%s236 + $0xfe8] sm:$0xff]
        %v759 = vld [vmem:[%s236 + $0xff0] sm:$0xff]
        %v760 = vld [vmem:[%s236 + $0xff8] sm:$0xff]
        %v761 = vld [vmem:[%s236 + $0x1000] sm:$0xff]
        %v762 = vld [vmem:[%s236 + $0x1008] sm:$0xff]
        %v763 = vld [vmem:[%s236 + $0x1010] sm:$0xff]
        %v764 = vld [vmem:[%s236 + $0x1018] sm:$0xff]
        %v765 = vld [vmem:[%s236 + $0x1020] sm:$0xff]
        %v766 = vld [vmem:[%s236 + $0x1028] sm:$0xff]
        %v767 = vld [vmem:[%s236 + $0x1030] sm:$0xff]
        %v768 = vld [vmem:[%s236 + $0x1038] sm:$0xff]
        %v769 = vld [vmem:[%s236 + $0x1040] sm:$0xff]
        %v770 = vld [vmem:[%s236 + $0x1048] sm:$0xff]
        %v771 = vld [vmem:[%s236 + $0x1050] sm:$0xff]
        %v772 = vld [vmem:[%s236 + $0x1058] sm:$0xff]
        %v773 = vld [vmem:[%s236 + $0x1060] sm:$0xff]
        %v774 = vld [vmem:[%s236 + $0x1068] sm:$0xff]
        %v775 = vld [vmem:[%s236 + $0x1070] sm:$0xff]
        %v776 = vld [vmem:[%s236 + $0x1078] sm:$0xff]
        %v777 = vld [vmem:[%s236 + $0x1080] sm:$0xff]
        %v778 = vld [vmem:[%s236 + $0x1088] sm:$0xff]
        %v779 = vld [vmem:[%s236 + $0x1090] sm:$0xff]
        %v780 = vld [vmem:[%s236 + $0x1098] sm:$0xff]
        %v781 = vld [vmem:[%s236 + $0x10a0] sm:$0xff]
        %v782 = vld [vmem:[%s236 + $0x10a8] sm:$0xff]
        %v783 = vld [vmem:[%s236 + $0x10b0] sm:$0xff]
        %v784 = vld [vmem:[%s236 + $0x10b8] sm:$0xff]
        %v785 = vld [vmem:[%s236 + $0x10c0] sm:$0xff]
        %v786 = vld [vmem:[%s236 + $0x10c8] sm:$0xff]
        %v787 = vld [vmem:[%s236 + $0x10d0] sm:$0xff]
        %v788 = vld [vmem:[%s236 + $0x10d8] sm:$0xff]
        %v789 = vld [vmem:[%s236 + $0x10e0] sm:$0xff]
        %v790 = vld [vmem:[%s236 + $0x10e8] sm:$0xff]
        %v791 = vld [vmem:[%s236 + $0x10f0] sm:$0xff]
        %v792 = vld [vmem:[%s236 + $0x10f8] sm:$0xff]
        %v793 = vld [vmem:[%s236 + $0x1100] sm:$0xff]
        %v794 = vld [vmem:[%s236 + $0x1108] sm:$0xff]
        %v795 = vld [vmem:[%s236 + $0x1110] sm:$0xff]
        %v796 = vld [vmem:[%s236 + $0x1118] sm:$0xff]
        %v797 = vld [vmem:[%s236 + $0x1120] sm:$0xff]
        %v798 = vld [vmem:[%s236 + $0x1128] sm:$0xff]
        %v799 = vld [vmem:[%s236 + $0x1130] sm:$0xff]
        %v800 = vld [vmem:[%s236 + $0x1138] sm:$0xff]
        %v801 = vld [vmem:[%s236 + $0x1140] sm:$0xff]
        %v802 = vld [vmem:[%s236 + $0x1148] sm:$0xff]
        %v803 = vld [vmem:[%s236 + $0x1150] sm:$0xff]
        %v804 = vld [vmem:[%s236 + $0x1158] sm:$0xff]
        %v805 = vld [vmem:[%s236 + $0x1160] sm:$0xff]
        %v806 = vld [vmem:[%s236 + $0x1168] sm:$0xff]
        %v807 = vld [vmem:[%s236 + $0x1170] sm:$0xff]
        %v808 = vld [vmem:[%s236 + $0x1178] sm:$0xff]
        %v809 = vld [vmem:[%s236 + $0x1180] sm:$0xff]
        %v810 = vld [vmem:[%s236 + $0x1188] sm:$0xff]
        %v811 = vld [vmem:[%s236 + $0x1190] sm:$0xff]
        %v812 = vld [vmem:[%s236 + $0x1198] sm:$0xff]
        %v813 = vld [vmem:[%s236 + $0x11a0] sm:$0xff]
        %v814 = vld [vmem:[%s236 + $0x11a8] sm:$0xff]
        %v815 = vld [vmem:[%s236 + $0x11b0] sm:$0xff]
        %v816 = vld [vmem:[%s236 + $0x11b8] sm:$0xff]
        %v817 = vld [vmem:[%s236 + $0x11c0] sm:$0xff]
        %v818 = vld [vmem:[%s236 + $0x11c8] sm:$0xff]
        %v819 = vld [vmem:[%s236 + $0x11d0] sm:$0xff]
        %v820 = vld [vmem:[%s236 + $0x11d8] sm:$0xff]
        %v821 = vld [vmem:[%s236 + $0x11e0] sm:$0xff]
        %v822 = vld [vmem:[%s236 + $0x11e8] sm:$0xff]
        %v823 = vld [vmem:[%s236 + $0x11f0] sm:$0xff]
        %v824 = vld [vmem:[%s236 + $0x11f8] sm:$0xff]
        %v830 = vcombine.high %v244, %v244
        %v832 = vunpack.c.l.s4 1983009808
        %v833 = vunpack.c.0.s8 %v832
        %v834 = vlaneseq
        %v835 = vshrl.u32 %v834, 7
        %v836 = vsub.s32 %v833, %v835
        %v837 = vrot.slane %v244, %v836
        %v839 = vunpack.c.l.s4 1983009808
        %v840 = vunpack.c.0.s8 %v839
        %v841 = vlaneseq
        %v842 = vshrl.u32 %v841, 7
        %v843 = vsub.s32 %v840, %v842
        %v844 = vrot.slane %v830, %v843
        %v845 = vcombine.high %v837, %v837
        %v846 = vcombine.high %v844, %v844
        %v847 = vcombine.high %v245, %v245
        %v849 = vunpack.c.l.s4 1983009808
        %v850 = vunpack.c.0.s8 %v849
        %v851 = vlaneseq
        %v852 = vshrl.u32 %v851, 7
        %v853 = vsub.s32 %v850, %v852
        %v854 = vrot.slane %v245, %v853
        %v856 = vunpack.c.l.s4 1983009808
        %v857 = vunpack.c.0.s8 %v856
        %v858 = vlaneseq
        %v859 = vshrl.u32 %v858, 7
        %v860 = vsub.s32 %v857, %v859
        %v861 = vrot.slane %v847, %v860
        %v862 = vcombine.high %v854, %v854
        %v863 = vcombine.high %v861, %v861
        %v864 = vcombine.high %v246, %v246
        %v866 = vunpack.c.l.s4 1983009808
        %v867 = vunpack.c.0.s8 %v866
        %v868 = vlaneseq
        %v869 = vshrl.u32 %v868, 7
        %v870 = vsub.s32 %v867, %v869
        %v871 = vrot.slane %v246, %v870
        %v873 = vunpack.c.l.s4 1983009808
        %v874 = vunpack.c.0.s8 %v873
        %v875 = vlaneseq
        %v876 = vshrl.u32 %v875, 7
        %v877 = vsub.s32 %v874, %v876
        %v878 = vrot.slane %v864, %v877
        %v879 = vcombine.high %v871, %v871
        %v880 = vcombine.high %v878, %v878
        %v881 = vcombine.high %v247, %v247
        %v883 = vunpack.c.l.s4 1983009808
        %v884 = vunpack.c.0.s8 %v883
        %v885 = vlaneseq
        %v886 = vshrl.u32 %v885, 7
        %v887 = vsub.s32 %v884, %v886
        %v888 = vrot.slane %v247, %v887
        %v890 = vunpack.c.l.s4 1983009808
        %v891 = vunpack.c.0.s8 %v890
        %v892 = vlaneseq
        %v893 = vshrl.u32 %v892, 7
        %v894 = vsub.s32 %v891, %v893
        %v895 = vrot.slane %v881, %v894
        %v896 = vcombine.high %v888, %v888
        %v897 = vcombine.high %v895, %v895
        %v899 = vunpack.c.l.s4 1983009808
        %v900 = vunpack.c.0.s8 %v899
        %v901 = vlaneseq
        %v902 = vshrl.u32 %v901, 7
        %v903 = vsub.s32 %v900, %v902
        %v904 = vrot.slane %v248, %v903
        %v905 = vcombine.high %v904, %v904
        %924 = vmatprep.subr.mxu0 %v250
        %925 = vmatpush1.msra.mxu0 %v249
        %926 = vmatprep.subr.mxu0 %v252
        %927 = vmatpush1.msra.mxu0 %v251
        %928 = vmatprep.subr.mxu0 %v254
        %929 = vmatpush1.msra.mxu0 %v253
        %930 = vmatprep.subr.mxu0 %v256
        %931 = vmatpush1.msra.mxu0 %v255
        %932 = vmatprep.subr.mxu0 %v258
        %933 = vmatpush1.msra.mxu0 %v257
        %934 = vmatprep.subr.mxu0 %v260
        %935 = vmatpush1.msra.mxu0 %v259
        %936 = vmatprep.subr.mxu0 %v262
        %937 = vmatpush1.msra.mxu0 %v261
        %938 = vmatprep.subr.mxu0 %v264
        %939 = vmatpush1.msra.mxu0 %v263
        %940 = vmatprep.subr.mxu0 %v266
        %941 = vmatpush1.msra.mxu0 %v265
        %942 = vmatprep.subr.mxu0 %v268
        %943 = vmatpush1.msra.mxu0 %v267
        %944 = vmatprep.subr.mxu0 %v270
        %945 = vmatpush1.msra.mxu0 %v269
        %946 = vmatprep.subr.mxu0 %v272
        %947 = vmatpush1.msra.mxu0 %v271
        %948 = vmatprep.subr.mxu0 %v274
        %949 = vmatpush1.msra.mxu0 %v273
        %950 = vmatprep.subr.mxu0 %v276
        %951 = vmatpush1.msra.mxu0 %v275
        %952 = vmatprep.subr.mxu0 %v278
        %953 = vmatpush1.msra.mxu0 %v277
        %954 = vmatprep.subr.mxu0 %v280
        %955 = vmatpush1.msra.mxu0 %v279
        %956 = vmatprep.subr.mxu0 %v282
        %957 = vmatpush1.msra.mxu0 %v281
        %958 = vmatprep.subr.mxu0 %v284
        %959 = vmatpush1.msra.mxu0 %v283
        %960 = vmatprep.subr.mxu0 %v286
        %961 = vmatpush1.msra.mxu0 %v285
        %962 = vmatprep.subr.mxu0 %v288
        %963 = vmatpush1.msra.mxu0 %v287
        %964 = vmatprep.subr.mxu0 %v290
        %965 = vmatpush1.msra.mxu0 %v289
        %966 = vmatprep.subr.mxu0 %v292
        %967 = vmatpush1.msra.mxu0 %v291
        %968 = vmatprep.subr.mxu0 %v294
        %969 = vmatpush1.msra.mxu0 %v293
        %970 = vmatprep.subr.mxu0 %v296
        %971 = vmatpush1.msra.mxu0 %v295
        %972 = vmatprep.subr.mxu0 %v298
        %973 = vmatpush1.msra.mxu0 %v297
        %974 = vmatprep.subr.mxu0 %v300
        %975 = vmatpush1.msra.mxu0 %v299
        %976 = vmatprep.subr.mxu0 %v302
        %977 = vmatpush1.msra.mxu0 %v301
        %978 = vmatprep.subr.mxu0 %v304
        %979 = vmatpush1.msra.mxu0 %v303
        %980 = vmatprep.subr.mxu0 %v306
        %981 = vmatpush1.msra.mxu0 %v305
        %982 = vmatprep.subr.mxu0 %v308
        %983 = vmatpush1.msra.mxu0 %v307
        %984 = vmatprep.subr.mxu0 %v310
        %985 = vmatpush1.msra.mxu0 %v309
        %986 = vmatprep.subr.mxu0 %v312
        %987 = vmatpush1.msra.mxu0 %v311
        %988 = vmatprep.mubr.f32.mxu0 %v845
        %989 = vmatmul.mubr.f32.gmra.mrb[0].mxu0 %v837
        %v990 = vpop.f32.mrb[0].mxu0
        %v991 = vadd.f32 0.0, %v990
        %v992 = vpop.f32.mrb[0].mxu0
        %v993 = vadd.f32 0.0, %v992
        %994 = vdwg.mxu0
        %995 = vmatprep.subr.mxu0 %v314
        %996 = vmatpush1.msra.mxu0 %v313
        %997 = vmatprep.subr.mxu0 %v316
        %998 = vmatpush1.msra.mxu0 %v315
        %999 = vmatprep.subr.mxu0 %v318
        %1000 = vmatpush1.msra.mxu0 %v317
        %1001 = vmatprep.subr.mxu0 %v320
        %1002 = vmatpush1.msra.mxu0 %v319
        %1003 = vmatprep.subr.mxu0 %v322
        %1004 = vmatpush1.msra.mxu0 %v321
        %1005 = vmatprep.subr.mxu0 %v324
        %1006 = vmatpush1.msra.mxu0 %v323
        %1007 = vmatprep.subr.mxu0 %v326
        %1008 = vmatpush1.msra.mxu0 %v325
        %1009 = vmatprep.subr.mxu0 %v328
        %1010 = vmatpush1.msra.mxu0 %v327
        %1011 = vmatprep.subr.mxu0 %v330
        %1012 = vmatpush1.msra.mxu0 %v329
        %1013 = vmatprep.subr.mxu0 %v332
        %1014 = vmatpush1.msra.mxu0 %v331
        %1015 = vmatprep.subr.mxu0 %v334
        %1016 = vmatpush1.msra.mxu0 %v333
        %1017 = vmatprep.subr.mxu0 %v336
        %1018 = vmatpush1.msra.mxu0 %v335
        %1019 = vmatprep.subr.mxu0 %v338
        %1020 = vmatpush1.msra.mxu0 %v337
        %1021 = vmatprep.subr.mxu0 %v340
        %1022 = vmatpush1.msra.mxu0 %v339
        %1023 = vmatprep.subr.mxu0 %v342
        %1024 = vmatpush1.msra.mxu0 %v341
        %1025 = vmatprep.subr.mxu0 %v344
        %1026 = vmatpush1.msra.mxu0 %v343
        %1027 = vmatprep.subr.mxu0 %v346
        %1028 = vmatpush1.msra.mxu0 %v345
        %1029 = vmatprep.subr.mxu0 %v348
        %1030 = vmatpush1.msra.mxu0 %v347
        %1031 = vmatprep.subr.mxu0 %v350
        %1032 = vmatpush1.msra.mxu0 %v349
        %1033 = vmatprep.subr.mxu0 %v352
        %1034 = vmatpush1.msra.mxu0 %v351
        %1035 = vmatprep.subr.mxu0 %v354
        %1036 = vmatpush1.msra.mxu0 %v353
        %1037 = vmatprep.subr.mxu0 %v356
        %1038 = vmatpush1.msra.mxu0 %v355
        %1039 = vmatprep.subr.mxu0 %v358
        %1040 = vmatpush1.msra.mxu0 %v357
        %1041 = vmatprep.subr.mxu0 %v360
        %1042 = vmatpush1.msra.mxu0 %v359
        %1043 = vmatprep.subr.mxu0 %v362
        %1044 = vmatpush1.msra.mxu0 %v361
        %1045 = vmatprep.subr.mxu0 %v364
        %1046 = vmatpush1.msra.mxu0 %v363
        %1047 = vmatprep.subr.mxu0 %v366
        %1048 = vmatpush1.msra.mxu0 %v365
        %1049 = vmatprep.subr.mxu0 %v368
        %1050 = vmatpush1.msra.mxu0 %v367
        %1051 = vmatprep.subr.mxu0 %v370
        %1052 = vmatpush1.msra.mxu0 %v369
        %1053 = vmatprep.subr.mxu0 %v372
        %1054 = vmatpush1.msra.mxu0 %v371
        %1055 = vmatprep.subr.mxu0 %v374
        %1056 = vmatpush1.msra.mxu0 %v373
        %1057 = vmatprep.subr.mxu0 %v376
        %1058 = vmatpush1.msra.mxu0 %v375
        %1059 = vmatprep.mubr.f32.mxu0 %v846
        %1060 = vmatmul.mubr.f32.gmra.mrb[0].mxu0 %v844
        %v1061 = vpop.f32.mrb[0].mxu0
        %v1062 = vadd.f32 %v991, %v1061
        %v1063 = vpop.f32.mrb[0].mxu0
        %v1064 = vadd.f32 %v993, %v1063
        %1065 = vdwg.mxu0
        %1066 = vmatprep.subr.mxu0 %v378
        %1067 = vmatpush1.msra.mxu0 %v377
        %1068 = vmatprep.subr.mxu0 %v380
        %1069 = vmatpush1.msra.mxu0 %v379
        %1070 = vmatprep.subr.mxu0 %v382
        %1071 = vmatpush1.msra.mxu0 %v381
        %1072 = vmatprep.subr.mxu0 %v384
        %1073 = vmatpush1.msra.mxu0 %v383
        %1074 = vmatprep.subr.mxu0 %v386
        %1075 = vmatpush1.msra.mxu0 %v385
        %1076 = vmatprep.subr.mxu0 %v388
        %1077 = vmatpush1.msra.mxu0 %v387
        %1078 = vmatprep.subr.mxu0 %v390
        %1079 = vmatpush1.msra.mxu0 %v389
        %1080 = vmatprep.subr.mxu0 %v392
        %1081 = vmatpush1.msra.mxu0 %v391
        %1082 = vmatprep.subr.mxu0 %v394
        %1083 = vmatpush1.msra.mxu0 %v393
        %1084 = vmatprep.subr.mxu0 %v396
        %1085 = vmatpush1.msra.mxu0 %v395
        %1086 = vmatprep.subr.mxu0 %v398
        %1087 = vmatpush1.msra.mxu0 %v397
        %1088 = vmatprep.subr.mxu0 %v400
        %1089 = vmatpush1.msra.mxu0 %v399
        %1090 = vmatprep.subr.mxu0 %v402
        %1091 = vmatpush1.msra.mxu0 %v401
        %1092 = vmatprep.subr.mxu0 %v404
        %1093 = vmatpush1.msra.mxu0 %v403
        %1094 = vmatprep.subr.mxu0 %v406
        %1095 = vmatpush1.msra.mxu0 %v405
        %1096 = vmatprep.subr.mxu0 %v408
        %1097 = vmatpush1.msra.mxu0 %v407
        %1098 = vmatprep.subr.mxu0 %v410
        %1099 = vmatpush1.msra.mxu0 %v409
        %1100 = vmatprep.subr.mxu0 %v412
        %1101 = vmatpush1.msra.mxu0 %v411
        %1102 = vmatprep.subr.mxu0 %v414
        %1103 = vmatpush1.msra.mxu0 %v413
        %1104 = vmatprep.subr.mxu0 %v416
        %1105 = vmatpush1.msra.mxu0 %v415
        %1106 = vmatprep.subr.mxu0 %v418
        %1107 = vmatpush1.msra.mxu0 %v417
        %1108 = vmatprep.subr.mxu0 %v420
        %1109 = vmatpush1.msra.mxu0 %v419
        %1110 = vmatprep.subr.mxu0 %v422
        %1111 = vmatpush1.msra.mxu0 %v421
        %1112 = vmatprep.subr.mxu0 %v424
        %1113 = vmatpush1.msra.mxu0 %v423
        %1114 = vmatprep.subr.mxu0 %v426
        %1115 = vmatpush1.msra.mxu0 %v425
        %1116 = vmatprep.subr.mxu0 %v428
        %1117 = vmatpush1.msra.mxu0 %v427
        %1118 = vmatprep.subr.mxu0 %v430
        %1119 = vmatpush1.msra.mxu0 %v429
        %1120 = vmatprep.subr.mxu0 %v432
        %1121 = vmatpush1.msra.mxu0 %v431
        %1122 = vmatprep.subr.mxu0 %v434
        %1123 = vmatpush1.msra.mxu0 %v433
        %1124 = vmatprep.subr.mxu0 %v436
        %1125 = vmatpush1.msra.mxu0 %v435
        %1126 = vmatprep.subr.mxu0 %v438
        %1127 = vmatpush1.msra.mxu0 %v437
        %1128 = vmatprep.subr.mxu0 %v440
        %1129 = vmatpush1.msra.mxu0 %v439
        %1130 = vmatprep.mubr.f32.mxu0 %v862
        %1131 = vmatmul.mubr.f32.gmra.mrb[0].mxu0 %v854
        %v1132 = vpop.f32.mrb[0].mxu0
        %v1133 = vadd.f32 %v1062, %v1132
        %v1134 = vpop.f32.mrb[0].mxu0
        %v1135 = vadd.f32 %v1064, %v1134
        %1136 = vdwg.mxu0
        %1137 = vmatprep.subr.mxu0 %v442
        %1138 = vmatpush1.msra.mxu0 %v441
        %1139 = vmatprep.subr.mxu0 %v444
        %1140 = vmatpush1.msra.mxu0 %v443
        %1141 = vmatprep.subr.mxu0 %v446
        %1142 = vmatpush1.msra.mxu0 %v445
        %1143 = vmatprep.subr.mxu0 %v448
        %1144 = vmatpush1.msra.mxu0 %v447
        %1145 = vmatprep.subr.mxu0 %v450
        %1146 = vmatpush1.msra.mxu0 %v449
        %1147 = vmatprep.subr.mxu0 %v452
        %1148 = vmatpush1.msra.mxu0 %v451
        %1149 = vmatprep.subr.mxu0 %v454
        %1150 = vmatpush1.msra.mxu0 %v453
        %1151 = vmatprep.subr.mxu0 %v456
        %1152 = vmatpush1.msra.mxu0 %v455
        %1153 = vmatprep.subr.mxu0 %v458
        %1154 = vmatpush1.msra.mxu0 %v457
        %1155 = vmatprep.subr.mxu0 %v460
        %1156 = vmatpush1.msra.mxu0 %v459
        %1157 = vmatprep.subr.mxu0 %v462
        %1158 = vmatpush1.msra.mxu0 %v461
        %1159 = vmatprep.subr.mxu0 %v464
        %1160 = vmatpush1.msra.mxu0 %v463
        %1161 = vmatprep.subr.mxu0 %v466
        %1162 = vmatpush1.msra.mxu0 %v465
        %1163 = vmatprep.subr.mxu0 %v468
        %1164 = vmatpush1.msra.mxu0 %v467
        %1165 = vmatprep.subr.mxu0 %v470
        %1166 = vmatpush1.msra.mxu0 %v469
        %1167 = vmatprep.subr.mxu0 %v472
        %1168 = vmatpush1.msra.mxu0 %v471
        %1169 = vmatprep.subr.mxu0 %v474
        %1170 = vmatpush1.msra.mxu0 %v473
        %1171 = vmatprep.subr.mxu0 %v476
        %1172 = vmatpush1.msra.mxu0 %v475
        %1173 = vmatprep.subr.mxu0 %v478
        %1174 = vmatpush1.msra.mxu0 %v477
        %1175 = vmatprep.subr.mxu0 %v480
        %1176 = vmatpush1.msra.mxu0 %v479
        %1177 = vmatprep.subr.mxu0 %v482
        %1178 = vmatpush1.msra.mxu0 %v481
        %1179 = vmatprep.subr.mxu0 %v484
        %1180 = vmatpush1.msra.mxu0 %v483
        %1181 = vmatprep.subr.mxu0 %v486
        %1182 = vmatpush1.msra.mxu0 %v485
        %1183 = vmatprep.subr.mxu0 %v488
        %1184 = vmatpush1.msra.mxu0 %v487
        %1185 = vmatprep.subr.mxu0 %v490
        %1186 = vmatpush1.msra.mxu0 %v489
        %1187 = vmatprep.subr.mxu0 %v492
        %1188 = vmatpush1.msra.mxu0 %v491
        %1189 = vmatprep.subr.mxu0 %v494
        %1190 = vmatpush1.msra.mxu0 %v493
        %1191 = vmatprep.subr.mxu0 %v496
        %1192 = vmatpush1.msra.mxu0 %v495
        %1193 = vmatprep.subr.mxu0 %v498
        %1194 = vmatpush1.msra.mxu0 %v497
        %1195 = vmatprep.subr.mxu0 %v500
        %1196 = vmatpush1.msra.mxu0 %v499
        %1197 = vmatprep.subr.mxu0 %v502
        %1198 = vmatpush1.msra.mxu0 %v501
        %1199 = vmatprep.subr.mxu0 %v504
        %1200 = vmatpush1.msra.mxu0 %v503
        %1201 = vmatprep.mubr.f32.mxu0 %v863
        %1202 = vmatmul.mubr.f32.gmra.mrb[0].mxu0 %v861
        %v1203 = vpop.f32.mrb[0].mxu0
        %v1204 = vadd.f32 %v1133, %v1203
        %v1205 = vpop.f32.mrb[0].mxu0
        %v1206 = vadd.f32 %v1135, %v1205
        %1207 = vdwg.mxu0
        %1208 = vmatprep.subr.mxu0 %v506
        %1209 = vmatpush1.msra.mxu0 %v505
        %1210 = vmatprep.subr.mxu0 %v508
        %1211 = vmatpush1.msra.mxu0 %v507
        %1212 = vmatprep.subr.mxu0 %v510
        %1213 = vmatpush1.msra.mxu0 %v509
        %1214 = vmatprep.subr.mxu0 %v512
        %1215 = vmatpush1.msra.mxu0 %v511
        %1216 = vmatprep.subr.mxu0 %v514
        %1217 = vmatpush1.msra.mxu0 %v513
        %1218 = vmatprep.subr.mxu0 %v516
        %1219 = vmatpush1.msra.mxu0 %v515
        %1220 = vmatprep.subr.mxu0 %v518
        %1221 = vmatpush1.msra.mxu0 %v517
        %1222 = vmatprep.subr.mxu0 %v520
        %1223 = vmatpush1.msra.mxu0 %v519
        %1224 = vmatprep.subr.mxu0 %v522
        %1225 = vmatpush1.msra.mxu0 %v521
        %1226 = vmatprep.subr.mxu0 %v524
        %1227 = vmatpush1.msra.mxu0 %v523
        %1228 = vmatprep.subr.mxu0 %v526
        %1229 = vmatpush1.msra.mxu0 %v525
        %1230 = vmatprep.subr.mxu0 %v528
        %1231 = vmatpush1.msra.mxu0 %v527
        %1232 = vmatprep.subr.mxu0 %v530
        %1233 = vmatpush1.msra.mxu0 %v529
        %1234 = vmatprep.subr.mxu0 %v532
        %1235 = vmatpush1.msra.mxu0 %v531
        %1236 = vmatprep.subr.mxu0 %v534
        %1237 = vmatpush1.msra.mxu0 %v533
        %1238 = vmatprep.subr.mxu0 %v536
        %1239 = vmatpush1.msra.mxu0 %v535
        %1240 = vmatprep.subr.mxu0 %v538
        %1241 = vmatpush1.msra.mxu0 %v537
        %1242 = vmatprep.subr.mxu0 %v540
        %1243 = vmatpush1.msra.mxu0 %v539
        %1244 = vmatprep.subr.mxu0 %v542
        %1245 = vmatpush1.msra.mxu0 %v541
        %1246 = vmatprep.subr.mxu0 %v544
        %1247 = vmatpush1.msra.mxu0 %v543
        %1248 = vmatprep.subr.mxu0 %v546
        %1249 = vmatpush1.msra.mxu0 %v545
        %1250 = vmatprep.subr.mxu0 %v548
        %1251 = vmatpush1.msra.mxu0 %v547
        %1252 = vmatprep.subr.mxu0 %v550
        %1253 = vmatpush1.msra.mxu0 %v549
        %1254 = vmatprep.subr.mxu0 %v552
        %1255 = vmatpush1.msra.mxu0 %v551
        %1256 = vmatprep.subr.mxu0 %v554
        %1257 = vmatpush1.msra.mxu0 %v553
        %1258 = vmatprep.subr.mxu0 %v556
        %1259 = vmatpush1.msra.mxu0 %v555
        %1260 = vmatprep.subr.mxu0 %v558
        %1261 = vmatpush1.msra.mxu0 %v557
        %1262 = vmatprep.subr.mxu0 %v560
        %1263 = vmatpush1.msra.mxu0 %v559
        %1264 = vmatprep.subr.mxu0 %v562
        %1265 = vmatpush1.msra.mxu0 %v561
        %1266 = vmatprep.subr.mxu0 %v564
        %1267 = vmatpush1.msra.mxu0 %v563
        %1268 = vmatprep.subr.mxu0 %v566
        %1269 = vmatpush1.msra.mxu0 %v565
        %1270 = vmatprep.subr.mxu0 %v568
        %1271 = vmatpush1.msra.mxu0 %v567
        %1272 = vmatprep.mubr.f32.mxu0 %v879
        %1273 = vmatmul.mubr.f32.gmra.mrb[0].mxu0 %v871
        %v1274 = vpop.f32.mrb[0].mxu0
        %v1275 = vadd.f32 %v1204, %v1274
        %v1276 = vpop.f32.mrb[0].mxu0
        %v1277 = vadd.f32 %v1206, %v1276
        %1278 = vdwg.mxu0
        %1279 = vmatprep.subr.mxu0 %v570
        %1280 = vmatpush1.msra.mxu0 %v569
        %1281 = vmatprep.subr.mxu0 %v572
        %1282 = vmatpush1.msra.mxu0 %v571
        %1283 = vmatprep.subr.mxu0 %v574
        %1284 = vmatpush1.msra.mxu0 %v573
        %1285 = vmatprep.subr.mxu0 %v576
        %1286 = vmatpush1.msra.mxu0 %v575
        %1287 = vmatprep.subr.mxu0 %v578
        %1288 = vmatpush1.msra.mxu0 %v577
        %1289 = vmatprep.subr.mxu0 %v580
        %1290 = vmatpush1.msra.mxu0 %v579
        %1291 = vmatprep.subr.mxu0 %v582
        %1292 = vmatpush1.msra.mxu0 %v581
        %1293 = vmatprep.subr.mxu0 %v584
        %1294 = vmatpush1.msra.mxu0 %v583
        %1295 = vmatprep.subr.mxu0 %v586
        %1296 = vmatpush1.msra.mxu0 %v585
        %1297 = vmatprep.subr.mxu0 %v588
        %1298 = vmatpush1.msra.mxu0 %v587
        %1299 = vmatprep.subr.mxu0 %v590
        %1300 = vmatpush1.msra.mxu0 %v589
        %1301 = vmatprep.subr.mxu0 %v592
        %1302 = vmatpush1.msra.mxu0 %v591
        %1303 = vmatprep.subr.mxu0 %v594
        %1304 = vmatpush1.msra.mxu0 %v593
        %1305 = vmatprep.subr.mxu0 %v596
        %1306 = vmatpush1.msra.mxu0 %v595
        %1307 = vmatprep.subr.mxu0 %v598
        %1308 = vmatpush1.msra.mxu0 %v597
        %1309 = vmatprep.subr.mxu0 %v600
        %1310 = vmatpush1.msra.mxu0 %v599
        %1311 = vmatprep.subr.mxu0 %v602
        %1312 = vmatpush1.msra.mxu0 %v601
        %1313 = vmatprep.subr.mxu0 %v604
        %1314 = vmatpush1.msra.mxu0 %v603
        %1315 = vmatprep.subr.mxu0 %v606
        %1316 = vmatpush1.msra.mxu0 %v605
        %1317 = vmatprep.subr.mxu0 %v608
        %1318 = vmatpush1.msra.mxu0 %v607
        %1319 = vmatprep.subr.mxu0 %v610
        %1320 = vmatpush1.msra.mxu0 %v609
        %1321 = vmatprep.subr.mxu0 %v612
        %1322 = vmatpush1.msra.mxu0 %v611
        %1323 = vmatprep.subr.mxu0 %v614
        %1324 = vmatpush1.msra.mxu0 %v613
        %1325 = vmatprep.subr.mxu0 %v616
        %1326 = vmatpush1.msra.mxu0 %v615
        %1327 = vmatprep.subr.mxu0 %v618
        %1328 = vmatpush1.msra.mxu0 %v617
        %1329 = vmatprep.subr.mxu0 %v620
        %1330 = vmatpush1.msra.mxu0 %v619
        %1331 = vmatprep.subr.mxu0 %v622
        %1332 = vmatpush1.msra.mxu0 %v621
        %1333 = vmatprep.subr.mxu0 %v624
        %1334 = vmatpush1.msra.mxu0 %v623
        %1335 = vmatprep.subr.mxu0 %v626
        %1336 = vmatpush1.msra.mxu0 %v625
        %1337 = vmatprep.subr.mxu0 %v628
        %1338 = vmatpush1.msra.mxu0 %v627
        %1339 = vmatprep.subr.mxu0 %v630
        %1340 = vmatpush1.msra.mxu0 %v629
        %1341 = vmatprep.subr.mxu0 %v632
        %1342 = vmatpush1.msra.mxu0 %v631
        %1343 = vmatprep.mubr.f32.mxu0 %v880
        %1344 = vmatmul.mubr.f32.gmra.mrb[0].mxu0 %v878
        %v1345 = vpop.f32.mrb[0].mxu0
        %v1346 = vadd.f32 %v1275, %v1345
        %v1347 = vpop.f32.mrb[0].mxu0
        %v1348 = vadd.f32 %v1277, %v1347
        %1349 = vdwg.mxu0
        %1350 = vmatprep.subr.mxu0 %v634
        %1351 = vmatpush1.msra.mxu0 %v633
        %1352 = vmatprep.subr.mxu0 %v636
        %1353 = vmatpush1.msra.mxu0 %v635
        %1354 = vmatprep.subr.mxu0 %v638
        %1355 = vmatpush1.msra.mxu0 %v637
        %1356 = vmatprep.subr.mxu0 %v640
        %1357 = vmatpush1.msra.mxu0 %v639
        %1358 = vmatprep.subr.mxu0 %v642
        %1359 = vmatpush1.msra.mxu0 %v641
        %1360 = vmatprep.subr.mxu0 %v644
        %1361 = vmatpush1.msra.mxu0 %v643
        %1362 = vmatprep.subr.mxu0 %v646
        %1363 = vmatpush1.msra.mxu0 %v645
        %1364 = vmatprep.subr.mxu0 %v648
        %1365 = vmatpush1.msra.mxu0 %v647
        %1366 = vmatprep.subr.mxu0 %v650
        %1367 = vmatpush1.msra.mxu0 %v649
        %1368 = vmatprep.subr.mxu0 %v652
        %1369 = vmatpush1.msra.mxu0 %v651
        %1370 = vmatprep.subr.mxu0 %v654
        %1371 = vmatpush1.msra.mxu0 %v653
        %1372 = vmatprep.subr.mxu0 %v656
        %1373 = vmatpush1.msra.mxu0 %v655
        %1374 = vmatprep.subr.mxu0 %v658
        %1375 = vmatpush1.msra.mxu0 %v657
        %1376 = vmatprep.subr.mxu0 %v660
        %1377 = vmatpush1.msra.mxu0 %v659
        %1378 = vmatprep.subr.mxu0 %v662
        %1379 = vmatpush1.msra.mxu0 %v661
        %1380 = vmatprep.subr.mxu0 %v664
        %1381 = vmatpush1.msra.mxu0 %v663
        %1382 = vmatprep.subr.mxu0 %v666
        %1383 = vmatpush1.msra.mxu0 %v665
        %1384 = vmatprep.subr.mxu0 %v668
        %1385 = vmatpush1.msra.mxu0 %v667
        %1386 = vmatprep.subr.mxu0 %v670
        %1387 = vmatpush1.msra.mxu0 %v669
        %1388 = vmatprep.subr.mxu0 %v672
        %1389 = vmatpush1.msra.mxu0 %v671
        %1390 = vmatprep.subr.mxu0 %v674
        %1391 = vmatpush1.msra.mxu0 %v673
        %1392 = vmatprep.subr.mxu0 %v676
        %1393 = vmatpush1.msra.mxu0 %v675
        %1394 = vmatprep.subr.mxu0 %v678
        %1395 = vmatpush1.msra.mxu0 %v677
        %1396 = vmatprep.subr.mxu0 %v680
        %1397 = vmatpush1.msra.mxu0 %v679
        %1398 = vmatprep.subr.mxu0 %v682
        %1399 = vmatpush1.msra.mxu0 %v681
        %1400 = vmatprep.subr.mxu0 %v684
        %1401 = vmatpush1.msra.mxu0 %v683
        %1402 = vmatprep.subr.mxu0 %v686
        %1403 = vmatpush1.msra.mxu0 %v685
        %1404 = vmatprep.subr.mxu0 %v688
        %1405 = vmatpush1.msra.mxu0 %v687
        %1406 = vmatprep.subr.mxu0 %v690
        %1407 = vmatpush1.msra.mxu0 %v689
        %1408 = vmatprep.subr.mxu0 %v692
        %1409 = vmatpush1.msra.mxu0 %v691
        %1410 = vmatprep.subr.mxu0 %v694
        %1411 = vmatpush1.msra.mxu0 %v693
        %1412 = vmatprep.subr.mxu0 %v696
        %1413 = vmatpush1.msra.mxu0 %v695
        %1414 = vmatprep.mubr.f32.mxu0 %v896
        %1415 = vmatmul.mubr.f32.gmra.mrb[0].mxu0 %v888
        %v1416 = vpop.f32.mrb[0].mxu0
        %v1417 = vadd.f32 %v1346, %v1416
        %v1418 = vpop.f32.mrb[0].mxu0
        %v1419 = vadd.f32 %v1348, %v1418
        %1420 = vdwg.mxu0
        %1421 = vmatprep.subr.mxu0 %v698
        %1422 = vmatpush1.msra.mxu0 %v697
        %1423 = vmatprep.subr.mxu0 %v700
        %1424 = vmatpush1.msra.mxu0 %v699
        %1425 = vmatprep.subr.mxu0 %v702
        %1426 = vmatpush1.msra.mxu0 %v701
        %1427 = vmatprep.subr.mxu0 %v704
        %1428 = vmatpush1.msra.mxu0 %v703
        %1429 = vmatprep.subr.mxu0 %v706
        %1430 = vmatpush1.msra.mxu0 %v705
        %1431 = vmatprep.subr.mxu0 %v708
        %1432 = vmatpush1.msra.mxu0 %v707
        %1433 = vmatprep.subr.mxu0 %v710
        %1434 = vmatpush1.msra.mxu0 %v709
        %1435 = vmatprep.subr.mxu0 %v712
        %1436 = vmatpush1.msra.mxu0 %v711
        %1437 = vmatprep.subr.mxu0 %v714
        %1438 = vmatpush1.msra.mxu0 %v713
        %1439 = vmatprep.subr.mxu0 %v716
        %1440 = vmatpush1.msra.mxu0 %v715
        %1441 = vmatprep.subr.mxu0 %v718
        %1442 = vmatpush1.msra.mxu0 %v717
        %1443 = vmatprep.subr.mxu0 %v720
        %1444 = vmatpush1.msra.mxu0 %v719
        %1445 = vmatprep.subr.mxu0 %v722
        %1446 = vmatpush1.msra.mxu0 %v721
        %1447 = vmatprep.subr.mxu0 %v724
        %1448 = vmatpush1.msra.mxu0 %v723
        %1449 = vmatprep.subr.mxu0 %v726
        %1450 = vmatpush1.msra.mxu0 %v725
        %1451 = vmatprep.subr.mxu0 %v728
        %1452 = vmatpush1.msra.mxu0 %v727
        %1453 = vmatprep.subr.mxu0 %v730
        %1454 = vmatpush1.msra.mxu0 %v729
        %1455 = vmatprep.subr.mxu0 %v732
        %1456 = vmatpush1.msra.mxu0 %v731
        %1457 = vmatprep.subr.mxu0 %v734
        %1458 = vmatpush1.msra.mxu0 %v733
        %1459 = vmatprep.subr.mxu0 %v736
        %1460 = vmatpush1.msra.mxu0 %v735
        %1461 = vmatprep.subr.mxu0 %v738
        %1462 = vmatpush1.msra.mxu0 %v737
        %1463 = vmatprep.subr.mxu0 %v740
        %1464 = vmatpush1.msra.mxu0 %v739
        %1465 = vmatprep.subr.mxu0 %v742
        %1466 = vmatpush1.msra.mxu0 %v741
        %1467 = vmatprep.subr.mxu0 %v744
        %1468 = vmatpush1.msra.mxu0 %v743
        %1469 = vmatprep.subr.mxu0 %v746
        %1470 = vmatpush1.msra.mxu0 %v745
        %1471 = vmatprep.subr.mxu0 %v748
        %1472 = vmatpush1.msra.mxu0 %v747
        %1473 = vmatprep.subr.mxu0 %v750
        %1474 = vmatpush1.msra.mxu0 %v749
        %1475 = vmatprep.subr.mxu0 %v752
        %1476 = vmatpush1.msra.mxu0 %v751
        %1477 = vmatprep.subr.mxu0 %v754
        %1478 = vmatpush1.msra.mxu0 %v753
        %1479 = vmatprep.subr.mxu0 %v756
        %1480 = vmatpush1.msra.mxu0 %v755
        %1481 = vmatprep.subr.mxu0 %v758
        %1482 = vmatpush1.msra.mxu0 %v757
        %1483 = vmatprep.subr.mxu0 %v760
        %1484 = vmatpush1.msra.mxu0 %v759
        %1485 = vmatprep.mubr.f32.mxu0 %v897
        %1486 = vmatmul.mubr.f32.gmra.mrb[0].mxu0 %v895
        %v1487 = vpop.f32.mrb[0].mxu0
        %v1488 = vadd.f32 %v1417, %v1487
        %v1489 = vpop.f32.mrb[0].mxu0
        %v1490 = vadd.f32 %v1419, %v1489
        %1491 = vdwg.mxu0
        %1492 = vmatprep.subr.mxu0 %v762
        %1493 = vmatpush1.msra.mxu0 %v761
        %1494 = vmatprep.subr.mxu0 %v764
        %1495 = vmatpush1.msra.mxu0 %v763
        %1496 = vmatprep.subr.mxu0 %v766
        %1497 = vmatpush1.msra.mxu0 %v765
        %1498 = vmatprep.subr.mxu0 %v768
        %1499 = vmatpush1.msra.mxu0 %v767
        %1500 = vmatprep.subr.mxu0 %v770
        %1501 = vmatpush1.msra.mxu0 %v769
        %1502 = vmatprep.subr.mxu0 %v772
        %1503 = vmatpush1.msra.mxu0 %v771
        %1504 = vmatprep.subr.mxu0 %v774
        %1505 = vmatpush1.msra.mxu0 %v773
        %1506 = vmatprep.subr.mxu0 %v776
        %1507 = vmatpush1.msra.mxu0 %v775
        %1508 = vmatprep.subr.mxu0 %v778
        %1509 = vmatpush1.msra.mxu0 %v777
        %1510 = vmatprep.subr.mxu0 %v780
        %1511 = vmatpush1.msra.mxu0 %v779
        %1512 = vmatprep.subr.mxu0 %v782
        %1513 = vmatpush1.msra.mxu0 %v781
        %1514 = vmatprep.subr.mxu0 %v784
        %1515 = vmatpush1.msra.mxu0 %v783
        %1516 = vmatprep.subr.mxu0 %v786
        %1517 = vmatpush1.msra.mxu0 %v785
        %1518 = vmatprep.subr.mxu0 %v788
        %1519 = vmatpush1.msra.mxu0 %v787
        %1520 = vmatprep.subr.mxu0 %v790
        %1521 = vmatpush1.msra.mxu0 %v789
        %1522 = vmatprep.subr.mxu0 %v792
        %1523 = vmatpush1.msra.mxu0 %v791
        %1524 = vmatprep.subr.mxu0 %v794
        %1525 = vmatpush1.msra.mxu0 %v793
        %1526 = vmatprep.subr.mxu0 %v796
        %1527 = vmatpush1.msra.mxu0 %v795
        %1528 = vmatprep.subr.mxu0 %v798
        %1529 = vmatpush1.msra.mxu0 %v797
        %1530 = vmatprep.subr.mxu0 %v800
        %1531 = vmatpush1.msra.mxu0 %v799
        %1532 = vmatprep.subr.mxu0 %v802
        %1533 = vmatpush1.msra.mxu0 %v801
        %1534 = vmatprep.subr.mxu0 %v804
        %1535 = vmatpush1.msra.mxu0 %v803
        %1536 = vmatprep.subr.mxu0 %v806
        %1537 = vmatpush1.msra.mxu0 %v805
        %1538 = vmatprep.subr.mxu0 %v808
        %1539 = vmatpush1.msra.mxu0 %v807
        %1540 = vmatprep.subr.mxu0 %v810
        %1541 = vmatpush1.msra.mxu0 %v809
        %1542 = vmatprep.subr.mxu0 %v812
        %1543 = vmatpush1.msra.mxu0 %v811
        %1544 = vmatprep.subr.mxu0 %v814
        %1545 = vmatpush1.msra.mxu0 %v813
        %1546 = vmatprep.subr.mxu0 %v816
        %1547 = vmatpush1.msra.mxu0 %v815
        %1548 = vmatprep.subr.mxu0 %v818
        %1549 = vmatpush1.msra.mxu0 %v817
        %1550 = vmatprep.subr.mxu0 %v820
        %1551 = vmatpush1.msra.mxu0 %v819
        %1552 = vmatprep.subr.mxu0 %v822
        %1553 = vmatpush1.msra.mxu0 %v821
        %1554 = vmatprep.subr.mxu0 %v824
        %1555 = vmatpush1.msra.mxu0 %v823
        %1556 = vmatprep.mubr.f32.mxu0 %v905
        %1557 = vmatmul.mubr.f32.gmra.mrb[0].mxu0 %v904
        %v1558 = vpop.f32.mrb[0].mxu0
        %v1559 = vadd.f32 %v1488, %v1558
        %v1560 = vpop.f32.mrb[0].mxu0
        %v1561 = vadd.f32 %v1490, %v1560
        %1562 = vdwg.mxu0
        %v1565 = vcombine.low %v1559, %v1561
        %v1567 = vunpack.c.l.s4 1983009808
        %v1568 = vunpack.c.0.s8 %v1567
        %v1569 = vlaneseq
        %v1570 = vshrl.u32 %v1569, 7
        %v1571 = vsub.s32 %v1568, %v1570
        %v1572 = vrot.slane %v1565, %v1571
        %v1574 = vadd.f32 %v243, %v1572
        %1575 = vst [vmem:[#allocation2] sm:$0xf] %v1574
        %p1576 = scmp.eq.s32.totalorder %s17, 7
        // Predicated region
        $region45: #{feature_extractor_forward.13} parent=39 // pred_check
          %p1577 = pneg %p1576
        $region46: #{feature_extractor_forward.13} parent=39 // pred_check_branch
          %1579 = sbr.rel (%p1577) target = $region48
        $region47: #{feature_extractor_forward.13} parent=39 // pred_region
          %v1580 = vld [vmem:[#allocation2] sm:$0xf]
          %v1581 = vld [vmem:[%s2] sm:$0x3]
          %v1583 = vlaneseq
          %v1584 = vshrl.u32 %v1583, 7
          %v1585 = vsub.s32 0, %v1584
          %v1586 = vrot.slane %v1581, %v1585
          %v1587 = vlaneseq
          %v1588 = vshrl.u32 %v1587, 7
          %v1589 = vsub.s32 1, %v1588
          %v1590 = vrot.slane %v1581, %v1589
          %v1591 = vcombine.low %v1586, %v1590
          %v1593 = vunpack.c.l.s4 1983009808
          %v1594 = vunpack.c.0.s8 %v1593
          %v1595 = vlaneseq
          %v1596 = vshrl.u32 %v1595, 7
          %v1597 = vsub.s32 %v1594, %v1596
          %v1598 = vrot.slane %v1591, %v1597
          %v1600 = vadd.f32 %v1580, %v1598
          %v1601 = vmax.f32 %v1600, 0.0
          %v1602 = vld [vmem:[%s3] sm:$0xff]
          %v1603 = vld [vmem:[%s3 + $0x8] sm:$0xff]
          %v1604 = vld [vmem:[%s3 + $0x10] sm:$0xff]
          %v1605 = vld [vmem:[%s3 + $0x18] sm:$0xff]
          %v1606 = vld [vmem:[%s3 + $0x20] sm:$0xff]
          %v1607 = vld [vmem:[%s3 + $0x28] sm:$0xff]
          %v1608 = vld [vmem:[%s3 + $0x30] sm:$0xff]
          %v1609 = vld [vmem:[%s3 + $0x38] sm:$0xff]
          %v1610 = vld [vmem:[%s3 + $0x40] sm:$0xff]
          %v1611 = vld [vmem:[%s3 + $0x48] sm:$0xff]
          %v1612 = vld [vmem:[%s3 + $0x50] sm:$0xff]
          %v1613 = vld [vmem:[%s3 + $0x58] sm:$0xff]
          %v1614 = vld [vmem:[%s3 + $0x60] sm:$0xff]
          %v1615 = vld [vmem:[%s3 + $0x68] sm:$0xff]
          %v1616 = vld [vmem:[%s3 + $0x70] sm:$0xff]
          %v1617 = vld [vmem:[%s3 + $0x78] sm:$0xff]
          %v1618 = vld [vmem:[%s3 + $0x80] sm:$0xff]
          %v1619 = vld [vmem:[%s3 + $0x88] sm:$0xff]
          %v1620 = vld [vmem:[%s3 + $0x90] sm:$0xff]
          %v1621 = vld [vmem:[%s3 + $0x98] sm:$0xff]
          %v1622 = vld [vmem:[%s3 + $0xa0] sm:$0xff]
          %v1623 = vld [vmem:[%s3 + $0xa8] sm:$0xff]
          %v1624 = vld [vmem:[%s3 + $0xb0] sm:$0xff]
          %v1625 = vld [vmem:[%s3 + $0xb8] sm:$0xff]
          %v1626 = vld [vmem:[%s3 + $0xc0] sm:$0xff]
          %v1627 = vld [vmem:[%s3 + $0xc8] sm:$0xff]
          %v1628 = vld [vmem:[%s3 + $0xd0] sm:$0xff]
          %v1629 = vld [vmem:[%s3 + $0xd8] sm:$0xff]
          %v1630 = vld [vmem:[%s3 + $0xe0] sm:$0xff]
          %v1631 = vld [vmem:[%s3 + $0xe8] sm:$0xff]
          %v1632 = vld [vmem:[%s3 + $0xf0] sm:$0xff]
          %v1633 = vld [vmem:[%s3 + $0xf8] sm:$0xff]
          %v1634 = vld [vmem:[%s4] sm:$0x1]
          %v1636 = vlaneseq
          %v1637 = vshrl.u32 %v1636, 7
          %v1638 = vsub.s32 0, %v1637
          %v1639 = vrot.slane %v1634, %v1638
          %v1643 = vunpack.c.l.s4 1983009808
          %v1644 = vunpack.c.0.s8 %v1643
          %v1645 = vlaneseq
          %v1646 = vshrl.u32 %v1645, 7
          %v1647 = vsub.s32 %v1644, %v1646
          %v1648 = vrot.slane %v1601, %v1647
          %v1649 = vcombine.high %v1648, %v1648
          %1652 = vmatprep.subr.mxu0 0.0
          %1653 = vmatpush1.msra.mxu0 %v1602
          %1654 = vmatprep.subr.mxu0 0.0
          %1655 = vmatpush1.msra.mxu0 %v1603
          %1656 = vmatprep.subr.mxu0 0.0
          %1657 = vmatpush1.msra.mxu0 %v1604
          %1658 = vmatprep.subr.mxu0 0.0
          %1659 = vmatpush1.msra.mxu0 %v1605
          %1660 = vmatprep.subr.mxu0 0.0
          %1661 = vmatpush1.msra.mxu0 %v1606
          %1662 = vmatprep.subr.mxu0 0.0
          %1663 = vmatpush1.msra.mxu0 %v1607
          %1664 = vmatprep.subr.mxu0 0.0
          %1665 = vmatpush1.msra.mxu0 %v1608
          %1666 = vmatprep.subr.mxu0 0.0
          %1667 = vmatpush1.msra.mxu0 %v1609
          %1668 = vmatprep.subr.mxu0 0.0
          %1669 = vmatpush1.msra.mxu0 %v1610
          %1670 = vmatprep.subr.mxu0 0.0
          %1671 = vmatpush1.msra.mxu0 %v1611
          %1672 = vmatprep.subr.mxu0 0.0
          %1673 = vmatpush1.msra.mxu0 %v1612
          %1674 = vmatprep.subr.mxu0 0.0
          %1675 = vmatpush1.msra.mxu0 %v1613
          %1676 = vmatprep.subr.mxu0 0.0
          %1677 = vmatpush1.msra.mxu0 %v1614
          %1678 = vmatprep.subr.mxu0 0.0
          %1679 = vmatpush1.msra.mxu0 %v1615
          %1680 = vmatprep.subr.mxu0 0.0
          %1681 = vmatpush1.msra.mxu0 %v1616
          %1682 = vmatprep.subr.mxu0 0.0
          %1683 = vmatpush1.msra.mxu0 %v1617
          %1684 = vmatprep.subr.mxu0 0.0
          %1685 = vmatpush1.msra.mxu0 %v1618
          %1686 = vmatprep.subr.mxu0 0.0
          %1687 = vmatpush1.msra.mxu0 %v1619
          %1688 = vmatprep.subr.mxu0 0.0
          %1689 = vmatpush1.msra.mxu0 %v1620
          %1690 = vmatprep.subr.mxu0 0.0
          %1691 = vmatpush1.msra.mxu0 %v1621
          %1692 = vmatprep.subr.mxu0 0.0
          %1693 = vmatpush1.msra.mxu0 %v1622
          %1694 = vmatprep.subr.mxu0 0.0
          %1695 = vmatpush1.msra.mxu0 %v1623
          %1696 = vmatprep.subr.mxu0 0.0
          %1697 = vmatpush1.msra.mxu0 %v1624
          %1698 = vmatprep.subr.mxu0 0.0
          %1699 = vmatpush1.msra.mxu0 %v1625
          %1700 = vmatprep.subr.mxu0 0.0
          %1701 = vmatpush1.msra.mxu0 %v1626
          %1702 = vmatprep.subr.mxu0 0.0
          %1703 = vmatpush1.msra.mxu0 %v1627
          %1704 = vmatprep.subr.mxu0 0.0
          %1705 = vmatpush1.msra.mxu0 %v1628
          %1706 = vmatprep.subr.mxu0 0.0
          %1707 = vmatpush1.msra.mxu0 %v1629
          %1708 = vmatprep.subr.mxu0 0.0
          %1709 = vmatpush1.msra.mxu0 %v1630
          %1710 = vmatprep.subr.mxu0 0.0
          %1711 = vmatpush1.msra.mxu0 %v1631
          %1712 = vmatprep.subr.mxu0 0.0
          %1713 = vmatpush1.msra.mxu0 %v1632
          %1714 = vmatprep.subr.mxu0 0.0
          %1715 = vmatpush1.msra.mxu0 %v1633
          %1716 = vmatprep.mubr.f32.mxu0 %v1649
          %1717 = vmatmul.mubr.f32.gmra.mrb[0].mxu0 %v1648
          %v1718 = vpop.f32.mrb[0].mxu0
          %v1719 = vadd.f32 %v1639, %v1718
          %v1720 = vpop.f32.mrb[0].mxu0
          %1721 = vdwg.mxu0
          %vm1722 = vcmask 58368
          %1723 = vst.msk [vmem:[#allocation3] sm:$0x3] %vm1722, %v1719
        $region48: #{feature_extractor_forward.13} parent=39 // pred_fallthru
          _
        // Predicated region
        $region49: #{feature_extractor_forward.13} parent=39 // pred_check
          %p1724 = pneg %p145
        $region50: #{feature_extractor_forward.13} parent=39 // pred_check_branch
          %1726 = sbr.rel (%p1724) target = $region52
        $region51: #{feature_extractor_forward.13} parent=39 // pred_region
          %s1728 = ssub.s32 32, 32
          %1729 = vsyncadd [#allocation4], %s1728
          %s1731 = sshll.u32 [#allocation3], 4
          %s1732 = int_to_ptr.vmem [resolvable:$true] %s1731
          %1734 = dma.vmem_to_hbm [thread:$0]  %s1732, 32, %s5, [#allocation4]
        $region52: #{feature_extractor_forward.13} parent=39 // pred_fallthru
          _
        // Predicated region
        $region53: #{feature_extractor_forward.13} parent=39 // pred_check
          %p1735 = pneg %p145
        $region54: #{feature_extractor_forward.13} parent=39 // pred_check_branch
          %1737 = sbr.rel (%p1735) target = $region56
        $region55: #{feature_extractor_forward.13} parent=39 // pred_region
          %1738 = dma.done [#allocation4], 32
        $region56: #{feature_extractor_forward.13} parent=39 // pred_fallthru
          _
      $region40: #{feature_extractor_forward.13} parent=5 // pred_fallthru
        _
      %p1739 = scmp.le.s32.totalorder 2, %s12
      // Predicated region
      $region57: #{feature_extractor_forward.13} parent=5 // pred_check
        %p1740 = pneg %p1739
      $region58: #{feature_extractor_forward.13} parent=5 // pred_check_branch
        %1742 = sbr.rel (%p1740) target = $region60
      $region59: #{feature_extractor_forward.13} parent=5 // pred_region
        %s1743 = ssub.s32 %s12, 2
      $region60: #{feature_extractor_forward.13} parent=5 // pred_fallthru
        _
    $region6: #{feature_extractor_forward.13} parent=1 // loop_footer
      %s16 = sadd.s32 1, %s12
    $region7: #{feature_extractor_forward.13} parent=1 // loop_footer_branch
      %11 = sbr.rel target = $region3
    $region8: #{feature_extractor_forward.13} parent=1 // loop_exit
      _
    %1744 = vsyncpa [#allocation4], 1
    %s1745 = scalar_lea.sflag [#allocation4], 1
    %1746 = vsyncpa %s1745, 1

</llo_original>
